<compile_context>
chip_gen: v5e
topology: v5e:2x2
jax: 0.10.0
libtpu: 0.0.40
codegen_flags: <defaults>
</compile_context>

<pallas_src>
import math

import jax
import jax.numpy as jnp
from jax.experimental import pallas as pl
from jax.experimental.pallas import tpu as pltpu

HEADS = 8
NUM_BUCKETS = 32
MAX_DISTANCE = 128

# Cap on flattened elements per grid step (f32 one-hot = 32 * cap * 4 B = 8 MiB).
_TILE_ELEMS_CAP = 65536


def _make_kernel(n_pad, tile_rows):
    half = NUM_BUCKETS // 2            # num_buckets //= 2 in the torch code
    max_exact = half // 2
    log_scale = 1.0 / math.log(MAX_DISTANCE / max_exact)
    shift = n_pad.bit_length() - 1     # log2(n_pad); n_pad is a power of two
    col_mask = n_pad - 1
    t_len = tile_rows * n_pad          # flattened elements handled per grid step

    def kernel(table_t_ref, out_ref):
        i0 = pl.program_id(0) * tile_rows

        # Flat index t over this block's (tile_rows, n_pad) slab:
        # row r = t >> shift, col c = t & mask; q index i = i0 + r, k index j = c.
        # rel_pos = j - i, and torch's n = -rel_pos = i - j.
        t = jax.lax.broadcasted_iota(jnp.int32, (1, t_len), 1)
        r = t >> shift
        c = t & col_mask
        n_pos = (r + i0) - c

        ret = jnp.where(n_pos < 0, half, 0).astype(jnp.int32)
        n_abs = jnp.abs(n_pos)
        is_small = n_abs < max_exact
        # guard log(0); guarded values are masked out by `is_small` anyway
        n_safe = jnp.maximum(n_abs, 1).astype(jnp.float32)
        val_if_large_f = (jnp.log(n_safe * (1.0 / max_exact))
                          * (log_scale * (half - max_exact)))
        # torch .long() truncates toward zero; jnp float->int cast does the same
        val_if_large = max_exact + val_if_large_f.astype(jnp.int32)
        val_if_large = jnp.minimum(val_if_large, half - 1)
        bucket = ret + jnp.where(is_small, n_abs, val_if_large)   # (1, t_len) int32

        # Embedding gather as a heads-major one-hot matmul on the MXU:
        # (HEADS, NUM_BUCKETS) @ (NUM_BUCKETS, t_len) -> (HEADS, t_len), lane dense.
        b_iota = jax.lax.broadcasted_iota(jnp.int32, (NUM_BUCKETS, t_len), 0)
        onehot = (bucket == b_iota).astype(jnp.float32)

        out_ref[...] = jax.lax.dot_general(
            table_t_ref[...], onehot,
            (((1,), (0,)), ((), ())),
            preferred_element_type=jnp.float32)

    return kernel


def relative_position_bias(table, n):
    """table: (NUM_BUCKETS, HEADS) float32 embedding weight.
    Returns (HEADS, n, n) float32 bias, matching the PyTorch module forward."""
    assert table.shape == (NUM_BUCKETS, HEADS)
    # Pad to a power of two >= 128: lane-dense unmasked stores, shift/mask index math.
    n_pad = max(128, 1 << (int(n) - 1).bit_length())
    tile_rows = max(1, min(n_pad, _TILE_ELEMS_CAP // n_pad))
    grid = (n_pad // tile_rows,)

    table_t = jnp.asarray(table, jnp.float32).T            # (HEADS, NUM_BUCKETS)
    kernel = _make_kernel(n_pad, tile_rows)

    out_flat = pl.pallas_call(
        kernel,
        out_shape=jax.ShapeDtypeStruct((HEADS, n_pad * n_pad), jnp.float32),
        grid_spec=pltpu.PrefetchScalarGridSpec(
            num_scalar_prefetch=0,
            grid=grid,
            in_specs=[pl.BlockSpec((HEADS, NUM_BUCKETS), lambda i: (0, 0))],
            out_specs=pl.BlockSpec((HEADS, tile_rows * n_pad), lambda i: (0, i)),
        ),
        compiler_params=pltpu.CompilerParams(
            dimension_semantics=("parallel",),
            vmem_limit_bytes=48 * 1024 * 1024),
    )(table_t)

    out = out_flat.reshape(HEADS, n_pad, n_pad)             # free, row-major metadata
    if n_pad != n:
        out = out[:, :n, :n]
    return out


def _reference(table, n):
    """Plain-JAX reference mirroring the PyTorch forward."""
    q = jnp.arange(n)
    k = jnp.arange(n)
    rel = k[None, :] - q[:, None]
    npos = -rel
    half = NUM_BUCKETS // 2
    ret = jnp.where(npos < 0, half, 0)
    nabs = jnp.abs(npos)
    max_exact = half // 2
    is_small = nabs < max_exact
    nsafe = jnp.maximum(nabs, 1).astype(jnp.float32)
    vlarge = max_exact + (jnp.log(nsafe / max_exact)
                          / math.log(MAX_DISTANCE / max_exact)
                          * (half - max_exact)).astype(jnp.int32)
    vlarge = jnp.minimum(vlarge, half - 1)
    bucket = ret + jnp.where(is_small, nabs, vlarge)
    vals = table[bucket]                       # (n, n, heads)
    return jnp.transpose(vals, (2, 0, 1))      # (heads, n, n)


if __name__ == "__main__":
    key = jax.random.PRNGKey(0)
    # nn.Embedding(num_buckets, heads) weight ~ N(0, 1), deterministic init
    table = jax.random.normal(key, (NUM_BUCKETS, HEADS), dtype=jnp.float32)

    n = 8  # sequence length
    out = relative_position_bias(table, n)
    out = jax.block_until_ready(out)

    ref = _reference(table, n)
    assert out.shape == (HEADS, n, n)
    assert jnp.allclose(out, ref, atol=1e-5), "mismatch vs reference"

    print("KERNEL_OK")
</pallas_src>

<mosaic_0001>
module attributes {stable_mosaic.version = 11 : i64} {
  func.func @kernel(%arg0: i32, %arg1: memref<8x32xf32, #tpu.memory_space<vmem>>, %arg2: memref<8x16384xf32, #tpu.memory_space<vmem>>) attributes {dimension_semantics = [#tpu.dimension_semantics<parallel>], iteration_bounds = array<i64: 1>, scalar_prefetch = 0 : i64, scratch_operands = 0 : i64, tpu.core_type = #tpu.core_type<tc>, window_params = [{pipeline_mode = #tpu.pipeline_mode<synchronous>, transform_indices = @transform_0, window_bounds = array<i64: 8, 32>}, {transform_indices = @transform_1, window_bounds = array<i64: 8, 16384>}]} {
    %c128_i32 = arith.constant 128 : i32
    %0 = arith.muli %arg0, %c128_i32 : i32
    %1 = tpu.iota {dimensions = array<i32: 1>} : vector<1x16384xi32>
    %c7_i32 = arith.constant 7 : i32
    %2 = vector.broadcast %c7_i32 : i32 to vector<1x16384xi32>
    %3 = arith.shrsi %1, %2 : vector<1x16384xi32>
    %c127_i32 = arith.constant 127 : i32
    %4 = vector.broadcast %c127_i32 : i32 to vector<1x16384xi32>
    %5 = arith.andi %1, %4 : vector<1x16384xi32>
    %6 = vector.broadcast %0 : i32 to vector<1x16384xi32>
    %7 = arith.addi %3, %6 : vector<1x16384xi32>
    %8 = arith.subi %7, %5 : vector<1x16384xi32>
    %c0_i32 = arith.constant 0 : i32
    %9 = vector.broadcast %c0_i32 : i32 to vector<1x16384xi32>
    %10 = arith.cmpi slt, %8, %9 : vector<1x16384xi32>
    %c16_i32 = arith.constant 16 : i32
    %c0_i32_0 = arith.constant 0 : i32
    %11 = vector.broadcast %c16_i32 : i32 to vector<1x16384xi32>
    %12 = vector.broadcast %c0_i32_0 : i32 to vector<1x16384xi32>
    %13 = arith.select %10, %11, %12 : vector<1x16384xi1>, vector<1x16384xi32>
    %14 = math.absi %8 : vector<1x16384xi32>
    %c8_i32 = arith.constant 8 : i32
    %15 = vector.broadcast %c8_i32 : i32 to vector<1x16384xi32>
    %16 = arith.cmpi slt, %14, %15 : vector<1x16384xi32>
    %c1_i32 = arith.constant 1 : i32
    %17 = vector.broadcast %c1_i32 : i32 to vector<1x16384xi32>
    %18 = arith.maxsi %14, %17 : vector<1x16384xi32>
    %19 = arith.sitofp %18 : vector<1x16384xi32> to vector<1x16384xf32>
    %cst = arith.constant 1.250000e-01 : f32
    %20 = vector.broadcast %cst : f32 to vector<1x16384xf32>
    %21 = arith.mulf %19, %20 : vector<1x16384xf32>
    %22 = math.log %21 : vector<1x16384xf32>
    %cst_1 = arith.constant 2.885390e+00 : f32
    %23 = vector.broadcast %cst_1 : f32 to vector<1x16384xf32>
    %24 = arith.mulf %22, %23 : vector<1x16384xf32>
    %25 = arith.fptosi %24 : vector<1x16384xf32> to vector<1x16384xi32>
    %c8_i32_2 = arith.constant 8 : i32
    %26 = vector.broadcast %c8_i32_2 : i32 to vector<1x16384xi32>
    %27 = arith.addi %26, %25 : vector<1x16384xi32>
    %c15_i32 = arith.constant 15 : i32
    %28 = vector.broadcast %c15_i32 : i32 to vector<1x16384xi32>
    %29 = arith.minsi %27, %28 : vector<1x16384xi32>
    %30 = arith.select %16, %14, %29 : vector<1x16384xi1>, vector<1x16384xi32>
    %31 = arith.addi %13, %30 : vector<1x16384xi32>
    %32 = tpu.iota {dimensions = array<i32: 0>} : vector<32x16384xi32>
    %33 = vector.broadcast %31 : vector<1x16384xi32> to vector<32x16384xi32>
    %34 = arith.cmpi eq, %33, %32 : vector<32x16384xi32>
    %35 = arith.extui %34 : vector<32x16384xi1> to vector<32x16384xi32>
    %36 = arith.sitofp %35 : vector<32x16384xi32> to vector<32x16384xf32>
    %c0 = arith.constant 0 : index
    %c0_3 = arith.constant 0 : index
    %37 = vector.load %arg1[%c0, %c0_3] : memref<8x32xf32, #tpu.memory_space<vmem>>, vector<8x32xf32>
    %cst_4 = arith.constant dense<0.000000e+00> : vector<8x16384xf32>
    %38 = tpu.matmul %37, %36, %cst_4 {dimension_numbers = #tpu.dot_dimension_numbers<[1], [0], [0], [1], [0, 0, 1, 1], [], []>} : vector<8x32xf32>, vector<32x16384xf32>, vector<8x16384xf32> -> vector<8x16384xf32>
    %c0_5 = arith.constant 0 : index
    %c0_6 = arith.constant 0 : index
    %39 = vector.load %arg2[%c0_5, %c0_6] : memref<8x16384xf32, #tpu.memory_space<vmem>>, vector<8x16384xf32>
    tpu.vector_store %arg2[%c0_5, %c0_6], %38 {strides = array<i32>} : memref<8x16384xf32, #tpu.memory_space<vmem>>, vector<8x16384xf32>,
    return
  }
  func.func @transform_0(%arg0: i32) -> (i32, i32) {
    %c0_i32 = arith.constant 0 : i32
    %c0_i32_0 = arith.constant 0 : i32
    %c0_i32_1 = arith.constant 0 : i32
    return %c0_i32, %c0_i32_0 : i32, i32
  }
  func.func @transform_1(%arg0: i32) -> (i32, i32) {
    %c0_i32 = arith.constant 0 : i32
    %c0_i32_0 = arith.constant 0 : i32
    return %c0_i32, %arg0 : i32, i32
  }
}

</mosaic_0001>

<llo_original>
// kernel: tpu_custom_call.1
$region0: #{tpu_custom_call.1}
  #allocation0 [shape = 'u32[]', space=smem, size = 0x4, offset = 0x4, fixed_abs, tag = 'smem constant byte address 0x4 - core index']
  #allocation1 [shape = 'u32[72,128]{1,0:T(1,128)}', space=vmem, size = 0x9000, scoped, tag = 'internal scratch']
  %s0 = inlined_call_operand.hbm [shape: f32[8,32], index: 0, kind: input, shape index: {}]
  %s1 = inlined_call_operand.hbm [shape: f32[8,16384], index: 1, kind: output, shape index: {}]
  %s2 = sld [smem:[#allocation0]]
  $region18: #{tpu_custom_call.1} parent=0
    _
  %s4 = ssub.s32 1, %s2
  %s5 = scalar_select 0, %s4, %s2
  $region1: #{tpu_custom_call.1} parent=0
    #allocation2 [shape = 'u8[4096]{0}', space=vmem, size = 0x1000, scoped, tag = 'input window, operand 0, single buffered']
    #allocation3 [shape = 's32[1]{0}', space=sflag, size = 0x4, scoped, tag = 'scoped memory for tpu_custom_call.1']
    #allocation4 [shape = 's32[1]{0}', space=sflag, size = 0x4, scoped, tag = 'scoped memory for tpu_custom_call.1']
    #allocation5 [shape = 'u8[524288]{0}', space=vmem, size = 0x80000, scoped, tag = 'output window, operand 0, single buffered']
    %6 = vsyncpa [#allocation3], 0
    %7 = vsyncpa [#allocation4], 0
    // Predicated region
    $region2: #{tpu_custom_call.1} parent=1 // pred_check
      _
    $region3: #{tpu_custom_call.1} parent=1 // pred_check_branch
      %9 = sbr.rel (0) target = $region5
    $region4: #{tpu_custom_call.1} parent=1 // pred_region
      %11 = vsyncadd [#allocation3], 0
      %s13 = sshll.u32 %s0, 4
      %s14 = int_to_ptr.hbm [resolvable:$true] %s13
      %s15 = sshll.u32 [#allocation2], 4
      %s16 = int_to_ptr.vmem [resolvable:$true] %s15
      %18 = dma.hbm_to_vmem [thread:$0]  %s14, 128, %s16, [#allocation3]
    $region5: #{tpu_custom_call.1} parent=1 // pred_fallthru
      _
    // Predicated region
    $region6: #{tpu_custom_call.1} parent=1 // pred_check
      _
    $region7: #{tpu_custom_call.1} parent=1 // pred_check_branch
      %20 = sbr.rel (0) target = $region9
    $region8: #{tpu_custom_call.1} parent=1 // pred_region
      %22 = dma.done [#allocation3], 128
    $region9: #{tpu_custom_call.1} parent=1 // pred_fallthru
      _
    %s23 = smul.u32 0, 128
    %v24 = vlaneseq
    %v25 = vand.u32 %v24, 127
    %v26 = vadd.s32 %v25, 128
    %v27 = vadd.s32 %v25, 256
    %v28 = vadd.s32 %v25, 384
    %v29 = vadd.s32 %v25, 512
    %v30 = vadd.s32 %v25, 640
    %v31 = vadd.s32 %v25, 768
    %v32 = vadd.s32 %v25, 896
    %v33 = vadd.s32 %v25, 1024
    %v34 = vadd.s32 %v25, 1152
    %v35 = vadd.s32 %v25, 1280
    %v36 = vadd.s32 %v25, 1408
    %v37 = vadd.s32 %v25, 1536
    %v38 = vadd.s32 %v25, 1664
    %v39 = vadd.s32 %v25, 1792
    %v40 = vadd.s32 %v25, 1920
    %v41 = vadd.s32 %v25, 2048
    %v42 = vadd.s32 %v25, 2176
    %v43 = vadd.s32 %v25, 2304
    %v44 = vadd.s32 %v25, 2432
    %v45 = vadd.s32 %v25, 2560
    %v46 = vadd.s32 %v25, 2688
    %v47 = vadd.s32 %v25, 2816
    %v48 = vadd.s32 %v25, 2944
    %v49 = vadd.s32 %v25, 3072
    %v50 = vadd.s32 %v25, 3200
    %v51 = vadd.s32 %v25, 3328
    %v52 = vadd.s32 %v25, 3456
    %v53 = vadd.s32 %v25, 3584
    %v54 = vadd.s32 %v25, 3712
    %v55 = vadd.s32 %v25, 3840
    %v56 = vadd.s32 %v25, 3968
    %v57 = vadd.s32 %v25, 4096
    %v58 = vadd.s32 %v25, 4224
    %v59 = vadd.s32 %v25, 4352
    %v60 = vadd.s32 %v25, 4480
    %v61 = vadd.s32 %v25, 4608
    %v62 = vadd.s32 %v25, 4736
    %v63 = vadd.s32 %v25, 4864
    %v64 = vadd.s32 %v25, 4992
    %v65 = vadd.s32 %v25, 5120
    %v66 = vadd.s32 %v25, 5248
    %v67 = vadd.s32 %v25, 5376
    %v68 = vadd.s32 %v25, 5504
    %v69 = vadd.s32 %v25, 5632
    %v70 = vadd.s32 %v25, 5760
    %v71 = vadd.s32 %v25, 5888
    %v72 = vadd.s32 %v25, 6016
    %v73 = vadd.s32 %v25, 6144
    %v74 = vadd.s32 %v25, 6272
    %v75 = vadd.s32 %v25, 6400
    %v76 = vadd.s32 %v25, 6528
    %v77 = vadd.s32 %v25, 6656
    %v78 = vadd.s32 %v25, 6784
    %v79 = vadd.s32 %v25, 6912
    %v80 = vadd.s32 %v25, 7040
    %v81 = vadd.s32 %v25, 7168
    %v82 = vadd.s32 %v25, 7296
    %v83 = vadd.s32 %v25, 7424
    %v84 = vadd.s32 %v25, 7552
    %v85 = vadd.s32 %v25, 7680
    %v86 = vadd.s32 %v25, 7808
    %v87 = vadd.s32 %v25, 7936
    %v88 = vadd.s32 %v25, 8064
    %v89 = vadd.s32 %v25, 8192
    %v90 = vadd.s32 %v25, 8320
    %v91 = vadd.s32 %v25, 8448
    %v92 = vadd.s32 %v25, 8576
    %v93 = vadd.s32 %v25, 8704
    %v94 = vadd.s32 %v25, 8832
    %v95 = vadd.s32 %v25, 8960
    %v96 = vadd.s32 %v25, 9088
    %v97 = vadd.s32 %v25, 9216
    %v98 = vadd.s32 %v25, 9344
    %v99 = vadd.s32 %v25, 9472
    %v100 = vadd.s32 %v25, 9600
    %v101 = vadd.s32 %v25, 9728
    %v102 = vadd.s32 %v25, 9856
    %v103 = vadd.s32 %v25, 9984
    %v104 = vadd.s32 %v25, 10112
    %v105 = vadd.s32 %v25, 10240
    %v106 = vadd.s32 %v25, 10368
    %v107 = vadd.s32 %v25, 10496
    %v108 = vadd.s32 %v25, 10624
    %v109 = vadd.s32 %v25, 10752
    %v110 = vadd.s32 %v25, 10880
    %v111 = vadd.s32 %v25, 11008
    %v112 = vadd.s32 %v25, 11136
    %v113 = vadd.s32 %v25, 11264
    %v114 = vadd.s32 %v25, 11392
    %v115 = vadd.s32 %v25, 11520
    %v116 = vadd.s32 %v25, 11648
    %v117 = vadd.s32 %v25, 11776
    %v118 = vadd.s32 %v25, 11904
    %v119 = vadd.s32 %v25, 12032
    %v120 = vadd.s32 %v25, 12160
    %v121 = vadd.s32 %v25, 12288
    %v122 = vadd.s32 %v25, 12416
    %v123 = vadd.s32 %v25, 12544
    %v124 = vadd.s32 %v25, 12672
    %v125 = vadd.s32 %v25, 12800
    %v126 = vadd.s32 %v25, 12928
    %v127 = vadd.s32 %v25, 13056
    %v128 = vadd.s32 %v25, 13184
    %v129 = vadd.s32 %v25, 13312
    %v130 = vadd.s32 %v25, 13440
    %v131 = vadd.s32 %v25, 13568
    %v132 = vadd.s32 %v25, 13696
    %v133 = vadd.s32 %v25, 13824
    %v134 = vadd.s32 %v25, 13952
    %v135 = vadd.s32 %v25, 14080
    %v136 = vadd.s32 %v25, 14208
    %v137 = vadd.s32 %v25, 14336
    %v138 = vadd.s32 %v25, 14464
    %v139 = vadd.s32 %v25, 14592
    %v140 = vadd.s32 %v25, 14720
    %v141 = vadd.s32 %v25, 14848
    %v142 = vadd.s32 %v25, 14976
    %v143 = vadd.s32 %v25, 15104
    %v144 = vadd.s32 %v25, 15232
    %v145 = vadd.s32 %v25, 15360
    %v146 = vadd.s32 %v25, 15488
    %v147 = vadd.s32 %v25, 15616
    %v148 = vadd.s32 %v25, 15744
    %v149 = vadd.s32 %v25, 15872
    %v150 = vadd.s32 %v25, 16000
    %v151 = vadd.s32 %v25, 16128
    %v152 = vadd.s32 %v25, 16256
    %v153 = vshra.s32 %v25, 7
    %v154 = vshra.s32 %v26, 7
    %v155 = vshra.s32 %v27, 7
    %v156 = vshra.s32 %v28, 7
    %v157 = vshra.s32 %v29, 7
    %v158 = vshra.s32 %v30, 7
    %v159 = vshra.s32 %v31, 7
    %v160 = vshra.s32 %v32, 7
    %v161 = vshra.s32 %v33, 7
    %v162 = vshra.s32 %v34, 7
    %v163 = vshra.s32 %v35, 7
    %v164 = vshra.s32 %v36, 7
    %v165 = vshra.s32 %v37, 7
    %v166 = vshra.s32 %v38, 7
    %v167 = vshra.s32 %v39, 7
    %v168 = vshra.s32 %v40, 7
    %v169 = vshra.s32 %v41, 7
    %v170 = vshra.s32 %v42, 7
    %v171 = vshra.s32 %v43, 7
    %v172 = vshra.s32 %v44, 7
    %v173 = vshra.s32 %v45, 7
    %v174 = vshra.s32 %v46, 7
    %v175 = vshra.s32 %v47, 7
    %v176 = vshra.s32 %v48, 7
    %v177 = vshra.s32 %v49, 7
    %v178 = vshra.s32 %v50, 7
    %v179 = vshra.s32 %v51, 7
    %v180 = vshra.s32 %v52, 7
    %v181 = vshra.s32 %v53, 7
    %v182 = vshra.s32 %v54, 7
    %v183 = vshra.s32 %v55, 7
    %v184 = vshra.s32 %v56, 7
    %v185 = vshra.s32 %v57, 7
    %v186 = vshra.s32 %v58, 7
    %v187 = vshra.s32 %v59, 7
    %v188 = vshra.s32 %v60, 7
    %v189 = vshra.s32 %v61, 7
    %v190 = vshra.s32 %v62, 7
    %v191 = vshra.s32 %v63, 7
    %v192 = vshra.s32 %v64, 7
    %v193 = vshra.s32 %v65, 7
    %v194 = vshra.s32 %v66, 7
    %v195 = vshra.s32 %v67, 7
    %v196 = vshra.s32 %v68, 7
    %v197 = vshra.s32 %v69, 7
    %v198 = vshra.s32 %v70, 7
    %v199 = vshra.s32 %v71, 7
    %v200 = vshra.s32 %v72, 7
    %v201 = vshra.s32 %v73, 7
    %v202 = vshra.s32 %v74, 7
    %v203 = vshra.s32 %v75, 7
    %v204 = vshra.s32 %v76, 7
    %v205 = vshra.s32 %v77, 7
    %v206 = vshra.s32 %v78, 7
    %v207 = vshra.s32 %v79, 7
    %v208 = vshra.s32 %v80, 7
    %v209 = vshra.s32 %v81, 7
    %v210 = vshra.s32 %v82, 7
    %v211 = vshra.s32 %v83, 7
    %v212 = vshra.s32 %v84, 7
    %v213 = vshra.s32 %v85, 7
    %v214 = vshra.s32 %v86, 7
    %v215 = vshra.s32 %v87, 7
    %v216 = vshra.s32 %v88, 7
    %v217 = vshra.s32 %v89, 7
    %v218 = vshra.s32 %v90, 7
    %v219 = vshra.s32 %v91, 7
    %v220 = vshra.s32 %v92, 7
    %v221 = vshra.s32 %v93, 7
    %v222 = vshra.s32 %v94, 7
    %v223 = vshra.s32 %v95, 7
    %v224 = vshra.s32 %v96, 7
    %v225 = vshra.s32 %v97, 7
    %v226 = vshra.s32 %v98, 7
    %v227 = vshra.s32 %v99, 7
    %v228 = vshra.s32 %v100, 7
    %v229 = vshra.s32 %v101, 7
    %v230 = vshra.s32 %v102, 7
    %v231 = vshra.s32 %v103, 7
    %v232 = vshra.s32 %v104, 7
    %v233 = vshra.s32 %v105, 7
    %v234 = vshra.s32 %v106, 7
    %v235 = vshra.s32 %v107, 7
    %v236 = vshra.s32 %v108, 7
    %v237 = vshra.s32 %v109, 7
    %v238 = vshra.s32 %v110, 7
    %v239 = vshra.s32 %v111, 7
    %v240 = vshra.s32 %v112, 7
    %v241 = vshra.s32 %v113, 7
    %v242 = vshra.s32 %v114, 7
    %v243 = vshra.s32 %v115, 7
    %v244 = vshra.s32 %v116, 7
    %v245 = vshra.s32 %v117, 7
    %v246 = vshra.s32 %v118, 7
    %v247 = vshra.s32 %v119, 7
    %v248 = vshra.s32 %v120, 7
    %v249 = vshra.s32 %v121, 7
    %v250 = vshra.s32 %v122, 7
    %v251 = vshra.s32 %v123, 7
    %v252 = vshra.s32 %v124, 7
    %v253 = vshra.s32 %v125, 7
    %v254 = vshra.s32 %v126, 7
    %v255 = vshra.s32 %v127, 7
    %v256 = vshra.s32 %v128, 7
    %v257 = vshra.s32 %v129, 7
    %v258 = vshra.s32 %v130, 7
    %v259 = vshra.s32 %v131, 7
    %v260 = vshra.s32 %v132, 7
    %v261 = vshra.s32 %v133, 7
    %v262 = vshra.s32 %v134, 7
    %v263 = vshra.s32 %v135, 7
    %v264 = vshra.s32 %v136, 7
    %v265 = vshra.s32 %v137, 7
    %v266 = vshra.s32 %v138, 7
    %v267 = vshra.s32 %v139, 7
    %v268 = vshra.s32 %v140, 7
    %v269 = vshra.s32 %v141, 7
    %v270 = vshra.s32 %v142, 7
    %v271 = vshra.s32 %v143, 7
    %v272 = vshra.s32 %v144, 7
    %v273 = vshra.s32 %v145, 7
    %v274 = vshra.s32 %v146, 7
    %v275 = vshra.s32 %v147, 7
    %v276 = vshra.s32 %v148, 7
    %v277 = vshra.s32 %v149, 7
    %v278 = vshra.s32 %v150, 7
    %v279 = vshra.s32 %v151, 7
    %v280 = vshra.s32 %v152, 7
    %v281 = vand.u32 %v25, 127
    %v282 = vand.u32 %v26, 127
    %v283 = vand.u32 %v27, 127
    %v284 = vand.u32 %v28, 127
    %v285 = vand.u32 %v29, 127
    %v286 = vand.u32 %v30, 127
    %v287 = vand.u32 %v31, 127
    %v288 = vand.u32 %v32, 127
    %v289 = vand.u32 %v33, 127
    %v290 = vand.u32 %v34, 127
    %v291 = vand.u32 %v35, 127
    %v292 = vand.u32 %v36, 127
    %v293 = vand.u32 %v37, 127
    %v294 = vand.u32 %v38, 127
    %v295 = vand.u32 %v39, 127
    %v296 = vand.u32 %v40, 127
    %v297 = vand.u32 %v41, 127
    %v298 = vand.u32 %v42, 127
    %v299 = vand.u32 %v43, 127
    %v300 = vand.u32 %v44, 127
    %v301 = vand.u32 %v45, 127
    %v302 = vand.u32 %v46, 127
    %v303 = vand.u32 %v47, 127
    %v304 = vand.u32 %v48, 127
    %v305 = vand.u32 %v49, 127
    %v306 = vand.u32 %v50, 127
    %v307 = vand.u32 %v51, 127
    %v308 = vand.u32 %v52, 127
    %v309 = vand.u32 %v53, 127
    %v310 = vand.u32 %v54, 127
    %v311 = vand.u32 %v55, 127
    %v312 = vand.u32 %v56, 127
    %v313 = vand.u32 %v57, 127
    %v314 = vand.u32 %v58, 127
    %v315 = vand.u32 %v59, 127
    %v316 = vand.u32 %v60, 127
    %v317 = vand.u32 %v61, 127
    %v318 = vand.u32 %v62, 127
    %v319 = vand.u32 %v63, 127
    %v320 = vand.u32 %v64, 127
    %v321 = vand.u32 %v65, 127
    %v322 = vand.u32 %v66, 127
    %v323 = vand.u32 %v67, 127
    %v324 = vand.u32 %v68, 127
    %v325 = vand.u32 %v69, 127
    %v326 = vand.u32 %v70, 127
    %v327 = vand.u32 %v71, 127
    %v328 = vand.u32 %v72, 127
    %v329 = vand.u32 %v73, 127
    %v330 = vand.u32 %v74, 127
    %v331 = vand.u32 %v75, 127
    %v332 = vand.u32 %v76, 127
    %v333 = vand.u32 %v77, 127
    %v334 = vand.u32 %v78, 127
    %v335 = vand.u32 %v79, 127
    %v336 = vand.u32 %v80, 127
    %v337 = vand.u32 %v81, 127
    %v338 = vand.u32 %v82, 127
    %v339 = vand.u32 %v83, 127
    %v340 = vand.u32 %v84, 127
    %v341 = vand.u32 %v85, 127
    %v342 = vand.u32 %v86, 127
    %v343 = vand.u32 %v87, 127
    %v344 = vand.u32 %v88, 127
    %v345 = vand.u32 %v89, 127
    %v346 = vand.u32 %v90, 127
    %v347 = vand.u32 %v91, 127
    %v348 = vand.u32 %v92, 127
    %v349 = vand.u32 %v93, 127
    %v350 = vand.u32 %v94, 127
    %v351 = vand.u32 %v95, 127
    %v352 = vand.u32 %v96, 127
    %v353 = vand.u32 %v97, 127
    %v354 = vand.u32 %v98, 127
    %v355 = vand.u32 %v99, 127
    %v356 = vand.u32 %v100, 127
    %v357 = vand.u32 %v101, 127
    %v358 = vand.u32 %v102, 127
    %v359 = vand.u32 %v103, 127
    %v360 = vand.u32 %v104, 127
    %v361 = vand.u32 %v105, 127
    %v362 = vand.u32 %v106, 127
    %v363 = vand.u32 %v107, 127
    %v364 = vand.u32 %v108, 127
    %v365 = vand.u32 %v109, 127
    %v366 = vand.u32 %v110, 127
    %v367 = vand.u32 %v111, 127
    %v368 = vand.u32 %v112, 127
    %v369 = vand.u32 %v113, 127
    %v370 = vand.u32 %v114, 127
    %v371 = vand.u32 %v115, 127
    %v372 = vand.u32 %v116, 127
    %v373 = vand.u32 %v117, 127
    %v374 = vand.u32 %v118, 127
    %v375 = vand.u32 %v119, 127
    %v376 = vand.u32 %v120, 127
    %v377 = vand.u32 %v121, 127
    %v378 = vand.u32 %v122, 127
    %v379 = vand.u32 %v123, 127
    %v380 = vand.u32 %v124, 127
    %v381 = vand.u32 %v125, 127
    %v382 = vand.u32 %v126, 127
    %v383 = vand.u32 %v127, 127
    %v384 = vand.u32 %v128, 127
    %v385 = vand.u32 %v129, 127
    %v386 = vand.u32 %v130, 127
    %v387 = vand.u32 %v131, 127
    %v388 = vand.u32 %v132, 127
    %v389 = vand.u32 %v133, 127
    %v390 = vand.u32 %v134, 127
    %v391 = vand.u32 %v135, 127
    %v392 = vand.u32 %v136, 127
    %v393 = vand.u32 %v137, 127
    %v394 = vand.u32 %v138, 127
    %v395 = vand.u32 %v139, 127
    %v396 = vand.u32 %v140, 127
    %v397 = vand.u32 %v141, 127
    %v398 = vand.u32 %v142, 127
    %v399 = vand.u32 %v143, 127
    %v400 = vand.u32 %v144, 127
    %v401 = vand.u32 %v145, 127
    %v402 = vand.u32 %v146, 127
    %v403 = vand.u32 %v147, 127
    %v404 = vand.u32 %v148, 127
    %v405 = vand.u32 %v149, 127
    %v406 = vand.u32 %v150, 127
    %v407 = vand.u32 %v151, 127
    %v408 = vand.u32 %v152, 127
    %v409 = vstv %s23
    %v410 = vadd.s32 %v153, %v409
    %v411 = vadd.s32 %v154, %v409
    %v412 = vadd.s32 %v155, %v409
    %v413 = vadd.s32 %v156, %v409
    %v414 = vadd.s32 %v157, %v409
    %v415 = vadd.s32 %v158, %v409
    %v416 = vadd.s32 %v159, %v409
    %v417 = vadd.s32 %v160, %v409
    %v418 = vadd.s32 %v161, %v409
    %v419 = vadd.s32 %v162, %v409
    %v420 = vadd.s32 %v163, %v409
    %v421 = vadd.s32 %v164, %v409
    %v422 = vadd.s32 %v165, %v409
    %v423 = vadd.s32 %v166, %v409
    %v424 = vadd.s32 %v167, %v409
    %v425 = vadd.s32 %v168, %v409
    %v426 = vadd.s32 %v169, %v409
    %v427 = vadd.s32 %v170, %v409
    %v428 = vadd.s32 %v171, %v409
    %v429 = vadd.s32 %v172, %v409
    %v430 = vadd.s32 %v173, %v409
    %v431 = vadd.s32 %v174, %v409
    %v432 = vadd.s32 %v175, %v409
    %v433 = vadd.s32 %v176, %v409
    %v434 = vadd.s32 %v177, %v409
    %v435 = vadd.s32 %v178, %v409
    %v436 = vadd.s32 %v179, %v409
    %v437 = vadd.s32 %v180, %v409
    %v438 = vadd.s32 %v181, %v409
    %v439 = vadd.s32 %v182, %v409
    %v440 = vadd.s32 %v183, %v409
    %v441 = vadd.s32 %v184, %v409
    %v442 = vadd.s32 %v185, %v409
    %v443 = vadd.s32 %v186, %v409
    %v444 = vadd.s32 %v187, %v409
    %v445 = vadd.s32 %v188, %v409
    %v446 = vadd.s32 %v189, %v409
    %v447 = vadd.s32 %v190, %v409
    %v448 = vadd.s32 %v191, %v409
    %v449 = vadd.s32 %v192, %v409
    %v450 = vadd.s32 %v193, %v409
    %v451 = vadd.s32 %v194, %v409
    %v452 = vadd.s32 %v195, %v409
    %v453 = vadd.s32 %v196, %v409
    %v454 = vadd.s32 %v197, %v409
    %v455 = vadd.s32 %v198, %v409
    %v456 = vadd.s32 %v199, %v409
    %v457 = vadd.s32 %v200, %v409
    %v458 = vadd.s32 %v201, %v409
    %v459 = vadd.s32 %v202, %v409
    %v460 = vadd.s32 %v203, %v409
    %v461 = vadd.s32 %v204, %v409
    %v462 = vadd.s32 %v205, %v409
    %v463 = vadd.s32 %v206, %v409
    %v464 = vadd.s32 %v207, %v409
    %v465 = vadd.s32 %v208, %v409
    %v466 = vadd.s32 %v209, %v409
    %v467 = vadd.s32 %v210, %v409
    %v468 = vadd.s32 %v211, %v409
    %v469 = vadd.s32 %v212, %v409
    %v470 = vadd.s32 %v213, %v409
    %v471 = vadd.s32 %v214, %v409
    %v472 = vadd.s32 %v215, %v409
    %v473 = vadd.s32 %v216, %v409
    %v474 = vadd.s32 %v217, %v409
    %v475 = vadd.s32 %v218, %v409
    %v476 = vadd.s32 %v219, %v409
    %v477 = vadd.s32 %v220, %v409
    %v478 = vadd.s32 %v221, %v409
    %v479 = vadd.s32 %v222, %v409
    %v480 = vadd.s32 %v223, %v409
    %v481 = vadd.s32 %v224, %v409
    %v482 = vadd.s32 %v225, %v409
    %v483 = vadd.s32 %v226, %v409
    %v484 = vadd.s32 %v227, %v409
    %v485 = vadd.s32 %v228, %v409
    %v486 = vadd.s32 %v229, %v409
    %v487 = vadd.s32 %v230, %v409
    %v488 = vadd.s32 %v231, %v409
    %v489 = vadd.s32 %v232, %v409
    %v490 = vadd.s32 %v233, %v409
    %v491 = vadd.s32 %v234, %v409
    %v492 = vadd.s32 %v235, %v409
    %v493 = vadd.s32 %v236, %v409
    %v494 = vadd.s32 %v237, %v409
    %v495 = vadd.s32 %v238, %v409
    %v496 = vadd.s32 %v239, %v409
    %v497 = vadd.s32 %v240, %v409
    %v498 = vadd.s32 %v241, %v409
    %v499 = vadd.s32 %v242, %v409
    %v500 = vadd.s32 %v243, %v409
    %v501 = vadd.s32 %v244, %v409
    %v502 = vadd.s32 %v245, %v409
    %v503 = vadd.s32 %v246, %v409
    %v504 = vadd.s32 %v247, %v409
    %v505 = vadd.s32 %v248, %v409
    %v506 = vadd.s32 %v249, %v409
    %v507 = vadd.s32 %v250, %v409
    %v508 = vadd.s32 %v251, %v409
    %v509 = vadd.s32 %v252, %v409
    %v510 = vadd.s32 %v253, %v409
    %v511 = vadd.s32 %v254, %v409
    %v512 = vadd.s32 %v255, %v409
    %v513 = vadd.s32 %v256, %v409
    %v514 = vadd.s32 %v257, %v409
    %v515 = vadd.s32 %v258, %v409
    %v516 = vadd.s32 %v259, %v409
    %v517 = vadd.s32 %v260, %v409
    %v518 = vadd.s32 %v261, %v409
    %v519 = vadd.s32 %v262, %v409
    %v520 = vadd.s32 %v263, %v409
    %v521 = vadd.s32 %v264, %v409
    %v522 = vadd.s32 %v265, %v409
    %v523 = vadd.s32 %v266, %v409
    %v524 = vadd.s32 %v267, %v409
    %v525 = vadd.s32 %v268, %v409
    %v526 = vadd.s32 %v269, %v409
    %v527 = vadd.s32 %v270, %v409
    %v528 = vadd.s32 %v271, %v409
    %v529 = vadd.s32 %v272, %v409
    %v530 = vadd.s32 %v273, %v409
    %v531 = vadd.s32 %v274, %v409
    %v532 = vadd.s32 %v275, %v409
    %v533 = vadd.s32 %v276, %v409
    %v534 = vadd.s32 %v277, %v409
    %v535 = vadd.s32 %v278, %v409
    %v536 = vadd.s32 %v279, %v409
    %v537 = vadd.s32 %v280, %v409
    %v538 = vsub.s32 %v410, %v281
    %v539 = vsub.s32 %v411, %v282
    %v540 = vsub.s32 %v412, %v283
    %v541 = vsub.s32 %v413, %v284
    %v542 = vsub.s32 %v414, %v285
    %v543 = vsub.s32 %v415, %v286
    %v544 = vsub.s32 %v416, %v287
    %v545 = vsub.s32 %v417, %v288
    %v546 = vsub.s32 %v418, %v289
    %v547 = vsub.s32 %v419, %v290
    %v548 = vsub.s32 %v420, %v291
    %v549 = vsub.s32 %v421, %v292
    %v550 = vsub.s32 %v422, %v293
    %v551 = vsub.s32 %v423, %v294
    %v552 = vsub.s32 %v424, %v295
    %v553 = vsub.s32 %v425, %v296
    %v554 = vsub.s32 %v426, %v297
    %v555 = vsub.s32 %v427, %v298
    %v556 = vsub.s32 %v428, %v299
    %v557 = vsub.s32 %v429, %v300
    %v558 = vsub.s32 %v430, %v301
    %v559 = vsub.s32 %v431, %v302
    %v560 = vsub.s32 %v432, %v303
    %v561 = vsub.s32 %v433, %v304
    %v562 = vsub.s32 %v434, %v305
    %v563 = vsub.s32 %v435, %v306
    %v564 = vsub.s32 %v436, %v307
    %v565 = vsub.s32 %v437, %v308
    %v566 = vsub.s32 %v438, %v309
    %v567 = vsub.s32 %v439, %v310
    %v568 = vsub.s32 %v440, %v311
    %v569 = vsub.s32 %v441, %v312
    %v570 = vsub.s32 %v442, %v313
    %v571 = vsub.s32 %v443, %v314
    %v572 = vsub.s32 %v444, %v315
    %v573 = vsub.s32 %v445, %v316
    %v574 = vsub.s32 %v446, %v317
    %v575 = vsub.s32 %v447, %v318
    %v576 = vsub.s32 %v448, %v319
    %v577 = vsub.s32 %v449, %v320
    %v578 = vsub.s32 %v450, %v321
    %v579 = vsub.s32 %v451, %v322
    %v580 = vsub.s32 %v452, %v323
    %v581 = vsub.s32 %v453, %v324
    %v582 = vsub.s32 %v454, %v325
    %v583 = vsub.s32 %v455, %v326
    %v584 = vsub.s32 %v456, %v327
    %v585 = vsub.s32 %v457, %v328
    %v586 = vsub.s32 %v458, %v329
    %v587 = vsub.s32 %v459, %v330
    %v588 = vsub.s32 %v460, %v331
    %v589 = vsub.s32 %v461, %v332
    %v590 = vsub.s32 %v462, %v333
    %v591 = vsub.s32 %v463, %v334
    %v592 = vsub.s32 %v464, %v335
    %v593 = vsub.s32 %v465, %v336
    %v594 = vsub.s32 %v466, %v337
    %v595 = vsub.s32 %v467, %v338
    %v596 = vsub.s32 %v468, %v339
    %v597 = vsub.s32 %v469, %v340
    %v598 = vsub.s32 %v470, %v341
    %v599 = vsub.s32 %v471, %v342
    %v600 = vsub.s32 %v472, %v343
    %v601 = vsub.s32 %v473, %v344
    %v602 = vsub.s32 %v474, %v345
    %v603 = vsub.s32 %v475, %v346
    %v604 = vsub.s32 %v476, %v347
    %v605 = vsub.s32 %v477, %v348
    %v606 = vsub.s32 %v478, %v349
    %v607 = vsub.s32 %v479, %v350
    %v608 = vsub.s32 %v480, %v351
    %v609 = vsub.s32 %v481, %v352
    %v610 = vsub.s32 %v482, %v353
    %v611 = vsub.s32 %v483, %v354
    %v612 = vsub.s32 %v484, %v355
    %v613 = vsub.s32 %v485, %v356
    %v614 = vsub.s32 %v486, %v357
    %v615 = vsub.s32 %v487, %v358
    %v616 = vsub.s32 %v488, %v359
    %v617 = vsub.s32 %v489, %v360
    %v618 = vsub.s32 %v490, %v361
    %v619 = vsub.s32 %v491, %v362
    %v620 = vsub.s32 %v492, %v363
    %v621 = vsub.s32 %v493, %v364
    %v622 = vsub.s32 %v494, %v365
    %v623 = vsub.s32 %v495, %v366
    %v624 = vsub.s32 %v496, %v367
    %v625 = vsub.s32 %v497, %v368
    %v626 = vsub.s32 %v498, %v369
    %v627 = vsub.s32 %v499, %v370
    %v628 = vsub.s32 %v500, %v371
    %v629 = vsub.s32 %v501, %v372
    %v630 = vsub.s32 %v502, %v373
    %v631 = vsub.s32 %v503, %v374
    %v632 = vsub.s32 %v504, %v375
    %v633 = vsub.s32 %v505, %v376
    %v634 = vsub.s32 %v506, %v377
    %v635 = vsub.s32 %v507, %v378
    %v636 = vsub.s32 %v508, %v379
    %v637 = vsub.s32 %v509, %v380
    %v638 = vsub.s32 %v510, %v381
    %v639 = vsub.s32 %v511, %v382
    %v640 = vsub.s32 %v512, %v383
    %v641 = vsub.s32 %v513, %v384
    %v642 = vsub.s32 %v514, %v385
    %v643 = vsub.s32 %v515, %v386
    %v644 = vsub.s32 %v516, %v387
    %v645 = vsub.s32 %v517, %v388
    %v646 = vsub.s32 %v518, %v389
    %v647 = vsub.s32 %v519, %v390
    %v648 = vsub.s32 %v520, %v391
    %v649 = vsub.s32 %v521, %v392
    %v650 = vsub.s32 %v522, %v393
    %v651 = vsub.s32 %v523, %v394
    %v652 = vsub.s32 %v524, %v395
    %v653 = vsub.s32 %v525, %v396
    %v654 = vsub.s32 %v526, %v397
    %v655 = vsub.s32 %v527, %v398
    %v656 = vsub.s32 %v528, %v399
    %v657 = vsub.s32 %v529, %v400
    %v658 = vsub.s32 %v530, %v401
    %v659 = vsub.s32 %v531, %v402
    %v660 = vsub.s32 %v532, %v403
    %v661 = vsub.s32 %v533, %v404
    %v662 = vsub.s32 %v534, %v405
    %v663 = vsub.s32 %v535, %v406
    %v664 = vsub.s32 %v536, %v407
    %v665 = vsub.s32 %v537, %v408
    %vm666 = vcmp.lt.s32.totalorder %v538, 0
    %vm667 = vcmp.lt.s32.totalorder %v539, 0
    %vm668 = vcmp.lt.s32.totalorder %v540, 0
    %vm669 = vcmp.lt.s32.totalorder %v541, 0
    %vm670 = vcmp.lt.s32.totalorder %v542, 0
    %vm671 = vcmp.lt.s32.totalorder %v543, 0
    %vm672 = vcmp.lt.s32.totalorder %v544, 0
    %vm673 = vcmp.lt.s32.totalorder %v545, 0
    %vm674 = vcmp.lt.s32.totalorder %v546, 0
    %vm675 = vcmp.lt.s32.totalorder %v547, 0
    %vm676 = vcmp.lt.s32.totalorder %v548, 0
    %vm677 = vcmp.lt.s32.totalorder %v549, 0
    %vm678 = vcmp.lt.s32.totalorder %v550, 0
    %vm679 = vcmp.lt.s32.totalorder %v551, 0
    %vm680 = vcmp.lt.s32.totalorder %v552, 0
    %vm681 = vcmp.lt.s32.totalorder %v553, 0
    %vm682 = vcmp.lt.s32.totalorder %v554, 0
    %vm683 = vcmp.lt.s32.totalorder %v555, 0
    %vm684 = vcmp.lt.s32.totalorder %v556, 0
    %vm685 = vcmp.lt.s32.totalorder %v557, 0
    %vm686 = vcmp.lt.s32.totalorder %v558, 0
    %vm687 = vcmp.lt.s32.totalorder %v559, 0
    %vm688 = vcmp.lt.s32.totalorder %v560, 0
    %vm689 = vcmp.lt.s32.totalorder %v561, 0
    %vm690 = vcmp.lt.s32.totalorder %v562, 0
    %vm691 = vcmp.lt.s32.totalorder %v563, 0
    %vm692 = vcmp.lt.s32.totalorder %v564, 0
    %vm693 = vcmp.lt.s32.totalorder %v565, 0
    %vm694 = vcmp.lt.s32.totalorder %v566, 0
    %vm695 = vcmp.lt.s32.totalorder %v567, 0
    %vm696 = vcmp.lt.s32.totalorder %v568, 0
    %vm697 = vcmp.lt.s32.totalorder %v569, 0
    %vm698 = vcmp.lt.s32.totalorder %v570, 0
    %vm699 = vcmp.lt.s32.totalorder %v571, 0
    %vm700 = vcmp.lt.s32.totalorder %v572, 0
    %vm701 = vcmp.lt.s32.totalorder %v573, 0
    %vm702 = vcmp.lt.s32.totalorder %v574, 0
    %vm703 = vcmp.lt.s32.totalorder %v575, 0
    %vm704 = vcmp.lt.s32.totalorder %v576, 0
    %vm705 = vcmp.lt.s32.totalorder %v577, 0
    %vm706 = vcmp.lt.s32.totalorder %v578, 0
    %vm707 = vcmp.lt.s32.totalorder %v579, 0
    %vm708 = vcmp.lt.s32.totalorder %v580, 0
    %vm709 = vcmp.lt.s32.totalorder %v581, 0
    %vm710 = vcmp.lt.s32.totalorder %v582, 0
    %vm711 = vcmp.lt.s32.totalorder %v583, 0
    %vm712 = vcmp.lt.s32.totalorder %v584, 0
    %vm713 = vcmp.lt.s32.totalorder %v585, 0
    %vm714 = vcmp.lt.s32.totalorder %v586, 0
    %vm715 = vcmp.lt.s32.totalorder %v587, 0
    %vm716 = vcmp.lt.s32.totalorder %v588, 0
    %vm717 = vcmp.lt.s32.totalorder %v589, 0
    %vm718 = vcmp.lt.s32.totalorder %v590, 0
    %vm719 = vcmp.lt.s32.totalorder %v591, 0
    %vm720 = vcmp.lt.s32.totalorder %v592, 0
    %vm721 = vcmp.lt.s32.totalorder %v593, 0
    %vm722 = vcmp.lt.s32.totalorder %v594, 0
    %vm723 = vcmp.lt.s32.totalorder %v595, 0
    %vm724 = vcmp.lt.s32.totalorder %v596, 0
    %vm725 = vcmp.lt.s32.totalorder %v597, 0
    %vm726 = vcmp.lt.s32.totalorder %v598, 0
    %vm727 = vcmp.lt.s32.totalorder %v599, 0
    %vm728 = vcmp.lt.s32.totalorder %v600, 0
    %vm729 = vcmp.lt.s32.totalorder %v601, 0
    %vm730 = vcmp.lt.s32.totalorder %v602, 0
    %vm731 = vcmp.lt.s32.totalorder %v603, 0
    %vm732 = vcmp.lt.s32.totalorder %v604, 0
    %vm733 = vcmp.lt.s32.totalorder %v605, 0
    %vm734 = vcmp.lt.s32.totalorder %v606, 0
    %vm735 = vcmp.lt.s32.totalorder %v607, 0
    %vm736 = vcmp.lt.s32.totalorder %v608, 0
    %vm737 = vcmp.lt.s32.totalorder %v609, 0
    %vm738 = vcmp.lt.s32.totalorder %v610, 0
    %vm739 = vcmp.lt.s32.totalorder %v611, 0
    %vm740 = vcmp.lt.s32.totalorder %v612, 0
    %vm741 = vcmp.lt.s32.totalorder %v613, 0
    %vm742 = vcmp.lt.s32.totalorder %v614, 0
    %vm743 = vcmp.lt.s32.totalorder %v615, 0
    %vm744 = vcmp.lt.s32.totalorder %v616, 0
    %vm745 = vcmp.lt.s32.totalorder %v617, 0
    %vm746 = vcmp.lt.s32.totalorder %v618, 0
    %vm747 = vcmp.lt.s32.totalorder %v619, 0
    %vm748 = vcmp.lt.s32.totalorder %v620, 0
    %vm749 = vcmp.lt.s32.totalorder %v621, 0
    %vm750 = vcmp.lt.s32.totalorder %v622, 0
    %vm751 = vcmp.lt.s32.totalorder %v623, 0
    %vm752 = vcmp.lt.s32.totalorder %v624, 0
    %vm753 = vcmp.lt.s32.totalorder %v625, 0
    %vm754 = vcmp.lt.s32.totalorder %v626, 0
    %vm755 = vcmp.lt.s32.totalorder %v627, 0
    %vm756 = vcmp.lt.s32.totalorder %v628, 0
    %vm757 = vcmp.lt.s32.totalorder %v629, 0
    %vm758 = vcmp.lt.s32.totalorder %v630, 0
    %vm759 = vcmp.lt.s32.totalorder %v631, 0
    %vm760 = vcmp.lt.s32.totalorder %v632, 0
    %vm761 = vcmp.lt.s32.totalorder %v633, 0
    %vm762 = vcmp.lt.s32.totalorder %v634, 0
    %vm763 = vcmp.lt.s32.totalorder %v635, 0
    %vm764 = vcmp.lt.s32.totalorder %v636, 0
    %vm765 = vcmp.lt.s32.totalorder %v637, 0
    %vm766 = vcmp.lt.s32.totalorder %v638, 0
    %vm767 = vcmp.lt.s32.totalorder %v639, 0
    %vm768 = vcmp.lt.s32.totalorder %v640, 0
    %vm769 = vcmp.lt.s32.totalorder %v641, 0
    %vm770 = vcmp.lt.s32.totalorder %v642, 0
    %vm771 = vcmp.lt.s32.totalorder %v643, 0
    %vm772 = vcmp.lt.s32.totalorder %v644, 0
    %vm773 = vcmp.lt.s32.totalorder %v645, 0
    %vm774 = vcmp.lt.s32.totalorder %v646, 0
    %vm775 = vcmp.lt.s32.totalorder %v647, 0
    %vm776 = vcmp.lt.s32.totalorder %v648, 0
    %vm777 = vcmp.lt.s32.totalorder %v649, 0
    %vm778 = vcmp.lt.s32.totalorder %v650, 0
    %vm779 = vcmp.lt.s32.totalorder %v651, 0
    %vm780 = vcmp.lt.s32.totalorder %v652, 0
    %vm781 = vcmp.lt.s32.totalorder %v653, 0
    %vm782 = vcmp.lt.s32.totalorder %v654, 0
    %vm783 = vcmp.lt.s32.totalorder %v655, 0
    %vm784 = vcmp.lt.s32.totalorder %v656, 0
    %vm785 = vcmp.lt.s32.totalorder %v657, 0
    %vm786 = vcmp.lt.s32.totalorder %v658, 0
    %vm787 = vcmp.lt.s32.totalorder %v659, 0
    %vm788 = vcmp.lt.s32.totalorder %v660, 0
    %vm789 = vcmp.lt.s32.totalorder %v661, 0
    %vm790 = vcmp.lt.s32.totalorder %v662, 0
    %vm791 = vcmp.lt.s32.totalorder %v663, 0
    %vm792 = vcmp.lt.s32.totalorder %v664, 0
    %vm793 = vcmp.lt.s32.totalorder %v665, 0
    %v794 = vsel %vm666, 16, 0
    %v795 = vsel %vm667, 16, 0
    %v796 = vsel %vm668, 16, 0
    %v797 = vsel %vm669, 16, 0
    %v798 = vsel %vm670, 16, 0
    %v799 = vsel %vm671, 16, 0
    %v800 = vsel %vm672, 16, 0
    %v801 = vsel %vm673, 16, 0
    %v802 = vsel %vm674, 16, 0
    %v803 = vsel %vm675, 16, 0
    %v804 = vsel %vm676, 16, 0
    %v805 = vsel %vm677, 16, 0
    %v806 = vsel %vm678, 16, 0
    %v807 = vsel %vm679, 16, 0
    %v808 = vsel %vm680, 16, 0
    %v809 = vsel %vm681, 16, 0
    %v810 = vsel %vm682, 16, 0
    %v811 = vsel %vm683, 16, 0
    %v812 = vsel %vm684, 16, 0
    %v813 = vsel %vm685, 16, 0
    %v814 = vsel %vm686, 16, 0
    %v815 = vsel %vm687, 16, 0
    %v816 = vsel %vm688, 16, 0
    %v817 = vsel %vm689, 16, 0
    %v818 = vsel %vm690, 16, 0
    %v819 = vsel %vm691, 16, 0
    %v820 = vsel %vm692, 16, 0
    %v821 = vsel %vm693, 16, 0
    %v822 = vsel %vm694, 16, 0
    %v823 = vsel %vm695, 16, 0
    %v824 = vsel %vm696, 16, 0
    %v825 = vsel %vm697, 16, 0
    %v826 = vsel %vm698, 16, 0
    %v827 = vsel %vm699, 16, 0
    %v828 = vsel %vm700, 16, 0
    %v829 = vsel %vm701, 16, 0
    %v830 = vsel %vm702, 16, 0
    %v831 = vsel %vm703, 16, 0
    %v832 = vsel %vm704, 16, 0
    %v833 = vsel %vm705, 16, 0
    %v834 = vsel %vm706, 16, 0
    %v835 = vsel %vm707, 16, 0
    %v836 = vsel %vm708, 16, 0
    %v837 = vsel %vm709, 16, 0
    %v838 = vsel %vm710, 16, 0
    %v839 = vsel %vm711, 16, 0
    %v840 = vsel %vm712, 16, 0
    %v841 = vsel %vm713, 16, 0
    %v842 = vsel %vm714, 16, 0
    %v843 = vsel %vm715, 16, 0
    %v844 = vsel %vm716, 16, 0
    %v845 = vsel %vm717, 16, 0
    %v846 = vsel %vm718, 16, 0
    %v847 = vsel %vm719, 16, 0
    %v848 = vsel %vm720, 16, 0
    %v849 = vsel %vm721, 16, 0
    %v850 = vsel %vm722, 16, 0
    %v851 = vsel %vm723, 16, 0
    %v852 = vsel %vm724, 16, 0
    %v853 = vsel %vm725, 16, 0
    %v854 = vsel %vm726, 16, 0
    %v855 = vsel %vm727, 16, 0
    %v856 = vsel %vm728, 16, 0
    %v857 = vsel %vm729, 16, 0
    %v858 = vsel %vm730, 16, 0
    %v859 = vsel %vm731, 16, 0
    %v860 = vsel %vm732, 16, 0
    %v861 = vsel %vm733, 16, 0
    %v862 = vsel %vm734, 16, 0
    %v863 = vsel %vm735, 16, 0
    %v864 = vsel %vm736, 16, 0
    %v865 = vsel %vm737, 16, 0
    %v866 = vsel %vm738, 16, 0
    %v867 = vsel %vm739, 16, 0
    %v868 = vsel %vm740, 16, 0
    %v869 = vsel %vm741, 16, 0
    %v870 = vsel %vm742, 16, 0
    %v871 = vsel %vm743, 16, 0
    %v872 = vsel %vm744, 16, 0
    %v873 = vsel %vm745, 16, 0
    %v874 = vsel %vm746, 16, 0
    %v875 = vsel %vm747, 16, 0
    %v876 = vsel %vm748, 16, 0
    %v877 = vsel %vm749, 16, 0
    %v878 = vsel %vm750, 16, 0
    %v879 = vsel %vm751, 16, 0
    %v880 = vsel %vm752, 16, 0
    %v881 = vsel %vm753, 16, 0
    %v882 = vsel %vm754, 16, 0
    %v883 = vsel %vm755, 16, 0
    %v884 = vsel %vm756, 16, 0
    %v885 = vsel %vm757, 16, 0
    %v886 = vsel %vm758, 16, 0
    %v887 = vsel %vm759, 16, 0
    %v888 = vsel %vm760, 16, 0
    %v889 = vsel %vm761, 16, 0
    %v890 = vsel %vm762, 16, 0
    %v891 = vsel %vm763, 16, 0
    %v892 = vsel %vm764, 16, 0
    %v893 = vsel %vm765, 16, 0
    %v894 = vsel %vm766, 16, 0
    %v895 = vsel %vm767, 16, 0
    %v896 = vsel %vm768, 16, 0
    %v897 = vsel %vm769, 16, 0
    %v898 = vsel %vm770, 16, 0
    %v899 = vsel %vm771, 16, 0
    %v900 = vsel %vm772, 16, 0
    %v901 = vsel %vm773, 16, 0
    %v902 = vsel %vm774, 16, 0
    %v903 = vsel %vm775, 16, 0
    %v904 = vsel %vm776, 16, 0
    %v905 = vsel %vm777, 16, 0
    %v906 = vsel %vm778, 16, 0
    %v907 = vsel %vm779, 16, 0
    %v908 = vsel %vm780, 16, 0
    %v909 = vsel %vm781, 16, 0
    %v910 = vsel %vm782, 16, 0
    %v911 = vsel %vm783, 16, 0
    %v912 = vsel %vm784, 16, 0
    %v913 = vsel %vm785, 16, 0
    %v914 = vsel %vm786, 16, 0
    %v915 = vsel %vm787, 16, 0
    %v916 = vsel %vm788, 16, 0
    %v917 = vsel %vm789, 16, 0
    %v918 = vsel %vm790, 16, 0
    %v919 = vsel %vm791, 16, 0
    %v920 = vsel %vm792, 16, 0
    %v921 = vsel %vm793, 16, 0
    %v922 = vsub.s32 0, %v538
    %v923 = vsel %vm666, %v922, %v538
    %v924 = vsub.s32 0, %v539
    %v925 = vsel %vm667, %v924, %v539
    %v926 = vsub.s32 0, %v540
    %v927 = vsel %vm668, %v926, %v540
    %v928 = vsub.s32 0, %v541
    %v929 = vsel %vm669, %v928, %v541
    %v930 = vsub.s32 0, %v542
    %v931 = vsel %vm670, %v930, %v542
    %v932 = vsub.s32 0, %v543
    %v933 = vsel %vm671, %v932, %v543
    %v934 = vsub.s32 0, %v544
    %v935 = vsel %vm672, %v934, %v544
    %v936 = vsub.s32 0, %v545
    %v937 = vsel %vm673, %v936, %v545
    %v938 = vsub.s32 0, %v546
    %v939 = vsel %vm674, %v938, %v546
    %v940 = vsub.s32 0, %v547
    %v941 = vsel %vm675, %v940, %v547
    %v942 = vsub.s32 0, %v548
    %v943 = vsel %vm676, %v942, %v548
    %v944 = vsub.s32 0, %v549
    %v945 = vsel %vm677, %v944, %v549
    %v946 = vsub.s32 0, %v550
    %v947 = vsel %vm678, %v946, %v550
    %v948 = vsub.s32 0, %v551
    %v949 = vsel %vm679, %v948, %v551
    %v950 = vsub.s32 0, %v552
    %v951 = vsel %vm680, %v950, %v552
    %v952 = vsub.s32 0, %v553
    %v953 = vsel %vm681, %v952, %v553
    %v954 = vsub.s32 0, %v554
    %v955 = vsel %vm682, %v954, %v554
    %v956 = vsub.s32 0, %v555
    %v957 = vsel %vm683, %v956, %v555
    %v958 = vsub.s32 0, %v556
    %v959 = vsel %vm684, %v958, %v556
    %v960 = vsub.s32 0, %v557
    %v961 = vsel %vm685, %v960, %v557
    %v962 = vsub.s32 0, %v558
    %v963 = vsel %vm686, %v962, %v558
    %v964 = vsub.s32 0, %v559
    %v965 = vsel %vm687, %v964, %v559
    %v966 = vsub.s32 0, %v560
    %v967 = vsel %vm688, %v966, %v560
    %v968 = vsub.s32 0, %v561
    %v969 = vsel %vm689, %v968, %v561
    %v970 = vsub.s32 0, %v562
    %v971 = vsel %vm690, %v970, %v562
    %v972 = vsub.s32 0, %v563
    %v973 = vsel %vm691, %v972, %v563
    %v974 = vsub.s32 0, %v564
    %v975 = vsel %vm692, %v974, %v564
    %v976 = vsub.s32 0, %v565
    %v977 = vsel %vm693, %v976, %v565
    %v978 = vsub.s32 0, %v566
    %v979 = vsel %vm694, %v978, %v566
    %v980 = vsub.s32 0, %v567
    %v981 = vsel %vm695, %v980, %v567
    %v982 = vsub.s32 0, %v568
    %v983 = vsel %vm696, %v982, %v568
    %v984 = vsub.s32 0, %v569
    %v985 = vsel %vm697, %v984, %v569
    %v986 = vsub.s32 0, %v570
    %v987 = vsel %vm698, %v986, %v570
    %v988 = vsub.s32 0, %v571
    %v989 = vsel %vm699, %v988, %v571
    %v990 = vsub.s32 0, %v572
    %v991 = vsel %vm700, %v990, %v572
    %v992 = vsub.s32 0, %v573
    %v993 = vsel %vm701, %v992, %v573
    %v994 = vsub.s32 0, %v574
    %v995 = vsel %vm702, %v994, %v574
    %v996 = vsub.s32 0, %v575
    %v997 = vsel %vm703, %v996, %v575
    %v998 = vsub.s32 0, %v576
    %v999 = vsel %vm704, %v998, %v576
    %v1000 = vsub.s32 0, %v577
    %v1001 = vsel %vm705, %v1000, %v577
    %v1002 = vsub.s32 0, %v578
    %v1003 = vsel %vm706, %v1002, %v578
    %v1004 = vsub.s32 0, %v579
    %v1005 = vsel %vm707, %v1004, %v579
    %v1006 = vsub.s32 0, %v580
    %v1007 = vsel %vm708, %v1006, %v580
    %v1008 = vsub.s32 0, %v581
    %v1009 = vsel %vm709, %v1008, %v581
    %v1010 = vsub.s32 0, %v582
    %v1011 = vsel %vm710, %v1010, %v582
    %v1012 = vsub.s32 0, %v583
    %v1013 = vsel %vm711, %v1012, %v583
    %v1014 = vsub.s32 0, %v584
    %v1015 = vsel %vm712, %v1014, %v584
    %v1016 = vsub.s32 0, %v585
    %v1017 = vsel %vm713, %v1016, %v585
    %v1018 = vsub.s32 0, %v586
    %v1019 = vsel %vm714, %v1018, %v586
    %v1020 = vsub.s32 0, %v587
    %v1021 = vsel %vm715, %v1020, %v587
    %v1022 = vsub.s32 0, %v588
    %v1023 = vsel %vm716, %v1022, %v588
    %v1024 = vsub.s32 0, %v589
    %v1025 = vsel %vm717, %v1024, %v589
    %v1026 = vsub.s32 0, %v590
    %v1027 = vsel %vm718, %v1026, %v590
    %v1028 = vsub.s32 0, %v591
    %v1029 = vsel %vm719, %v1028, %v591
    %v1030 = vsub.s32 0, %v592
    %v1031 = vsel %vm720, %v1030, %v592
    %v1032 = vsub.s32 0, %v593
    %v1033 = vsel %vm721, %v1032, %v593
    %v1034 = vsub.s32 0, %v594
    %v1035 = vsel %vm722, %v1034, %v594
    %v1036 = vsub.s32 0, %v595
    %v1037 = vsel %vm723, %v1036, %v595
    %v1038 = vsub.s32 0, %v596
    %v1039 = vsel %vm724, %v1038, %v596
    %v1040 = vsub.s32 0, %v597
    %v1041 = vsel %vm725, %v1040, %v597
    %v1042 = vsub.s32 0, %v598
    %v1043 = vsel %vm726, %v1042, %v598
    %v1044 = vsub.s32 0, %v599
    %v1045 = vsel %vm727, %v1044, %v599
    %v1046 = vsub.s32 0, %v600
    %v1047 = vsel %vm728, %v1046, %v600
    %v1048 = vsub.s32 0, %v601
    %v1049 = vsel %vm729, %v1048, %v601
    %v1050 = vsub.s32 0, %v602
    %v1051 = vsel %vm730, %v1050, %v602
    %v1052 = vsub.s32 0, %v603
    %v1053 = vsel %vm731, %v1052, %v603
    %v1054 = vsub.s32 0, %v604
    %v1055 = vsel %vm732, %v1054, %v604
    %v1056 = vsub.s32 0, %v605
    %v1057 = vsel %vm733, %v1056, %v605
    %v1058 = vsub.s32 0, %v606
    %v1059 = vsel %vm734, %v1058, %v606
    %v1060 = vsub.s32 0, %v607
    %v1061 = vsel %vm735, %v1060, %v607
    %v1062 = vsub.s32 0, %v608
    %v1063 = vsel %vm736, %v1062, %v608
    %v1064 = vsub.s32 0, %v609
    %v1065 = vsel %vm737, %v1064, %v609
    %v1066 = vsub.s32 0, %v610
    %v1067 = vsel %vm738, %v1066, %v610
    %v1068 = vsub.s32 0, %v611
    %v1069 = vsel %vm739, %v1068, %v611
    %v1070 = vsub.s32 0, %v612
    %v1071 = vsel %vm740, %v1070, %v612
    %v1072 = vsub.s32 0, %v613
    %v1073 = vsel %vm741, %v1072, %v613
    %v1074 = vsub.s32 0, %v614
    %v1075 = vsel %vm742, %v1074, %v614
    %v1076 = vsub.s32 0, %v615
    %v1077 = vsel %vm743, %v1076, %v615
    %v1078 = vsub.s32 0, %v616
    %v1079 = vsel %vm744, %v1078, %v616
    %v1080 = vsub.s32 0, %v617
    %v1081 = vsel %vm745, %v1080, %v617
    %v1082 = vsub.s32 0, %v618
    %v1083 = vsel %vm746, %v1082, %v618
    %v1084 = vsub.s32 0, %v619
    %v1085 = vsel %vm747, %v1084, %v619
    %v1086 = vsub.s32 0, %v620
    %v1087 = vsel %vm748, %v1086, %v620
    %v1088 = vsub.s32 0, %v621
    %v1089 = vsel %vm749, %v1088, %v621
    %v1090 = vsub.s32 0, %v622
    %v1091 = vsel %vm750, %v1090, %v622
    %v1092 = vsub.s32 0, %v623
    %v1093 = vsel %vm751, %v1092, %v623
    %v1094 = vsub.s32 0, %v624
    %v1095 = vsel %vm752, %v1094, %v624
    %v1096 = vsub.s32 0, %v625
    %v1097 = vsel %vm753, %v1096, %v625
    %v1098 = vsub.s32 0, %v626
    %v1099 = vsel %vm754, %v1098, %v626
    %v1100 = vsub.s32 0, %v627
    %v1101 = vsel %vm755, %v1100, %v627
    %v1102 = vsub.s32 0, %v628
    %v1103 = vsel %vm756, %v1102, %v628
    %v1104 = vsub.s32 0, %v629
    %v1105 = vsel %vm757, %v1104, %v629
    %v1106 = vsub.s32 0, %v630
    %v1107 = vsel %vm758, %v1106, %v630
    %v1108 = vsub.s32 0, %v631
    %v1109 = vsel %vm759, %v1108, %v631
    %v1110 = vsub.s32 0, %v632
    %v1111 = vsel %vm760, %v1110, %v632
    %v1112 = vsub.s32 0, %v633
    %v1113 = vsel %vm761, %v1112, %v633
    %v1114 = vsub.s32 0, %v634
    %v1115 = vsel %vm762, %v1114, %v634
    %v1116 = vsub.s32 0, %v635
    %v1117 = vsel %vm763, %v1116, %v635
    %v1118 = vsub.s32 0, %v636
    %v1119 = vsel %vm764, %v1118, %v636
    %v1120 = vsub.s32 0, %v637
    %v1121 = vsel %vm765, %v1120, %v637
    %v1122 = vsub.s32 0, %v638
    %v1123 = vsel %vm766, %v1122, %v638
    %v1124 = vsub.s32 0, %v639
    %v1125 = vsel %vm767, %v1124, %v639
    %v1126 = vsub.s32 0, %v640
    %v1127 = vsel %vm768, %v1126, %v640
    %v1128 = vsub.s32 0, %v641
    %v1129 = vsel %vm769, %v1128, %v641
    %v1130 = vsub.s32 0, %v642
    %v1131 = vsel %vm770, %v1130, %v642
    %v1132 = vsub.s32 0, %v643
    %v1133 = vsel %vm771, %v1132, %v643
    %v1134 = vsub.s32 0, %v644
    %v1135 = vsel %vm772, %v1134, %v644
    %v1136 = vsub.s32 0, %v645
    %v1137 = vsel %vm773, %v1136, %v645
    %v1138 = vsub.s32 0, %v646
    %v1139 = vsel %vm774, %v1138, %v646
    %v1140 = vsub.s32 0, %v647
    %v1141 = vsel %vm775, %v1140, %v647
    %v1142 = vsub.s32 0, %v648
    %v1143 = vsel %vm776, %v1142, %v648
    %v1144 = vsub.s32 0, %v649
    %v1145 = vsel %vm777, %v1144, %v649
    %v1146 = vsub.s32 0, %v650
    %v1147 = vsel %vm778, %v1146, %v650
    %v1148 = vsub.s32 0, %v651
    %v1149 = vsel %vm779, %v1148, %v651
    %v1150 = vsub.s32 0, %v652
    %v1151 = vsel %vm780, %v1150, %v652
    %v1152 = vsub.s32 0, %v653
    %v1153 = vsel %vm781, %v1152, %v653
    %v1154 = vsub.s32 0, %v654
    %v1155 = vsel %vm782, %v1154, %v654
    %v1156 = vsub.s32 0, %v655
    %v1157 = vsel %vm783, %v1156, %v655
    %v1158 = vsub.s32 0, %v656
    %v1159 = vsel %vm784, %v1158, %v656
    %v1160 = vsub.s32 0, %v657
    %v1161 = vsel %vm785, %v1160, %v657
    %v1162 = vsub.s32 0, %v658
    %v1163 = vsel %vm786, %v1162, %v658
    %v1164 = vsub.s32 0, %v659
    %v1165 = vsel %vm787, %v1164, %v659
    %v1166 = vsub.s32 0, %v660
    %v1167 = vsel %vm788, %v1166, %v660
    %v1168 = vsub.s32 0, %v661
    %v1169 = vsel %vm789, %v1168, %v661
    %v1170 = vsub.s32 0, %v662
    %v1171 = vsel %vm790, %v1170, %v662
    %v1172 = vsub.s32 0, %v663
    %v1173 = vsel %vm791, %v1172, %v663
    %v1174 = vsub.s32 0, %v664
    %v1175 = vsel %vm792, %v1174, %v664
    %v1176 = vsub.s32 0, %v665
    %v1177 = vsel %vm793, %v1176, %v665
    %vm1178 = vcmp.lt.s32.totalorder %v923, 8
    %vm1179 = vcmp.lt.s32.totalorder %v925, 8
    %vm1180 = vcmp.lt.s32.totalorder %v927, 8
    %vm1181 = vcmp.lt.s32.totalorder %v929, 8
    %vm1182 = vcmp.lt.s32.totalorder %v931, 8
    %vm1183 = vcmp.lt.s32.totalorder %v933, 8
    %vm1184 = vcmp.lt.s32.totalorder %v935, 8
    %vm1185 = vcmp.lt.s32.totalorder %v937, 8
    %vm1186 = vcmp.lt.s32.totalorder %v939, 8
    %vm1187 = vcmp.lt.s32.totalorder %v941, 8
    %vm1188 = vcmp.lt.s32.totalorder %v943, 8
    %vm1189 = vcmp.lt.s32.totalorder %v945, 8
    %vm1190 = vcmp.lt.s32.totalorder %v947, 8
    %vm1191 = vcmp.lt.s32.totalorder %v949, 8
    %vm1192 = vcmp.lt.s32.totalorder %v951, 8
    %vm1193 = vcmp.lt.s32.totalorder %v953, 8
    %vm1194 = vcmp.lt.s32.totalorder %v955, 8
    %vm1195 = vcmp.lt.s32.totalorder %v957, 8
    %vm1196 = vcmp.lt.s32.totalorder %v959, 8
    %vm1197 = vcmp.lt.s32.totalorder %v961, 8
    %vm1198 = vcmp.lt.s32.totalorder %v963, 8
    %vm1199 = vcmp.lt.s32.totalorder %v965, 8
    %vm1200 = vcmp.lt.s32.totalorder %v967, 8
    %vm1201 = vcmp.lt.s32.totalorder %v969, 8
    %vm1202 = vcmp.lt.s32.totalorder %v971, 8
    %vm1203 = vcmp.lt.s32.totalorder %v973, 8
    %vm1204 = vcmp.lt.s32.totalorder %v975, 8
    %vm1205 = vcmp.lt.s32.totalorder %v977, 8
    %vm1206 = vcmp.lt.s32.totalorder %v979, 8
    %vm1207 = vcmp.lt.s32.totalorder %v981, 8
    %vm1208 = vcmp.lt.s32.totalorder %v983, 8
    %vm1209 = vcmp.lt.s32.totalorder %v985, 8
    %vm1210 = vcmp.lt.s32.totalorder %v987, 8
    %vm1211 = vcmp.lt.s32.totalorder %v989, 8
    %vm1212 = vcmp.lt.s32.totalorder %v991, 8
    %vm1213 = vcmp.lt.s32.totalorder %v993, 8
    %vm1214 = vcmp.lt.s32.totalorder %v995, 8
    %vm1215 = vcmp.lt.s32.totalorder %v997, 8
    %vm1216 = vcmp.lt.s32.totalorder %v999, 8
    %vm1217 = vcmp.lt.s32.totalorder %v1001, 8
    %vm1218 = vcmp.lt.s32.totalorder %v1003, 8
    %vm1219 = vcmp.lt.s32.totalorder %v1005, 8
    %vm1220 = vcmp.lt.s32.totalorder %v1007, 8
    %vm1221 = vcmp.lt.s32.totalorder %v1009, 8
    %vm1222 = vcmp.lt.s32.totalorder %v1011, 8
    %vm1223 = vcmp.lt.s32.totalorder %v1013, 8
    %vm1224 = vcmp.lt.s32.totalorder %v1015, 8
    %vm1225 = vcmp.lt.s32.totalorder %v1017, 8
    %vm1226 = vcmp.lt.s32.totalorder %v1019, 8
    %vm1227 = vcmp.lt.s32.totalorder %v1021, 8
    %vm1228 = vcmp.lt.s32.totalorder %v1023, 8
    %vm1229 = vcmp.lt.s32.totalorder %v1025, 8
    %vm1230 = vcmp.lt.s32.totalorder %v1027, 8
    %vm1231 = vcmp.lt.s32.totalorder %v1029, 8
    %vm1232 = vcmp.lt.s32.totalorder %v1031, 8
    %vm1233 = vcmp.lt.s32.totalorder %v1033, 8
    %vm1234 = vcmp.lt.s32.totalorder %v1035, 8
    %vm1235 = vcmp.lt.s32.totalorder %v1037, 8
    %vm1236 = vcmp.lt.s32.totalorder %v1039, 8
    %vm1237 = vcmp.lt.s32.totalorder %v1041, 8
    %vm1238 = vcmp.lt.s32.totalorder %v1043, 8
    %vm1239 = vcmp.lt.s32.totalorder %v1045, 8
    %vm1240 = vcmp.lt.s32.totalorder %v1047, 8
    %vm1241 = vcmp.lt.s32.totalorder %v1049, 8
    %vm1242 = vcmp.lt.s32.totalorder %v1051, 8
    %vm1243 = vcmp.lt.s32.totalorder %v1053, 8
    %vm1244 = vcmp.lt.s32.totalorder %v1055, 8
    %vm1245 = vcmp.lt.s32.totalorder %v1057, 8
    %vm1246 = vcmp.lt.s32.totalorder %v1059, 8
    %vm1247 = vcmp.lt.s32.totalorder %v1061, 8
    %vm1248 = vcmp.lt.s32.totalorder %v1063, 8
    %vm1249 = vcmp.lt.s32.totalorder %v1065, 8
    %vm1250 = vcmp.lt.s32.totalorder %v1067, 8
    %vm1251 = vcmp.lt.s32.totalorder %v1069, 8
    %vm1252 = vcmp.lt.s32.totalorder %v1071, 8
    %vm1253 = vcmp.lt.s32.totalorder %v1073, 8
    %vm1254 = vcmp.lt.s32.totalorder %v1075, 8
    %vm1255 = vcmp.lt.s32.totalorder %v1077, 8
    %vm1256 = vcmp.lt.s32.totalorder %v1079, 8
    %vm1257 = vcmp.lt.s32.totalorder %v1081, 8
    %vm1258 = vcmp.lt.s32.totalorder %v1083, 8
    %vm1259 = vcmp.lt.s32.totalorder %v1085, 8
    %vm1260 = vcmp.lt.s32.totalorder %v1087, 8
    %vm1261 = vcmp.lt.s32.totalorder %v1089, 8
    %vm1262 = vcmp.lt.s32.totalorder %v1091, 8
    %vm1263 = vcmp.lt.s32.totalorder %v1093, 8
    %vm1264 = vcmp.lt.s32.totalorder %v1095, 8
    %vm1265 = vcmp.lt.s32.totalorder %v1097, 8
    %vm1266 = vcmp.lt.s32.totalorder %v1099, 8
    %vm1267 = vcmp.lt.s32.totalorder %v1101, 8
    %vm1268 = vcmp.lt.s32.totalorder %v1103, 8
    %vm1269 = vcmp.lt.s32.totalorder %v1105, 8
    %vm1270 = vcmp.lt.s32.totalorder %v1107, 8
    %vm1271 = vcmp.lt.s32.totalorder %v1109, 8
    %vm1272 = vcmp.lt.s32.totalorder %v1111, 8
    %vm1273 = vcmp.lt.s32.totalorder %v1113, 8
    %vm1274 = vcmp.lt.s32.totalorder %v1115, 8
    %vm1275 = vcmp.lt.s32.totalorder %v1117, 8
    %vm1276 = vcmp.lt.s32.totalorder %v1119, 8
    %vm1277 = vcmp.lt.s32.totalorder %v1121, 8
    %vm1278 = vcmp.lt.s32.totalorder %v1123, 8
    %vm1279 = vcmp.lt.s32.totalorder %v1125, 8
    %vm1280 = vcmp.lt.s32.totalorder %v1127, 8
    %vm1281 = vcmp.lt.s32.totalorder %v1129, 8
    %vm1282 = vcmp.lt.s32.totalorder %v1131, 8
    %vm1283 = vcmp.lt.s32.totalorder %v1133, 8
    %vm1284 = vcmp.lt.s32.totalorder %v1135, 8
    %vm1285 = vcmp.lt.s32.totalorder %v1137, 8
    %vm1286 = vcmp.lt.s32.totalorder %v1139, 8
    %vm1287 = vcmp.lt.s32.totalorder %v1141, 8
    %vm1288 = vcmp.lt.s32.totalorder %v1143, 8
    %vm1289 = vcmp.lt.s32.totalorder %v1145, 8
    %vm1290 = vcmp.lt.s32.totalorder %v1147, 8
    %vm1291 = vcmp.lt.s32.totalorder %v1149, 8
    %vm1292 = vcmp.lt.s32.totalorder %v1151, 8
    %vm1293 = vcmp.lt.s32.totalorder %v1153, 8
    %vm1294 = vcmp.lt.s32.totalorder %v1155, 8
    %vm1295 = vcmp.lt.s32.totalorder %v1157, 8
    %vm1296 = vcmp.lt.s32.totalorder %v1159, 8
    %vm1297 = vcmp.lt.s32.totalorder %v1161, 8
    %vm1298 = vcmp.lt.s32.totalorder %v1163, 8
    %vm1299 = vcmp.lt.s32.totalorder %v1165, 8
    %vm1300 = vcmp.lt.s32.totalorder %v1167, 8
    %vm1301 = vcmp.lt.s32.totalorder %v1169, 8
    %vm1302 = vcmp.lt.s32.totalorder %v1171, 8
    %vm1303 = vcmp.lt.s32.totalorder %v1173, 8
    %vm1304 = vcmp.lt.s32.totalorder %v1175, 8
    %vm1305 = vcmp.lt.s32.totalorder %v1177, 8
    %vm1306 = vcmp.gt.s32.totalorder %v923, 1
    %v1307 = vsel %vm1306, %v923, 1
    %vm1308 = vcmp.gt.s32.totalorder %v925, 1
    %v1309 = vsel %vm1308, %v925, 1
    %vm1310 = vcmp.gt.s32.totalorder %v927, 1
    %v1311 = vsel %vm1310, %v927, 1
    %vm1312 = vcmp.gt.s32.totalorder %v929, 1
    %v1313 = vsel %vm1312, %v929, 1
    %vm1314 = vcmp.gt.s32.totalorder %v931, 1
    %v1315 = vsel %vm1314, %v931, 1
    %vm1316 = vcmp.gt.s32.totalorder %v933, 1
    %v1317 = vsel %vm1316, %v933, 1
    %vm1318 = vcmp.gt.s32.totalorder %v935, 1
    %v1319 = vsel %vm1318, %v935, 1
    %vm1320 = vcmp.gt.s32.totalorder %v937, 1
    %v1321 = vsel %vm1320, %v937, 1
    %vm1322 = vcmp.gt.s32.totalorder %v939, 1
    %v1323 = vsel %vm1322, %v939, 1
    %vm1324 = vcmp.gt.s32.totalorder %v941, 1
    %v1325 = vsel %vm1324, %v941, 1
    %vm1326 = vcmp.gt.s32.totalorder %v943, 1
    %v1327 = vsel %vm1326, %v943, 1
    %vm1328 = vcmp.gt.s32.totalorder %v945, 1
    %v1329 = vsel %vm1328, %v945, 1
    %vm1330 = vcmp.gt.s32.totalorder %v947, 1
    %v1331 = vsel %vm1330, %v947, 1
    %vm1332 = vcmp.gt.s32.totalorder %v949, 1
    %v1333 = vsel %vm1332, %v949, 1
    %vm1334 = vcmp.gt.s32.totalorder %v951, 1
    %v1335 = vsel %vm1334, %v951, 1
    %vm1336 = vcmp.gt.s32.totalorder %v953, 1
    %v1337 = vsel %vm1336, %v953, 1
    %vm1338 = vcmp.gt.s32.totalorder %v955, 1
    %v1339 = vsel %vm1338, %v955, 1
    %vm1340 = vcmp.gt.s32.totalorder %v957, 1
    %v1341 = vsel %vm1340, %v957, 1
    %vm1342 = vcmp.gt.s32.totalorder %v959, 1
    %v1343 = vsel %vm1342, %v959, 1
    %vm1344 = vcmp.gt.s32.totalorder %v961, 1
    %v1345 = vsel %vm1344, %v961, 1
    %vm1346 = vcmp.gt.s32.totalorder %v963, 1
    %v1347 = vsel %vm1346, %v963, 1
    %vm1348 = vcmp.gt.s32.totalorder %v965, 1
    %v1349 = vsel %vm1348, %v965, 1
    %vm1350 = vcmp.gt.s32.totalorder %v967, 1
    %v1351 = vsel %vm1350, %v967, 1
    %vm1352 = vcmp.gt.s32.totalorder %v969, 1
    %v1353 = vsel %vm1352, %v969, 1
    %vm1354 = vcmp.gt.s32.totalorder %v971, 1
    %v1355 = vsel %vm1354, %v971, 1
    %vm1356 = vcmp.gt.s32.totalorder %v973, 1
    %v1357 = vsel %vm1356, %v973, 1
    %vm1358 = vcmp.gt.s32.totalorder %v975, 1
    %v1359 = vsel %vm1358, %v975, 1
    %vm1360 = vcmp.gt.s32.totalorder %v977, 1
    %v1361 = vsel %vm1360, %v977, 1
    %vm1362 = vcmp.gt.s32.totalorder %v979, 1
    %v1363 = vsel %vm1362, %v979, 1
    %vm1364 = vcmp.gt.s32.totalorder %v981, 1
    %v1365 = vsel %vm1364, %v981, 1
    %vm1366 = vcmp.gt.s32.totalorder %v983, 1
    %v1367 = vsel %vm1366, %v983, 1
    %vm1368 = vcmp.gt.s32.totalorder %v985, 1
    %v1369 = vsel %vm1368, %v985, 1
    %vm1370 = vcmp.gt.s32.totalorder %v987, 1
    %v1371 = vsel %vm1370, %v987, 1
    %vm1372 = vcmp.gt.s32.totalorder %v989, 1
    %v1373 = vsel %vm1372, %v989, 1
    %vm1374 = vcmp.gt.s32.totalorder %v991, 1
    %v1375 = vsel %vm1374, %v991, 1
    %vm1376 = vcmp.gt.s32.totalorder %v993, 1
    %v1377 = vsel %vm1376, %v993, 1
    %vm1378 = vcmp.gt.s32.totalorder %v995, 1
    %v1379 = vsel %vm1378, %v995, 1
    %vm1380 = vcmp.gt.s32.totalorder %v997, 1
    %v1381 = vsel %vm1380, %v997, 1
    %vm1382 = vcmp.gt.s32.totalorder %v999, 1
    %v1383 = vsel %vm1382, %v999, 1
    %vm1384 = vcmp.gt.s32.totalorder %v1001, 1
    %v1385 = vsel %vm1384, %v1001, 1
    %vm1386 = vcmp.gt.s32.totalorder %v1003, 1
    %v1387 = vsel %vm1386, %v1003, 1
    %vm1388 = vcmp.gt.s32.totalorder %v1005, 1
    %v1389 = vsel %vm1388, %v1005, 1
    %vm1390 = vcmp.gt.s32.totalorder %v1007, 1
    %v1391 = vsel %vm1390, %v1007, 1
    %vm1392 = vcmp.gt.s32.totalorder %v1009, 1
    %v1393 = vsel %vm1392, %v1009, 1
    %vm1394 = vcmp.gt.s32.totalorder %v1011, 1
    %v1395 = vsel %vm1394, %v1011, 1
    %vm1396 = vcmp.gt.s32.totalorder %v1013, 1
    %v1397 = vsel %vm1396, %v1013, 1
    %vm1398 = vcmp.gt.s32.totalorder %v1015, 1
    %v1399 = vsel %vm1398, %v1015, 1
    %vm1400 = vcmp.gt.s32.totalorder %v1017, 1
    %v1401 = vsel %vm1400, %v1017, 1
    %vm1402 = vcmp.gt.s32.totalorder %v1019, 1
    %v1403 = vsel %vm1402, %v1019, 1
    %vm1404 = vcmp.gt.s32.totalorder %v1021, 1
    %v1405 = vsel %vm1404, %v1021, 1
    %vm1406 = vcmp.gt.s32.totalorder %v1023, 1
    %v1407 = vsel %vm1406, %v1023, 1
    %vm1408 = vcmp.gt.s32.totalorder %v1025, 1
    %v1409 = vsel %vm1408, %v1025, 1
    %vm1410 = vcmp.gt.s32.totalorder %v1027, 1
    %v1411 = vsel %vm1410, %v1027, 1
    %vm1412 = vcmp.gt.s32.totalorder %v1029, 1
    %v1413 = vsel %vm1412, %v1029, 1
    %vm1414 = vcmp.gt.s32.totalorder %v1031, 1
    %v1415 = vsel %vm1414, %v1031, 1
    %vm1416 = vcmp.gt.s32.totalorder %v1033, 1
    %v1417 = vsel %vm1416, %v1033, 1
    %vm1418 = vcmp.gt.s32.totalorder %v1035, 1
    %v1419 = vsel %vm1418, %v1035, 1
    %vm1420 = vcmp.gt.s32.totalorder %v1037, 1
    %v1421 = vsel %vm1420, %v1037, 1
    %vm1422 = vcmp.gt.s32.totalorder %v1039, 1
    %v1423 = vsel %vm1422, %v1039, 1
    %vm1424 = vcmp.gt.s32.totalorder %v1041, 1
    %v1425 = vsel %vm1424, %v1041, 1
    %vm1426 = vcmp.gt.s32.totalorder %v1043, 1
    %v1427 = vsel %vm1426, %v1043, 1
    %vm1428 = vcmp.gt.s32.totalorder %v1045, 1
    %v1429 = vsel %vm1428, %v1045, 1
    %vm1430 = vcmp.gt.s32.totalorder %v1047, 1
    %v1431 = vsel %vm1430, %v1047, 1
    %vm1432 = vcmp.gt.s32.totalorder %v1049, 1
    %v1433 = vsel %vm1432, %v1049, 1
    %vm1434 = vcmp.gt.s32.totalorder %v1051, 1
    %v1435 = vsel %vm1434, %v1051, 1
    %vm1436 = vcmp.gt.s32.totalorder %v1053, 1
    %v1437 = vsel %vm1436, %v1053, 1
    %vm1438 = vcmp.gt.s32.totalorder %v1055, 1
    %v1439 = vsel %vm1438, %v1055, 1
    %vm1440 = vcmp.gt.s32.totalorder %v1057, 1
    %v1441 = vsel %vm1440, %v1057, 1
    %vm1442 = vcmp.gt.s32.totalorder %v1059, 1
    %v1443 = vsel %vm1442, %v1059, 1
    %vm1444 = vcmp.gt.s32.totalorder %v1061, 1
    %v1445 = vsel %vm1444, %v1061, 1
    %vm1446 = vcmp.gt.s32.totalorder %v1063, 1
    %v1447 = vsel %vm1446, %v1063, 1
    %vm1448 = vcmp.gt.s32.totalorder %v1065, 1
    %v1449 = vsel %vm1448, %v1065, 1
    %vm1450 = vcmp.gt.s32.totalorder %v1067, 1
    %v1451 = vsel %vm1450, %v1067, 1
    %vm1452 = vcmp.gt.s32.totalorder %v1069, 1
    %v1453 = vsel %vm1452, %v1069, 1
    %vm1454 = vcmp.gt.s32.totalorder %v1071, 1
    %v1455 = vsel %vm1454, %v1071, 1
    %vm1456 = vcmp.gt.s32.totalorder %v1073, 1
    %v1457 = vsel %vm1456, %v1073, 1
    %vm1458 = vcmp.gt.s32.totalorder %v1075, 1
    %v1459 = vsel %vm1458, %v1075, 1
    %vm1460 = vcmp.gt.s32.totalorder %v1077, 1
    %v1461 = vsel %vm1460, %v1077, 1
    %vm1462 = vcmp.gt.s32.totalorder %v1079, 1
    %v1463 = vsel %vm1462, %v1079, 1
    %vm1464 = vcmp.gt.s32.totalorder %v1081, 1
    %v1465 = vsel %vm1464, %v1081, 1
    %vm1466 = vcmp.gt.s32.totalorder %v1083, 1
    %v1467 = vsel %vm1466, %v1083, 1
    %vm1468 = vcmp.gt.s32.totalorder %v1085, 1
    %v1469 = vsel %vm1468, %v1085, 1
    %vm1470 = vcmp.gt.s32.totalorder %v1087, 1
    %v1471 = vsel %vm1470, %v1087, 1
    %vm1472 = vcmp.gt.s32.totalorder %v1089, 1
    %v1473 = vsel %vm1472, %v1089, 1
    %vm1474 = vcmp.gt.s32.totalorder %v1091, 1
    %v1475 = vsel %vm1474, %v1091, 1
    %vm1476 = vcmp.gt.s32.totalorder %v1093, 1
    %v1477 = vsel %vm1476, %v1093, 1
    %vm1478 = vcmp.gt.s32.totalorder %v1095, 1
    %v1479 = vsel %vm1478, %v1095, 1
    %vm1480 = vcmp.gt.s32.totalorder %v1097, 1
    %v1481 = vsel %vm1480, %v1097, 1
    %vm1482 = vcmp.gt.s32.totalorder %v1099, 1
    %v1483 = vsel %vm1482, %v1099, 1
    %vm1484 = vcmp.gt.s32.totalorder %v1101, 1
    %v1485 = vsel %vm1484, %v1101, 1
    %vm1486 = vcmp.gt.s32.totalorder %v1103, 1
    %v1487 = vsel %vm1486, %v1103, 1
    %vm1488 = vcmp.gt.s32.totalorder %v1105, 1
    %v1489 = vsel %vm1488, %v1105, 1
    %vm1490 = vcmp.gt.s32.totalorder %v1107, 1
    %v1491 = vsel %vm1490, %v1107, 1
    %vm1492 = vcmp.gt.s32.totalorder %v1109, 1
    %v1493 = vsel %vm1492, %v1109, 1
    %vm1494 = vcmp.gt.s32.totalorder %v1111, 1
    %v1495 = vsel %vm1494, %v1111, 1
    %vm1496 = vcmp.gt.s32.totalorder %v1113, 1
    %v1497 = vsel %vm1496, %v1113, 1
    %vm1498 = vcmp.gt.s32.totalorder %v1115, 1
    %v1499 = vsel %vm1498, %v1115, 1
    %vm1500 = vcmp.gt.s32.totalorder %v1117, 1
    %v1501 = vsel %vm1500, %v1117, 1
    %vm1502 = vcmp.gt.s32.totalorder %v1119, 1
    %v1503 = vsel %vm1502, %v1119, 1
    %vm1504 = vcmp.gt.s32.totalorder %v1121, 1
    %v1505 = vsel %vm1504, %v1121, 1
    %vm1506 = vcmp.gt.s32.totalorder %v1123, 1
    %v1507 = vsel %vm1506, %v1123, 1
    %vm1508 = vcmp.gt.s32.totalorder %v1125, 1
    %v1509 = vsel %vm1508, %v1125, 1
    %vm1510 = vcmp.gt.s32.totalorder %v1127, 1
    %v1511 = vsel %vm1510, %v1127, 1
    %vm1512 = vcmp.gt.s32.totalorder %v1129, 1
    %v1513 = vsel %vm1512, %v1129, 1
    %vm1514 = vcmp.gt.s32.totalorder %v1131, 1
    %v1515 = vsel %vm1514, %v1131, 1
    %vm1516 = vcmp.gt.s32.totalorder %v1133, 1
    %v1517 = vsel %vm1516, %v1133, 1
    %vm1518 = vcmp.gt.s32.totalorder %v1135, 1
    %v1519 = vsel %vm1518, %v1135, 1
    %vm1520 = vcmp.gt.s32.totalorder %v1137, 1
    %v1521 = vsel %vm1520, %v1137, 1
    %vm1522 = vcmp.gt.s32.totalorder %v1139, 1
    %v1523 = vsel %vm1522, %v1139, 1
    %vm1524 = vcmp.gt.s32.totalorder %v1141, 1
    %v1525 = vsel %vm1524, %v1141, 1
    %vm1526 = vcmp.gt.s32.totalorder %v1143, 1
    %v1527 = vsel %vm1526, %v1143, 1
    %vm1528 = vcmp.gt.s32.totalorder %v1145, 1
    %v1529 = vsel %vm1528, %v1145, 1
    %vm1530 = vcmp.gt.s32.totalorder %v1147, 1
    %v1531 = vsel %vm1530, %v1147, 1
    %vm1532 = vcmp.gt.s32.totalorder %v1149, 1
    %v1533 = vsel %vm1532, %v1149, 1
    %vm1534 = vcmp.gt.s32.totalorder %v1151, 1
    %v1535 = vsel %vm1534, %v1151, 1
    %vm1536 = vcmp.gt.s32.totalorder %v1153, 1
    %v1537 = vsel %vm1536, %v1153, 1
    %vm1538 = vcmp.gt.s32.totalorder %v1155, 1
    %v1539 = vsel %vm1538, %v1155, 1
    %vm1540 = vcmp.gt.s32.totalorder %v1157, 1
    %v1541 = vsel %vm1540, %v1157, 1
    %vm1542 = vcmp.gt.s32.totalorder %v1159, 1
    %v1543 = vsel %vm1542, %v1159, 1
    %vm1544 = vcmp.gt.s32.totalorder %v1161, 1
    %v1545 = vsel %vm1544, %v1161, 1
    %vm1546 = vcmp.gt.s32.totalorder %v1163, 1
    %v1547 = vsel %vm1546, %v1163, 1
    %vm1548 = vcmp.gt.s32.totalorder %v1165, 1
    %v1549 = vsel %vm1548, %v1165, 1
    %vm1550 = vcmp.gt.s32.totalorder %v1167, 1
    %v1551 = vsel %vm1550, %v1167, 1
    %vm1552 = vcmp.gt.s32.totalorder %v1169, 1
    %v1553 = vsel %vm1552, %v1169, 1
    %vm1554 = vcmp.gt.s32.totalorder %v1171, 1
    %v1555 = vsel %vm1554, %v1171, 1
    %vm1556 = vcmp.gt.s32.totalorder %v1173, 1
    %v1557 = vsel %vm1556, %v1173, 1
    %vm1558 = vcmp.gt.s32.totalorder %v1175, 1
    %v1559 = vsel %vm1558, %v1175, 1
    %vm1560 = vcmp.gt.s32.totalorder %v1177, 1
    %v1561 = vsel %vm1560, %v1177, 1
    %v1562 = vcvt.s32.f32 %v1307
    %v1563 = vcvt.s32.f32 %v1309
    %v1564 = vcvt.s32.f32 %v1311
    %v1565 = vcvt.s32.f32 %v1313
    %v1566 = vcvt.s32.f32 %v1315
    %v1567 = vcvt.s32.f32 %v1317
    %v1568 = vcvt.s32.f32 %v1319
    %v1569 = vcvt.s32.f32 %v1321
    %v1570 = vcvt.s32.f32 %v1323
    %v1571 = vcvt.s32.f32 %v1325
    %v1572 = vcvt.s32.f32 %v1327
    %v1573 = vcvt.s32.f32 %v1329
    %v1574 = vcvt.s32.f32 %v1331
    %v1575 = vcvt.s32.f32 %v1333
    %v1576 = vcvt.s32.f32 %v1335
    %v1577 = vcvt.s32.f32 %v1337
    %v1578 = vcvt.s32.f32 %v1339
    %v1579 = vcvt.s32.f32 %v1341
    %v1580 = vcvt.s32.f32 %v1343
    %v1581 = vcvt.s32.f32 %v1345
    %v1582 = vcvt.s32.f32 %v1347
    %v1583 = vcvt.s32.f32 %v1349
    %v1584 = vcvt.s32.f32 %v1351
    %v1585 = vcvt.s32.f32 %v1353
    %v1586 = vcvt.s32.f32 %v1355
    %v1587 = vcvt.s32.f32 %v1357
    %v1588 = vcvt.s32.f32 %v1359
    %v1589 = vcvt.s32.f32 %v1361
    %v1590 = vcvt.s32.f32 %v1363
    %v1591 = vcvt.s32.f32 %v1365
    %v1592 = vcvt.s32.f32 %v1367
    %v1593 = vcvt.s32.f32 %v1369
    %v1594 = vcvt.s32.f32 %v1371
    %v1595 = vcvt.s32.f32 %v1373
    %v1596 = vcvt.s32.f32 %v1375
    %v1597 = vcvt.s32.f32 %v1377
    %v1598 = vcvt.s32.f32 %v1379
    %v1599 = vcvt.s32.f32 %v1381
    %v1600 = vcvt.s32.f32 %v1383
    %v1601 = vcvt.s32.f32 %v1385
    %v1602 = vcvt.s32.f32 %v1387
    %v1603 = vcvt.s32.f32 %v1389
    %v1604 = vcvt.s32.f32 %v1391
    %v1605 = vcvt.s32.f32 %v1393
    %v1606 = vcvt.s32.f32 %v1395
    %v1607 = vcvt.s32.f32 %v1397
    %v1608 = vcvt.s32.f32 %v1399
    %v1609 = vcvt.s32.f32 %v1401
    %v1610 = vcvt.s32.f32 %v1403
    %v1611 = vcvt.s32.f32 %v1405
    %v1612 = vcvt.s32.f32 %v1407
    %v1613 = vcvt.s32.f32 %v1409
    %v1614 = vcvt.s32.f32 %v1411
    %v1615 = vcvt.s32.f32 %v1413
    %v1616 = vcvt.s32.f32 %v1415
    %v1617 = vcvt.s32.f32 %v1417
    %v1618 = vcvt.s32.f32 %v1419
    %v1619 = vcvt.s32.f32 %v1421
    %v1620 = vcvt.s32.f32 %v1423
    %v1621 = vcvt.s32.f32 %v1425
    %v1622 = vcvt.s32.f32 %v1427
    %v1623 = vcvt.s32.f32 %v1429
    %v1624 = vcvt.s32.f32 %v1431
    %v1625 = vcvt.s32.f32 %v1433
    %v1626 = vcvt.s32.f32 %v1435
    %v1627 = vcvt.s32.f32 %v1437
    %v1628 = vcvt.s32.f32 %v1439
    %v1629 = vcvt.s32.f32 %v1441
    %v1630 = vcvt.s32.f32 %v1443
    %v1631 = vcvt.s32.f32 %v1445
    %v1632 = vcvt.s32.f32 %v1447
    %v1633 = vcvt.s32.f32 %v1449
    %v1634 = vcvt.s32.f32 %v1451
    %v1635 = vcvt.s32.f32 %v1453
    %v1636 = vcvt.s32.f32 %v1455
    %v1637 = vcvt.s32.f32 %v1457
    %v1638 = vcvt.s32.f32 %v1459
    %v1639 = vcvt.s32.f32 %v1461
    %v1640 = vcvt.s32.f32 %v1463
    %v1641 = vcvt.s32.f32 %v1465
    %v1642 = vcvt.s32.f32 %v1467
    %v1643 = vcvt.s32.f32 %v1469
    %v1644 = vcvt.s32.f32 %v1471
    %v1645 = vcvt.s32.f32 %v1473
    %v1646 = vcvt.s32.f32 %v1475
    %v1647 = vcvt.s32.f32 %v1477
    %v1648 = vcvt.s32.f32 %v1479
    %v1649 = vcvt.s32.f32 %v1481
    %v1650 = vcvt.s32.f32 %v1483
    %v1651 = vcvt.s32.f32 %v1485
    %v1652 = vcvt.s32.f32 %v1487
    %v1653 = vcvt.s32.f32 %v1489
    %v1654 = vcvt.s32.f32 %v1491
    %v1655 = vcvt.s32.f32 %v1493
    %v1656 = vcvt.s32.f32 %v1495
    %v1657 = vcvt.s32.f32 %v1497
    %v1658 = vcvt.s32.f32 %v1499
    %v1659 = vcvt.s32.f32 %v1501
    %v1660 = vcvt.s32.f32 %v1503
    %v1661 = vcvt.s32.f32 %v1505
    %v1662 = vcvt.s32.f32 %v1507
    %v1663 = vcvt.s32.f32 %v1509
    %v1664 = vcvt.s32.f32 %v1511
    %v1665 = vcvt.s32.f32 %v1513
    %v1666 = vcvt.s32.f32 %v1515
    %v1667 = vcvt.s32.f32 %v1517
    %v1668 = vcvt.s32.f32 %v1519
    %v1669 = vcvt.s32.f32 %v1521
    %v1670 = vcvt.s32.f32 %v1523
    %v1671 = vcvt.s32.f32 %v1525
    %v1672 = vcvt.s32.f32 %v1527
    %v1673 = vcvt.s32.f32 %v1529
    %v1674 = vcvt.s32.f32 %v1531
    %v1675 = vcvt.s32.f32 %v1533
    %v1676 = vcvt.s32.f32 %v1535
    %v1677 = vcvt.s32.f32 %v1537
    %v1678 = vcvt.s32.f32 %v1539
    %v1679 = vcvt.s32.f32 %v1541
    %v1680 = vcvt.s32.f32 %v1543
    %v1681 = vcvt.s32.f32 %v1545
    %v1682 = vcvt.s32.f32 %v1547
    %v1683 = vcvt.s32.f32 %v1549
    %v1684 = vcvt.s32.f32 %v1551
    %v1685 = vcvt.s32.f32 %v1553
    %v1686 = vcvt.s32.f32 %v1555
    %v1687 = vcvt.s32.f32 %v1557
    %v1688 = vcvt.s32.f32 %v1559
    %v1689 = vcvt.s32.f32 %v1561
    %v1690 = vmul.f32 %v1562, 0.125
    %v1691 = vmul.f32 %v1563, 0.125
    %v1692 = vmul.f32 %v1564, 0.125
    %v1693 = vmul.f32 %v1565, 0.125
    %v1694 = vmul.f32 %v1566, 0.125
    %v1695 = vmul.f32 %v1567, 0.125
    %v1696 = vmul.f32 %v1568, 0.125
    %v1697 = vmul.f32 %v1569, 0.125
    %v1698 = vmul.f32 %v1570, 0.125
    %v1699 = vmul.f32 %v1571, 0.125
    %v1700 = vmul.f32 %v1572, 0.125
    %v1701 = vmul.f32 %v1573, 0.125
    %v1702 = vmul.f32 %v1574, 0.125
    %v1703 = vmul.f32 %v1575, 0.125
    %v1704 = vmul.f32 %v1576, 0.125
    %v1705 = vmul.f32 %v1577, 0.125
    %v1706 = vmul.f32 %v1578, 0.125
    %v1707 = vmul.f32 %v1579, 0.125
    %v1708 = vmul.f32 %v1580, 0.125
    %v1709 = vmul.f32 %v1581, 0.125
    %v1710 = vmul.f32 %v1582, 0.125
    %v1711 = vmul.f32 %v1583, 0.125
    %v1712 = vmul.f32 %v1584, 0.125
    %v1713 = vmul.f32 %v1585, 0.125
    %v1714 = vmul.f32 %v1586, 0.125
    %v1715 = vmul.f32 %v1587, 0.125
    %v1716 = vmul.f32 %v1588, 0.125
    %v1717 = vmul.f32 %v1589, 0.125
    %v1718 = vmul.f32 %v1590, 0.125
    %v1719 = vmul.f32 %v1591, 0.125
    %v1720 = vmul.f32 %v1592, 0.125
    %v1721 = vmul.f32 %v1593, 0.125
    %v1722 = vmul.f32 %v1594, 0.125
    %v1723 = vmul.f32 %v1595, 0.125
    %v1724 = vmul.f32 %v1596, 0.125
    %v1725 = vmul.f32 %v1597, 0.125
    %v1726 = vmul.f32 %v1598, 0.125
    %v1727 = vmul.f32 %v1599, 0.125
    %v1728 = vmul.f32 %v1600, 0.125
    %v1729 = vmul.f32 %v1601, 0.125
    %v1730 = vmul.f32 %v1602, 0.125
    %v1731 = vmul.f32 %v1603, 0.125
    %v1732 = vmul.f32 %v1604, 0.125
    %v1733 = vmul.f32 %v1605, 0.125
    %v1734 = vmul.f32 %v1606, 0.125
    %v1735 = vmul.f32 %v1607, 0.125
    %v1736 = vmul.f32 %v1608, 0.125
    %v1737 = vmul.f32 %v1609, 0.125
    %v1738 = vmul.f32 %v1610, 0.125
    %v1739 = vmul.f32 %v1611, 0.125
    %v1740 = vmul.f32 %v1612, 0.125
    %v1741 = vmul.f32 %v1613, 0.125
    %v1742 = vmul.f32 %v1614, 0.125
    %v1743 = vmul.f32 %v1615, 0.125
    %v1744 = vmul.f32 %v1616, 0.125
    %v1745 = vmul.f32 %v1617, 0.125
    %v1746 = vmul.f32 %v1618, 0.125
    %v1747 = vmul.f32 %v1619, 0.125
    %v1748 = vmul.f32 %v1620, 0.125
    %v1749 = vmul.f32 %v1621, 0.125
    %v1750 = vmul.f32 %v1622, 0.125
    %v1751 = vmul.f32 %v1623, 0.125
    %v1752 = vmul.f32 %v1624, 0.125
    %v1753 = vmul.f32 %v1625, 0.125
    %v1754 = vmul.f32 %v1626, 0.125
    %v1755 = vmul.f32 %v1627, 0.125
    %v1756 = vmul.f32 %v1628, 0.125
    %v1757 = vmul.f32 %v1629, 0.125
    %v1758 = vmul.f32 %v1630, 0.125
    %v1759 = vmul.f32 %v1631, 0.125
    %v1760 = vmul.f32 %v1632, 0.125
    %v1761 = vmul.f32 %v1633, 0.125
    %v1762 = vmul.f32 %v1634, 0.125
    %v1763 = vmul.f32 %v1635, 0.125
    %v1764 = vmul.f32 %v1636, 0.125
    %v1765 = vmul.f32 %v1637, 0.125
    %v1766 = vmul.f32 %v1638, 0.125
    %v1767 = vmul.f32 %v1639, 0.125
    %v1768 = vmul.f32 %v1640, 0.125
    %v1769 = vmul.f32 %v1641, 0.125
    %v1770 = vmul.f32 %v1642, 0.125
    %v1771 = vmul.f32 %v1643, 0.125
    %v1772 = vmul.f32 %v1644, 0.125
    %v1773 = vmul.f32 %v1645, 0.125
    %v1774 = vmul.f32 %v1646, 0.125
    %v1775 = vmul.f32 %v1647, 0.125
    %v1776 = vmul.f32 %v1648, 0.125
    %v1777 = vmul.f32 %v1649, 0.125
    %v1778 = vmul.f32 %v1650, 0.125
    %v1779 = vmul.f32 %v1651, 0.125
    %v1780 = vmul.f32 %v1652, 0.125
    %v1781 = vmul.f32 %v1653, 0.125
    %v1782 = vmul.f32 %v1654, 0.125
    %v1783 = vmul.f32 %v1655, 0.125
    %v1784 = vmul.f32 %v1656, 0.125
    %v1785 = vmul.f32 %v1657, 0.125
    %v1786 = vmul.f32 %v1658, 0.125
    %v1787 = vmul.f32 %v1659, 0.125
    %v1788 = vmul.f32 %v1660, 0.125
    %v1789 = vmul.f32 %v1661, 0.125
    %v1790 = vmul.f32 %v1662, 0.125
    %v1791 = vmul.f32 %v1663, 0.125
    %v1792 = vmul.f32 %v1664, 0.125
    %v1793 = vmul.f32 %v1665, 0.125
    %v1794 = vmul.f32 %v1666, 0.125
    %v1795 = vmul.f32 %v1667, 0.125
    %v1796 = vmul.f32 %v1668, 0.125
    %v1797 = vmul.f32 %v1669, 0.125
    %v1798 = vmul.f32 %v1670, 0.125
    %v1799 = vmul.f32 %v1671, 0.125
    %v1800 = vmul.f32 %v1672, 0.125
    %v1801 = vmul.f32 %v1673, 0.125
    %v1802 = vmul.f32 %v1674, 0.125
    %v1803 = vmul.f32 %v1675, 0.125
    %v1804 = vmul.f32 %v1676, 0.125
    %v1805 = vmul.f32 %v1677, 0.125
    %v1806 = vmul.f32 %v1678, 0.125
    %v1807 = vmul.f32 %v1679, 0.125
    %v1808 = vmul.f32 %v1680, 0.125
    %v1809 = vmul.f32 %v1681, 0.125
    %v1810 = vmul.f32 %v1682, 0.125
    %v1811 = vmul.f32 %v1683, 0.125
    %v1812 = vmul.f32 %v1684, 0.125
    %v1813 = vmul.f32 %v1685, 0.125
    %v1814 = vmul.f32 %v1686, 0.125
    %v1815 = vmul.f32 %v1687, 0.125
    %v1816 = vmul.f32 %v1688, 0.125
    %v1817 = vmul.f32 %v1689, 0.125
    %v1818 = vlog2.pop %v1690
    %v1819 = vmul.f32 %v1818, 0.6931472
    %v1820 = vlog2.pop %v1691
    %v1821 = vmul.f32 %v1820, 0.6931472
    %v1822 = vlog2.pop %v1692
    %v1823 = vmul.f32 %v1822, 0.6931472
    %v1824 = vlog2.pop %v1693
    %v1825 = vmul.f32 %v1824, 0.6931472
    %v1826 = vlog2.pop %v1694
    %v1827 = vmul.f32 %v1826, 0.6931472
    %v1828 = vlog2.pop %v1695
    %v1829 = vmul.f32 %v1828, 0.6931472
    %v1830 = vlog2.pop %v1696
    %v1831 = vmul.f32 %v1830, 0.6931472
    %v1832 = vlog2.pop %v1697
    %v1833 = vmul.f32 %v1832, 0.6931472
    %v1834 = vlog2.pop %v1698
    %v1835 = vmul.f32 %v1834, 0.6931472
    %v1836 = vlog2.pop %v1699
    %v1837 = vmul.f32 %v1836, 0.6931472
    %v1838 = vlog2.pop %v1700
    %v1839 = vmul.f32 %v1838, 0.6931472
    %v1840 = vlog2.pop %v1701
    %v1841 = vmul.f32 %v1840, 0.6931472
    %v1842 = vlog2.pop %v1702
    %v1843 = vmul.f32 %v1842, 0.6931472
    %v1844 = vlog2.pop %v1703
    %v1845 = vmul.f32 %v1844, 0.6931472
    %v1846 = vlog2.pop %v1704
    %v1847 = vmul.f32 %v1846, 0.6931472
    %v1848 = vlog2.pop %v1705
    %v1849 = vmul.f32 %v1848, 0.6931472
    %v1850 = vlog2.pop %v1706
    %v1851 = vmul.f32 %v1850, 0.6931472
    %v1852 = vlog2.pop %v1707
    %v1853 = vmul.f32 %v1852, 0.6931472
    %v1854 = vlog2.pop %v1708
    %v1855 = vmul.f32 %v1854, 0.6931472
    %v1856 = vlog2.pop %v1709
    %v1857 = vmul.f32 %v1856, 0.6931472
    %v1858 = vlog2.pop %v1710
    %v1859 = vmul.f32 %v1858, 0.6931472
    %v1860 = vlog2.pop %v1711
    %v1861 = vmul.f32 %v1860, 0.6931472
    %v1862 = vlog2.pop %v1712
    %v1863 = vmul.f32 %v1862, 0.6931472
    %v1864 = vlog2.pop %v1713
    %v1865 = vmul.f32 %v1864, 0.6931472
    %v1866 = vlog2.pop %v1714
    %v1867 = vmul.f32 %v1866, 0.6931472
    %v1868 = vlog2.pop %v1715
    %v1869 = vmul.f32 %v1868, 0.6931472
    %v1870 = vlog2.pop %v1716
    %v1871 = vmul.f32 %v1870, 0.6931472
    %v1872 = vlog2.pop %v1717
    %v1873 = vmul.f32 %v1872, 0.6931472
    %v1874 = vlog2.pop %v1718
    %v1875 = vmul.f32 %v1874, 0.6931472
    %v1876 = vlog2.pop %v1719
    %v1877 = vmul.f32 %v1876, 0.6931472
    %v1878 = vlog2.pop %v1720
    %v1879 = vmul.f32 %v1878, 0.6931472
    %v1880 = vlog2.pop %v1721
    %v1881 = vmul.f32 %v1880, 0.6931472
    %v1882 = vlog2.pop %v1722
    %v1883 = vmul.f32 %v1882, 0.6931472
    %v1884 = vlog2.pop %v1723
    %v1885 = vmul.f32 %v1884, 0.6931472
    %v1886 = vlog2.pop %v1724
    %v1887 = vmul.f32 %v1886, 0.6931472
    %v1888 = vlog2.pop %v1725
    %v1889 = vmul.f32 %v1888, 0.6931472
    %v1890 = vlog2.pop %v1726
    %v1891 = vmul.f32 %v1890, 0.6931472
    %v1892 = vlog2.pop %v1727
    %v1893 = vmul.f32 %v1892, 0.6931472
    %v1894 = vlog2.pop %v1728
    %v1895 = vmul.f32 %v1894, 0.6931472
    %v1896 = vlog2.pop %v1729
    %v1897 = vmul.f32 %v1896, 0.6931472
    %v1898 = vlog2.pop %v1730
    %v1899 = vmul.f32 %v1898, 0.6931472
    %v1900 = vlog2.pop %v1731
    %v1901 = vmul.f32 %v1900, 0.6931472
    %v1902 = vlog2.pop %v1732
    %v1903 = vmul.f32 %v1902, 0.6931472
    %v1904 = vlog2.pop %v1733
    %v1905 = vmul.f32 %v1904, 0.6931472
    %v1906 = vlog2.pop %v1734
    %v1907 = vmul.f32 %v1906, 0.6931472
    %v1908 = vlog2.pop %v1735
    %v1909 = vmul.f32 %v1908, 0.6931472
    %v1910 = vlog2.pop %v1736
    %v1911 = vmul.f32 %v1910, 0.6931472
    %v1912 = vlog2.pop %v1737
    %v1913 = vmul.f32 %v1912, 0.6931472
    %v1914 = vlog2.pop %v1738
    %v1915 = vmul.f32 %v1914, 0.6931472
    %v1916 = vlog2.pop %v1739
    %v1917 = vmul.f32 %v1916, 0.6931472
    %v1918 = vlog2.pop %v1740
    %v1919 = vmul.f32 %v1918, 0.6931472
    %v1920 = vlog2.pop %v1741
    %v1921 = vmul.f32 %v1920, 0.6931472
    %v1922 = vlog2.pop %v1742
    %v1923 = vmul.f32 %v1922, 0.6931472
    %v1924 = vlog2.pop %v1743
    %v1925 = vmul.f32 %v1924, 0.6931472
    %v1926 = vlog2.pop %v1744
    %v1927 = vmul.f32 %v1926, 0.6931472
    %v1928 = vlog2.pop %v1745
    %v1929 = vmul.f32 %v1928, 0.6931472
    %v1930 = vlog2.pop %v1746
    %v1931 = vmul.f32 %v1930, 0.6931472
    %v1932 = vlog2.pop %v1747
    %v1933 = vmul.f32 %v1932, 0.6931472
    %v1934 = vlog2.pop %v1748
    %v1935 = vmul.f32 %v1934, 0.6931472
    %v1936 = vlog2.pop %v1749
    %v1937 = vmul.f32 %v1936, 0.6931472
    %v1938 = vlog2.pop %v1750
    %v1939 = vmul.f32 %v1938, 0.6931472
    %v1940 = vlog2.pop %v1751
    %v1941 = vmul.f32 %v1940, 0.6931472
    %v1942 = vlog2.pop %v1752
    %v1943 = vmul.f32 %v1942, 0.6931472
    %v1944 = vlog2.pop %v1753
    %v1945 = vmul.f32 %v1944, 0.6931472
    %v1946 = vlog2.pop %v1754
    %v1947 = vmul.f32 %v1946, 0.6931472
    %v1948 = vlog2.pop %v1755
    %v1949 = vmul.f32 %v1948, 0.6931472
    %v1950 = vlog2.pop %v1756
    %v1951 = vmul.f32 %v1950, 0.6931472
    %v1952 = vlog2.pop %v1757
    %v1953 = vmul.f32 %v1952, 0.6931472
    %v1954 = vlog2.pop %v1758
    %v1955 = vmul.f32 %v1954, 0.6931472
    %v1956 = vlog2.pop %v1759
    %v1957 = vmul.f32 %v1956, 0.6931472
    %v1958 = vlog2.pop %v1760
    %v1959 = vmul.f32 %v1958, 0.6931472
    %v1960 = vlog2.pop %v1761
    %v1961 = vmul.f32 %v1960, 0.6931472
    %v1962 = vlog2.pop %v1762
    %v1963 = vmul.f32 %v1962, 0.6931472
    %v1964 = vlog2.pop %v1763
    %v1965 = vmul.f32 %v1964, 0.6931472
    %v1966 = vlog2.pop %v1764
    %v1967 = vmul.f32 %v1966, 0.6931472
    %v1968 = vlog2.pop %v1765
    %v1969 = vmul.f32 %v1968, 0.6931472
    %v1970 = vlog2.pop %v1766
    %v1971 = vmul.f32 %v1970, 0.6931472
    %v1972 = vlog2.pop %v1767
    %v1973 = vmul.f32 %v1972, 0.6931472
    %v1974 = vlog2.pop %v1768
    %v1975 = vmul.f32 %v1974, 0.6931472
    %v1976 = vlog2.pop %v1769
    %v1977 = vmul.f32 %v1976, 0.6931472
    %v1978 = vlog2.pop %v1770
    %v1979 = vmul.f32 %v1978, 0.6931472
    %v1980 = vlog2.pop %v1771
    %v1981 = vmul.f32 %v1980, 0.6931472
    %v1982 = vlog2.pop %v1772
    %v1983 = vmul.f32 %v1982, 0.6931472
    %v1984 = vlog2.pop %v1773
    %v1985 = vmul.f32 %v1984, 0.6931472
    %v1986 = vlog2.pop %v1774
    %v1987 = vmul.f32 %v1986, 0.6931472
    %v1988 = vlog2.pop %v1775
    %v1989 = vmul.f32 %v1988, 0.6931472
    %v1990 = vlog2.pop %v1776
    %v1991 = vmul.f32 %v1990, 0.6931472
    %v1992 = vlog2.pop %v1777
    %v1993 = vmul.f32 %v1992, 0.6931472
    %v1994 = vlog2.pop %v1778
    %v1995 = vmul.f32 %v1994, 0.6931472
    %v1996 = vlog2.pop %v1779
    %v1997 = vmul.f32 %v1996, 0.6931472
    %v1998 = vlog2.pop %v1780
    %v1999 = vmul.f32 %v1998, 0.6931472
    %v2000 = vlog2.pop %v1781
    %v2001 = vmul.f32 %v2000, 0.6931472
    %v2002 = vlog2.pop %v1782
    %v2003 = vmul.f32 %v2002, 0.6931472
    %v2004 = vlog2.pop %v1783
    %v2005 = vmul.f32 %v2004, 0.6931472
    %v2006 = vlog2.pop %v1784
    %v2007 = vmul.f32 %v2006, 0.6931472
    %v2008 = vlog2.pop %v1785
    %v2009 = vmul.f32 %v2008, 0.6931472
    %v2010 = vlog2.pop %v1786
    %v2011 = vmul.f32 %v2010, 0.6931472
    %v2012 = vlog2.pop %v1787
    %v2013 = vmul.f32 %v2012, 0.6931472
    %v2014 = vlog2.pop %v1788
    %v2015 = vmul.f32 %v2014, 0.6931472
    %v2016 = vlog2.pop %v1789
    %v2017 = vmul.f32 %v2016, 0.6931472
    %v2018 = vlog2.pop %v1790
    %v2019 = vmul.f32 %v2018, 0.6931472
    %v2020 = vlog2.pop %v1791
    %v2021 = vmul.f32 %v2020, 0.6931472
    %v2022 = vlog2.pop %v1792
    %v2023 = vmul.f32 %v2022, 0.6931472
    %v2024 = vlog2.pop %v1793
    %v2025 = vmul.f32 %v2024, 0.6931472
    %v2026 = vlog2.pop %v1794
    %v2027 = vmul.f32 %v2026, 0.6931472
    %v2028 = vlog2.pop %v1795
    %v2029 = vmul.f32 %v2028, 0.6931472
    %v2030 = vlog2.pop %v1796
    %v2031 = vmul.f32 %v2030, 0.6931472
    %v2032 = vlog2.pop %v1797
    %v2033 = vmul.f32 %v2032, 0.6931472
    %v2034 = vlog2.pop %v1798
    %v2035 = vmul.f32 %v2034, 0.6931472
    %v2036 = vlog2.pop %v1799
    %v2037 = vmul.f32 %v2036, 0.6931472
    %v2038 = vlog2.pop %v1800
    %v2039 = vmul.f32 %v2038, 0.6931472
    %v2040 = vlog2.pop %v1801
    %v2041 = vmul.f32 %v2040, 0.6931472
    %v2042 = vlog2.pop %v1802
    %v2043 = vmul.f32 %v2042, 0.6931472
    %v2044 = vlog2.pop %v1803
    %v2045 = vmul.f32 %v2044, 0.6931472
    %v2046 = vlog2.pop %v1804
    %v2047 = vmul.f32 %v2046, 0.6931472
    %v2048 = vlog2.pop %v1805
    %v2049 = vmul.f32 %v2048, 0.6931472
    %v2050 = vlog2.pop %v1806
    %v2051 = vmul.f32 %v2050, 0.6931472
    %v2052 = vlog2.pop %v1807
    %v2053 = vmul.f32 %v2052, 0.6931472
    %v2054 = vlog2.pop %v1808
    %v2055 = vmul.f32 %v2054, 0.6931472
    %v2056 = vlog2.pop %v1809
    %v2057 = vmul.f32 %v2056, 0.6931472
    %v2058 = vlog2.pop %v1810
    %v2059 = vmul.f32 %v2058, 0.6931472
    %v2060 = vlog2.pop %v1811
    %v2061 = vmul.f32 %v2060, 0.6931472
    %v2062 = vlog2.pop %v1812
    %v2063 = vmul.f32 %v2062, 0.6931472
    %v2064 = vlog2.pop %v1813
    %v2065 = vmul.f32 %v2064, 0.6931472
    %v2066 = vlog2.pop %v1814
    %v2067 = vmul.f32 %v2066, 0.6931472
    %v2068 = vlog2.pop %v1815
    %v2069 = vmul.f32 %v2068, 0.6931472
    %v2070 = vlog2.pop %v1816
    %v2071 = vmul.f32 %v2070, 0.6931472
    %v2072 = vlog2.pop %v1817
    %v2073 = vmul.f32 %v2072, 0.6931472
    %v2074 = vmul.f32 %v1819, 2.88539
    %v2075 = vmul.f32 %v1821, 2.88539
    %v2076 = vmul.f32 %v1823, 2.88539
    %v2077 = vmul.f32 %v1825, 2.88539
    %v2078 = vmul.f32 %v1827, 2.88539
    %v2079 = vmul.f32 %v1829, 2.88539
    %v2080 = vmul.f32 %v1831, 2.88539
    %v2081 = vmul.f32 %v1833, 2.88539
    %v2082 = vmul.f32 %v1835, 2.88539
    %v2083 = vmul.f32 %v1837, 2.88539
    %v2084 = vmul.f32 %v1839, 2.88539
    %v2085 = vmul.f32 %v1841, 2.88539
    %v2086 = vmul.f32 %v1843, 2.88539
    %v2087 = vmul.f32 %v1845, 2.88539
    %v2088 = vmul.f32 %v1847, 2.88539
    %v2089 = vmul.f32 %v1849, 2.88539
    %v2090 = vmul.f32 %v1851, 2.88539
    %v2091 = vmul.f32 %v1853, 2.88539
    %v2092 = vmul.f32 %v1855, 2.88539
    %v2093 = vmul.f32 %v1857, 2.88539
    %v2094 = vmul.f32 %v1859, 2.88539
    %v2095 = vmul.f32 %v1861, 2.88539
    %v2096 = vmul.f32 %v1863, 2.88539
    %v2097 = vmul.f32 %v1865, 2.88539
    %v2098 = vmul.f32 %v1867, 2.88539
    %v2099 = vmul.f32 %v1869, 2.88539
    %v2100 = vmul.f32 %v1871, 2.88539
    %v2101 = vmul.f32 %v1873, 2.88539
    %v2102 = vmul.f32 %v1875, 2.88539
    %v2103 = vmul.f32 %v1877, 2.88539
    %v2104 = vmul.f32 %v1879, 2.88539
    %v2105 = vmul.f32 %v1881, 2.88539
    %v2106 = vmul.f32 %v1883, 2.88539
    %v2107 = vmul.f32 %v1885, 2.88539
    %v2108 = vmul.f32 %v1887, 2.88539
    %v2109 = vmul.f32 %v1889, 2.88539
    %v2110 = vmul.f32 %v1891, 2.88539
    %v2111 = vmul.f32 %v1893, 2.88539
    %v2112 = vmul.f32 %v1895, 2.88539
    %v2113 = vmul.f32 %v1897, 2.88539
    %v2114 = vmul.f32 %v1899, 2.88539
    %v2115 = vmul.f32 %v1901, 2.88539
    %v2116 = vmul.f32 %v1903, 2.88539
    %v2117 = vmul.f32 %v1905, 2.88539
    %v2118 = vmul.f32 %v1907, 2.88539
    %v2119 = vmul.f32 %v1909, 2.88539
    %v2120 = vmul.f32 %v1911, 2.88539
    %v2121 = vmul.f32 %v1913, 2.88539
    %v2122 = vmul.f32 %v1915, 2.88539
    %v2123 = vmul.f32 %v1917, 2.88539
    %v2124 = vmul.f32 %v1919, 2.88539
    %v2125 = vmul.f32 %v1921, 2.88539
    %v2126 = vmul.f32 %v1923, 2.88539
    %v2127 = vmul.f32 %v1925, 2.88539
    %v2128 = vmul.f32 %v1927, 2.88539
    %v2129 = vmul.f32 %v1929, 2.88539
    %v2130 = vmul.f32 %v1931, 2.88539
    %v2131 = vmul.f32 %v1933, 2.88539
    %v2132 = vmul.f32 %v1935, 2.88539
    %v2133 = vmul.f32 %v1937, 2.88539
    %v2134 = vmul.f32 %v1939, 2.88539
    %v2135 = vmul.f32 %v1941, 2.88539
    %v2136 = vmul.f32 %v1943, 2.88539
    %v2137 = vmul.f32 %v1945, 2.88539
    %v2138 = vmul.f32 %v1947, 2.88539
    %v2139 = vmul.f32 %v1949, 2.88539
    %v2140 = vmul.f32 %v1951, 2.88539
    %v2141 = vmul.f32 %v1953, 2.88539
    %v2142 = vmul.f32 %v1955, 2.88539
    %v2143 = vmul.f32 %v1957, 2.88539
    %v2144 = vmul.f32 %v1959, 2.88539
    %v2145 = vmul.f32 %v1961, 2.88539
    %v2146 = vmul.f32 %v1963, 2.88539
    %v2147 = vmul.f32 %v1965, 2.88539
    %v2148 = vmul.f32 %v1967, 2.88539
    %v2149 = vmul.f32 %v1969, 2.88539
    %v2150 = vmul.f32 %v1971, 2.88539
    %v2151 = vmul.f32 %v1973, 2.88539
    %v2152 = vmul.f32 %v1975, 2.88539
    %v2153 = vmul.f32 %v1977, 2.88539
    %v2154 = vmul.f32 %v1979, 2.88539
    %v2155 = vmul.f32 %v1981, 2.88539
    %v2156 = vmul.f32 %v1983, 2.88539
    %v2157 = vmul.f32 %v1985, 2.88539
    %v2158 = vmul.f32 %v1987, 2.88539
    %v2159 = vmul.f32 %v1989, 2.88539
    %v2160 = vmul.f32 %v1991, 2.88539
    %v2161 = vmul.f32 %v1993, 2.88539
    %v2162 = vmul.f32 %v1995, 2.88539
    %v2163 = vmul.f32 %v1997, 2.88539
    %v2164 = vmul.f32 %v1999, 2.88539
    %v2165 = vmul.f32 %v2001, 2.88539
    %v2166 = vmul.f32 %v2003, 2.88539
    %v2167 = vmul.f32 %v2005, 2.88539
    %v2168 = vmul.f32 %v2007, 2.88539
    %v2169 = vmul.f32 %v2009, 2.88539
    %v2170 = vmul.f32 %v2011, 2.88539
    %v2171 = vmul.f32 %v2013, 2.88539
    %v2172 = vmul.f32 %v2015, 2.88539
    %v2173 = vmul.f32 %v2017, 2.88539
    %v2174 = vmul.f32 %v2019, 2.88539
    %v2175 = vmul.f32 %v2021, 2.88539
    %v2176 = vmul.f32 %v2023, 2.88539
    %v2177 = vmul.f32 %v2025, 2.88539
    %v2178 = vmul.f32 %v2027, 2.88539
    %v2179 = vmul.f32 %v2029, 2.88539
    %v2180 = vmul.f32 %v2031, 2.88539
    %v2181 = vmul.f32 %v2033, 2.88539
    %v2182 = vmul.f32 %v2035, 2.88539
    %v2183 = vmul.f32 %v2037, 2.88539
    %v2184 = vmul.f32 %v2039, 2.88539
    %v2185 = vmul.f32 %v2041, 2.88539
    %v2186 = vmul.f32 %v2043, 2.88539
    %v2187 = vmul.f32 %v2045, 2.88539
    %v2188 = vmul.f32 %v2047, 2.88539
    %v2189 = vmul.f32 %v2049, 2.88539
    %v2190 = vmul.f32 %v2051, 2.88539
    %v2191 = vmul.f32 %v2053, 2.88539
    %v2192 = vmul.f32 %v2055, 2.88539
    %v2193 = vmul.f32 %v2057, 2.88539
    %v2194 = vmul.f32 %v2059, 2.88539
    %v2195 = vmul.f32 %v2061, 2.88539
    %v2196 = vmul.f32 %v2063, 2.88539
    %v2197 = vmul.f32 %v2065, 2.88539
    %v2198 = vmul.f32 %v2067, 2.88539
    %v2199 = vmul.f32 %v2069, 2.88539
    %v2200 = vmul.f32 %v2071, 2.88539
    %v2201 = vmul.f32 %v2073, 2.88539
    %v2202 = vcvt.f32.s32.to.zero.pseudo %v2074
    %v2203 = vcvt.f32.s32.to.zero.pseudo %v2075
    %v2204 = vcvt.f32.s32.to.zero.pseudo %v2076
    %v2205 = vcvt.f32.s32.to.zero.pseudo %v2077
    %v2206 = vcvt.f32.s32.to.zero.pseudo %v2078
    %v2207 = vcvt.f32.s32.to.zero.pseudo %v2079
    %v2208 = vcvt.f32.s32.to.zero.pseudo %v2080
    %v2209 = vcvt.f32.s32.to.zero.pseudo %v2081
    %v2210 = vcvt.f32.s32.to.zero.pseudo %v2082
    %v2211 = vcvt.f32.s32.to.zero.pseudo %v2083
    %v2212 = vcvt.f32.s32.to.zero.pseudo %v2084
    %v2213 = vcvt.f32.s32.to.zero.pseudo %v2085
    %v2214 = vcvt.f32.s32.to.zero.pseudo %v2086
    %v2215 = vcvt.f32.s32.to.zero.pseudo %v2087
    %v2216 = vcvt.f32.s32.to.zero.pseudo %v2088
    %v2217 = vcvt.f32.s32.to.zero.pseudo %v2089
    %v2218 = vcvt.f32.s32.to.zero.pseudo %v2090
    %v2219 = vcvt.f32.s32.to.zero.pseudo %v2091
    %v2220 = vcvt.f32.s32.to.zero.pseudo %v2092
    %v2221 = vcvt.f32.s32.to.zero.pseudo %v2093
    %v2222 = vcvt.f32.s32.to.zero.pseudo %v2094
    %v2223 = vcvt.f32.s32.to.zero.pseudo %v2095
    %v2224 = vcvt.f32.s32.to.zero.pseudo %v2096
    %v2225 = vcvt.f32.s32.to.zero.pseudo %v2097
    %v2226 = vcvt.f32.s32.to.zero.pseudo %v2098
    %v2227 = vcvt.f32.s32.to.zero.pseudo %v2099
    %v2228 = vcvt.f32.s32.to.zero.pseudo %v2100
    %v2229 = vcvt.f32.s32.to.zero.pseudo %v2101
    %v2230 = vcvt.f32.s32.to.zero.pseudo %v2102
    %v2231 = vcvt.f32.s32.to.zero.pseudo %v2103
    %v2232 = vcvt.f32.s32.to.zero.pseudo %v2104
    %v2233 = vcvt.f32.s32.to.zero.pseudo %v2105
    %v2234 = vcvt.f32.s32.to.zero.pseudo %v2106
    %v2235 = vcvt.f32.s32.to.zero.pseudo %v2107
    %v2236 = vcvt.f32.s32.to.zero.pseudo %v2108
    %v2237 = vcvt.f32.s32.to.zero.pseudo %v2109
    %v2238 = vcvt.f32.s32.to.zero.pseudo %v2110
    %v2239 = vcvt.f32.s32.to.zero.pseudo %v2111
    %v2240 = vcvt.f32.s32.to.zero.pseudo %v2112
    %v2241 = vcvt.f32.s32.to.zero.pseudo %v2113
    %v2242 = vcvt.f32.s32.to.zero.pseudo %v2114
    %v2243 = vcvt.f32.s32.to.zero.pseudo %v2115
    %v2244 = vcvt.f32.s32.to.zero.pseudo %v2116
    %v2245 = vcvt.f32.s32.to.zero.pseudo %v2117
    %v2246 = vcvt.f32.s32.to.zero.pseudo %v2118
    %v2247 = vcvt.f32.s32.to.zero.pseudo %v2119
    %v2248 = vcvt.f32.s32.to.zero.pseudo %v2120
    %v2249 = vcvt.f32.s32.to.zero.pseudo %v2121
    %v2250 = vcvt.f32.s32.to.zero.pseudo %v2122
    %v2251 = vcvt.f32.s32.to.zero.pseudo %v2123
    %v2252 = vcvt.f32.s32.to.zero.pseudo %v2124
    %v2253 = vcvt.f32.s32.to.zero.pseudo %v2125
    %v2254 = vcvt.f32.s32.to.zero.pseudo %v2126
    %v2255 = vcvt.f32.s32.to.zero.pseudo %v2127
    %v2256 = vcvt.f32.s32.to.zero.pseudo %v2128
    %v2257 = vcvt.f32.s32.to.zero.pseudo %v2129
    %v2258 = vcvt.f32.s32.to.zero.pseudo %v2130
    %v2259 = vcvt.f32.s32.to.zero.pseudo %v2131
    %v2260 = vcvt.f32.s32.to.zero.pseudo %v2132
    %v2261 = vcvt.f32.s32.to.zero.pseudo %v2133
    %v2262 = vcvt.f32.s32.to.zero.pseudo %v2134
    %v2263 = vcvt.f32.s32.to.zero.pseudo %v2135
    %v2264 = vcvt.f32.s32.to.zero.pseudo %v2136
    %v2265 = vcvt.f32.s32.to.zero.pseudo %v2137
    %v2266 = vcvt.f32.s32.to.zero.pseudo %v2138
    %v2267 = vcvt.f32.s32.to.zero.pseudo %v2139
    %v2268 = vcvt.f32.s32.to.zero.pseudo %v2140
    %v2269 = vcvt.f32.s32.to.zero.pseudo %v2141
    %v2270 = vcvt.f32.s32.to.zero.pseudo %v2142
    %v2271 = vcvt.f32.s32.to.zero.pseudo %v2143
    %v2272 = vcvt.f32.s32.to.zero.pseudo %v2144
    %v2273 = vcvt.f32.s32.to.zero.pseudo %v2145
    %v2274 = vcvt.f32.s32.to.zero.pseudo %v2146
    %v2275 = vcvt.f32.s32.to.zero.pseudo %v2147
    %v2276 = vcvt.f32.s32.to.zero.pseudo %v2148
    %v2277 = vcvt.f32.s32.to.zero.pseudo %v2149
    %v2278 = vcvt.f32.s32.to.zero.pseudo %v2150
    %v2279 = vcvt.f32.s32.to.zero.pseudo %v2151
    %v2280 = vcvt.f32.s32.to.zero.pseudo %v2152
    %v2281 = vcvt.f32.s32.to.zero.pseudo %v2153
    %v2282 = vcvt.f32.s32.to.zero.pseudo %v2154
    %v2283 = vcvt.f32.s32.to.zero.pseudo %v2155
    %v2284 = vcvt.f32.s32.to.zero.pseudo %v2156
    %v2285 = vcvt.f32.s32.to.zero.pseudo %v2157
    %v2286 = vcvt.f32.s32.to.zero.pseudo %v2158
    %v2287 = vcvt.f32.s32.to.zero.pseudo %v2159
    %v2288 = vcvt.f32.s32.to.zero.pseudo %v2160
    %v2289 = vcvt.f32.s32.to.zero.pseudo %v2161
    %v2290 = vcvt.f32.s32.to.zero.pseudo %v2162
    %v2291 = vcvt.f32.s32.to.zero.pseudo %v2163
    %v2292 = vcvt.f32.s32.to.zero.pseudo %v2164
    %v2293 = vcvt.f32.s32.to.zero.pseudo %v2165
    %v2294 = vcvt.f32.s32.to.zero.pseudo %v2166
    %v2295 = vcvt.f32.s32.to.zero.pseudo %v2167
    %v2296 = vcvt.f32.s32.to.zero.pseudo %v2168
    %v2297 = vcvt.f32.s32.to.zero.pseudo %v2169
    %v2298 = vcvt.f32.s32.to.zero.pseudo %v2170
    %v2299 = vcvt.f32.s32.to.zero.pseudo %v2171
    %v2300 = vcvt.f32.s32.to.zero.pseudo %v2172
    %v2301 = vcvt.f32.s32.to.zero.pseudo %v2173
    %v2302 = vcvt.f32.s32.to.zero.pseudo %v2174
    %v2303 = vcvt.f32.s32.to.zero.pseudo %v2175
    %v2304 = vcvt.f32.s32.to.zero.pseudo %v2176
    %v2305 = vcvt.f32.s32.to.zero.pseudo %v2177
    %v2306 = vcvt.f32.s32.to.zero.pseudo %v2178
    %v2307 = vcvt.f32.s32.to.zero.pseudo %v2179
    %v2308 = vcvt.f32.s32.to.zero.pseudo %v2180
    %v2309 = vcvt.f32.s32.to.zero.pseudo %v2181
    %v2310 = vcvt.f32.s32.to.zero.pseudo %v2182
    %v2311 = vcvt.f32.s32.to.zero.pseudo %v2183
    %v2312 = vcvt.f32.s32.to.zero.pseudo %v2184
    %v2313 = vcvt.f32.s32.to.zero.pseudo %v2185
    %v2314 = vcvt.f32.s32.to.zero.pseudo %v2186
    %v2315 = vcvt.f32.s32.to.zero.pseudo %v2187
    %v2316 = vcvt.f32.s32.to.zero.pseudo %v2188
    %v2317 = vcvt.f32.s32.to.zero.pseudo %v2189
    %v2318 = vcvt.f32.s32.to.zero.pseudo %v2190
    %v2319 = vcvt.f32.s32.to.zero.pseudo %v2191
    %v2320 = vcvt.f32.s32.to.zero.pseudo %v2192
    %v2321 = vcvt.f32.s32.to.zero.pseudo %v2193
    %v2322 = vcvt.f32.s32.to.zero.pseudo %v2194
    %v2323 = vcvt.f32.s32.to.zero.pseudo %v2195
    %v2324 = vcvt.f32.s32.to.zero.pseudo %v2196
    %v2325 = vcvt.f32.s32.to.zero.pseudo %v2197
    %v2326 = vcvt.f32.s32.to.zero.pseudo %v2198
    %v2327 = vcvt.f32.s32.to.zero.pseudo %v2199
    %v2328 = vcvt.f32.s32.to.zero.pseudo %v2200
    %v2329 = vcvt.f32.s32.to.zero.pseudo %v2201
    %v2330 = vadd.s32 %v2202, 8
    %v2331 = vadd.s32 %v2203, 8
    %v2332 = vadd.s32 %v2204, 8
    %v2333 = vadd.s32 %v2205, 8
    %v2334 = vadd.s32 %v2206, 8
    %v2335 = vadd.s32 %v2207, 8
    %v2336 = vadd.s32 %v2208, 8
    %v2337 = vadd.s32 %v2209, 8
    %v2338 = vadd.s32 %v2210, 8
    %v2339 = vadd.s32 %v2211, 8
    %v2340 = vadd.s32 %v2212, 8
    %v2341 = vadd.s32 %v2213, 8
    %v2342 = vadd.s32 %v2214, 8
    %v2343 = vadd.s32 %v2215, 8
    %v2344 = vadd.s32 %v2216, 8
    %v2345 = vadd.s32 %v2217, 8
    %v2346 = vadd.s32 %v2218, 8
    %v2347 = vadd.s32 %v2219, 8
    %v2348 = vadd.s32 %v2220, 8
    %v2349 = vadd.s32 %v2221, 8
    %v2350 = vadd.s32 %v2222, 8
    %v2351 = vadd.s32 %v2223, 8
    %v2352 = vadd.s32 %v2224, 8
    %v2353 = vadd.s32 %v2225, 8
    %v2354 = vadd.s32 %v2226, 8
    %v2355 = vadd.s32 %v2227, 8
    %v2356 = vadd.s32 %v2228, 8
    %v2357 = vadd.s32 %v2229, 8
    %v2358 = vadd.s32 %v2230, 8
    %v2359 = vadd.s32 %v2231, 8
    %v2360 = vadd.s32 %v2232, 8
    %v2361 = vadd.s32 %v2233, 8
    %v2362 = vadd.s32 %v2234, 8
    %v2363 = vadd.s32 %v2235, 8
    %v2364 = vadd.s32 %v2236, 8
    %v2365 = vadd.s32 %v2237, 8
    %v2366 = vadd.s32 %v2238, 8
    %v2367 = vadd.s32 %v2239, 8
    %v2368 = vadd.s32 %v2240, 8
    %v2369 = vadd.s32 %v2241, 8
    %v2370 = vadd.s32 %v2242, 8
    %v2371 = vadd.s32 %v2243, 8
    %v2372 = vadd.s32 %v2244, 8
    %v2373 = vadd.s32 %v2245, 8
    %v2374 = vadd.s32 %v2246, 8
    %v2375 = vadd.s32 %v2247, 8
    %v2376 = vadd.s32 %v2248, 8
    %v2377 = vadd.s32 %v2249, 8
    %v2378 = vadd.s32 %v2250, 8
    %v2379 = vadd.s32 %v2251, 8
    %v2380 = vadd.s32 %v2252, 8
    %v2381 = vadd.s32 %v2253, 8
    %v2382 = vadd.s32 %v2254, 8
    %v2383 = vadd.s32 %v2255, 8
    %v2384 = vadd.s32 %v2256, 8
    %v2385 = vadd.s32 %v2257, 8
    %v2386 = vadd.s32 %v2258, 8
    %v2387 = vadd.s32 %v2259, 8
    %v2388 = vadd.s32 %v2260, 8
    %v2389 = vadd.s32 %v2261, 8
    %v2390 = vadd.s32 %v2262, 8
    %v2391 = vadd.s32 %v2263, 8
    %v2392 = vadd.s32 %v2264, 8
    %v2393 = vadd.s32 %v2265, 8
    %v2394 = vadd.s32 %v2266, 8
    %v2395 = vadd.s32 %v2267, 8
    %v2396 = vadd.s32 %v2268, 8
    %v2397 = vadd.s32 %v2269, 8
    %v2398 = vadd.s32 %v2270, 8
    %v2399 = vadd.s32 %v2271, 8
    %v2400 = vadd.s32 %v2272, 8
    %v2401 = vadd.s32 %v2273, 8
    %v2402 = vadd.s32 %v2274, 8
    %v2403 = vadd.s32 %v2275, 8
    %v2404 = vadd.s32 %v2276, 8
    %v2405 = vadd.s32 %v2277, 8
    %v2406 = vadd.s32 %v2278, 8
    %v2407 = vadd.s32 %v2279, 8
    %v2408 = vadd.s32 %v2280, 8
    %v2409 = vadd.s32 %v2281, 8
    %v2410 = vadd.s32 %v2282, 8
    %v2411 = vadd.s32 %v2283, 8
    %v2412 = vadd.s32 %v2284, 8
    %v2413 = vadd.s32 %v2285, 8
    %v2414 = vadd.s32 %v2286, 8
    %v2415 = vadd.s32 %v2287, 8
    %v2416 = vadd.s32 %v2288, 8
    %v2417 = vadd.s32 %v2289, 8
    %v2418 = vadd.s32 %v2290, 8
    %v2419 = vadd.s32 %v2291, 8
    %v2420 = vadd.s32 %v2292, 8
    %v2421 = vadd.s32 %v2293, 8
    %v2422 = vadd.s32 %v2294, 8
    %v2423 = vadd.s32 %v2295, 8
    %v2424 = vadd.s32 %v2296, 8
    %v2425 = vadd.s32 %v2297, 8
    %v2426 = vadd.s32 %v2298, 8
    %v2427 = vadd.s32 %v2299, 8
    %v2428 = vadd.s32 %v2300, 8
    %v2429 = vadd.s32 %v2301, 8
    %v2430 = vadd.s32 %v2302, 8
    %v2431 = vadd.s32 %v2303, 8
    %v2432 = vadd.s32 %v2304, 8
    %v2433 = vadd.s32 %v2305, 8
    %v2434 = vadd.s32 %v2306, 8
    %v2435 = vadd.s32 %v2307, 8
    %v2436 = vadd.s32 %v2308, 8
    %v2437 = vadd.s32 %v2309, 8
    %v2438 = vadd.s32 %v2310, 8
    %v2439 = vadd.s32 %v2311, 8
    %v2440 = vadd.s32 %v2312, 8
    %v2441 = vadd.s32 %v2313, 8
    %v2442 = vadd.s32 %v2314, 8
    %v2443 = vadd.s32 %v2315, 8
    %v2444 = vadd.s32 %v2316, 8
    %v2445 = vadd.s32 %v2317, 8
    %v2446 = vadd.s32 %v2318, 8
    %v2447 = vadd.s32 %v2319, 8
    %v2448 = vadd.s32 %v2320, 8
    %v2449 = vadd.s32 %v2321, 8
    %v2450 = vadd.s32 %v2322, 8
    %v2451 = vadd.s32 %v2323, 8
    %v2452 = vadd.s32 %v2324, 8
    %v2453 = vadd.s32 %v2325, 8
    %v2454 = vadd.s32 %v2326, 8
    %v2455 = vadd.s32 %v2327, 8
    %v2456 = vadd.s32 %v2328, 8
    %v2457 = vadd.s32 %v2329, 8
    %vm2458 = vcmp.lt.s32.totalorder %v2330, 15
    %v2459 = vsel %vm2458, %v2330, 15
    %vm2460 = vcmp.lt.s32.totalorder %v2331, 15
    %v2461 = vsel %vm2460, %v2331, 15
    %vm2462 = vcmp.lt.s32.totalorder %v2332, 15
    %v2463 = vsel %vm2462, %v2332, 15
    %vm2464 = vcmp.lt.s32.totalorder %v2333, 15
    %v2465 = vsel %vm2464, %v2333, 15
    %vm2466 = vcmp.lt.s32.totalorder %v2334, 15
    %v2467 = vsel %vm2466, %v2334, 15
    %vm2468 = vcmp.lt.s32.totalorder %v2335, 15
    %v2469 = vsel %vm2468, %v2335, 15
    %vm2470 = vcmp.lt.s32.totalorder %v2336, 15
    %v2471 = vsel %vm2470, %v2336, 15
    %vm2472 = vcmp.lt.s32.totalorder %v2337, 15
    %v2473 = vsel %vm2472, %v2337, 15
    %vm2474 = vcmp.lt.s32.totalorder %v2338, 15
    %v2475 = vsel %vm2474, %v2338, 15
    %vm2476 = vcmp.lt.s32.totalorder %v2339, 15
    %v2477 = vsel %vm2476, %v2339, 15
    %vm2478 = vcmp.lt.s32.totalorder %v2340, 15
    %v2479 = vsel %vm2478, %v2340, 15
    %vm2480 = vcmp.lt.s32.totalorder %v2341, 15
    %v2481 = vsel %vm2480, %v2341, 15
    %vm2482 = vcmp.lt.s32.totalorder %v2342, 15
    %v2483 = vsel %vm2482, %v2342, 15
    %vm2484 = vcmp.lt.s32.totalorder %v2343, 15
    %v2485 = vsel %vm2484, %v2343, 15
    %vm2486 = vcmp.lt.s32.totalorder %v2344, 15
    %v2487 = vsel %vm2486, %v2344, 15
    %vm2488 = vcmp.lt.s32.totalorder %v2345, 15
    %v2489 = vsel %vm2488, %v2345, 15
    %vm2490 = vcmp.lt.s32.totalorder %v2346, 15
    %v2491 = vsel %vm2490, %v2346, 15
    %vm2492 = vcmp.lt.s32.totalorder %v2347, 15
    %v2493 = vsel %vm2492, %v2347, 15
    %vm2494 = vcmp.lt.s32.totalorder %v2348, 15
    %v2495 = vsel %vm2494, %v2348, 15
    %vm2496 = vcmp.lt.s32.totalorder %v2349, 15
    %v2497 = vsel %vm2496, %v2349, 15
    %vm2498 = vcmp.lt.s32.totalorder %v2350, 15
    %v2499 = vsel %vm2498, %v2350, 15
    %vm2500 = vcmp.lt.s32.totalorder %v2351, 15
    %v2501 = vsel %vm2500, %v2351, 15
    %vm2502 = vcmp.lt.s32.totalorder %v2352, 15
    %v2503 = vsel %vm2502, %v2352, 15
    %vm2504 = vcmp.lt.s32.totalorder %v2353, 15
    %v2505 = vsel %vm2504, %v2353, 15
    %vm2506 = vcmp.lt.s32.totalorder %v2354, 15
    %v2507 = vsel %vm2506, %v2354, 15
    %vm2508 = vcmp.lt.s32.totalorder %v2355, 15
    %v2509 = vsel %vm2508, %v2355, 15
    %vm2510 = vcmp.lt.s32.totalorder %v2356, 15
    %v2511 = vsel %vm2510, %v2356, 15
    %vm2512 = vcmp.lt.s32.totalorder %v2357, 15
    %v2513 = vsel %vm2512, %v2357, 15
    %vm2514 = vcmp.lt.s32.totalorder %v2358, 15
    %v2515 = vsel %vm2514, %v2358, 15
    %vm2516 = vcmp.lt.s32.totalorder %v2359, 15
    %v2517 = vsel %vm2516, %v2359, 15
    %vm2518 = vcmp.lt.s32.totalorder %v2360, 15
    %v2519 = vsel %vm2518, %v2360, 15
    %vm2520 = vcmp.lt.s32.totalorder %v2361, 15
    %v2521 = vsel %vm2520, %v2361, 15
    %vm2522 = vcmp.lt.s32.totalorder %v2362, 15
    %v2523 = vsel %vm2522, %v2362, 15
    %vm2524 = vcmp.lt.s32.totalorder %v2363, 15
    %v2525 = vsel %vm2524, %v2363, 15
    %vm2526 = vcmp.lt.s32.totalorder %v2364, 15
    %v2527 = vsel %vm2526, %v2364, 15
    %vm2528 = vcmp.lt.s32.totalorder %v2365, 15
    %v2529 = vsel %vm2528, %v2365, 15
    %vm2530 = vcmp.lt.s32.totalorder %v2366, 15
    %v2531 = vsel %vm2530, %v2366, 15
    %vm2532 = vcmp.lt.s32.totalorder %v2367, 15
    %v2533 = vsel %vm2532, %v2367, 15
    %vm2534 = vcmp.lt.s32.totalorder %v2368, 15
    %v2535 = vsel %vm2534, %v2368, 15
    %vm2536 = vcmp.lt.s32.totalorder %v2369, 15
    %v2537 = vsel %vm2536, %v2369, 15
    %vm2538 = vcmp.lt.s32.totalorder %v2370, 15
    %v2539 = vsel %vm2538, %v2370, 15
    %vm2540 = vcmp.lt.s32.totalorder %v2371, 15
    %v2541 = vsel %vm2540, %v2371, 15
    %vm2542 = vcmp.lt.s32.totalorder %v2372, 15
    %v2543 = vsel %vm2542, %v2372, 15
    %vm2544 = vcmp.lt.s32.totalorder %v2373, 15
    %v2545 = vsel %vm2544, %v2373, 15
    %vm2546 = vcmp.lt.s32.totalorder %v2374, 15
    %v2547 = vsel %vm2546, %v2374, 15
    %vm2548 = vcmp.lt.s32.totalorder %v2375, 15
    %v2549 = vsel %vm2548, %v2375, 15
    %vm2550 = vcmp.lt.s32.totalorder %v2376, 15
    %v2551 = vsel %vm2550, %v2376, 15
    %vm2552 = vcmp.lt.s32.totalorder %v2377, 15
    %v2553 = vsel %vm2552, %v2377, 15
    %vm2554 = vcmp.lt.s32.totalorder %v2378, 15
    %v2555 = vsel %vm2554, %v2378, 15
    %vm2556 = vcmp.lt.s32.totalorder %v2379, 15
    %v2557 = vsel %vm2556, %v2379, 15
    %vm2558 = vcmp.lt.s32.totalorder %v2380, 15
    %v2559 = vsel %vm2558, %v2380, 15
    %vm2560 = vcmp.lt.s32.totalorder %v2381, 15
    %v2561 = vsel %vm2560, %v2381, 15
    %vm2562 = vcmp.lt.s32.totalorder %v2382, 15
    %v2563 = vsel %vm2562, %v2382, 15
    %vm2564 = vcmp.lt.s32.totalorder %v2383, 15
    %v2565 = vsel %vm2564, %v2383, 15
    %vm2566 = vcmp.lt.s32.totalorder %v2384, 15
    %v2567 = vsel %vm2566, %v2384, 15
    %vm2568 = vcmp.lt.s32.totalorder %v2385, 15
    %v2569 = vsel %vm2568, %v2385, 15
    %vm2570 = vcmp.lt.s32.totalorder %v2386, 15
    %v2571 = vsel %vm2570, %v2386, 15
    %vm2572 = vcmp.lt.s32.totalorder %v2387, 15
    %v2573 = vsel %vm2572, %v2387, 15
    %vm2574 = vcmp.lt.s32.totalorder %v2388, 15
    %v2575 = vsel %vm2574, %v2388, 15
    %vm2576 = vcmp.lt.s32.totalorder %v2389, 15
    %v2577 = vsel %vm2576, %v2389, 15
    %vm2578 = vcmp.lt.s32.totalorder %v2390, 15
    %v2579 = vsel %vm2578, %v2390, 15
    %vm2580 = vcmp.lt.s32.totalorder %v2391, 15
    %v2581 = vsel %vm2580, %v2391, 15
    %vm2582 = vcmp.lt.s32.totalorder %v2392, 15
    %v2583 = vsel %vm2582, %v2392, 15
    %vm2584 = vcmp.lt.s32.totalorder %v2393, 15
    %v2585 = vsel %vm2584, %v2393, 15
    %vm2586 = vcmp.lt.s32.totalorder %v2394, 15
    %v2587 = vsel %vm2586, %v2394, 15
    %vm2588 = vcmp.lt.s32.totalorder %v2395, 15
    %v2589 = vsel %vm2588, %v2395, 15
    %vm2590 = vcmp.lt.s32.totalorder %v2396, 15
    %v2591 = vsel %vm2590, %v2396, 15
    %vm2592 = vcmp.lt.s32.totalorder %v2397, 15
    %v2593 = vsel %vm2592, %v2397, 15
    %vm2594 = vcmp.lt.s32.totalorder %v2398, 15
    %v2595 = vsel %vm2594, %v2398, 15
    %vm2596 = vcmp.lt.s32.totalorder %v2399, 15
    %v2597 = vsel %vm2596, %v2399, 15
    %vm2598 = vcmp.lt.s32.totalorder %v2400, 15
    %v2599 = vsel %vm2598, %v2400, 15
    %vm2600 = vcmp.lt.s32.totalorder %v2401, 15
    %v2601 = vsel %vm2600, %v2401, 15
    %vm2602 = vcmp.lt.s32.totalorder %v2402, 15
    %v2603 = vsel %vm2602, %v2402, 15
    %vm2604 = vcmp.lt.s32.totalorder %v2403, 15
    %v2605 = vsel %vm2604, %v2403, 15
    %vm2606 = vcmp.lt.s32.totalorder %v2404, 15
    %v2607 = vsel %vm2606, %v2404, 15
    %vm2608 = vcmp.lt.s32.totalorder %v2405, 15
    %v2609 = vsel %vm2608, %v2405, 15
    %vm2610 = vcmp.lt.s32.totalorder %v2406, 15
    %v2611 = vsel %vm2610, %v2406, 15
    %vm2612 = vcmp.lt.s32.totalorder %v2407, 15
    %v2613 = vsel %vm2612, %v2407, 15
    %vm2614 = vcmp.lt.s32.totalorder %v2408, 15
    %v2615 = vsel %vm2614, %v2408, 15
    %vm2616 = vcmp.lt.s32.totalorder %v2409, 15
    %v2617 = vsel %vm2616, %v2409, 15
    %vm2618 = vcmp.lt.s32.totalorder %v2410, 15
    %v2619 = vsel %vm2618, %v2410, 15
    %vm2620 = vcmp.lt.s32.totalorder %v2411, 15
    %v2621 = vsel %vm2620, %v2411, 15
    %vm2622 = vcmp.lt.s32.totalorder %v2412, 15
    %v2623 = vsel %vm2622, %v2412, 15
    %vm2624 = vcmp.lt.s32.totalorder %v2413, 15
    %v2625 = vsel %vm2624, %v2413, 15
    %vm2626 = vcmp.lt.s32.totalorder %v2414, 15
    %v2627 = vsel %vm2626, %v2414, 15
    %vm2628 = vcmp.lt.s32.totalorder %v2415, 15
    %v2629 = vsel %vm2628, %v2415, 15
    %vm2630 = vcmp.lt.s32.totalorder %v2416, 15
    %v2631 = vsel %vm2630, %v2416, 15
    %vm2632 = vcmp.lt.s32.totalorder %v2417, 15
    %v2633 = vsel %vm2632, %v2417, 15
    %vm2634 = vcmp.lt.s32.totalorder %v2418, 15
    %v2635 = vsel %vm2634, %v2418, 15
    %vm2636 = vcmp.lt.s32.totalorder %v2419, 15
    %v2637 = vsel %vm2636, %v2419, 15
    %vm2638 = vcmp.lt.s32.totalorder %v2420, 15
    %v2639 = vsel %vm2638, %v2420, 15
    %vm2640 = vcmp.lt.s32.totalorder %v2421, 15
    %v2641 = vsel %vm2640, %v2421, 15
    %vm2642 = vcmp.lt.s32.totalorder %v2422, 15
    %v2643 = vsel %vm2642, %v2422, 15
    %vm2644 = vcmp.lt.s32.totalorder %v2423, 15
    %v2645 = vsel %vm2644, %v2423, 15
    %vm2646 = vcmp.lt.s32.totalorder %v2424, 15
    %v2647 = vsel %vm2646, %v2424, 15
    %vm2648 = vcmp.lt.s32.totalorder %v2425, 15
    %v2649 = vsel %vm2648, %v2425, 15
    %vm2650 = vcmp.lt.s32.totalorder %v2426, 15
    %v2651 = vsel %vm2650, %v2426, 15
    %vm2652 = vcmp.lt.s32.totalorder %v2427, 15
    %v2653 = vsel %vm2652, %v2427, 15
    %vm2654 = vcmp.lt.s32.totalorder %v2428, 15
    %v2655 = vsel %vm2654, %v2428, 15
    %vm2656 = vcmp.lt.s32.totalorder %v2429, 15
    %v2657 = vsel %vm2656, %v2429, 15
    %vm2658 = vcmp.lt.s32.totalorder %v2430, 15
    %v2659 = vsel %vm2658, %v2430, 15
    %vm2660 = vcmp.lt.s32.totalorder %v2431, 15
    %v2661 = vsel %vm2660, %v2431, 15
    %vm2662 = vcmp.lt.s32.totalorder %v2432, 15
    %v2663 = vsel %vm2662, %v2432, 15
    %vm2664 = vcmp.lt.s32.totalorder %v2433, 15
    %v2665 = vsel %vm2664, %v2433, 15
    %vm2666 = vcmp.lt.s32.totalorder %v2434, 15
    %v2667 = vsel %vm2666, %v2434, 15
    %vm2668 = vcmp.lt.s32.totalorder %v2435, 15
    %v2669 = vsel %vm2668, %v2435, 15
    %vm2670 = vcmp.lt.s32.totalorder %v2436, 15
    %v2671 = vsel %vm2670, %v2436, 15
    %vm2672 = vcmp.lt.s32.totalorder %v2437, 15
    %v2673 = vsel %vm2672, %v2437, 15
    %vm2674 = vcmp.lt.s32.totalorder %v2438, 15
    %v2675 = vsel %vm2674, %v2438, 15
    %vm2676 = vcmp.lt.s32.totalorder %v2439, 15
    %v2677 = vsel %vm2676, %v2439, 15
    %vm2678 = vcmp.lt.s32.totalorder %v2440, 15
    %v2679 = vsel %vm2678, %v2440, 15
    %vm2680 = vcmp.lt.s32.totalorder %v2441, 15
    %v2681 = vsel %vm2680, %v2441, 15
    %vm2682 = vcmp.lt.s32.totalorder %v2442, 15
    %v2683 = vsel %vm2682, %v2442, 15
    %vm2684 = vcmp.lt.s32.totalorder %v2443, 15
    %v2685 = vsel %vm2684, %v2443, 15
    %vm2686 = vcmp.lt.s32.totalorder %v2444, 15
    %v2687 = vsel %vm2686, %v2444, 15
    %vm2688 = vcmp.lt.s32.totalorder %v2445, 15
    %v2689 = vsel %vm2688, %v2445, 15
    %vm2690 = vcmp.lt.s32.totalorder %v2446, 15
    %v2691 = vsel %vm2690, %v2446, 15
    %vm2692 = vcmp.lt.s32.totalorder %v2447, 15
    %v2693 = vsel %vm2692, %v2447, 15
    %vm2694 = vcmp.lt.s32.totalorder %v2448, 15
    %v2695 = vsel %vm2694, %v2448, 15
    %vm2696 = vcmp.lt.s32.totalorder %v2449, 15
    %v2697 = vsel %vm2696, %v2449, 15
    %vm2698 = vcmp.lt.s32.totalorder %v2450, 15
    %v2699 = vsel %vm2698, %v2450, 15
    %vm2700 = vcmp.lt.s32.totalorder %v2451, 15
    %v2701 = vsel %vm2700, %v2451, 15
    %vm2702 = vcmp.lt.s32.totalorder %v2452, 15
    %v2703 = vsel %vm2702, %v2452, 15
    %vm2704 = vcmp.lt.s32.totalorder %v2453, 15
    %v2705 = vsel %vm2704, %v2453, 15
    %vm2706 = vcmp.lt.s32.totalorder %v2454, 15
    %v2707 = vsel %vm2706, %v2454, 15
    %vm2708 = vcmp.lt.s32.totalorder %v2455, 15
    %v2709 = vsel %vm2708, %v2455, 15
    %vm2710 = vcmp.lt.s32.totalorder %v2456, 15
    %v2711 = vsel %vm2710, %v2456, 15
    %vm2712 = vcmp.lt.s32.totalorder %v2457, 15
    %v2713 = vsel %vm2712, %v2457, 15
    %v2714 = vsel %vm1178, %v923, %v2459
    %v2715 = vsel %vm1179, %v925, %v2461
    %v2716 = vsel %vm1180, %v927, %v2463
    %v2717 = vsel %vm1181, %v929, %v2465
    %v2718 = vsel %vm1182, %v931, %v2467
    %v2719 = vsel %vm1183, %v933, %v2469
    %v2720 = vsel %vm1184, %v935, %v2471
    %v2721 = vsel %vm1185, %v937, %v2473
    %v2722 = vsel %vm1186, %v939, %v2475
    %v2723 = vsel %vm1187, %v941, %v2477
    %v2724 = vsel %vm1188, %v943, %v2479
    %v2725 = vsel %vm1189, %v945, %v2481
    %v2726 = vsel %vm1190, %v947, %v2483
    %v2727 = vsel %vm1191, %v949, %v2485
    %v2728 = vsel %vm1192, %v951, %v2487
    %v2729 = vsel %vm1193, %v953, %v2489
    %v2730 = vsel %vm1194, %v955, %v2491
    %v2731 = vsel %vm1195, %v957, %v2493
    %v2732 = vsel %vm1196, %v959, %v2495
    %v2733 = vsel %vm1197, %v961, %v2497
    %v2734 = vsel %vm1198, %v963, %v2499
    %v2735 = vsel %vm1199, %v965, %v2501
    %v2736 = vsel %vm1200, %v967, %v2503
    %v2737 = vsel %vm1201, %v969, %v2505
    %v2738 = vsel %vm1202, %v971, %v2507
    %v2739 = vsel %vm1203, %v973, %v2509
    %v2740 = vsel %vm1204, %v975, %v2511
    %v2741 = vsel %vm1205, %v977, %v2513
    %v2742 = vsel %vm1206, %v979, %v2515
    %v2743 = vsel %vm1207, %v981, %v2517
    %v2744 = vsel %vm1208, %v983, %v2519
    %v2745 = vsel %vm1209, %v985, %v2521
    %v2746 = vsel %vm1210, %v987, %v2523
    %v2747 = vsel %vm1211, %v989, %v2525
    %v2748 = vsel %vm1212, %v991, %v2527
    %v2749 = vsel %vm1213, %v993, %v2529
    %v2750 = vsel %vm1214, %v995, %v2531
    %v2751 = vsel %vm1215, %v997, %v2533
    %v2752 = vsel %vm1216, %v999, %v2535
    %v2753 = vsel %vm1217, %v1001, %v2537
    %v2754 = vsel %vm1218, %v1003, %v2539
    %v2755 = vsel %vm1219, %v1005, %v2541
    %v2756 = vsel %vm1220, %v1007, %v2543
    %v2757 = vsel %vm1221, %v1009, %v2545
    %v2758 = vsel %vm1222, %v1011, %v2547
    %v2759 = vsel %vm1223, %v1013, %v2549
    %v2760 = vsel %vm1224, %v1015, %v2551
    %v2761 = vsel %vm1225, %v1017, %v2553
    %v2762 = vsel %vm1226, %v1019, %v2555
    %v2763 = vsel %vm1227, %v1021, %v2557
    %v2764 = vsel %vm1228, %v1023, %v2559
    %v2765 = vsel %vm1229, %v1025, %v2561
    %v2766 = vsel %vm1230, %v1027, %v2563
    %v2767 = vsel %vm1231, %v1029, %v2565
    %v2768 = vsel %vm1232, %v1031, %v2567
    %v2769 = vsel %vm1233, %v1033, %v2569
    %v2770 = vsel %vm1234, %v1035, %v2571
    %v2771 = vsel %vm1235, %v1037, %v2573
    %v2772 = vsel %vm1236, %v1039, %v2575
    %v2773 = vsel %vm1237, %v1041, %v2577
    %v2774 = vsel %vm1238, %v1043, %v2579
    %v2775 = vsel %vm1239, %v1045, %v2581
    %v2776 = vsel %vm1240, %v1047, %v2583
    %v2777 = vsel %vm1241, %v1049, %v2585
    %v2778 = vsel %vm1242, %v1051, %v2587
    %v2779 = vsel %vm1243, %v1053, %v2589
    %v2780 = vsel %vm1244, %v1055, %v2591
    %v2781 = vsel %vm1245, %v1057, %v2593
    %v2782 = vsel %vm1246, %v1059, %v2595
    %v2783 = vsel %vm1247, %v1061, %v2597
    %v2784 = vsel %vm1248, %v1063, %v2599
    %v2785 = vsel %vm1249, %v1065, %v2601
    %v2786 = vsel %vm1250, %v1067, %v2603
    %v2787 = vsel %vm1251, %v1069, %v2605
    %v2788 = vsel %vm1252, %v1071, %v2607
    %v2789 = vsel %vm1253, %v1073, %v2609
    %v2790 = vsel %vm1254, %v1075, %v2611
    %v2791 = vsel %vm1255, %v1077, %v2613
    %v2792 = vsel %vm1256, %v1079, %v2615
    %v2793 = vsel %vm1257, %v1081, %v2617
    %v2794 = vsel %vm1258, %v1083, %v2619
    %v2795 = vsel %vm1259, %v1085, %v2621
    %v2796 = vsel %vm1260, %v1087, %v2623
    %v2797 = vsel %vm1261, %v1089, %v2625
    %v2798 = vsel %vm1262, %v1091, %v2627
    %v2799 = vsel %vm1263, %v1093, %v2629
    %v2800 = vsel %vm1264, %v1095, %v2631
    %v2801 = vsel %vm1265, %v1097, %v2633
    %v2802 = vsel %vm1266, %v1099, %v2635
    %v2803 = vsel %vm1267, %v1101, %v2637
    %v2804 = vsel %vm1268, %v1103, %v2639
    %v2805 = vsel %vm1269, %v1105, %v2641
    %v2806 = vsel %vm1270, %v1107, %v2643
    %v2807 = vsel %vm1271, %v1109, %v2645
    %v2808 = vsel %vm1272, %v1111, %v2647
    %v2809 = vsel %vm1273, %v1113, %v2649
    %v2810 = vsel %vm1274, %v1115, %v2651
    %v2811 = vsel %vm1275, %v1117, %v2653
    %v2812 = vsel %vm1276, %v1119, %v2655
    %v2813 = vsel %vm1277, %v1121, %v2657
    %v2814 = vsel %vm1278, %v1123, %v2659
    %v2815 = vsel %vm1279, %v1125, %v2661
    %v2816 = vsel %vm1280, %v1127, %v2663
    %v2817 = vsel %vm1281, %v1129, %v2665
    %v2818 = vsel %vm1282, %v1131, %v2667
    %v2819 = vsel %vm1283, %v1133, %v2669
    %v2820 = vsel %vm1284, %v1135, %v2671
    %v2821 = vsel %vm1285, %v1137, %v2673
    %v2822 = vsel %vm1286, %v1139, %v2675
    %v2823 = vsel %vm1287, %v1141, %v2677
    %v2824 = vsel %vm1288, %v1143, %v2679
    %v2825 = vsel %vm1289, %v1145, %v2681
    %v2826 = vsel %vm1290, %v1147, %v2683
    %v2827 = vsel %vm1291, %v1149, %v2685
    %v2828 = vsel %vm1292, %v1151, %v2687
    %v2829 = vsel %vm1293, %v1153, %v2689
    %v2830 = vsel %vm1294, %v1155, %v2691
    %v2831 = vsel %vm1295, %v1157, %v2693
    %v2832 = vsel %vm1296, %v1159, %v2695
    %v2833 = vsel %vm1297, %v1161, %v2697
    %v2834 = vsel %vm1298, %v1163, %v2699
    %v2835 = vsel %vm1299, %v1165, %v2701
    %v2836 = vsel %vm1300, %v1167, %v2703
    %v2837 = vsel %vm1301, %v1169, %v2705
    %v2838 = vsel %vm1302, %v1171, %v2707
    %v2839 = vsel %vm1303, %v1173, %v2709
    %v2840 = vsel %vm1304, %v1175, %v2711
    %v2841 = vsel %vm1305, %v1177, %v2713
    %v2842 = vadd.s32 %v794, %v2714
    %v2843 = vadd.s32 %v795, %v2715
    %v2844 = vadd.s32 %v796, %v2716
    %v2845 = vadd.s32 %v797, %v2717
    %v2846 = vadd.s32 %v798, %v2718
    %v2847 = vadd.s32 %v799, %v2719
    %v2848 = vadd.s32 %v800, %v2720
    %v2849 = vadd.s32 %v801, %v2721
    %v2850 = vadd.s32 %v802, %v2722
    %v2851 = vadd.s32 %v803, %v2723
    %v2852 = vadd.s32 %v804, %v2724
    %v2853 = vadd.s32 %v805, %v2725
    %v2854 = vadd.s32 %v806, %v2726
    %v2855 = vadd.s32 %v807, %v2727
    %v2856 = vadd.s32 %v808, %v2728
    %v2857 = vadd.s32 %v809, %v2729
    %v2858 = vadd.s32 %v810, %v2730
    %v2859 = vadd.s32 %v811, %v2731
    %v2860 = vadd.s32 %v812, %v2732
    %v2861 = vadd.s32 %v813, %v2733
    %v2862 = vadd.s32 %v814, %v2734
    %v2863 = vadd.s32 %v815, %v2735
    %v2864 = vadd.s32 %v816, %v2736
    %v2865 = vadd.s32 %v817, %v2737
    %v2866 = vadd.s32 %v818, %v2738
    %v2867 = vadd.s32 %v819, %v2739
    %v2868 = vadd.s32 %v820, %v2740
    %v2869 = vadd.s32 %v821, %v2741
    %v2870 = vadd.s32 %v822, %v2742
    %v2871 = vadd.s32 %v823, %v2743
    %v2872 = vadd.s32 %v824, %v2744
    %v2873 = vadd.s32 %v825, %v2745
    %v2874 = vadd.s32 %v826, %v2746
    %v2875 = vadd.s32 %v827, %v2747
    %v2876 = vadd.s32 %v828, %v2748
    %v2877 = vadd.s32 %v829, %v2749
    %v2878 = vadd.s32 %v830, %v2750
    %v2879 = vadd.s32 %v831, %v2751
    %v2880 = vadd.s32 %v832, %v2752
    %v2881 = vadd.s32 %v833, %v2753
    %v2882 = vadd.s32 %v834, %v2754
    %v2883 = vadd.s32 %v835, %v2755
    %v2884 = vadd.s32 %v836, %v2756
    %v2885 = vadd.s32 %v837, %v2757
    %v2886 = vadd.s32 %v838, %v2758
    %v2887 = vadd.s32 %v839, %v2759
    %v2888 = vadd.s32 %v840, %v2760
    %v2889 = vadd.s32 %v841, %v2761
    %v2890 = vadd.s32 %v842, %v2762
    %v2891 = vadd.s32 %v843, %v2763
    %v2892 = vadd.s32 %v844, %v2764
    %v2893 = vadd.s32 %v845, %v2765
    %v2894 = vadd.s32 %v846, %v2766
    %v2895 = vadd.s32 %v847, %v2767
    %v2896 = vadd.s32 %v848, %v2768
    %v2897 = vadd.s32 %v849, %v2769
    %v2898 = vadd.s32 %v850, %v2770
    %v2899 = vadd.s32 %v851, %v2771
    %v2900 = vadd.s32 %v852, %v2772
    %v2901 = vadd.s32 %v853, %v2773
    %v2902 = vadd.s32 %v854, %v2774
    %v2903 = vadd.s32 %v855, %v2775
    %v2904 = vadd.s32 %v856, %v2776
    %v2905 = vadd.s32 %v857, %v2777
    %v2906 = vadd.s32 %v858, %v2778
    %v2907 = vadd.s32 %v859, %v2779
    %v2908 = vadd.s32 %v860, %v2780
    %v2909 = vadd.s32 %v861, %v2781
    %v2910 = vadd.s32 %v862, %v2782
    %v2911 = vadd.s32 %v863, %v2783
    %v2912 = vadd.s32 %v864, %v2784
    %v2913 = vadd.s32 %v865, %v2785
    %v2914 = vadd.s32 %v866, %v2786
    %v2915 = vadd.s32 %v867, %v2787
    %v2916 = vadd.s32 %v868, %v2788
    %v2917 = vadd.s32 %v869, %v2789
    %v2918 = vadd.s32 %v870, %v2790
    %v2919 = vadd.s32 %v871, %v2791
    %v2920 = vadd.s32 %v872, %v2792
    %v2921 = vadd.s32 %v873, %v2793
    %v2922 = vadd.s32 %v874, %v2794
    %v2923 = vadd.s32 %v875, %v2795
    %v2924 = vadd.s32 %v876, %v2796
    %v2925 = vadd.s32 %v877, %v2797
    %v2926 = vadd.s32 %v878, %v2798
    %v2927 = vadd.s32 %v879, %v2799
    %v2928 = vadd.s32 %v880, %v2800
    %v2929 = vadd.s32 %v881, %v2801
    %v2930 = vadd.s32 %v882, %v2802
    %v2931 = vadd.s32 %v883, %v2803
    %v2932 = vadd.s32 %v884, %v2804
    %v2933 = vadd.s32 %v885, %v2805
    %v2934 = vadd.s32 %v886, %v2806
    %v2935 = vadd.s32 %v887, %v2807
    %v2936 = vadd.s32 %v888, %v2808
    %v2937 = vadd.s32 %v889, %v2809
    %v2938 = vadd.s32 %v890, %v2810
    %v2939 = vadd.s32 %v891, %v2811
    %v2940 = vadd.s32 %v892, %v2812
    %v2941 = vadd.s32 %v893, %v2813
    %v2942 = vadd.s32 %v894, %v2814
    %v2943 = vadd.s32 %v895, %v2815
    %v2944 = vadd.s32 %v896, %v2816
    %v2945 = vadd.s32 %v897, %v2817
    %v2946 = vadd.s32 %v898, %v2818
    %v2947 = vadd.s32 %v899, %v2819
    %v2948 = vadd.s32 %v900, %v2820
    %v2949 = vadd.s32 %v901, %v2821
    %v2950 = vadd.s32 %v902, %v2822
    %v2951 = vadd.s32 %v903, %v2823
    %v2952 = vadd.s32 %v904, %v2824
    %v2953 = vadd.s32 %v905, %v2825
    %v2954 = vadd.s32 %v906, %v2826
    %v2955 = vadd.s32 %v907, %v2827
    %v2956 = vadd.s32 %v908, %v2828
    %v2957 = vadd.s32 %v909, %v2829
    %v2958 = vadd.s32 %v910, %v2830
    %v2959 = vadd.s32 %v911, %v2831
    %v2960 = vadd.s32 %v912, %v2832
    %v2961 = vadd.s32 %v913, %v2833
    %v2962 = vadd.s32 %v914, %v2834
    %v2963 = vadd.s32 %v915, %v2835
    %v2964 = vadd.s32 %v916, %v2836
    %v2965 = vadd.s32 %v917, %v2837
    %v2966 = vadd.s32 %v918, %v2838
    %v2967 = vadd.s32 %v919, %v2839
    %v2968 = vadd.s32 %v920, %v2840
    %v2969 = vadd.s32 %v921, %v2841
    %v2970 = vlaneseq
    %v2971 = vshrl.u32 %v2970, 7
    %v2972 = vadd.s32 %v2971, 8
    %v2973 = vadd.s32 %v2971, 16
    %v2974 = vadd.s32 %v2971, 24
    %vm2975 = vcmp.eq.s32.totalorder %v2842, %v2971
    %vm2976 = vcmp.eq.s32.totalorder %v2843, %v2971
    %vm2977 = vcmp.eq.s32.totalorder %v2844, %v2971
    %vm2978 = vcmp.eq.s32.totalorder %v2845, %v2971
    %vm2979 = vcmp.eq.s32.totalorder %v2846, %v2971
    %vm2980 = vcmp.eq.s32.totalorder %v2847, %v2971
    %vm2981 = vcmp.eq.s32.totalorder %v2848, %v2971
    %vm2982 = vcmp.eq.s32.totalorder %v2849, %v2971
    %vm2983 = vcmp.eq.s32.totalorder %v2850, %v2971
    %vm2984 = vcmp.eq.s32.totalorder %v2851, %v2971
    %vm2985 = vcmp.eq.s32.totalorder %v2852, %v2971
    %vm2986 = vcmp.eq.s32.totalorder %v2853, %v2971
    %vm2987 = vcmp.eq.s32.totalorder %v2854, %v2971
    %vm2988 = vcmp.eq.s32.totalorder %v2855, %v2971
    %vm2989 = vcmp.eq.s32.totalorder %v2856, %v2971
    %vm2990 = vcmp.eq.s32.totalorder %v2857, %v2971
    %vm2991 = vcmp.eq.s32.totalorder %v2858, %v2971
    %vm2992 = vcmp.eq.s32.totalorder %v2859, %v2971
    %vm2993 = vcmp.eq.s32.totalorder %v2860, %v2971
    %vm2994 = vcmp.eq.s32.totalorder %v2861, %v2971
    %vm2995 = vcmp.eq.s32.totalorder %v2862, %v2971
    %vm2996 = vcmp.eq.s32.totalorder %v2863, %v2971
    %vm2997 = vcmp.eq.s32.totalorder %v2864, %v2971
    %vm2998 = vcmp.eq.s32.totalorder %v2865, %v2971
    %vm2999 = vcmp.eq.s32.totalorder %v2866, %v2971
    %vm3000 = vcmp.eq.s32.totalorder %v2867, %v2971
    %vm3001 = vcmp.eq.s32.totalorder %v2868, %v2971
    %vm3002 = vcmp.eq.s32.totalorder %v2869, %v2971
    %vm3003 = vcmp.eq.s32.totalorder %v2870, %v2971
    %vm3004 = vcmp.eq.s32.totalorder %v2871, %v2971
    %vm3005 = vcmp.eq.s32.totalorder %v2872, %v2971
    %vm3006 = vcmp.eq.s32.totalorder %v2873, %v2971
    %vm3007 = vcmp.eq.s32.totalorder %v2874, %v2971
    %vm3008 = vcmp.eq.s32.totalorder %v2875, %v2971
    %vm3009 = vcmp.eq.s32.totalorder %v2876, %v2971
    %vm3010 = vcmp.eq.s32.totalorder %v2877, %v2971
    %vm3011 = vcmp.eq.s32.totalorder %v2878, %v2971
    %vm3012 = vcmp.eq.s32.totalorder %v2879, %v2971
    %vm3013 = vcmp.eq.s32.totalorder %v2880, %v2971
    %vm3014 = vcmp.eq.s32.totalorder %v2881, %v2971
    %vm3015 = vcmp.eq.s32.totalorder %v2882, %v2971
    %vm3016 = vcmp.eq.s32.totalorder %v2883, %v2971
    %vm3017 = vcmp.eq.s32.totalorder %v2884, %v2971
    %vm3018 = vcmp.eq.s32.totalorder %v2885, %v2971
    %vm3019 = vcmp.eq.s32.totalorder %v2886, %v2971
    %vm3020 = vcmp.eq.s32.totalorder %v2887, %v2971
    %vm3021 = vcmp.eq.s32.totalorder %v2888, %v2971
    %vm3022 = vcmp.eq.s32.totalorder %v2889, %v2971
    %vm3023 = vcmp.eq.s32.totalorder %v2890, %v2971
    %vm3024 = vcmp.eq.s32.totalorder %v2891, %v2971
    %vm3025 = vcmp.eq.s32.totalorder %v2892, %v2971
    %vm3026 = vcmp.eq.s32.totalorder %v2893, %v2971
    %vm3027 = vcmp.eq.s32.totalorder %v2894, %v2971
    %vm3028 = vcmp.eq.s32.totalorder %v2895, %v2971
    %vm3029 = vcmp.eq.s32.totalorder %v2896, %v2971
    %vm3030 = vcmp.eq.s32.totalorder %v2897, %v2971
    %vm3031 = vcmp.eq.s32.totalorder %v2898, %v2971
    %vm3032 = vcmp.eq.s32.totalorder %v2899, %v2971
    %vm3033 = vcmp.eq.s32.totalorder %v2900, %v2971
    %vm3034 = vcmp.eq.s32.totalorder %v2901, %v2971
    %vm3035 = vcmp.eq.s32.totalorder %v2902, %v2971
    %vm3036 = vcmp.eq.s32.totalorder %v2903, %v2971
    %vm3037 = vcmp.eq.s32.totalorder %v2904, %v2971
    %vm3038 = vcmp.eq.s32.totalorder %v2905, %v2971
    %vm3039 = vcmp.eq.s32.totalorder %v2906, %v2971
    %vm3040 = vcmp.eq.s32.totalorder %v2907, %v2971
    %vm3041 = vcmp.eq.s32.totalorder %v2908, %v2971
    %vm3042 = vcmp.eq.s32.totalorder %v2909, %v2971
    %vm3043 = vcmp.eq.s32.totalorder %v2910, %v2971
    %vm3044 = vcmp.eq.s32.totalorder %v2911, %v2971
    %vm3045 = vcmp.eq.s32.totalorder %v2912, %v2971
    %vm3046 = vcmp.eq.s32.totalorder %v2913, %v2971
    %vm3047 = vcmp.eq.s32.totalorder %v2914, %v2971
    %vm3048 = vcmp.eq.s32.totalorder %v2915, %v2971
    %vm3049 = vcmp.eq.s32.totalorder %v2916, %v2971
    %vm3050 = vcmp.eq.s32.totalorder %v2917, %v2971
    %vm3051 = vcmp.eq.s32.totalorder %v2918, %v2971
    %vm3052 = vcmp.eq.s32.totalorder %v2919, %v2971
    %vm3053 = vcmp.eq.s32.totalorder %v2920, %v2971
    %vm3054 = vcmp.eq.s32.totalorder %v2921, %v2971
    %vm3055 = vcmp.eq.s32.totalorder %v2922, %v2971
    %vm3056 = vcmp.eq.s32.totalorder %v2923, %v2971
    %vm3057 = vcmp.eq.s32.totalorder %v2924, %v2971
    %vm3058 = vcmp.eq.s32.totalorder %v2925, %v2971
    %vm3059 = vcmp.eq.s32.totalorder %v2926, %v2971
    %vm3060 = vcmp.eq.s32.totalorder %v2927, %v2971
    %vm3061 = vcmp.eq.s32.totalorder %v2928, %v2971
    %vm3062 = vcmp.eq.s32.totalorder %v2929, %v2971
    %vm3063 = vcmp.eq.s32.totalorder %v2930, %v2971
    %vm3064 = vcmp.eq.s32.totalorder %v2931, %v2971
    %vm3065 = vcmp.eq.s32.totalorder %v2932, %v2971
    %vm3066 = vcmp.eq.s32.totalorder %v2933, %v2971
    %vm3067 = vcmp.eq.s32.totalorder %v2934, %v2971
    %vm3068 = vcmp.eq.s32.totalorder %v2935, %v2971
    %vm3069 = vcmp.eq.s32.totalorder %v2936, %v2971
    %vm3070 = vcmp.eq.s32.totalorder %v2937, %v2971
    %vm3071 = vcmp.eq.s32.totalorder %v2938, %v2971
    %vm3072 = vcmp.eq.s32.totalorder %v2939, %v2971
    %vm3073 = vcmp.eq.s32.totalorder %v2940, %v2971
    %vm3074 = vcmp.eq.s32.totalorder %v2941, %v2971
    %vm3075 = vcmp.eq.s32.totalorder %v2942, %v2971
    %vm3076 = vcmp.eq.s32.totalorder %v2943, %v2971
    %vm3077 = vcmp.eq.s32.totalorder %v2944, %v2971
    %vm3078 = vcmp.eq.s32.totalorder %v2945, %v2971
    %vm3079 = vcmp.eq.s32.totalorder %v2946, %v2971
    %vm3080 = vcmp.eq.s32.totalorder %v2947, %v2971
    %vm3081 = vcmp.eq.s32.totalorder %v2948, %v2971
    %vm3082 = vcmp.eq.s32.totalorder %v2949, %v2971
    %vm3083 = vcmp.eq.s32.totalorder %v2950, %v2971
    %vm3084 = vcmp.eq.s32.totalorder %v2951, %v2971
    %vm3085 = vcmp.eq.s32.totalorder %v2952, %v2971
    %vm3086 = vcmp.eq.s32.totalorder %v2953, %v2971
    %vm3087 = vcmp.eq.s32.totalorder %v2954, %v2971
    %vm3088 = vcmp.eq.s32.totalorder %v2955, %v2971
    %vm3089 = vcmp.eq.s32.totalorder %v2956, %v2971
    %vm3090 = vcmp.eq.s32.totalorder %v2957, %v2971
    %vm3091 = vcmp.eq.s32.totalorder %v2958, %v2971
    %vm3092 = vcmp.eq.s32.totalorder %v2959, %v2971
    %vm3093 = vcmp.eq.s32.totalorder %v2960, %v2971
    %vm3094 = vcmp.eq.s32.totalorder %v2961, %v2971
    %vm3095 = vcmp.eq.s32.totalorder %v2962, %v2971
    %vm3096 = vcmp.eq.s32.totalorder %v2963, %v2971
    %vm3097 = vcmp.eq.s32.totalorder %v2964, %v2971
    %vm3098 = vcmp.eq.s32.totalorder %v2965, %v2971
    %vm3099 = vcmp.eq.s32.totalorder %v2966, %v2971
    %vm3100 = vcmp.eq.s32.totalorder %v2967, %v2971
    %vm3101 = vcmp.eq.s32.totalorder %v2968, %v2971
    %vm3102 = vcmp.eq.s32.totalorder %v2969, %v2971
    %vm3103 = vcmp.eq.s32.totalorder %v2842, %v2972
    %vm3104 = vcmp.eq.s32.totalorder %v2843, %v2972
    %vm3105 = vcmp.eq.s32.totalorder %v2844, %v2972
    %vm3106 = vcmp.eq.s32.totalorder %v2845, %v2972
    %vm3107 = vcmp.eq.s32.totalorder %v2846, %v2972
    %vm3108 = vcmp.eq.s32.totalorder %v2847, %v2972
    %vm3109 = vcmp.eq.s32.totalorder %v2848, %v2972
    %vm3110 = vcmp.eq.s32.totalorder %v2849, %v2972
    %vm3111 = vcmp.eq.s32.totalorder %v2850, %v2972
    %vm3112 = vcmp.eq.s32.totalorder %v2851, %v2972
    %vm3113 = vcmp.eq.s32.totalorder %v2852, %v2972
    %vm3114 = vcmp.eq.s32.totalorder %v2853, %v2972
    %vm3115 = vcmp.eq.s32.totalorder %v2854, %v2972
    %vm3116 = vcmp.eq.s32.totalorder %v2855, %v2972
    %vm3117 = vcmp.eq.s32.totalorder %v2856, %v2972
    %vm3118 = vcmp.eq.s32.totalorder %v2857, %v2972
    %vm3119 = vcmp.eq.s32.totalorder %v2858, %v2972
    %vm3120 = vcmp.eq.s32.totalorder %v2859, %v2972
    %vm3121 = vcmp.eq.s32.totalorder %v2860, %v2972
    %vm3122 = vcmp.eq.s32.totalorder %v2861, %v2972
    %vm3123 = vcmp.eq.s32.totalorder %v2862, %v2972
    %vm3124 = vcmp.eq.s32.totalorder %v2863, %v2972
    %vm3125 = vcmp.eq.s32.totalorder %v2864, %v2972
    %vm3126 = vcmp.eq.s32.totalorder %v2865, %v2972
    %vm3127 = vcmp.eq.s32.totalorder %v2866, %v2972
    %vm3128 = vcmp.eq.s32.totalorder %v2867, %v2972
    %vm3129 = vcmp.eq.s32.totalorder %v2868, %v2972
    %vm3130 = vcmp.eq.s32.totalorder %v2869, %v2972
    %vm3131 = vcmp.eq.s32.totalorder %v2870, %v2972
    %vm3132 = vcmp.eq.s32.totalorder %v2871, %v2972
    %vm3133 = vcmp.eq.s32.totalorder %v2872, %v2972
    %vm3134 = vcmp.eq.s32.totalorder %v2873, %v2972
    %vm3135 = vcmp.eq.s32.totalorder %v2874, %v2972
    %vm3136 = vcmp.eq.s32.totalorder %v2875, %v2972
    %vm3137 = vcmp.eq.s32.totalorder %v2876, %v2972
    %vm3138 = vcmp.eq.s32.totalorder %v2877, %v2972
    %vm3139 = vcmp.eq.s32.totalorder %v2878, %v2972
    %vm3140 = vcmp.eq.s32.totalorder %v2879, %v2972
    %vm3141 = vcmp.eq.s32.totalorder %v2880, %v2972
    %vm3142 = vcmp.eq.s32.totalorder %v2881, %v2972
    %vm3143 = vcmp.eq.s32.totalorder %v2882, %v2972
    %vm3144 = vcmp.eq.s32.totalorder %v2883, %v2972
    %vm3145 = vcmp.eq.s32.totalorder %v2884, %v2972
    %vm3146 = vcmp.eq.s32.totalorder %v2885, %v2972
    %vm3147 = vcmp.eq.s32.totalorder %v2886, %v2972
    %vm3148 = vcmp.eq.s32.totalorder %v2887, %v2972
    %vm3149 = vcmp.eq.s32.totalorder %v2888, %v2972
    %vm3150 = vcmp.eq.s32.totalorder %v2889, %v2972
    %vm3151 = vcmp.eq.s32.totalorder %v2890, %v2972
    %vm3152 = vcmp.eq.s32.totalorder %v2891, %v2972
    %vm3153 = vcmp.eq.s32.totalorder %v2892, %v2972
    %vm3154 = vcmp.eq.s32.totalorder %v2893, %v2972
    %vm3155 = vcmp.eq.s32.totalorder %v2894, %v2972
    %vm3156 = vcmp.eq.s32.totalorder %v2895, %v2972
    %vm3157 = vcmp.eq.s32.totalorder %v2896, %v2972
    %vm3158 = vcmp.eq.s32.totalorder %v2897, %v2972
    %vm3159 = vcmp.eq.s32.totalorder %v2898, %v2972
    %vm3160 = vcmp.eq.s32.totalorder %v2899, %v2972
    %vm3161 = vcmp.eq.s32.totalorder %v2900, %v2972
    %vm3162 = vcmp.eq.s32.totalorder %v2901, %v2972
    %vm3163 = vcmp.eq.s32.totalorder %v2902, %v2972
    %vm3164 = vcmp.eq.s32.totalorder %v2903, %v2972
    %vm3165 = vcmp.eq.s32.totalorder %v2904, %v2972
    %vm3166 = vcmp.eq.s32.totalorder %v2905, %v2972
    %vm3167 = vcmp.eq.s32.totalorder %v2906, %v2972
    %vm3168 = vcmp.eq.s32.totalorder %v2907, %v2972
    %vm3169 = vcmp.eq.s32.totalorder %v2908, %v2972
    %vm3170 = vcmp.eq.s32.totalorder %v2909, %v2972
    %vm3171 = vcmp.eq.s32.totalorder %v2910, %v2972
    %vm3172 = vcmp.eq.s32.totalorder %v2911, %v2972
    %vm3173 = vcmp.eq.s32.totalorder %v2912, %v2972
    %vm3174 = vcmp.eq.s32.totalorder %v2913, %v2972
    %vm3175 = vcmp.eq.s32.totalorder %v2914, %v2972
    %vm3176 = vcmp.eq.s32.totalorder %v2915, %v2972
    %vm3177 = vcmp.eq.s32.totalorder %v2916, %v2972
    %vm3178 = vcmp.eq.s32.totalorder %v2917, %v2972
    %vm3179 = vcmp.eq.s32.totalorder %v2918, %v2972
    %vm3180 = vcmp.eq.s32.totalorder %v2919, %v2972
    %vm3181 = vcmp.eq.s32.totalorder %v2920, %v2972
    %vm3182 = vcmp.eq.s32.totalorder %v2921, %v2972
    %vm3183 = vcmp.eq.s32.totalorder %v2922, %v2972
    %vm3184 = vcmp.eq.s32.totalorder %v2923, %v2972
    %vm3185 = vcmp.eq.s32.totalorder %v2924, %v2972
    %vm3186 = vcmp.eq.s32.totalorder %v2925, %v2972
    %vm3187 = vcmp.eq.s32.totalorder %v2926, %v2972
    %vm3188 = vcmp.eq.s32.totalorder %v2927, %v2972
    %vm3189 = vcmp.eq.s32.totalorder %v2928, %v2972
    %vm3190 = vcmp.eq.s32.totalorder %v2929, %v2972
    %vm3191 = vcmp.eq.s32.totalorder %v2930, %v2972
    %vm3192 = vcmp.eq.s32.totalorder %v2931, %v2972
    %vm3193 = vcmp.eq.s32.totalorder %v2932, %v2972
    %vm3194 = vcmp.eq.s32.totalorder %v2933, %v2972
    %vm3195 = vcmp.eq.s32.totalorder %v2934, %v2972
    %vm3196 = vcmp.eq.s32.totalorder %v2935, %v2972
    %vm3197 = vcmp.eq.s32.totalorder %v2936, %v2972
    %vm3198 = vcmp.eq.s32.totalorder %v2937, %v2972
    %vm3199 = vcmp.eq.s32.totalorder %v2938, %v2972
    %vm3200 = vcmp.eq.s32.totalorder %v2939, %v2972
    %vm3201 = vcmp.eq.s32.totalorder %v2940, %v2972
    %vm3202 = vcmp.eq.s32.totalorder %v2941, %v2972
    %vm3203 = vcmp.eq.s32.totalorder %v2942, %v2972
    %vm3204 = vcmp.eq.s32.totalorder %v2943, %v2972
    %vm3205 = vcmp.eq.s32.totalorder %v2944, %v2972
    %vm3206 = vcmp.eq.s32.totalorder %v2945, %v2972
    %vm3207 = vcmp.eq.s32.totalorder %v2946, %v2972
    %vm3208 = vcmp.eq.s32.totalorder %v2947, %v2972
    %vm3209 = vcmp.eq.s32.totalorder %v2948, %v2972
    %vm3210 = vcmp.eq.s32.totalorder %v2949, %v2972
    %vm3211 = vcmp.eq.s32.totalorder %v2950, %v2972
    %vm3212 = vcmp.eq.s32.totalorder %v2951, %v2972
    %vm3213 = vcmp.eq.s32.totalorder %v2952, %v2972
    %vm3214 = vcmp.eq.s32.totalorder %v2953, %v2972
    %vm3215 = vcmp.eq.s32.totalorder %v2954, %v2972
    %vm3216 = vcmp.eq.s32.totalorder %v2955, %v2972
    %vm3217 = vcmp.eq.s32.totalorder %v2956, %v2972
    %vm3218 = vcmp.eq.s32.totalorder %v2957, %v2972
    %vm3219 = vcmp.eq.s32.totalorder %v2958, %v2972
    %vm3220 = vcmp.eq.s32.totalorder %v2959, %v2972
    %vm3221 = vcmp.eq.s32.totalorder %v2960, %v2972
    %vm3222 = vcmp.eq.s32.totalorder %v2961, %v2972
    %vm3223 = vcmp.eq.s32.totalorder %v2962, %v2972
    %vm3224 = vcmp.eq.s32.totalorder %v2963, %v2972
    %vm3225 = vcmp.eq.s32.totalorder %v2964, %v2972
    %vm3226 = vcmp.eq.s32.totalorder %v2965, %v2972
    %vm3227 = vcmp.eq.s32.totalorder %v2966, %v2972
    %vm3228 = vcmp.eq.s32.totalorder %v2967, %v2972
    %vm3229 = vcmp.eq.s32.totalorder %v2968, %v2972
    %vm3230 = vcmp.eq.s32.totalorder %v2969, %v2972
    %vm3231 = vcmp.eq.s32.totalorder %v2842, %v2973
    %vm3232 = vcmp.eq.s32.totalorder %v2843, %v2973
    %vm3233 = vcmp.eq.s32.totalorder %v2844, %v2973
    %vm3234 = vcmp.eq.s32.totalorder %v2845, %v2973
    %vm3235 = vcmp.eq.s32.totalorder %v2846, %v2973
    %vm3236 = vcmp.eq.s32.totalorder %v2847, %v2973
    %vm3237 = vcmp.eq.s32.totalorder %v2848, %v2973
    %vm3238 = vcmp.eq.s32.totalorder %v2849, %v2973
    %vm3239 = vcmp.eq.s32.totalorder %v2850, %v2973
    %vm3240 = vcmp.eq.s32.totalorder %v2851, %v2973
    %vm3241 = vcmp.eq.s32.totalorder %v2852, %v2973
    %vm3242 = vcmp.eq.s32.totalorder %v2853, %v2973
    %vm3243 = vcmp.eq.s32.totalorder %v2854, %v2973
    %vm3244 = vcmp.eq.s32.totalorder %v2855, %v2973
    %vm3245 = vcmp.eq.s32.totalorder %v2856, %v2973
    %vm3246 = vcmp.eq.s32.totalorder %v2857, %v2973
    %vm3247 = vcmp.eq.s32.totalorder %v2858, %v2973
    %vm3248 = vcmp.eq.s32.totalorder %v2859, %v2973
    %vm3249 = vcmp.eq.s32.totalorder %v2860, %v2973
    %vm3250 = vcmp.eq.s32.totalorder %v2861, %v2973
    %vm3251 = vcmp.eq.s32.totalorder %v2862, %v2973
    %vm3252 = vcmp.eq.s32.totalorder %v2863, %v2973
    %vm3253 = vcmp.eq.s32.totalorder %v2864, %v2973
    %vm3254 = vcmp.eq.s32.totalorder %v2865, %v2973
    %vm3255 = vcmp.eq.s32.totalorder %v2866, %v2973
    %vm3256 = vcmp.eq.s32.totalorder %v2867, %v2973
    %vm3257 = vcmp.eq.s32.totalorder %v2868, %v2973
    %vm3258 = vcmp.eq.s32.totalorder %v2869, %v2973
    %vm3259 = vcmp.eq.s32.totalorder %v2870, %v2973
    %vm3260 = vcmp.eq.s32.totalorder %v2871, %v2973
    %vm3261 = vcmp.eq.s32.totalorder %v2872, %v2973
    %vm3262 = vcmp.eq.s32.totalorder %v2873, %v2973
    %vm3263 = vcmp.eq.s32.totalorder %v2874, %v2973
    %vm3264 = vcmp.eq.s32.totalorder %v2875, %v2973
    %vm3265 = vcmp.eq.s32.totalorder %v2876, %v2973
    %vm3266 = vcmp.eq.s32.totalorder %v2877, %v2973
    %vm3267 = vcmp.eq.s32.totalorder %v2878, %v2973
    %vm3268 = vcmp.eq.s32.totalorder %v2879, %v2973
    %vm3269 = vcmp.eq.s32.totalorder %v2880, %v2973
    %vm3270 = vcmp.eq.s32.totalorder %v2881, %v2973
    %vm3271 = vcmp.eq.s32.totalorder %v2882, %v2973
    %vm3272 = vcmp.eq.s32.totalorder %v2883, %v2973
    %vm3273 = vcmp.eq.s32.totalorder %v2884, %v2973
    %vm3274 = vcmp.eq.s32.totalorder %v2885, %v2973
    %vm3275 = vcmp.eq.s32.totalorder %v2886, %v2973
    %vm3276 = vcmp.eq.s32.totalorder %v2887, %v2973
    %vm3277 = vcmp.eq.s32.totalorder %v2888, %v2973
    %vm3278 = vcmp.eq.s32.totalorder %v2889, %v2973
    %vm3279 = vcmp.eq.s32.totalorder %v2890, %v2973
    %vm3280 = vcmp.eq.s32.totalorder %v2891, %v2973
    %vm3281 = vcmp.eq.s32.totalorder %v2892, %v2973
    %vm3282 = vcmp.eq.s32.totalorder %v2893, %v2973
    %vm3283 = vcmp.eq.s32.totalorder %v2894, %v2973
    %vm3284 = vcmp.eq.s32.totalorder %v2895, %v2973
    %vm3285 = vcmp.eq.s32.totalorder %v2896, %v2973
    %vm3286 = vcmp.eq.s32.totalorder %v2897, %v2973
    %vm3287 = vcmp.eq.s32.totalorder %v2898, %v2973
    %vm3288 = vcmp.eq.s32.totalorder %v2899, %v2973
    %vm3289 = vcmp.eq.s32.totalorder %v2900, %v2973
    %vm3290 = vcmp.eq.s32.totalorder %v2901, %v2973
    %vm3291 = vcmp.eq.s32.totalorder %v2902, %v2973
    %vm3292 = vcmp.eq.s32.totalorder %v2903, %v2973
    %vm3293 = vcmp.eq.s32.totalorder %v2904, %v2973
    %vm3294 = vcmp.eq.s32.totalorder %v2905, %v2973
    %vm3295 = vcmp.eq.s32.totalorder %v2906, %v2973
    %vm3296 = vcmp.eq.s32.totalorder %v2907, %v2973
    %vm3297 = vcmp.eq.s32.totalorder %v2908, %v2973
    %vm3298 = vcmp.eq.s32.totalorder %v2909, %v2973
    %vm3299 = vcmp.eq.s32.totalorder %v2910, %v2973
    %vm3300 = vcmp.eq.s32.totalorder %v2911, %v2973
    %vm3301 = vcmp.eq.s32.totalorder %v2912, %v2973
    %vm3302 = vcmp.eq.s32.totalorder %v2913, %v2973
    %vm3303 = vcmp.eq.s32.totalorder %v2914, %v2973
    %vm3304 = vcmp.eq.s32.totalorder %v2915, %v2973
    %vm3305 = vcmp.eq.s32.totalorder %v2916, %v2973
    %vm3306 = vcmp.eq.s32.totalorder %v2917, %v2973
    %vm3307 = vcmp.eq.s32.totalorder %v2918, %v2973
    %vm3308 = vcmp.eq.s32.totalorder %v2919, %v2973
    %vm3309 = vcmp.eq.s32.totalorder %v2920, %v2973
    %vm3310 = vcmp.eq.s32.totalorder %v2921, %v2973
    %vm3311 = vcmp.eq.s32.totalorder %v2922, %v2973
    %vm3312 = vcmp.eq.s32.totalorder %v2923, %v2973
    %vm3313 = vcmp.eq.s32.totalorder %v2924, %v2973
    %vm3314 = vcmp.eq.s32.totalorder %v2925, %v2973
    %vm3315 = vcmp.eq.s32.totalorder %v2926, %v2973
    %vm3316 = vcmp.eq.s32.totalorder %v2927, %v2973
    %vm3317 = vcmp.eq.s32.totalorder %v2928, %v2973
    %vm3318 = vcmp.eq.s32.totalorder %v2929, %v2973
    %vm3319 = vcmp.eq.s32.totalorder %v2930, %v2973
    %vm3320 = vcmp.eq.s32.totalorder %v2931, %v2973
    %vm3321 = vcmp.eq.s32.totalorder %v2932, %v2973
    %vm3322 = vcmp.eq.s32.totalorder %v2933, %v2973
    %vm3323 = vcmp.eq.s32.totalorder %v2934, %v2973
    %vm3324 = vcmp.eq.s32.totalorder %v2935, %v2973
    %vm3325 = vcmp.eq.s32.totalorder %v2936, %v2973
    %vm3326 = vcmp.eq.s32.totalorder %v2937, %v2973
    %vm3327 = vcmp.eq.s32.totalorder %v2938, %v2973
    %vm3328 = vcmp.eq.s32.totalorder %v2939, %v2973
    %vm3329 = vcmp.eq.s32.totalorder %v2940, %v2973
    %vm3330 = vcmp.eq.s32.totalorder %v2941, %v2973
    %vm3331 = vcmp.eq.s32.totalorder %v2942, %v2973
    %vm3332 = vcmp.eq.s32.totalorder %v2943, %v2973
    %vm3333 = vcmp.eq.s32.totalorder %v2944, %v2973
    %vm3334 = vcmp.eq.s32.totalorder %v2945, %v2973
    %vm3335 = vcmp.eq.s32.totalorder %v2946, %v2973
    %vm3336 = vcmp.eq.s32.totalorder %v2947, %v2973
    %vm3337 = vcmp.eq.s32.totalorder %v2948, %v2973
    %vm3338 = vcmp.eq.s32.totalorder %v2949, %v2973
    %vm3339 = vcmp.eq.s32.totalorder %v2950, %v2973
    %vm3340 = vcmp.eq.s32.totalorder %v2951, %v2973
    %vm3341 = vcmp.eq.s32.totalorder %v2952, %v2973
    %vm3342 = vcmp.eq.s32.totalorder %v2953, %v2973
    %vm3343 = vcmp.eq.s32.totalorder %v2954, %v2973
    %vm3344 = vcmp.eq.s32.totalorder %v2955, %v2973
    %vm3345 = vcmp.eq.s32.totalorder %v2956, %v2973
    %vm3346 = vcmp.eq.s32.totalorder %v2957, %v2973
    %vm3347 = vcmp.eq.s32.totalorder %v2958, %v2973
    %vm3348 = vcmp.eq.s32.totalorder %v2959, %v2973
    %vm3349 = vcmp.eq.s32.totalorder %v2960, %v2973
    %vm3350 = vcmp.eq.s32.totalorder %v2961, %v2973
    %vm3351 = vcmp.eq.s32.totalorder %v2962, %v2973
    %vm3352 = vcmp.eq.s32.totalorder %v2963, %v2973
    %vm3353 = vcmp.eq.s32.totalorder %v2964, %v2973
    %vm3354 = vcmp.eq.s32.totalorder %v2965, %v2973
    %vm3355 = vcmp.eq.s32.totalorder %v2966, %v2973
    %vm3356 = vcmp.eq.s32.totalorder %v2967, %v2973
    %vm3357 = vcmp.eq.s32.totalorder %v2968, %v2973
    %vm3358 = vcmp.eq.s32.totalorder %v2969, %v2973
    %vm3359 = vcmp.eq.s32.totalorder %v2842, %v2974
    %vm3360 = vcmp.eq.s32.totalorder %v2843, %v2974
    %vm3361 = vcmp.eq.s32.totalorder %v2844, %v2974
    %vm3362 = vcmp.eq.s32.totalorder %v2845, %v2974
    %vm3363 = vcmp.eq.s32.totalorder %v2846, %v2974
    %vm3364 = vcmp.eq.s32.totalorder %v2847, %v2974
    %vm3365 = vcmp.eq.s32.totalorder %v2848, %v2974
    %vm3366 = vcmp.eq.s32.totalorder %v2849, %v2974
    %vm3367 = vcmp.eq.s32.totalorder %v2850, %v2974
    %vm3368 = vcmp.eq.s32.totalorder %v2851, %v2974
    %vm3369 = vcmp.eq.s32.totalorder %v2852, %v2974
    %vm3370 = vcmp.eq.s32.totalorder %v2853, %v2974
    %vm3371 = vcmp.eq.s32.totalorder %v2854, %v2974
    %vm3372 = vcmp.eq.s32.totalorder %v2855, %v2974
    %vm3373 = vcmp.eq.s32.totalorder %v2856, %v2974
    %vm3374 = vcmp.eq.s32.totalorder %v2857, %v2974
    %vm3375 = vcmp.eq.s32.totalorder %v2858, %v2974
    %vm3376 = vcmp.eq.s32.totalorder %v2859, %v2974
    %vm3377 = vcmp.eq.s32.totalorder %v2860, %v2974
    %vm3378 = vcmp.eq.s32.totalorder %v2861, %v2974
    %vm3379 = vcmp.eq.s32.totalorder %v2862, %v2974
    %vm3380 = vcmp.eq.s32.totalorder %v2863, %v2974
    %vm3381 = vcmp.eq.s32.totalorder %v2864, %v2974
    %vm3382 = vcmp.eq.s32.totalorder %v2865, %v2974
    %vm3383 = vcmp.eq.s32.totalorder %v2866, %v2974
    %vm3384 = vcmp.eq.s32.totalorder %v2867, %v2974
    %vm3385 = vcmp.eq.s32.totalorder %v2868, %v2974
    %vm3386 = vcmp.eq.s32.totalorder %v2869, %v2974
    %vm3387 = vcmp.eq.s32.totalorder %v2870, %v2974
    %vm3388 = vcmp.eq.s32.totalorder %v2871, %v2974
    %vm3389 = vcmp.eq.s32.totalorder %v2872, %v2974
    %vm3390 = vcmp.eq.s32.totalorder %v2873, %v2974
    %vm3391 = vcmp.eq.s32.totalorder %v2874, %v2974
    %vm3392 = vcmp.eq.s32.totalorder %v2875, %v2974
    %vm3393 = vcmp.eq.s32.totalorder %v2876, %v2974
    %vm3394 = vcmp.eq.s32.totalorder %v2877, %v2974
    %vm3395 = vcmp.eq.s32.totalorder %v2878, %v2974
    %vm3396 = vcmp.eq.s32.totalorder %v2879, %v2974
    %vm3397 = vcmp.eq.s32.totalorder %v2880, %v2974
    %vm3398 = vcmp.eq.s32.totalorder %v2881, %v2974
    %vm3399 = vcmp.eq.s32.totalorder %v2882, %v2974
    %vm3400 = vcmp.eq.s32.totalorder %v2883, %v2974
    %vm3401 = vcmp.eq.s32.totalorder %v2884, %v2974
    %vm3402 = vcmp.eq.s32.totalorder %v2885, %v2974
    %vm3403 = vcmp.eq.s32.totalorder %v2886, %v2974
    %vm3404 = vcmp.eq.s32.totalorder %v2887, %v2974
    %vm3405 = vcmp.eq.s32.totalorder %v2888, %v2974
    %vm3406 = vcmp.eq.s32.totalorder %v2889, %v2974
    %vm3407 = vcmp.eq.s32.totalorder %v2890, %v2974
    %vm3408 = vcmp.eq.s32.totalorder %v2891, %v2974
    %vm3409 = vcmp.eq.s32.totalorder %v2892, %v2974
    %vm3410 = vcmp.eq.s32.totalorder %v2893, %v2974
    %vm3411 = vcmp.eq.s32.totalorder %v2894, %v2974
    %vm3412 = vcmp.eq.s32.totalorder %v2895, %v2974
    %vm3413 = vcmp.eq.s32.totalorder %v2896, %v2974
    %vm3414 = vcmp.eq.s32.totalorder %v2897, %v2974
    %vm3415 = vcmp.eq.s32.totalorder %v2898, %v2974
    %vm3416 = vcmp.eq.s32.totalorder %v2899, %v2974
    %vm3417 = vcmp.eq.s32.totalorder %v2900, %v2974
    %vm3418 = vcmp.eq.s32.totalorder %v2901, %v2974
    %vm3419 = vcmp.eq.s32.totalorder %v2902, %v2974
    %vm3420 = vcmp.eq.s32.totalorder %v2903, %v2974
    %vm3421 = vcmp.eq.s32.totalorder %v2904, %v2974
    %vm3422 = vcmp.eq.s32.totalorder %v2905, %v2974
    %vm3423 = vcmp.eq.s32.totalorder %v2906, %v2974
    %vm3424 = vcmp.eq.s32.totalorder %v2907, %v2974
    %vm3425 = vcmp.eq.s32.totalorder %v2908, %v2974
    %vm3426 = vcmp.eq.s32.totalorder %v2909, %v2974
    %vm3427 = vcmp.eq.s32.totalorder %v2910, %v2974
    %vm3428 = vcmp.eq.s32.totalorder %v2911, %v2974
    %vm3429 = vcmp.eq.s32.totalorder %v2912, %v2974
    %vm3430 = vcmp.eq.s32.totalorder %v2913, %v2974
    %vm3431 = vcmp.eq.s32.totalorder %v2914, %v2974
    %vm3432 = vcmp.eq.s32.totalorder %v2915, %v2974
    %vm3433 = vcmp.eq.s32.totalorder %v2916, %v2974
    %vm3434 = vcmp.eq.s32.totalorder %v2917, %v2974
    %vm3435 = vcmp.eq.s32.totalorder %v2918, %v2974
    %vm3436 = vcmp.eq.s32.totalorder %v2919, %v2974
    %vm3437 = vcmp.eq.s32.totalorder %v2920, %v2974
    %vm3438 = vcmp.eq.s32.totalorder %v2921, %v2974
    %vm3439 = vcmp.eq.s32.totalorder %v2922, %v2974
    %vm3440 = vcmp.eq.s32.totalorder %v2923, %v2974
    %vm3441 = vcmp.eq.s32.totalorder %v2924, %v2974
    %vm3442 = vcmp.eq.s32.totalorder %v2925, %v2974
    %vm3443 = vcmp.eq.s32.totalorder %v2926, %v2974
    %vm3444 = vcmp.eq.s32.totalorder %v2927, %v2974
    %vm3445 = vcmp.eq.s32.totalorder %v2928, %v2974
    %vm3446 = vcmp.eq.s32.totalorder %v2929, %v2974
    %vm3447 = vcmp.eq.s32.totalorder %v2930, %v2974
    %vm3448 = vcmp.eq.s32.totalorder %v2931, %v2974
    %vm3449 = vcmp.eq.s32.totalorder %v2932, %v2974
    %vm3450 = vcmp.eq.s32.totalorder %v2933, %v2974
    %vm3451 = vcmp.eq.s32.totalorder %v2934, %v2974
    %vm3452 = vcmp.eq.s32.totalorder %v2935, %v2974
    %vm3453 = vcmp.eq.s32.totalorder %v2936, %v2974
    %vm3454 = vcmp.eq.s32.totalorder %v2937, %v2974
    %vm3455 = vcmp.eq.s32.totalorder %v2938, %v2974
    %vm3456 = vcmp.eq.s32.totalorder %v2939, %v2974
    %vm3457 = vcmp.eq.s32.totalorder %v2940, %v2974
    %vm3458 = vcmp.eq.s32.totalorder %v2941, %v2974
    %vm3459 = vcmp.eq.s32.totalorder %v2942, %v2974
    %vm3460 = vcmp.eq.s32.totalorder %v2943, %v2974
    %vm3461 = vcmp.eq.s32.totalorder %v2944, %v2974
    %vm3462 = vcmp.eq.s32.totalorder %v2945, %v2974
    %vm3463 = vcmp.eq.s32.totalorder %v2946, %v2974
    %vm3464 = vcmp.eq.s32.totalorder %v2947, %v2974
    %vm3465 = vcmp.eq.s32.totalorder %v2948, %v2974
    %vm3466 = vcmp.eq.s32.totalorder %v2949, %v2974
    %vm3467 = vcmp.eq.s32.totalorder %v2950, %v2974
    %vm3468 = vcmp.eq.s32.totalorder %v2951, %v2974
    %vm3469 = vcmp.eq.s32.totalorder %v2952, %v2974
    %vm3470 = vcmp.eq.s32.totalorder %v2953, %v2974
    %vm3471 = vcmp.eq.s32.totalorder %v2954, %v2974
    %vm3472 = vcmp.eq.s32.totalorder %v2955, %v2974
    %vm3473 = vcmp.eq.s32.totalorder %v2956, %v2974
    %vm3474 = vcmp.eq.s32.totalorder %v2957, %v2974
    %vm3475 = vcmp.eq.s32.totalorder %v2958, %v2974
    %vm3476 = vcmp.eq.s32.totalorder %v2959, %v2974
    %vm3477 = vcmp.eq.s32.totalorder %v2960, %v2974
    %vm3478 = vcmp.eq.s32.totalorder %v2961, %v2974
    %vm3479 = vcmp.eq.s32.totalorder %v2962, %v2974
    %vm3480 = vcmp.eq.s32.totalorder %v2963, %v2974
    %vm3481 = vcmp.eq.s32.totalorder %v2964, %v2974
    %vm3482 = vcmp.eq.s32.totalorder %v2965, %v2974
    %vm3483 = vcmp.eq.s32.totalorder %v2966, %v2974
    %vm3484 = vcmp.eq.s32.totalorder %v2967, %v2974
    %vm3485 = vcmp.eq.s32.totalorder %v2968, %v2974
    %vm3486 = vcmp.eq.s32.totalorder %v2969, %v2974
    %v3487 = vsel %vm2975, 1, 0
    %v3488 = vsel %vm2976, 1, 0
    %v3489 = vsel %vm2977, 1, 0
    %v3490 = vsel %vm2978, 1, 0
    %v3491 = vsel %vm2979, 1, 0
    %v3492 = vsel %vm2980, 1, 0
    %v3493 = vsel %vm2981, 1, 0
    %v3494 = vsel %vm2982, 1, 0
    %v3495 = vsel %vm2983, 1, 0
    %v3496 = vsel %vm2984, 1, 0
    %v3497 = vsel %vm2985, 1, 0
    %v3498 = vsel %vm2986, 1, 0
    %v3499 = vsel %vm2987, 1, 0
    %v3500 = vsel %vm2988, 1, 0
    %v3501 = vsel %vm2989, 1, 0
    %v3502 = vsel %vm2990, 1, 0
    %v3503 = vsel %vm2991, 1, 0
    %v3504 = vsel %vm2992, 1, 0
    %v3505 = vsel %vm2993, 1, 0
    %v3506 = vsel %vm2994, 1, 0
    %v3507 = vsel %vm2995, 1, 0
    %v3508 = vsel %vm2996, 1, 0
    %v3509 = vsel %vm2997, 1, 0
    %v3510 = vsel %vm2998, 1, 0
    %v3511 = vsel %vm2999, 1, 0
    %v3512 = vsel %vm3000, 1, 0
    %v3513 = vsel %vm3001, 1, 0
    %v3514 = vsel %vm3002, 1, 0
    %v3515 = vsel %vm3003, 1, 0
    %v3516 = vsel %vm3004, 1, 0
    %v3517 = vsel %vm3005, 1, 0
    %v3518 = vsel %vm3006, 1, 0
    %v3519 = vsel %vm3007, 1, 0
    %v3520 = vsel %vm3008, 1, 0
    %v3521 = vsel %vm3009, 1, 0
    %v3522 = vsel %vm3010, 1, 0
    %v3523 = vsel %vm3011, 1, 0
    %v3524 = vsel %vm3012, 1, 0
    %v3525 = vsel %vm3013, 1, 0
    %v3526 = vsel %vm3014, 1, 0
    %v3527 = vsel %vm3015, 1, 0
    %v3528 = vsel %vm3016, 1, 0
    %v3529 = vsel %vm3017, 1, 0
    %v3530 = vsel %vm3018, 1, 0
    %v3531 = vsel %vm3019, 1, 0
    %v3532 = vsel %vm3020, 1, 0
    %v3533 = vsel %vm3021, 1, 0
    %v3534 = vsel %vm3022, 1, 0
    %v3535 = vsel %vm3023, 1, 0
    %v3536 = vsel %vm3024, 1, 0
    %v3537 = vsel %vm3025, 1, 0
    %v3538 = vsel %vm3026, 1, 0
    %v3539 = vsel %vm3027, 1, 0
    %v3540 = vsel %vm3028, 1, 0
    %v3541 = vsel %vm3029, 1, 0
    %v3542 = vsel %vm3030, 1, 0
    %v3543 = vsel %vm3031, 1, 0
    %v3544 = vsel %vm3032, 1, 0
    %v3545 = vsel %vm3033, 1, 0
    %v3546 = vsel %vm3034, 1, 0
    %v3547 = vsel %vm3035, 1, 0
    %v3548 = vsel %vm3036, 1, 0
    %v3549 = vsel %vm3037, 1, 0
    %v3550 = vsel %vm3038, 1, 0
    %v3551 = vsel %vm3039, 1, 0
    %v3552 = vsel %vm3040, 1, 0
    %v3553 = vsel %vm3041, 1, 0
    %v3554 = vsel %vm3042, 1, 0
    %v3555 = vsel %vm3043, 1, 0
    %v3556 = vsel %vm3044, 1, 0
    %v3557 = vsel %vm3045, 1, 0
    %v3558 = vsel %vm3046, 1, 0
    %v3559 = vsel %vm3047, 1, 0
    %v3560 = vsel %vm3048, 1, 0
    %v3561 = vsel %vm3049, 1, 0
    %v3562 = vsel %vm3050, 1, 0
    %v3563 = vsel %vm3051, 1, 0
    %v3564 = vsel %vm3052, 1, 0
    %v3565 = vsel %vm3053, 1, 0
    %v3566 = vsel %vm3054, 1, 0
    %v3567 = vsel %vm3055, 1, 0
    %v3568 = vsel %vm3056, 1, 0
    %v3569 = vsel %vm3057, 1, 0
    %v3570 = vsel %vm3058, 1, 0
    %v3571 = vsel %vm3059, 1, 0
    %v3572 = vsel %vm3060, 1, 0
    %v3573 = vsel %vm3061, 1, 0
    %v3574 = vsel %vm3062, 1, 0
    %v3575 = vsel %vm3063, 1, 0
    %v3576 = vsel %vm3064, 1, 0
    %v3577 = vsel %vm3065, 1, 0
    %v3578 = vsel %vm3066, 1, 0
    %v3579 = vsel %vm3067, 1, 0
    %v3580 = vsel %vm3068, 1, 0
    %v3581 = vsel %vm3069, 1, 0
    %v3582 = vsel %vm3070, 1, 0
    %v3583 = vsel %vm3071, 1, 0
    %v3584 = vsel %vm3072, 1, 0
    %v3585 = vsel %vm3073, 1, 0
    %v3586 = vsel %vm3074, 1, 0
    %v3587 = vsel %vm3075, 1, 0
    %v3588 = vsel %vm3076, 1, 0
    %v3589 = vsel %vm3077, 1, 0
    %v3590 = vsel %vm3078, 1, 0
    %v3591 = vsel %vm3079, 1, 0
    %v3592 = vsel %vm3080, 1, 0
    %v3593 = vsel %vm3081, 1, 0
    %v3594 = vsel %vm3082, 1, 0
    %v3595 = vsel %vm3083, 1, 0
    %v3596 = vsel %vm3084, 1, 0
    %v3597 = vsel %vm3085, 1, 0
    %v3598 = vsel %vm3086, 1, 0
    %v3599 = vsel %vm3087, 1, 0
    %v3600 = vsel %vm3088, 1, 0
    %v3601 = vsel %vm3089, 1, 0
    %v3602 = vsel %vm3090, 1, 0
    %v3603 = vsel %vm3091, 1, 0
    %v3604 = vsel %vm3092, 1, 0
    %v3605 = vsel %vm3093, 1, 0
    %v3606 = vsel %vm3094, 1, 0
    %v3607 = vsel %vm3095, 1, 0
    %v3608 = vsel %vm3096, 1, 0
    %v3609 = vsel %vm3097, 1, 0
    %v3610 = vsel %vm3098, 1, 0
    %v3611 = vsel %vm3099, 1, 0
    %v3612 = vsel %vm3100, 1, 0
    %v3613 = vsel %vm3101, 1, 0
    %v3614 = vsel %vm3102, 1, 0
    %v3615 = vsel %vm3103, 1, 0
    %v3616 = vsel %vm3104, 1, 0
    %v3617 = vsel %vm3105, 1, 0
    %v3618 = vsel %vm3106, 1, 0
    %v3619 = vsel %vm3107, 1, 0
    %v3620 = vsel %vm3108, 1, 0
    %v3621 = vsel %vm3109, 1, 0
    %v3622 = vsel %vm3110, 1, 0
    %v3623 = vsel %vm3111, 1, 0
    %v3624 = vsel %vm3112, 1, 0
    %v3625 = vsel %vm3113, 1, 0
    %v3626 = vsel %vm3114, 1, 0
    %v3627 = vsel %vm3115, 1, 0
    %v3628 = vsel %vm3116, 1, 0
    %v3629 = vsel %vm3117, 1, 0
    %v3630 = vsel %vm3118, 1, 0
    %v3631 = vsel %vm3119, 1, 0
    %v3632 = vsel %vm3120, 1, 0
    %v3633 = vsel %vm3121, 1, 0
    %v3634 = vsel %vm3122, 1, 0
    %v3635 = vsel %vm3123, 1, 0
    %v3636 = vsel %vm3124, 1, 0
    %v3637 = vsel %vm3125, 1, 0
    %v3638 = vsel %vm3126, 1, 0
    %v3639 = vsel %vm3127, 1, 0
    %v3640 = vsel %vm3128, 1, 0
    %v3641 = vsel %vm3129, 1, 0
    %v3642 = vsel %vm3130, 1, 0
    %v3643 = vsel %vm3131, 1, 0
    %v3644 = vsel %vm3132, 1, 0
    %v3645 = vsel %vm3133, 1, 0
    %v3646 = vsel %vm3134, 1, 0
    %v3647 = vsel %vm3135, 1, 0
    %v3648 = vsel %vm3136, 1, 0
    %v3649 = vsel %vm3137, 1, 0
    %v3650 = vsel %vm3138, 1, 0
    %v3651 = vsel %vm3139, 1, 0
    %v3652 = vsel %vm3140, 1, 0
    %v3653 = vsel %vm3141, 1, 0
    %v3654 = vsel %vm3142, 1, 0
    %v3655 = vsel %vm3143, 1, 0
    %v3656 = vsel %vm3144, 1, 0
    %v3657 = vsel %vm3145, 1, 0
    %v3658 = vsel %vm3146, 1, 0
    %v3659 = vsel %vm3147, 1, 0
    %v3660 = vsel %vm3148, 1, 0
    %v3661 = vsel %vm3149, 1, 0
    %v3662 = vsel %vm3150, 1, 0
    %v3663 = vsel %vm3151, 1, 0
    %v3664 = vsel %vm3152, 1, 0
    %v3665 = vsel %vm3153, 1, 0
    %v3666 = vsel %vm3154, 1, 0
    %v3667 = vsel %vm3155, 1, 0
    %v3668 = vsel %vm3156, 1, 0
    %v3669 = vsel %vm3157, 1, 0
    %v3670 = vsel %vm3158, 1, 0
    %v3671 = vsel %vm3159, 1, 0
    %v3672 = vsel %vm3160, 1, 0
    %v3673 = vsel %vm3161, 1, 0
    %v3674 = vsel %vm3162, 1, 0
    %v3675 = vsel %vm3163, 1, 0
    %v3676 = vsel %vm3164, 1, 0
    %v3677 = vsel %vm3165, 1, 0
    %v3678 = vsel %vm3166, 1, 0
    %v3679 = vsel %vm3167, 1, 0
    %v3680 = vsel %vm3168, 1, 0
    %v3681 = vsel %vm3169, 1, 0
    %v3682 = vsel %vm3170, 1, 0
    %v3683 = vsel %vm3171, 1, 0
    %v3684 = vsel %vm3172, 1, 0
    %v3685 = vsel %vm3173, 1, 0
    %v3686 = vsel %vm3174, 1, 0
    %v3687 = vsel %vm3175, 1, 0
    %v3688 = vsel %vm3176, 1, 0
    %v3689 = vsel %vm3177, 1, 0
    %v3690 = vsel %vm3178, 1, 0
    %v3691 = vsel %vm3179, 1, 0
    %v3692 = vsel %vm3180, 1, 0
    %v3693 = vsel %vm3181, 1, 0
    %v3694 = vsel %vm3182, 1, 0
    %v3695 = vsel %vm3183, 1, 0
    %v3696 = vsel %vm3184, 1, 0
    %v3697 = vsel %vm3185, 1, 0
    %v3698 = vsel %vm3186, 1, 0
    %v3699 = vsel %vm3187, 1, 0
    %v3700 = vsel %vm3188, 1, 0
    %v3701 = vsel %vm3189, 1, 0
    %v3702 = vsel %vm3190, 1, 0
    %v3703 = vsel %vm3191, 1, 0
    %v3704 = vsel %vm3192, 1, 0
    %v3705 = vsel %vm3193, 1, 0
    %v3706 = vsel %vm3194, 1, 0
    %v3707 = vsel %vm3195, 1, 0
    %v3708 = vsel %vm3196, 1, 0
    %v3709 = vsel %vm3197, 1, 0
    %v3710 = vsel %vm3198, 1, 0
    %v3711 = vsel %vm3199, 1, 0
    %v3712 = vsel %vm3200, 1, 0
    %v3713 = vsel %vm3201, 1, 0
    %v3714 = vsel %vm3202, 1, 0
    %v3715 = vsel %vm3203, 1, 0
    %v3716 = vsel %vm3204, 1, 0
    %v3717 = vsel %vm3205, 1, 0
    %v3718 = vsel %vm3206, 1, 0
    %v3719 = vsel %vm3207, 1, 0
    %v3720 = vsel %vm3208, 1, 0
    %v3721 = vsel %vm3209, 1, 0
    %v3722 = vsel %vm3210, 1, 0
    %v3723 = vsel %vm3211, 1, 0
    %v3724 = vsel %vm3212, 1, 0
    %v3725 = vsel %vm3213, 1, 0
    %v3726 = vsel %vm3214, 1, 0
    %v3727 = vsel %vm3215, 1, 0
    %v3728 = vsel %vm3216, 1, 0
    %v3729 = vsel %vm3217, 1, 0
    %v3730 = vsel %vm3218, 1, 0
    %v3731 = vsel %vm3219, 1, 0
    %v3732 = vsel %vm3220, 1, 0
    %v3733 = vsel %vm3221, 1, 0
    %v3734 = vsel %vm3222, 1, 0
    %v3735 = vsel %vm3223, 1, 0
    %v3736 = vsel %vm3224, 1, 0
    %v3737 = vsel %vm3225, 1, 0
    %v3738 = vsel %vm3226, 1, 0
    %v3739 = vsel %vm3227, 1, 0
    %v3740 = vsel %vm3228, 1, 0
    %v3741 = vsel %vm3229, 1, 0
    %v3742 = vsel %vm3230, 1, 0
    %v3743 = vsel %vm3231, 1, 0
    %v3744 = vsel %vm3232, 1, 0
    %v3745 = vsel %vm3233, 1, 0
    %v3746 = vsel %vm3234, 1, 0
    %v3747 = vsel %vm3235, 1, 0
    %v3748 = vsel %vm3236, 1, 0
    %v3749 = vsel %vm3237, 1, 0
    %v3750 = vsel %vm3238, 1, 0
    %v3751 = vsel %vm3239, 1, 0
    %v3752 = vsel %vm3240, 1, 0
    %v3753 = vsel %vm3241, 1, 0
    %v3754 = vsel %vm3242, 1, 0
    %v3755 = vsel %vm3243, 1, 0
    %v3756 = vsel %vm3244, 1, 0
    %v3757 = vsel %vm3245, 1, 0
    %v3758 = vsel %vm3246, 1, 0
    %v3759 = vsel %vm3247, 1, 0
    %v3760 = vsel %vm3248, 1, 0
    %v3761 = vsel %vm3249, 1, 0
    %v3762 = vsel %vm3250, 1, 0
    %v3763 = vsel %vm3251, 1, 0
    %v3764 = vsel %vm3252, 1, 0
    %v3765 = vsel %vm3253, 1, 0
    %v3766 = vsel %vm3254, 1, 0
    %v3767 = vsel %vm3255, 1, 0
    %v3768 = vsel %vm3256, 1, 0
    %v3769 = vsel %vm3257, 1, 0
    %v3770 = vsel %vm3258, 1, 0
    %v3771 = vsel %vm3259, 1, 0
    %v3772 = vsel %vm3260, 1, 0
    %v3773 = vsel %vm3261, 1, 0
    %v3774 = vsel %vm3262, 1, 0
    %v3775 = vsel %vm3263, 1, 0
    %v3776 = vsel %vm3264, 1, 0
    %v3777 = vsel %vm3265, 1, 0
    %v3778 = vsel %vm3266, 1, 0
    %v3779 = vsel %vm3267, 1, 0
    %v3780 = vsel %vm3268, 1, 0
    %v3781 = vsel %vm3269, 1, 0
    %v3782 = vsel %vm3270, 1, 0
    %v3783 = vsel %vm3271, 1, 0
    %v3784 = vsel %vm3272, 1, 0
    %v3785 = vsel %vm3273, 1, 0
    %v3786 = vsel %vm3274, 1, 0
    %v3787 = vsel %vm3275, 1, 0
    %v3788 = vsel %vm3276, 1, 0
    %v3789 = vsel %vm3277, 1, 0
    %v3790 = vsel %vm3278, 1, 0
    %v3791 = vsel %vm3279, 1, 0
    %v3792 = vsel %vm3280, 1, 0
    %v3793 = vsel %vm3281, 1, 0
    %v3794 = vsel %vm3282, 1, 0
    %v3795 = vsel %vm3283, 1, 0
    %v3796 = vsel %vm3284, 1, 0
    %v3797 = vsel %vm3285, 1, 0
    %v3798 = vsel %vm3286, 1, 0
    %v3799 = vsel %vm3287, 1, 0
    %v3800 = vsel %vm3288, 1, 0
    %v3801 = vsel %vm3289, 1, 0
    %v3802 = vsel %vm3290, 1, 0
    %v3803 = vsel %vm3291, 1, 0
    %v3804 = vsel %vm3292, 1, 0
    %v3805 = vsel %vm3293, 1, 0
    %v3806 = vsel %vm3294, 1, 0
    %v3807 = vsel %vm3295, 1, 0
    %v3808 = vsel %vm3296, 1, 0
    %v3809 = vsel %vm3297, 1, 0
    %v3810 = vsel %vm3298, 1, 0
    %v3811 = vsel %vm3299, 1, 0
    %v3812 = vsel %vm3300, 1, 0
    %v3813 = vsel %vm3301, 1, 0
    %v3814 = vsel %vm3302, 1, 0
    %v3815 = vsel %vm3303, 1, 0
    %v3816 = vsel %vm3304, 1, 0
    %v3817 = vsel %vm3305, 1, 0
    %v3818 = vsel %vm3306, 1, 0
    %v3819 = vsel %vm3307, 1, 0
    %v3820 = vsel %vm3308, 1, 0
    %v3821 = vsel %vm3309, 1, 0
    %v3822 = vsel %vm3310, 1, 0
    %v3823 = vsel %vm3311, 1, 0
    %v3824 = vsel %vm3312, 1, 0
    %v3825 = vsel %vm3313, 1, 0
    %v3826 = vsel %vm3314, 1, 0
    %v3827 = vsel %vm3315, 1, 0
    %v3828 = vsel %vm3316, 1, 0
    %v3829 = vsel %vm3317, 1, 0
    %v3830 = vsel %vm3318, 1, 0
    %v3831 = vsel %vm3319, 1, 0
    %v3832 = vsel %vm3320, 1, 0
    %v3833 = vsel %vm3321, 1, 0
    %v3834 = vsel %vm3322, 1, 0
    %v3835 = vsel %vm3323, 1, 0
    %v3836 = vsel %vm3324, 1, 0
    %v3837 = vsel %vm3325, 1, 0
    %v3838 = vsel %vm3326, 1, 0
    %v3839 = vsel %vm3327, 1, 0
    %v3840 = vsel %vm3328, 1, 0
    %v3841 = vsel %vm3329, 1, 0
    %v3842 = vsel %vm3330, 1, 0
    %v3843 = vsel %vm3331, 1, 0
    %v3844 = vsel %vm3332, 1, 0
    %v3845 = vsel %vm3333, 1, 0
    %v3846 = vsel %vm3334, 1, 0
    %v3847 = vsel %vm3335, 1, 0
    %v3848 = vsel %vm3336, 1, 0
    %v3849 = vsel %vm3337, 1, 0
    %v3850 = vsel %vm3338, 1, 0
    %v3851 = vsel %vm3339, 1, 0
    %v3852 = vsel %vm3340, 1, 0
    %v3853 = vsel %vm3341, 1, 0
    %v3854 = vsel %vm3342, 1, 0
    %v3855 = vsel %vm3343, 1, 0
    %v3856 = vsel %vm3344, 1, 0
    %v3857 = vsel %vm3345, 1, 0
    %v3858 = vsel %vm3346, 1, 0
    %v3859 = vsel %vm3347, 1, 0
    %v3860 = vsel %vm3348, 1, 0
    %v3861 = vsel %vm3349, 1, 0
    %v3862 = vsel %vm3350, 1, 0
    %v3863 = vsel %vm3351, 1, 0
    %v3864 = vsel %vm3352, 1, 0
    %v3865 = vsel %vm3353, 1, 0
    %v3866 = vsel %vm3354, 1, 0
    %v3867 = vsel %vm3355, 1, 0
    %v3868 = vsel %vm3356, 1, 0
    %v3869 = vsel %vm3357, 1, 0
    %v3870 = vsel %vm3358, 1, 0
    %v3871 = vsel %vm3359, 1, 0
    %v3872 = vsel %vm3360, 1, 0
    %v3873 = vsel %vm3361, 1, 0
    %v3874 = vsel %vm3362, 1, 0
    %v3875 = vsel %vm3363, 1, 0
    %v3876 = vsel %vm3364, 1, 0
    %v3877 = vsel %vm3365, 1, 0
    %v3878 = vsel %vm3366, 1, 0
    %v3879 = vsel %vm3367, 1, 0
    %v3880 = vsel %vm3368, 1, 0
    %v3881 = vsel %vm3369, 1, 0
    %v3882 = vsel %vm3370, 1, 0
    %v3883 = vsel %vm3371, 1, 0
    %v3884 = vsel %vm3372, 1, 0
    %v3885 = vsel %vm3373, 1, 0
    %v3886 = vsel %vm3374, 1, 0
    %v3887 = vsel %vm3375, 1, 0
    %v3888 = vsel %vm3376, 1, 0
    %v3889 = vsel %vm3377, 1, 0
    %v3890 = vsel %vm3378, 1, 0
    %v3891 = vsel %vm3379, 1, 0
    %v3892 = vsel %vm3380, 1, 0
    %v3893 = vsel %vm3381, 1, 0
    %v3894 = vsel %vm3382, 1, 0
    %v3895 = vsel %vm3383, 1, 0
    %v3896 = vsel %vm3384, 1, 0
    %v3897 = vsel %vm3385, 1, 0
    %v3898 = vsel %vm3386, 1, 0
    %v3899 = vsel %vm3387, 1, 0
    %v3900 = vsel %vm3388, 1, 0
    %v3901 = vsel %vm3389, 1, 0
    %v3902 = vsel %vm3390, 1, 0
    %v3903 = vsel %vm3391, 1, 0
    %v3904 = vsel %vm3392, 1, 0
    %v3905 = vsel %vm3393, 1, 0
    %v3906 = vsel %vm3394, 1, 0
    %v3907 = vsel %vm3395, 1, 0
    %v3908 = vsel %vm3396, 1, 0
    %v3909 = vsel %vm3397, 1, 0
    %v3910 = vsel %vm3398, 1, 0
    %v3911 = vsel %vm3399, 1, 0
    %v3912 = vsel %vm3400, 1, 0
    %v3913 = vsel %vm3401, 1, 0
    %v3914 = vsel %vm3402, 1, 0
    %v3915 = vsel %vm3403, 1, 0
    %v3916 = vsel %vm3404, 1, 0
    %v3917 = vsel %vm3405, 1, 0
    %v3918 = vsel %vm3406, 1, 0
    %v3919 = vsel %vm3407, 1, 0
    %v3920 = vsel %vm3408, 1, 0
    %v3921 = vsel %vm3409, 1, 0
    %v3922 = vsel %vm3410, 1, 0
    %v3923 = vsel %vm3411, 1, 0
    %v3924 = vsel %vm3412, 1, 0
    %v3925 = vsel %vm3413, 1, 0
    %v3926 = vsel %vm3414, 1, 0
    %v3927 = vsel %vm3415, 1, 0
    %v3928 = vsel %vm3416, 1, 0
    %v3929 = vsel %vm3417, 1, 0
    %v3930 = vsel %vm3418, 1, 0
    %v3931 = vsel %vm3419, 1, 0
    %v3932 = vsel %vm3420, 1, 0
    %v3933 = vsel %vm3421, 1, 0
    %v3934 = vsel %vm3422, 1, 0
    %v3935 = vsel %vm3423, 1, 0
    %v3936 = vsel %vm3424, 1, 0
    %v3937 = vsel %vm3425, 1, 0
    %v3938 = vsel %vm3426, 1, 0
    %v3939 = vsel %vm3427, 1, 0
    %v3940 = vsel %vm3428, 1, 0
    %v3941 = vsel %vm3429, 1, 0
    %v3942 = vsel %vm3430, 1, 0
    %v3943 = vsel %vm3431, 1, 0
    %v3944 = vsel %vm3432, 1, 0
    %v3945 = vsel %vm3433, 1, 0
    %v3946 = vsel %vm3434, 1, 0
    %v3947 = vsel %vm3435, 1, 0
    %v3948 = vsel %vm3436, 1, 0
    %v3949 = vsel %vm3437, 1, 0
    %v3950 = vsel %vm3438, 1, 0
    %v3951 = vsel %vm3439, 1, 0
    %v3952 = vsel %vm3440, 1, 0
    %v3953 = vsel %vm3441, 1, 0
    %v3954 = vsel %vm3442, 1, 0
    %v3955 = vsel %vm3443, 1, 0
    %v3956 = vsel %vm3444, 1, 0
    %v3957 = vsel %vm3445, 1, 0
    %v3958 = vsel %vm3446, 1, 0
    %v3959 = vsel %vm3447, 1, 0
    %v3960 = vsel %vm3448, 1, 0
    %v3961 = vsel %vm3449, 1, 0
    %v3962 = vsel %vm3450, 1, 0
    %v3963 = vsel %vm3451, 1, 0
    %v3964 = vsel %vm3452, 1, 0
    %v3965 = vsel %vm3453, 1, 0
    %v3966 = vsel %vm3454, 1, 0
    %v3967 = vsel %vm3455, 1, 0
    %v3968 = vsel %vm3456, 1, 0
    %v3969 = vsel %vm3457, 1, 0
    %v3970 = vsel %vm3458, 1, 0
    %v3971 = vsel %vm3459, 1, 0
    %v3972 = vsel %vm3460, 1, 0
    %v3973 = vsel %vm3461, 1, 0
    %v3974 = vsel %vm3462, 1, 0
    %v3975 = vsel %vm3463, 1, 0
    %v3976 = vsel %vm3464, 1, 0
    %v3977 = vsel %vm3465, 1, 0
    %v3978 = vsel %vm3466, 1, 0
    %v3979 = vsel %vm3467, 1, 0
    %v3980 = vsel %vm3468, 1, 0
    %v3981 = vsel %vm3469, 1, 0
    %v3982 = vsel %vm3470, 1, 0
    %v3983 = vsel %vm3471, 1, 0
    %v3984 = vsel %vm3472, 1, 0
    %v3985 = vsel %vm3473, 1, 0
    %v3986 = vsel %vm3474, 1, 0
    %v3987 = vsel %vm3475, 1, 0
    %v3988 = vsel %vm3476, 1, 0
    %v3989 = vsel %vm3477, 1, 0
    %v3990 = vsel %vm3478, 1, 0
    %v3991 = vsel %vm3479, 1, 0
    %v3992 = vsel %vm3480, 1, 0
    %v3993 = vsel %vm3481, 1, 0
    %v3994 = vsel %vm3482, 1, 0
    %v3995 = vsel %vm3483, 1, 0
    %v3996 = vsel %vm3484, 1, 0
    %v3997 = vsel %vm3485, 1, 0
    %v3998 = vsel %vm3486, 1, 0
    %v3999 = vcvt.s32.f32 %v3487
    %v4000 = vcvt.s32.f32 %v3488
    %v4001 = vcvt.s32.f32 %v3489
    %v4002 = vcvt.s32.f32 %v3490
    %v4003 = vcvt.s32.f32 %v3491
    %v4004 = vcvt.s32.f32 %v3492
    %v4005 = vcvt.s32.f32 %v3493
    %v4006 = vcvt.s32.f32 %v3494
    %v4007 = vcvt.s32.f32 %v3495
    %v4008 = vcvt.s32.f32 %v3496
    %v4009 = vcvt.s32.f32 %v3497
    %v4010 = vcvt.s32.f32 %v3498
    %v4011 = vcvt.s32.f32 %v3499
    %v4012 = vcvt.s32.f32 %v3500
    %v4013 = vcvt.s32.f32 %v3501
    %v4014 = vcvt.s32.f32 %v3502
    %v4015 = vcvt.s32.f32 %v3503
    %v4016 = vcvt.s32.f32 %v3504
    %v4017 = vcvt.s32.f32 %v3505
    %v4018 = vcvt.s32.f32 %v3506
    %v4019 = vcvt.s32.f32 %v3507
    %v4020 = vcvt.s32.f32 %v3508
    %v4021 = vcvt.s32.f32 %v3509
    %v4022 = vcvt.s32.f32 %v3510
    %v4023 = vcvt.s32.f32 %v3511
    %v4024 = vcvt.s32.f32 %v3512
    %v4025 = vcvt.s32.f32 %v3513
    %v4026 = vcvt.s32.f32 %v3514
    %v4027 = vcvt.s32.f32 %v3515
    %v4028 = vcvt.s32.f32 %v3516
    %v4029 = vcvt.s32.f32 %v3517
    %v4030 = vcvt.s32.f32 %v3518
    %v4031 = vcvt.s32.f32 %v3519
    %v4032 = vcvt.s32.f32 %v3520
    %v4033 = vcvt.s32.f32 %v3521
    %v4034 = vcvt.s32.f32 %v3522
    %v4035 = vcvt.s32.f32 %v3523
    %v4036 = vcvt.s32.f32 %v3524
    %v4037 = vcvt.s32.f32 %v3525
    %v4038 = vcvt.s32.f32 %v3526
    %v4039 = vcvt.s32.f32 %v3527
    %v4040 = vcvt.s32.f32 %v3528
    %v4041 = vcvt.s32.f32 %v3529
    %v4042 = vcvt.s32.f32 %v3530
    %v4043 = vcvt.s32.f32 %v3531
    %v4044 = vcvt.s32.f32 %v3532
    %v4045 = vcvt.s32.f32 %v3533
    %v4046 = vcvt.s32.f32 %v3534
    %v4047 = vcvt.s32.f32 %v3535
    %v4048 = vcvt.s32.f32 %v3536
    %v4049 = vcvt.s32.f32 %v3537
    %v4050 = vcvt.s32.f32 %v3538
    %v4051 = vcvt.s32.f32 %v3539
    %v4052 = vcvt.s32.f32 %v3540
    %v4053 = vcvt.s32.f32 %v3541
    %v4054 = vcvt.s32.f32 %v3542
    %v4055 = vcvt.s32.f32 %v3543
    %v4056 = vcvt.s32.f32 %v3544
    %v4057 = vcvt.s32.f32 %v3545
    %v4058 = vcvt.s32.f32 %v3546
    %v4059 = vcvt.s32.f32 %v3547
    %v4060 = vcvt.s32.f32 %v3548
    %v4061 = vcvt.s32.f32 %v3549
    %v4062 = vcvt.s32.f32 %v3550
    %v4063 = vcvt.s32.f32 %v3551
    %v4064 = vcvt.s32.f32 %v3552
    %v4065 = vcvt.s32.f32 %v3553
    %v4066 = vcvt.s32.f32 %v3554
    %v4067 = vcvt.s32.f32 %v3555
    %v4068 = vcvt.s32.f32 %v3556
    %v4069 = vcvt.s32.f32 %v3557
    %v4070 = vcvt.s32.f32 %v3558
    %v4071 = vcvt.s32.f32 %v3559
    %v4072 = vcvt.s32.f32 %v3560
    %v4073 = vcvt.s32.f32 %v3561
    %v4074 = vcvt.s32.f32 %v3562
    %v4075 = vcvt.s32.f32 %v3563
    %v4076 = vcvt.s32.f32 %v3564
    %v4077 = vcvt.s32.f32 %v3565
    %v4078 = vcvt.s32.f32 %v3566
    %v4079 = vcvt.s32.f32 %v3567
    %v4080 = vcvt.s32.f32 %v3568
    %v4081 = vcvt.s32.f32 %v3569
    %v4082 = vcvt.s32.f32 %v3570
    %v4083 = vcvt.s32.f32 %v3571
    %v4084 = vcvt.s32.f32 %v3572
    %v4085 = vcvt.s32.f32 %v3573
    %v4086 = vcvt.s32.f32 %v3574
    %v4087 = vcvt.s32.f32 %v3575
    %v4088 = vcvt.s32.f32 %v3576
    %v4089 = vcvt.s32.f32 %v3577
    %v4090 = vcvt.s32.f32 %v3578
    %v4091 = vcvt.s32.f32 %v3579
    %v4092 = vcvt.s32.f32 %v3580
    %v4093 = vcvt.s32.f32 %v3581
    %v4094 = vcvt.s32.f32 %v3582
    %v4095 = vcvt.s32.f32 %v3583
    %v4096 = vcvt.s32.f32 %v3584
    %v4097 = vcvt.s32.f32 %v3585
    %v4098 = vcvt.s32.f32 %v3586
    %v4099 = vcvt.s32.f32 %v3587
    %v4100 = vcvt.s32.f32 %v3588
    %v4101 = vcvt.s32.f32 %v3589
    %v4102 = vcvt.s32.f32 %v3590
    %v4103 = vcvt.s32.f32 %v3591
    %v4104 = vcvt.s32.f32 %v3592
    %v4105 = vcvt.s32.f32 %v3593
    %v4106 = vcvt.s32.f32 %v3594
    %v4107 = vcvt.s32.f32 %v3595
    %v4108 = vcvt.s32.f32 %v3596
    %v4109 = vcvt.s32.f32 %v3597
    %v4110 = vcvt.s32.f32 %v3598
    %v4111 = vcvt.s32.f32 %v3599
    %v4112 = vcvt.s32.f32 %v3600
    %v4113 = vcvt.s32.f32 %v3601
    %v4114 = vcvt.s32.f32 %v3602
    %v4115 = vcvt.s32.f32 %v3603
    %v4116 = vcvt.s32.f32 %v3604
    %v4117 = vcvt.s32.f32 %v3605
    %v4118 = vcvt.s32.f32 %v3606
    %v4119 = vcvt.s32.f32 %v3607
    %v4120 = vcvt.s32.f32 %v3608
    %v4121 = vcvt.s32.f32 %v3609
    %v4122 = vcvt.s32.f32 %v3610
    %v4123 = vcvt.s32.f32 %v3611
    %v4124 = vcvt.s32.f32 %v3612
    %v4125 = vcvt.s32.f32 %v3613
    %v4126 = vcvt.s32.f32 %v3614
    %v4127 = vcvt.s32.f32 %v3615
    %v4128 = vcvt.s32.f32 %v3616
    %v4129 = vcvt.s32.f32 %v3617
    %v4130 = vcvt.s32.f32 %v3618
    %v4131 = vcvt.s32.f32 %v3619
    %v4132 = vcvt.s32.f32 %v3620
    %v4133 = vcvt.s32.f32 %v3621
    %v4134 = vcvt.s32.f32 %v3622
    %v4135 = vcvt.s32.f32 %v3623
    %v4136 = vcvt.s32.f32 %v3624
    %v4137 = vcvt.s32.f32 %v3625
    %v4138 = vcvt.s32.f32 %v3626
    %v4139 = vcvt.s32.f32 %v3627
    %v4140 = vcvt.s32.f32 %v3628
    %v4141 = vcvt.s32.f32 %v3629
    %v4142 = vcvt.s32.f32 %v3630
    %v4143 = vcvt.s32.f32 %v3631
    %v4144 = vcvt.s32.f32 %v3632
    %v4145 = vcvt.s32.f32 %v3633
    %v4146 = vcvt.s32.f32 %v3634
    %v4147 = vcvt.s32.f32 %v3635
    %v4148 = vcvt.s32.f32 %v3636
    %v4149 = vcvt.s32.f32 %v3637
    %v4150 = vcvt.s32.f32 %v3638
    %v4151 = vcvt.s32.f32 %v3639
    %v4152 = vcvt.s32.f32 %v3640
    %v4153 = vcvt.s32.f32 %v3641
    %v4154 = vcvt.s32.f32 %v3642
    %v4155 = vcvt.s32.f32 %v3643
    %v4156 = vcvt.s32.f32 %v3644
    %v4157 = vcvt.s32.f32 %v3645
    %v4158 = vcvt.s32.f32 %v3646
    %v4159 = vcvt.s32.f32 %v3647
    %v4160 = vcvt.s32.f32 %v3648
    %v4161 = vcvt.s32.f32 %v3649
    %v4162 = vcvt.s32.f32 %v3650
    %v4163 = vcvt.s32.f32 %v3651
    %v4164 = vcvt.s32.f32 %v3652
    %v4165 = vcvt.s32.f32 %v3653
    %v4166 = vcvt.s32.f32 %v3654
    %v4167 = vcvt.s32.f32 %v3655
    %v4168 = vcvt.s32.f32 %v3656
    %v4169 = vcvt.s32.f32 %v3657
    %v4170 = vcvt.s32.f32 %v3658
    %v4171 = vcvt.s32.f32 %v3659
    %v4172 = vcvt.s32.f32 %v3660
    %v4173 = vcvt.s32.f32 %v3661
    %v4174 = vcvt.s32.f32 %v3662
    %v4175 = vcvt.s32.f32 %v3663
    %v4176 = vcvt.s32.f32 %v3664
    %v4177 = vcvt.s32.f32 %v3665
    %v4178 = vcvt.s32.f32 %v3666
    %v4179 = vcvt.s32.f32 %v3667
    %v4180 = vcvt.s32.f32 %v3668
    %v4181 = vcvt.s32.f32 %v3669
    %v4182 = vcvt.s32.f32 %v3670
    %v4183 = vcvt.s32.f32 %v3671
    %v4184 = vcvt.s32.f32 %v3672
    %v4185 = vcvt.s32.f32 %v3673
    %v4186 = vcvt.s32.f32 %v3674
    %v4187 = vcvt.s32.f32 %v3675
    %v4188 = vcvt.s32.f32 %v3676
    %v4189 = vcvt.s32.f32 %v3677
    %v4190 = vcvt.s32.f32 %v3678
    %v4191 = vcvt.s32.f32 %v3679
    %v4192 = vcvt.s32.f32 %v3680
    %v4193 = vcvt.s32.f32 %v3681
    %v4194 = vcvt.s32.f32 %v3682
    %v4195 = vcvt.s32.f32 %v3683
    %v4196 = vcvt.s32.f32 %v3684
    %v4197 = vcvt.s32.f32 %v3685
    %v4198 = vcvt.s32.f32 %v3686
    %v4199 = vcvt.s32.f32 %v3687
    %v4200 = vcvt.s32.f32 %v3688
    %v4201 = vcvt.s32.f32 %v3689
    %v4202 = vcvt.s32.f32 %v3690
    %v4203 = vcvt.s32.f32 %v3691
    %v4204 = vcvt.s32.f32 %v3692
    %v4205 = vcvt.s32.f32 %v3693
    %v4206 = vcvt.s32.f32 %v3694
    %v4207 = vcvt.s32.f32 %v3695
    %v4208 = vcvt.s32.f32 %v3696
    %v4209 = vcvt.s32.f32 %v3697
    %v4210 = vcvt.s32.f32 %v3698
    %v4211 = vcvt.s32.f32 %v3699
    %v4212 = vcvt.s32.f32 %v3700
    %v4213 = vcvt.s32.f32 %v3701
    %v4214 = vcvt.s32.f32 %v3702
    %v4215 = vcvt.s32.f32 %v3703
    %v4216 = vcvt.s32.f32 %v3704
    %v4217 = vcvt.s32.f32 %v3705
    %v4218 = vcvt.s32.f32 %v3706
    %v4219 = vcvt.s32.f32 %v3707
    %v4220 = vcvt.s32.f32 %v3708
    %v4221 = vcvt.s32.f32 %v3709
    %v4222 = vcvt.s32.f32 %v3710
    %v4223 = vcvt.s32.f32 %v3711
    %v4224 = vcvt.s32.f32 %v3712
    %v4225 = vcvt.s32.f32 %v3713
    %v4226 = vcvt.s32.f32 %v3714
    %v4227 = vcvt.s32.f32 %v3715
    %v4228 = vcvt.s32.f32 %v3716
    %v4229 = vcvt.s32.f32 %v3717
    %v4230 = vcvt.s32.f32 %v3718
    %v4231 = vcvt.s32.f32 %v3719
    %v4232 = vcvt.s32.f32 %v3720
    %v4233 = vcvt.s32.f32 %v3721
    %v4234 = vcvt.s32.f32 %v3722
    %v4235 = vcvt.s32.f32 %v3723
    %v4236 = vcvt.s32.f32 %v3724
    %v4237 = vcvt.s32.f32 %v3725
    %v4238 = vcvt.s32.f32 %v3726
    %v4239 = vcvt.s32.f32 %v3727
    %v4240 = vcvt.s32.f32 %v3728
    %v4241 = vcvt.s32.f32 %v3729
    %v4242 = vcvt.s32.f32 %v3730
    %v4243 = vcvt.s32.f32 %v3731
    %v4244 = vcvt.s32.f32 %v3732
    %v4245 = vcvt.s32.f32 %v3733
    %v4246 = vcvt.s32.f32 %v3734
    %v4247 = vcvt.s32.f32 %v3735
    %v4248 = vcvt.s32.f32 %v3736
    %v4249 = vcvt.s32.f32 %v3737
    %v4250 = vcvt.s32.f32 %v3738
    %v4251 = vcvt.s32.f32 %v3739
    %v4252 = vcvt.s32.f32 %v3740
    %v4253 = vcvt.s32.f32 %v3741
    %v4254 = vcvt.s32.f32 %v3742
    %v4255 = vcvt.s32.f32 %v3743
    %v4256 = vcvt.s32.f32 %v3744
    %v4257 = vcvt.s32.f32 %v3745
    %v4258 = vcvt.s32.f32 %v3746
    %v4259 = vcvt.s32.f32 %v3747
    %v4260 = vcvt.s32.f32 %v3748
    %v4261 = vcvt.s32.f32 %v3749
    %v4262 = vcvt.s32.f32 %v3750
    %v4263 = vcvt.s32.f32 %v3751
    %v4264 = vcvt.s32.f32 %v3752
    %v4265 = vcvt.s32.f32 %v3753
    %v4266 = vcvt.s32.f32 %v3754
    %v4267 = vcvt.s32.f32 %v3755
    %v4268 = vcvt.s32.f32 %v3756
    %v4269 = vcvt.s32.f32 %v3757
    %v4270 = vcvt.s32.f32 %v3758
    %v4271 = vcvt.s32.f32 %v3759
    %v4272 = vcvt.s32.f32 %v3760
    %v4273 = vcvt.s32.f32 %v3761
    %v4274 = vcvt.s32.f32 %v3762
    %v4275 = vcvt.s32.f32 %v3763
    %v4276 = vcvt.s32.f32 %v3764
    %v4277 = vcvt.s32.f32 %v3765
    %v4278 = vcvt.s32.f32 %v3766
    %v4279 = vcvt.s32.f32 %v3767
    %v4280 = vcvt.s32.f32 %v3768
    %v4281 = vcvt.s32.f32 %v3769
    %v4282 = vcvt.s32.f32 %v3770
    %v4283 = vcvt.s32.f32 %v3771
    %v4284 = vcvt.s32.f32 %v3772
    %v4285 = vcvt.s32.f32 %v3773
    %v4286 = vcvt.s32.f32 %v3774
    %v4287 = vcvt.s32.f32 %v3775
    %v4288 = vcvt.s32.f32 %v3776
    %v4289 = vcvt.s32.f32 %v3777
    %v4290 = vcvt.s32.f32 %v3778
    %v4291 = vcvt.s32.f32 %v3779
    %v4292 = vcvt.s32.f32 %v3780
    %v4293 = vcvt.s32.f32 %v3781
    %v4294 = vcvt.s32.f32 %v3782
    %v4295 = vcvt.s32.f32 %v3783
    %v4296 = vcvt.s32.f32 %v3784
    %v4297 = vcvt.s32.f32 %v3785
    %v4298 = vcvt.s32.f32 %v3786
    %v4299 = vcvt.s32.f32 %v3787
    %v4300 = vcvt.s32.f32 %v3788
    %v4301 = vcvt.s32.f32 %v3789
    %v4302 = vcvt.s32.f32 %v3790
    %v4303 = vcvt.s32.f32 %v3791
    %v4304 = vcvt.s32.f32 %v3792
    %v4305 = vcvt.s32.f32 %v3793
    %v4306 = vcvt.s32.f32 %v3794
    %v4307 = vcvt.s32.f32 %v3795
    %v4308 = vcvt.s32.f32 %v3796
    %v4309 = vcvt.s32.f32 %v3797
    %v4310 = vcvt.s32.f32 %v3798
    %v4311 = vcvt.s32.f32 %v3799
    %v4312 = vcvt.s32.f32 %v3800
    %v4313 = vcvt.s32.f32 %v3801
    %v4314 = vcvt.s32.f32 %v3802
    %v4315 = vcvt.s32.f32 %v3803
    %v4316 = vcvt.s32.f32 %v3804
    %v4317 = vcvt.s32.f32 %v3805
    %v4318 = vcvt.s32.f32 %v3806
    %v4319 = vcvt.s32.f32 %v3807
    %v4320 = vcvt.s32.f32 %v3808
    %v4321 = vcvt.s32.f32 %v3809
    %v4322 = vcvt.s32.f32 %v3810
    %v4323 = vcvt.s32.f32 %v3811
    %v4324 = vcvt.s32.f32 %v3812
    %v4325 = vcvt.s32.f32 %v3813
    %v4326 = vcvt.s32.f32 %v3814
    %v4327 = vcvt.s32.f32 %v3815
    %v4328 = vcvt.s32.f32 %v3816
    %v4329 = vcvt.s32.f32 %v3817
    %v4330 = vcvt.s32.f32 %v3818
    %v4331 = vcvt.s32.f32 %v3819
    %v4332 = vcvt.s32.f32 %v3820
    %v4333 = vcvt.s32.f32 %v3821
    %v4334 = vcvt.s32.f32 %v3822
    %v4335 = vcvt.s32.f32 %v3823
    %v4336 = vcvt.s32.f32 %v3824
    %v4337 = vcvt.s32.f32 %v3825
    %v4338 = vcvt.s32.f32 %v3826
    %v4339 = vcvt.s32.f32 %v3827
    %v4340 = vcvt.s32.f32 %v3828
    %v4341 = vcvt.s32.f32 %v3829
    %v4342 = vcvt.s32.f32 %v3830
    %v4343 = vcvt.s32.f32 %v3831
    %v4344 = vcvt.s32.f32 %v3832
    %v4345 = vcvt.s32.f32 %v3833
    %v4346 = vcvt.s32.f32 %v3834
    %v4347 = vcvt.s32.f32 %v3835
    %v4348 = vcvt.s32.f32 %v3836
    %v4349 = vcvt.s32.f32 %v3837
    %v4350 = vcvt.s32.f32 %v3838
    %v4351 = vcvt.s32.f32 %v3839
    %v4352 = vcvt.s32.f32 %v3840
    %v4353 = vcvt.s32.f32 %v3841
    %v4354 = vcvt.s32.f32 %v3842
    %v4355 = vcvt.s32.f32 %v3843
    %v4356 = vcvt.s32.f32 %v3844
    %v4357 = vcvt.s32.f32 %v3845
    %v4358 = vcvt.s32.f32 %v3846
    %v4359 = vcvt.s32.f32 %v3847
    %v4360 = vcvt.s32.f32 %v3848
    %v4361 = vcvt.s32.f32 %v3849
    %v4362 = vcvt.s32.f32 %v3850
    %v4363 = vcvt.s32.f32 %v3851
    %v4364 = vcvt.s32.f32 %v3852
    %v4365 = vcvt.s32.f32 %v3853
    %v4366 = vcvt.s32.f32 %v3854
    %v4367 = vcvt.s32.f32 %v3855
    %v4368 = vcvt.s32.f32 %v3856
    %v4369 = vcvt.s32.f32 %v3857
    %v4370 = vcvt.s32.f32 %v3858
    %v4371 = vcvt.s32.f32 %v3859
    %v4372 = vcvt.s32.f32 %v3860
    %v4373 = vcvt.s32.f32 %v3861
    %v4374 = vcvt.s32.f32 %v3862
    %v4375 = vcvt.s32.f32 %v3863
    %v4376 = vcvt.s32.f32 %v3864
    %v4377 = vcvt.s32.f32 %v3865
    %v4378 = vcvt.s32.f32 %v3866
    %v4379 = vcvt.s32.f32 %v3867
    %v4380 = vcvt.s32.f32 %v3868
    %v4381 = vcvt.s32.f32 %v3869
    %v4382 = vcvt.s32.f32 %v3870
    %v4383 = vcvt.s32.f32 %v3871
    %v4384 = vcvt.s32.f32 %v3872
    %v4385 = vcvt.s32.f32 %v3873
    %v4386 = vcvt.s32.f32 %v3874
    %v4387 = vcvt.s32.f32 %v3875
    %v4388 = vcvt.s32.f32 %v3876
    %v4389 = vcvt.s32.f32 %v3877
    %v4390 = vcvt.s32.f32 %v3878
    %v4391 = vcvt.s32.f32 %v3879
    %v4392 = vcvt.s32.f32 %v3880
    %v4393 = vcvt.s32.f32 %v3881
    %v4394 = vcvt.s32.f32 %v3882
    %v4395 = vcvt.s32.f32 %v3883
    %v4396 = vcvt.s32.f32 %v3884
    %v4397 = vcvt.s32.f32 %v3885
    %v4398 = vcvt.s32.f32 %v3886
    %v4399 = vcvt.s32.f32 %v3887
    %v4400 = vcvt.s32.f32 %v3888
    %v4401 = vcvt.s32.f32 %v3889
    %v4402 = vcvt.s32.f32 %v3890
    %v4403 = vcvt.s32.f32 %v3891
    %v4404 = vcvt.s32.f32 %v3892
    %v4405 = vcvt.s32.f32 %v3893
    %v4406 = vcvt.s32.f32 %v3894
    %v4407 = vcvt.s32.f32 %v3895
    %v4408 = vcvt.s32.f32 %v3896
    %v4409 = vcvt.s32.f32 %v3897
    %v4410 = vcvt.s32.f32 %v3898
    %v4411 = vcvt.s32.f32 %v3899
    %v4412 = vcvt.s32.f32 %v3900
    %v4413 = vcvt.s32.f32 %v3901
    %v4414 = vcvt.s32.f32 %v3902
    %v4415 = vcvt.s32.f32 %v3903
    %v4416 = vcvt.s32.f32 %v3904
    %v4417 = vcvt.s32.f32 %v3905
    %v4418 = vcvt.s32.f32 %v3906
    %v4419 = vcvt.s32.f32 %v3907
    %v4420 = vcvt.s32.f32 %v3908
    %v4421 = vcvt.s32.f32 %v3909
    %v4422 = vcvt.s32.f32 %v3910
    %v4423 = vcvt.s32.f32 %v3911
    %v4424 = vcvt.s32.f32 %v3912
    %v4425 = vcvt.s32.f32 %v3913
    %v4426 = vcvt.s32.f32 %v3914
    %v4427 = vcvt.s32.f32 %v3915
    %v4428 = vcvt.s32.f32 %v3916
    %v4429 = vcvt.s32.f32 %v3917
    %v4430 = vcvt.s32.f32 %v3918
    %v4431 = vcvt.s32.f32 %v3919
    %v4432 = vcvt.s32.f32 %v3920
    %v4433 = vcvt.s32.f32 %v3921
    %v4434 = vcvt.s32.f32 %v3922
    %v4435 = vcvt.s32.f32 %v3923
    %v4436 = vcvt.s32.f32 %v3924
    %v4437 = vcvt.s32.f32 %v3925
    %v4438 = vcvt.s32.f32 %v3926
    %v4439 = vcvt.s32.f32 %v3927
    %v4440 = vcvt.s32.f32 %v3928
    %v4441 = vcvt.s32.f32 %v3929
    %v4442 = vcvt.s32.f32 %v3930
    %v4443 = vcvt.s32.f32 %v3931
    %v4444 = vcvt.s32.f32 %v3932
    %v4445 = vcvt.s32.f32 %v3933
    %v4446 = vcvt.s32.f32 %v3934
    %v4447 = vcvt.s32.f32 %v3935
    %v4448 = vcvt.s32.f32 %v3936
    %v4449 = vcvt.s32.f32 %v3937
    %v4450 = vcvt.s32.f32 %v3938
    %v4451 = vcvt.s32.f32 %v3939
    %v4452 = vcvt.s32.f32 %v3940
    %v4453 = vcvt.s32.f32 %v3941
    %v4454 = vcvt.s32.f32 %v3942
    %v4455 = vcvt.s32.f32 %v3943
    %v4456 = vcvt.s32.f32 %v3944
    %v4457 = vcvt.s32.f32 %v3945
    %v4458 = vcvt.s32.f32 %v3946
    %v4459 = vcvt.s32.f32 %v3947
    %v4460 = vcvt.s32.f32 %v3948
    %v4461 = vcvt.s32.f32 %v3949
    %v4462 = vcvt.s32.f32 %v3950
    %v4463 = vcvt.s32.f32 %v3951
    %v4464 = vcvt.s32.f32 %v3952
    %v4465 = vcvt.s32.f32 %v3953
    %v4466 = vcvt.s32.f32 %v3954
    %v4467 = vcvt.s32.f32 %v3955
    %v4468 = vcvt.s32.f32 %v3956
    %v4469 = vcvt.s32.f32 %v3957
    %v4470 = vcvt.s32.f32 %v3958
    %v4471 = vcvt.s32.f32 %v3959
    %v4472 = vcvt.s32.f32 %v3960
    %v4473 = vcvt.s32.f32 %v3961
    %v4474 = vcvt.s32.f32 %v3962
    %v4475 = vcvt.s32.f32 %v3963
    %v4476 = vcvt.s32.f32 %v3964
    %v4477 = vcvt.s32.f32 %v3965
    %v4478 = vcvt.s32.f32 %v3966
    %v4479 = vcvt.s32.f32 %v3967
    %v4480 = vcvt.s32.f32 %v3968
    %v4481 = vcvt.s32.f32 %v3969
    %v4482 = vcvt.s32.f32 %v3970
    %v4483 = vcvt.s32.f32 %v3971
    %v4484 = vcvt.s32.f32 %v3972
    %v4485 = vcvt.s32.f32 %v3973
    %v4486 = vcvt.s32.f32 %v3974
    %v4487 = vcvt.s32.f32 %v3975
    %v4488 = vcvt.s32.f32 %v3976
    %v4489 = vcvt.s32.f32 %v3977
    %v4490 = vcvt.s32.f32 %v3978
    %v4491 = vcvt.s32.f32 %v3979
    %v4492 = vcvt.s32.f32 %v3980
    %v4493 = vcvt.s32.f32 %v3981
    %v4494 = vcvt.s32.f32 %v3982
    %v4495 = vcvt.s32.f32 %v3983
    %v4496 = vcvt.s32.f32 %v3984
    %v4497 = vcvt.s32.f32 %v3985
    %v4498 = vcvt.s32.f32 %v3986
    %v4499 = vcvt.s32.f32 %v3987
    %v4500 = vcvt.s32.f32 %v3988
    %v4501 = vcvt.s32.f32 %v3989
    %v4502 = vcvt.s32.f32 %v3990
    %v4503 = vcvt.s32.f32 %v3991
    %v4504 = vcvt.s32.f32 %v3992
    %v4505 = vcvt.s32.f32 %v3993
    %v4506 = vcvt.s32.f32 %v3994
    %v4507 = vcvt.s32.f32 %v3995
    %v4508 = vcvt.s32.f32 %v3996
    %v4509 = vcvt.s32.f32 %v3997
    %v4510 = vcvt.s32.f32 %v3998
    %v4511 = vld [vmem:[#allocation2] sm:$0xff]
    %vm4512 = vcmask 261120
    %v4514 = vsel %vm4512, %v4511, 0
    %4516 = vmatpush.msra.mxu0 0.0
    %4517 = vmatpush.msra.mxu0 0.0
    %4518 = vmatpush.msra.mxu0 0.0
    %4519 = vmatpush.msra.mxu0 0.0
    %4520 = vmatpush.msra.mxu0 0.0
    %4521 = vmatpush.msra.mxu0 0.0
    %4522 = vmatpush.msra.mxu0 0.0
    %4523 = vmatpush.msra.mxu0 0.0
    %4524 = vmatpush.msra.mxu0 0.0
    %4525 = vmatpush.msra.mxu0 0.0
    %4526 = vmatpush.msra.mxu0 0.0
    %4527 = vmatpush.msra.mxu0 0.0
    %4528 = vmatpush.msra.mxu0 %v4383
    %4529 = vmatpush.msra.mxu0 %v4255
    %4530 = vmatpush.msra.mxu0 %v4127
    %4531 = vmatpush.msra.mxu0 %v3999
    %4532 = vmatmul.f32.gmra.mxu0 %v4514
    %v4533 = vpop.f32.mrf.mxu0
    %v4534 = vadd.f32 0.0, %v4533
    %4535 = vdwg.mxu0
    %4536 = vmatpush.msra.mxu0 0.0
    %4537 = vmatpush.msra.mxu0 0.0
    %4538 = vmatpush.msra.mxu0 0.0
    %4539 = vmatpush.msra.mxu0 0.0
    %4540 = vmatpush.msra.mxu0 0.0
    %4541 = vmatpush.msra.mxu0 0.0
    %4542 = vmatpush.msra.mxu0 0.0
    %4543 = vmatpush.msra.mxu0 0.0
    %4544 = vmatpush.msra.mxu0 0.0
    %4545 = vmatpush.msra.mxu0 0.0
    %4546 = vmatpush.msra.mxu0 0.0
    %4547 = vmatpush.msra.mxu0 0.0
    %4548 = vmatpush.msra.mxu0 %v4384
    %4549 = vmatpush.msra.mxu0 %v4256
    %4550 = vmatpush.msra.mxu0 %v4128
    %4551 = vmatpush.msra.mxu0 %v4000
    %4552 = vmatmul.f32.gmra.mxu0 %v4514
    %v4553 = vpop.f32.mrf.mxu0
    %v4554 = vadd.f32 0.0, %v4553
    %4555 = vdwg.mxu0
    %4556 = vmatpush.msra.mxu0 0.0
    %4557 = vmatpush.msra.mxu0 0.0
    %4558 = vmatpush.msra.mxu0 0.0
    %4559 = vmatpush.msra.mxu0 0.0
    %4560 = vmatpush.msra.mxu0 0.0
    %4561 = vmatpush.msra.mxu0 0.0
    %4562 = vmatpush.msra.mxu0 0.0
    %4563 = vmatpush.msra.mxu0 0.0
    %4564 = vmatpush.msra.mxu0 0.0
    %4565 = vmatpush.msra.mxu0 0.0
    %4566 = vmatpush.msra.mxu0 0.0
    %4567 = vmatpush.msra.mxu0 0.0
    %4568 = vmatpush.msra.mxu0 %v4385
    %4569 = vmatpush.msra.mxu0 %v4257
    %4570 = vmatpush.msra.mxu0 %v4129
    %4571 = vmatpush.msra.mxu0 %v4001
    %4572 = vmatmul.f32.gmra.mxu0 %v4514
    %v4573 = vpop.f32.mrf.mxu0
    %v4574 = vadd.f32 0.0, %v4573
    %4575 = vdwg.mxu0
    %4576 = vmatpush.msra.mxu0 0.0
    %4577 = vmatpush.msra.mxu0 0.0
    %4578 = vmatpush.msra.mxu0 0.0
    %4579 = vmatpush.msra.mxu0 0.0
    %4580 = vmatpush.msra.mxu0 0.0
    %4581 = vmatpush.msra.mxu0 0.0
    %4582 = vmatpush.msra.mxu0 0.0
    %4583 = vmatpush.msra.mxu0 0.0
    %4584 = vmatpush.msra.mxu0 0.0
    %4585 = vmatpush.msra.mxu0 0.0
    %4586 = vmatpush.msra.mxu0 0.0
    %4587 = vmatpush.msra.mxu0 0.0
    %4588 = vmatpush.msra.mxu0 %v4386
    %4589 = vmatpush.msra.mxu0 %v4258
    %4590 = vmatpush.msra.mxu0 %v4130
    %4591 = vmatpush.msra.mxu0 %v4002
    %4592 = vmatmul.f32.gmra.mxu0 %v4514
    %v4593 = vpop.f32.mrf.mxu0
    %v4594 = vadd.f32 0.0, %v4593
    %4595 = vdwg.mxu0
    %4596 = vmatpush.msra.mxu0 0.0
    %4597 = vmatpush.msra.mxu0 0.0
    %4598 = vmatpush.msra.mxu0 0.0
    %4599 = vmatpush.msra.mxu0 0.0
    %4600 = vmatpush.msra.mxu0 0.0
    %4601 = vmatpush.msra.mxu0 0.0
    %4602 = vmatpush.msra.mxu0 0.0
    %4603 = vmatpush.msra.mxu0 0.0
    %4604 = vmatpush.msra.mxu0 0.0
    %4605 = vmatpush.msra.mxu0 0.0
    %4606 = vmatpush.msra.mxu0 0.0
    %4607 = vmatpush.msra.mxu0 0.0
    %4608 = vmatpush.msra.mxu0 %v4387
    %4609 = vmatpush.msra.mxu0 %v4259
    %4610 = vmatpush.msra.mxu0 %v4131
    %4611 = vmatpush.msra.mxu0 %v4003
    %4612 = vmatmul.f32.gmra.mxu0 %v4514
    %v4613 = vpop.f32.mrf.mxu0
    %v4614 = vadd.f32 0.0, %v4613
    %4615 = vdwg.mxu0
    %4616 = vmatpush.msra.mxu0 0.0
    %4617 = vmatpush.msra.mxu0 0.0
    %4618 = vmatpush.msra.mxu0 0.0
    %4619 = vmatpush.msra.mxu0 0.0
    %4620 = vmatpush.msra.mxu0 0.0
    %4621 = vmatpush.msra.mxu0 0.0
    %4622 = vmatpush.msra.mxu0 0.0
    %4623 = vmatpush.msra.mxu0 0.0
    %4624 = vmatpush.msra.mxu0 0.0
    %4625 = vmatpush.msra.mxu0 0.0
    %4626 = vmatpush.msra.mxu0 0.0
    %4627 = vmatpush.msra.mxu0 0.0
    %4628 = vmatpush.msra.mxu0 %v4388
    %4629 = vmatpush.msra.mxu0 %v4260
    %4630 = vmatpush.msra.mxu0 %v4132
    %4631 = vmatpush.msra.mxu0 %v4004
    %4632 = vmatmul.f32.gmra.mxu0 %v4514
    %v4633 = vpop.f32.mrf.mxu0
    %v4634 = vadd.f32 0.0, %v4633
    %4635 = vdwg.mxu0
    %4636 = vmatpush.msra.mxu0 0.0
    %4637 = vmatpush.msra.mxu0 0.0
    %4638 = vmatpush.msra.mxu0 0.0
    %4639 = vmatpush.msra.mxu0 0.0
    %4640 = vmatpush.msra.mxu0 0.0
    %4641 = vmatpush.msra.mxu0 0.0
    %4642 = vmatpush.msra.mxu0 0.0
    %4643 = vmatpush.msra.mxu0 0.0
    %4644 = vmatpush.msra.mxu0 0.0
    %4645 = vmatpush.msra.mxu0 0.0
    %4646 = vmatpush.msra.mxu0 0.0
    %4647 = vmatpush.msra.mxu0 0.0
    %4648 = vmatpush.msra.mxu0 %v4389
    %4649 = vmatpush.msra.mxu0 %v4261
    %4650 = vmatpush.msra.mxu0 %v4133
    %4651 = vmatpush.msra.mxu0 %v4005
    %4652 = vmatmul.f32.gmra.mxu0 %v4514
    %v4653 = vpop.f32.mrf.mxu0
    %v4654 = vadd.f32 0.0, %v4653
    %4655 = vdwg.mxu0
    %4656 = vmatpush.msra.mxu0 0.0
    %4657 = vmatpush.msra.mxu0 0.0
    %4658 = vmatpush.msra.mxu0 0.0
    %4659 = vmatpush.msra.mxu0 0.0
    %4660 = vmatpush.msra.mxu0 0.0
    %4661 = vmatpush.msra.mxu0 0.0
    %4662 = vmatpush.msra.mxu0 0.0
    %4663 = vmatpush.msra.mxu0 0.0
    %4664 = vmatpush.msra.mxu0 0.0
    %4665 = vmatpush.msra.mxu0 0.0
    %4666 = vmatpush.msra.mxu0 0.0
    %4667 = vmatpush.msra.mxu0 0.0
    %4668 = vmatpush.msra.mxu0 %v4390
    %4669 = vmatpush.msra.mxu0 %v4262
    %4670 = vmatpush.msra.mxu0 %v4134
    %4671 = vmatpush.msra.mxu0 %v4006
    %4672 = vmatmul.f32.gmra.mxu0 %v4514
    %v4673 = vpop.f32.mrf.mxu0
    %v4674 = vadd.f32 0.0, %v4673
    %4675 = vdwg.mxu0
    %4676 = vmatpush.msra.mxu0 0.0
    %4677 = vmatpush.msra.mxu0 0.0
    %4678 = vmatpush.msra.mxu0 0.0
    %4679 = vmatpush.msra.mxu0 0.0
    %4680 = vmatpush.msra.mxu0 0.0
    %4681 = vmatpush.msra.mxu0 0.0
    %4682 = vmatpush.msra.mxu0 0.0
    %4683 = vmatpush.msra.mxu0 0.0
    %4684 = vmatpush.msra.mxu0 0.0
    %4685 = vmatpush.msra.mxu0 0.0
    %4686 = vmatpush.msra.mxu0 0.0
    %4687 = vmatpush.msra.mxu0 0.0
    %4688 = vmatpush.msra.mxu0 %v4391
    %4689 = vmatpush.msra.mxu0 %v4263
    %4690 = vmatpush.msra.mxu0 %v4135
    %4691 = vmatpush.msra.mxu0 %v4007
    %4692 = vmatmul.f32.gmra.mxu0 %v4514
    %v4693 = vpop.f32.mrf.mxu0
    %v4694 = vadd.f32 0.0, %v4693
    %4695 = vdwg.mxu0
    %4696 = vmatpush.msra.mxu0 0.0
    %4697 = vmatpush.msra.mxu0 0.0
    %4698 = vmatpush.msra.mxu0 0.0
    %4699 = vmatpush.msra.mxu0 0.0
    %4700 = vmatpush.msra.mxu0 0.0
    %4701 = vmatpush.msra.mxu0 0.0
    %4702 = vmatpush.msra.mxu0 0.0
    %4703 = vmatpush.msra.mxu0 0.0
    %4704 = vmatpush.msra.mxu0 0.0
    %4705 = vmatpush.msra.mxu0 0.0
    %4706 = vmatpush.msra.mxu0 0.0
    %4707 = vmatpush.msra.mxu0 0.0
    %4708 = vmatpush.msra.mxu0 %v4392
    %4709 = vmatpush.msra.mxu0 %v4264
    %4710 = vmatpush.msra.mxu0 %v4136
    %4711 = vmatpush.msra.mxu0 %v4008
    %4712 = vmatmul.f32.gmra.mxu0 %v4514
    %v4713 = vpop.f32.mrf.mxu0
    %v4714 = vadd.f32 0.0, %v4713
    %4715 = vdwg.mxu0
    %4716 = vmatpush.msra.mxu0 0.0
    %4717 = vmatpush.msra.mxu0 0.0
    %4718 = vmatpush.msra.mxu0 0.0
    %4719 = vmatpush.msra.mxu0 0.0
    %4720 = vmatpush.msra.mxu0 0.0
    %4721 = vmatpush.msra.mxu0 0.0
    %4722 = vmatpush.msra.mxu0 0.0
    %4723 = vmatpush.msra.mxu0 0.0
    %4724 = vmatpush.msra.mxu0 0.0
    %4725 = vmatpush.msra.mxu0 0.0
    %4726 = vmatpush.msra.mxu0 0.0
    %4727 = vmatpush.msra.mxu0 0.0
    %4728 = vmatpush.msra.mxu0 %v4393
    %4729 = vmatpush.msra.mxu0 %v4265
    %4730 = vmatpush.msra.mxu0 %v4137
    %4731 = vmatpush.msra.mxu0 %v4009
    %4732 = vmatmul.f32.gmra.mxu0 %v4514
    %v4733 = vpop.f32.mrf.mxu0
    %v4734 = vadd.f32 0.0, %v4733
    %4735 = vdwg.mxu0
    %4736 = vmatpush.msra.mxu0 0.0
    %4737 = vmatpush.msra.mxu0 0.0
    %4738 = vmatpush.msra.mxu0 0.0
    %4739 = vmatpush.msra.mxu0 0.0
    %4740 = vmatpush.msra.mxu0 0.0
    %4741 = vmatpush.msra.mxu0 0.0
    %4742 = vmatpush.msra.mxu0 0.0
    %4743 = vmatpush.msra.mxu0 0.0
    %4744 = vmatpush.msra.mxu0 0.0
    %4745 = vmatpush.msra.mxu0 0.0
    %4746 = vmatpush.msra.mxu0 0.0
    %4747 = vmatpush.msra.mxu0 0.0
    %4748 = vmatpush.msra.mxu0 %v4394
    %4749 = vmatpush.msra.mxu0 %v4266
    %4750 = vmatpush.msra.mxu0 %v4138
    %4751 = vmatpush.msra.mxu0 %v4010
    %4752 = vmatmul.f32.gmra.mxu0 %v4514
    %v4753 = vpop.f32.mrf.mxu0
    %v4754 = vadd.f32 0.0, %v4753
    %4755 = vdwg.mxu0
    %4756 = vmatpush.msra.mxu0 0.0
    %4757 = vmatpush.msra.mxu0 0.0
    %4758 = vmatpush.msra.mxu0 0.0
    %4759 = vmatpush.msra.mxu0 0.0
    %4760 = vmatpush.msra.mxu0 0.0
    %4761 = vmatpush.msra.mxu0 0.0
    %4762 = vmatpush.msra.mxu0 0.0
    %4763 = vmatpush.msra.mxu0 0.0
    %4764 = vmatpush.msra.mxu0 0.0
    %4765 = vmatpush.msra.mxu0 0.0
    %4766 = vmatpush.msra.mxu0 0.0
    %4767 = vmatpush.msra.mxu0 0.0
    %4768 = vmatpush.msra.mxu0 %v4395
    %4769 = vmatpush.msra.mxu0 %v4267
    %4770 = vmatpush.msra.mxu0 %v4139
    %4771 = vmatpush.msra.mxu0 %v4011
    %4772 = vmatmul.f32.gmra.mxu0 %v4514
    %v4773 = vpop.f32.mrf.mxu0
    %v4774 = vadd.f32 0.0, %v4773
    %4775 = vdwg.mxu0
    %4776 = vmatpush.msra.mxu0 0.0
    %4777 = vmatpush.msra.mxu0 0.0
    %4778 = vmatpush.msra.mxu0 0.0
    %4779 = vmatpush.msra.mxu0 0.0
    %4780 = vmatpush.msra.mxu0 0.0
    %4781 = vmatpush.msra.mxu0 0.0
    %4782 = vmatpush.msra.mxu0 0.0
    %4783 = vmatpush.msra.mxu0 0.0
    %4784 = vmatpush.msra.mxu0 0.0
    %4785 = vmatpush.msra.mxu0 0.0
    %4786 = vmatpush.msra.mxu0 0.0
    %4787 = vmatpush.msra.mxu0 0.0
    %4788 = vmatpush.msra.mxu0 %v4396
    %4789 = vmatpush.msra.mxu0 %v4268
    %4790 = vmatpush.msra.mxu0 %v4140
    %4791 = vmatpush.msra.mxu0 %v4012
    %4792 = vmatmul.f32.gmra.mxu0 %v4514
    %v4793 = vpop.f32.mrf.mxu0
    %v4794 = vadd.f32 0.0, %v4793
    %4795 = vdwg.mxu0
    %4796 = vmatpush.msra.mxu0 0.0
    %4797 = vmatpush.msra.mxu0 0.0
    %4798 = vmatpush.msra.mxu0 0.0
    %4799 = vmatpush.msra.mxu0 0.0
    %4800 = vmatpush.msra.mxu0 0.0
    %4801 = vmatpush.msra.mxu0 0.0
    %4802 = vmatpush.msra.mxu0 0.0
    %4803 = vmatpush.msra.mxu0 0.0
    %4804 = vmatpush.msra.mxu0 0.0
    %4805 = vmatpush.msra.mxu0 0.0
    %4806 = vmatpush.msra.mxu0 0.0
    %4807 = vmatpush.msra.mxu0 0.0
    %4808 = vmatpush.msra.mxu0 %v4397
    %4809 = vmatpush.msra.mxu0 %v4269
    %4810 = vmatpush.msra.mxu0 %v4141
    %4811 = vmatpush.msra.mxu0 %v4013
    %4812 = vmatmul.f32.gmra.mxu0 %v4514
    %v4813 = vpop.f32.mrf.mxu0
    %v4814 = vadd.f32 0.0, %v4813
    %4815 = vdwg.mxu0
    %4816 = vmatpush.msra.mxu0 0.0
    %4817 = vmatpush.msra.mxu0 0.0
    %4818 = vmatpush.msra.mxu0 0.0
    %4819 = vmatpush.msra.mxu0 0.0
    %4820 = vmatpush.msra.mxu0 0.0
    %4821 = vmatpush.msra.mxu0 0.0
    %4822 = vmatpush.msra.mxu0 0.0
    %4823 = vmatpush.msra.mxu0 0.0
    %4824 = vmatpush.msra.mxu0 0.0
    %4825 = vmatpush.msra.mxu0 0.0
    %4826 = vmatpush.msra.mxu0 0.0
    %4827 = vmatpush.msra.mxu0 0.0
    %4828 = vmatpush.msra.mxu0 %v4398
    %4829 = vmatpush.msra.mxu0 %v4270
    %4830 = vmatpush.msra.mxu0 %v4142
    %4831 = vmatpush.msra.mxu0 %v4014
    %4832 = vmatmul.f32.gmra.mxu0 %v4514
    %v4833 = vpop.f32.mrf.mxu0
    %v4834 = vadd.f32 0.0, %v4833
    %4835 = vdwg.mxu0
    %4836 = vmatpush.msra.mxu0 0.0
    %4837 = vmatpush.msra.mxu0 0.0
    %4838 = vmatpush.msra.mxu0 0.0
    %4839 = vmatpush.msra.mxu0 0.0
    %4840 = vmatpush.msra.mxu0 0.0
    %4841 = vmatpush.msra.mxu0 0.0
    %4842 = vmatpush.msra.mxu0 0.0
    %4843 = vmatpush.msra.mxu0 0.0
    %4844 = vmatpush.msra.mxu0 0.0
    %4845 = vmatpush.msra.mxu0 0.0
    %4846 = vmatpush.msra.mxu0 0.0
    %4847 = vmatpush.msra.mxu0 0.0
    %4848 = vmatpush.msra.mxu0 %v4399
    %4849 = vmatpush.msra.mxu0 %v4271
    %4850 = vmatpush.msra.mxu0 %v4143
    %4851 = vmatpush.msra.mxu0 %v4015
    %4852 = vmatmul.f32.gmra.mxu0 %v4514
    %v4853 = vpop.f32.mrf.mxu0
    %v4854 = vadd.f32 0.0, %v4853
    %4855 = vdwg.mxu0
    %4856 = vmatpush.msra.mxu0 0.0
    %4857 = vmatpush.msra.mxu0 0.0
    %4858 = vmatpush.msra.mxu0 0.0
    %4859 = vmatpush.msra.mxu0 0.0
    %4860 = vmatpush.msra.mxu0 0.0
    %4861 = vmatpush.msra.mxu0 0.0
    %4862 = vmatpush.msra.mxu0 0.0
    %4863 = vmatpush.msra.mxu0 0.0
    %4864 = vmatpush.msra.mxu0 0.0
    %4865 = vmatpush.msra.mxu0 0.0
    %4866 = vmatpush.msra.mxu0 0.0
    %4867 = vmatpush.msra.mxu0 0.0
    %4868 = vmatpush.msra.mxu0 %v4400
    %4869 = vmatpush.msra.mxu0 %v4272
    %4870 = vmatpush.msra.mxu0 %v4144
    %4871 = vmatpush.msra.mxu0 %v4016
    %4872 = vmatmul.f32.gmra.mxu0 %v4514
    %v4873 = vpop.f32.mrf.mxu0
    %v4874 = vadd.f32 0.0, %v4873
    %4875 = vdwg.mxu0
    %4876 = vmatpush.msra.mxu0 0.0
    %4877 = vmatpush.msra.mxu0 0.0
    %4878 = vmatpush.msra.mxu0 0.0
    %4879 = vmatpush.msra.mxu0 0.0
    %4880 = vmatpush.msra.mxu0 0.0
    %4881 = vmatpush.msra.mxu0 0.0
    %4882 = vmatpush.msra.mxu0 0.0
    %4883 = vmatpush.msra.mxu0 0.0
    %4884 = vmatpush.msra.mxu0 0.0
    %4885 = vmatpush.msra.mxu0 0.0
    %4886 = vmatpush.msra.mxu0 0.0
    %4887 = vmatpush.msra.mxu0 0.0
    %4888 = vmatpush.msra.mxu0 %v4401
    %4889 = vmatpush.msra.mxu0 %v4273
    %4890 = vmatpush.msra.mxu0 %v4145
    %4891 = vmatpush.msra.mxu0 %v4017
    %4892 = vmatmul.f32.gmra.mxu0 %v4514
    %v4893 = vpop.f32.mrf.mxu0
    %v4894 = vadd.f32 0.0, %v4893
    %4895 = vdwg.mxu0
    %4896 = vmatpush.msra.mxu0 0.0
    %4897 = vmatpush.msra.mxu0 0.0
    %4898 = vmatpush.msra.mxu0 0.0
    %4899 = vmatpush.msra.mxu0 0.0
    %4900 = vmatpush.msra.mxu0 0.0
    %4901 = vmatpush.msra.mxu0 0.0
    %4902 = vmatpush.msra.mxu0 0.0
    %4903 = vmatpush.msra.mxu0 0.0
    %4904 = vmatpush.msra.mxu0 0.0
    %4905 = vmatpush.msra.mxu0 0.0
    %4906 = vmatpush.msra.mxu0 0.0
    %4907 = vmatpush.msra.mxu0 0.0
    %4908 = vmatpush.msra.mxu0 %v4402
    %4909 = vmatpush.msra.mxu0 %v4274
    %4910 = vmatpush.msra.mxu0 %v4146
    %4911 = vmatpush.msra.mxu0 %v4018
    %4912 = vmatmul.f32.gmra.mxu0 %v4514
    %v4913 = vpop.f32.mrf.mxu0
    %v4914 = vadd.f32 0.0, %v4913
    %4915 = vdwg.mxu0
    %4916 = vmatpush.msra.mxu0 0.0
    %4917 = vmatpush.msra.mxu0 0.0
    %4918 = vmatpush.msra.mxu0 0.0
    %4919 = vmatpush.msra.mxu0 0.0
    %4920 = vmatpush.msra.mxu0 0.0
    %4921 = vmatpush.msra.mxu0 0.0
    %4922 = vmatpush.msra.mxu0 0.0
    %4923 = vmatpush.msra.mxu0 0.0
    %4924 = vmatpush.msra.mxu0 0.0
    %4925 = vmatpush.msra.mxu0 0.0
    %4926 = vmatpush.msra.mxu0 0.0
    %4927 = vmatpush.msra.mxu0 0.0
    %4928 = vmatpush.msra.mxu0 %v4403
    %4929 = vmatpush.msra.mxu0 %v4275
    %4930 = vmatpush.msra.mxu0 %v4147
    %4931 = vmatpush.msra.mxu0 %v4019
    %4932 = vmatmul.f32.gmra.mxu0 %v4514
    %v4933 = vpop.f32.mrf.mxu0
    %v4934 = vadd.f32 0.0, %v4933
    %4935 = vdwg.mxu0
    %4936 = vmatpush.msra.mxu0 0.0
    %4937 = vmatpush.msra.mxu0 0.0
    %4938 = vmatpush.msra.mxu0 0.0
    %4939 = vmatpush.msra.mxu0 0.0
    %4940 = vmatpush.msra.mxu0 0.0
    %4941 = vmatpush.msra.mxu0 0.0
    %4942 = vmatpush.msra.mxu0 0.0
    %4943 = vmatpush.msra.mxu0 0.0
    %4944 = vmatpush.msra.mxu0 0.0
    %4945 = vmatpush.msra.mxu0 0.0
    %4946 = vmatpush.msra.mxu0 0.0
    %4947 = vmatpush.msra.mxu0 0.0
    %4948 = vmatpush.msra.mxu0 %v4404
    %4949 = vmatpush.msra.mxu0 %v4276
    %4950 = vmatpush.msra.mxu0 %v4148
    %4951 = vmatpush.msra.mxu0 %v4020
    %4952 = vmatmul.f32.gmra.mxu0 %v4514
    %v4953 = vpop.f32.mrf.mxu0
    %v4954 = vadd.f32 0.0, %v4953
    %4955 = vdwg.mxu0
    %4956 = vmatpush.msra.mxu0 0.0
    %4957 = vmatpush.msra.mxu0 0.0
    %4958 = vmatpush.msra.mxu0 0.0
    %4959 = vmatpush.msra.mxu0 0.0
    %4960 = vmatpush.msra.mxu0 0.0
    %4961 = vmatpush.msra.mxu0 0.0
    %4962 = vmatpush.msra.mxu0 0.0
    %4963 = vmatpush.msra.mxu0 0.0
    %4964 = vmatpush.msra.mxu0 0.0
    %4965 = vmatpush.msra.mxu0 0.0
    %4966 = vmatpush.msra.mxu0 0.0
    %4967 = vmatpush.msra.mxu0 0.0
    %4968 = vmatpush.msra.mxu0 %v4405
    %4969 = vmatpush.msra.mxu0 %v4277
    %4970 = vmatpush.msra.mxu0 %v4149
    %4971 = vmatpush.msra.mxu0 %v4021
    %4972 = vmatmul.f32.gmra.mxu0 %v4514
    %v4973 = vpop.f32.mrf.mxu0
    %v4974 = vadd.f32 0.0, %v4973
    %4975 = vdwg.mxu0
    %4976 = vmatpush.msra.mxu0 0.0
    %4977 = vmatpush.msra.mxu0 0.0
    %4978 = vmatpush.msra.mxu0 0.0
    %4979 = vmatpush.msra.mxu0 0.0
    %4980 = vmatpush.msra.mxu0 0.0
    %4981 = vmatpush.msra.mxu0 0.0
    %4982 = vmatpush.msra.mxu0 0.0
    %4983 = vmatpush.msra.mxu0 0.0
    %4984 = vmatpush.msra.mxu0 0.0
    %4985 = vmatpush.msra.mxu0 0.0
    %4986 = vmatpush.msra.mxu0 0.0
    %4987 = vmatpush.msra.mxu0 0.0
    %4988 = vmatpush.msra.mxu0 %v4406
    %4989 = vmatpush.msra.mxu0 %v4278
    %4990 = vmatpush.msra.mxu0 %v4150
    %4991 = vmatpush.msra.mxu0 %v4022
    %4992 = vmatmul.f32.gmra.mxu0 %v4514
    %v4993 = vpop.f32.mrf.mxu0
    %v4994 = vadd.f32 0.0, %v4993
    %4995 = vdwg.mxu0
    %4996 = vmatpush.msra.mxu0 0.0
    %4997 = vmatpush.msra.mxu0 0.0
    %4998 = vmatpush.msra.mxu0 0.0
    %4999 = vmatpush.msra.mxu0 0.0
    %5000 = vmatpush.msra.mxu0 0.0
    %5001 = vmatpush.msra.mxu0 0.0
    %5002 = vmatpush.msra.mxu0 0.0
    %5003 = vmatpush.msra.mxu0 0.0
    %5004 = vmatpush.msra.mxu0 0.0
    %5005 = vmatpush.msra.mxu0 0.0
    %5006 = vmatpush.msra.mxu0 0.0
    %5007 = vmatpush.msra.mxu0 0.0
    %5008 = vmatpush.msra.mxu0 %v4407
    %5009 = vmatpush.msra.mxu0 %v4279
    %5010 = vmatpush.msra.mxu0 %v4151
    %5011 = vmatpush.msra.mxu0 %v4023
    %5012 = vmatmul.f32.gmra.mxu0 %v4514
    %v5013 = vpop.f32.mrf.mxu0
    %v5014 = vadd.f32 0.0, %v5013
    %5015 = vdwg.mxu0
    %5016 = vmatpush.msra.mxu0 0.0
    %5017 = vmatpush.msra.mxu0 0.0
    %5018 = vmatpush.msra.mxu0 0.0
    %5019 = vmatpush.msra.mxu0 0.0
    %5020 = vmatpush.msra.mxu0 0.0
    %5021 = vmatpush.msra.mxu0 0.0
    %5022 = vmatpush.msra.mxu0 0.0
    %5023 = vmatpush.msra.mxu0 0.0
    %5024 = vmatpush.msra.mxu0 0.0
    %5025 = vmatpush.msra.mxu0 0.0
    %5026 = vmatpush.msra.mxu0 0.0
    %5027 = vmatpush.msra.mxu0 0.0
    %5028 = vmatpush.msra.mxu0 %v4408
    %5029 = vmatpush.msra.mxu0 %v4280
    %5030 = vmatpush.msra.mxu0 %v4152
    %5031 = vmatpush.msra.mxu0 %v4024
    %5032 = vmatmul.f32.gmra.mxu0 %v4514
    %v5033 = vpop.f32.mrf.mxu0
    %v5034 = vadd.f32 0.0, %v5033
    %5035 = vdwg.mxu0
    %5036 = vmatpush.msra.mxu0 0.0
    %5037 = vmatpush.msra.mxu0 0.0
    %5038 = vmatpush.msra.mxu0 0.0
    %5039 = vmatpush.msra.mxu0 0.0
    %5040 = vmatpush.msra.mxu0 0.0
    %5041 = vmatpush.msra.mxu0 0.0
    %5042 = vmatpush.msra.mxu0 0.0
    %5043 = vmatpush.msra.mxu0 0.0
    %5044 = vmatpush.msra.mxu0 0.0
    %5045 = vmatpush.msra.mxu0 0.0
    %5046 = vmatpush.msra.mxu0 0.0
    %5047 = vmatpush.msra.mxu0 0.0
    %5048 = vmatpush.msra.mxu0 %v4409
    %5049 = vmatpush.msra.mxu0 %v4281
    %5050 = vmatpush.msra.mxu0 %v4153
    %5051 = vmatpush.msra.mxu0 %v4025
    %5052 = vmatmul.f32.gmra.mxu0 %v4514
    %v5053 = vpop.f32.mrf.mxu0
    %v5054 = vadd.f32 0.0, %v5053
    %5055 = vdwg.mxu0
    %5056 = vmatpush.msra.mxu0 0.0
    %5057 = vmatpush.msra.mxu0 0.0
    %5058 = vmatpush.msra.mxu0 0.0
    %5059 = vmatpush.msra.mxu0 0.0
    %5060 = vmatpush.msra.mxu0 0.0
    %5061 = vmatpush.msra.mxu0 0.0
    %5062 = vmatpush.msra.mxu0 0.0
    %5063 = vmatpush.msra.mxu0 0.0
    %5064 = vmatpush.msra.mxu0 0.0
    %5065 = vmatpush.msra.mxu0 0.0
    %5066 = vmatpush.msra.mxu0 0.0
    %5067 = vmatpush.msra.mxu0 0.0
    %5068 = vmatpush.msra.mxu0 %v4410
    %5069 = vmatpush.msra.mxu0 %v4282
    %5070 = vmatpush.msra.mxu0 %v4154
    %5071 = vmatpush.msra.mxu0 %v4026
    %5072 = vmatmul.f32.gmra.mxu0 %v4514
    %v5073 = vpop.f32.mrf.mxu0
    %v5074 = vadd.f32 0.0, %v5073
    %5075 = vdwg.mxu0
    %5076 = vmatpush.msra.mxu0 0.0
    %5077 = vmatpush.msra.mxu0 0.0
    %5078 = vmatpush.msra.mxu0 0.0
    %5079 = vmatpush.msra.mxu0 0.0
    %5080 = vmatpush.msra.mxu0 0.0
    %5081 = vmatpush.msra.mxu0 0.0
    %5082 = vmatpush.msra.mxu0 0.0
    %5083 = vmatpush.msra.mxu0 0.0
    %5084 = vmatpush.msra.mxu0 0.0
    %5085 = vmatpush.msra.mxu0 0.0
    %5086 = vmatpush.msra.mxu0 0.0
    %5087 = vmatpush.msra.mxu0 0.0
    %5088 = vmatpush.msra.mxu0 %v4411
    %5089 = vmatpush.msra.mxu0 %v4283
    %5090 = vmatpush.msra.mxu0 %v4155
    %5091 = vmatpush.msra.mxu0 %v4027
    %5092 = vmatmul.f32.gmra.mxu0 %v4514
    %v5093 = vpop.f32.mrf.mxu0
    %v5094 = vadd.f32 0.0, %v5093
    %5095 = vdwg.mxu0
    %5096 = vmatpush.msra.mxu0 0.0
    %5097 = vmatpush.msra.mxu0 0.0
    %5098 = vmatpush.msra.mxu0 0.0
    %5099 = vmatpush.msra.mxu0 0.0
    %5100 = vmatpush.msra.mxu0 0.0
    %5101 = vmatpush.msra.mxu0 0.0
    %5102 = vmatpush.msra.mxu0 0.0
    %5103 = vmatpush.msra.mxu0 0.0
    %5104 = vmatpush.msra.mxu0 0.0
    %5105 = vmatpush.msra.mxu0 0.0
    %5106 = vmatpush.msra.mxu0 0.0
    %5107 = vmatpush.msra.mxu0 0.0
    %5108 = vmatpush.msra.mxu0 %v4412
    %5109 = vmatpush.msra.mxu0 %v4284
    %5110 = vmatpush.msra.mxu0 %v4156
    %5111 = vmatpush.msra.mxu0 %v4028
    %5112 = vmatmul.f32.gmra.mxu0 %v4514
    %v5113 = vpop.f32.mrf.mxu0
    %v5114 = vadd.f32 0.0, %v5113
    %5115 = vdwg.mxu0
    %5116 = vmatpush.msra.mxu0 0.0
    %5117 = vmatpush.msra.mxu0 0.0
    %5118 = vmatpush.msra.mxu0 0.0
    %5119 = vmatpush.msra.mxu0 0.0
    %5120 = vmatpush.msra.mxu0 0.0
    %5121 = vmatpush.msra.mxu0 0.0
    %5122 = vmatpush.msra.mxu0 0.0
    %5123 = vmatpush.msra.mxu0 0.0
    %5124 = vmatpush.msra.mxu0 0.0
    %5125 = vmatpush.msra.mxu0 0.0
    %5126 = vmatpush.msra.mxu0 0.0
    %5127 = vmatpush.msra.mxu0 0.0
    %5128 = vmatpush.msra.mxu0 %v4413
    %5129 = vmatpush.msra.mxu0 %v4285
    %5130 = vmatpush.msra.mxu0 %v4157
    %5131 = vmatpush.msra.mxu0 %v4029
    %5132 = vmatmul.f32.gmra.mxu0 %v4514
    %v5133 = vpop.f32.mrf.mxu0
    %v5134 = vadd.f32 0.0, %v5133
    %5135 = vdwg.mxu0
    %5136 = vmatpush.msra.mxu0 0.0
    %5137 = vmatpush.msra.mxu0 0.0
    %5138 = vmatpush.msra.mxu0 0.0
    %5139 = vmatpush.msra.mxu0 0.0
    %5140 = vmatpush.msra.mxu0 0.0
    %5141 = vmatpush.msra.mxu0 0.0
    %5142 = vmatpush.msra.mxu0 0.0
    %5143 = vmatpush.msra.mxu0 0.0
    %5144 = vmatpush.msra.mxu0 0.0
    %5145 = vmatpush.msra.mxu0 0.0
    %5146 = vmatpush.msra.mxu0 0.0
    %5147 = vmatpush.msra.mxu0 0.0
    %5148 = vmatpush.msra.mxu0 %v4414
    %5149 = vmatpush.msra.mxu0 %v4286
    %5150 = vmatpush.msra.mxu0 %v4158
    %5151 = vmatpush.msra.mxu0 %v4030
    %5152 = vmatmul.f32.gmra.mxu0 %v4514
    %v5153 = vpop.f32.mrf.mxu0
    %v5154 = vadd.f32 0.0, %v5153
    %5155 = vdwg.mxu0
    %5156 = vmatpush.msra.mxu0 0.0
    %5157 = vmatpush.msra.mxu0 0.0
    %5158 = vmatpush.msra.mxu0 0.0
    %5159 = vmatpush.msra.mxu0 0.0
    %5160 = vmatpush.msra.mxu0 0.0
    %5161 = vmatpush.msra.mxu0 0.0
    %5162 = vmatpush.msra.mxu0 0.0
    %5163 = vmatpush.msra.mxu0 0.0
    %5164 = vmatpush.msra.mxu0 0.0
    %5165 = vmatpush.msra.mxu0 0.0
    %5166 = vmatpush.msra.mxu0 0.0
    %5167 = vmatpush.msra.mxu0 0.0
    %5168 = vmatpush.msra.mxu0 %v4415
    %5169 = vmatpush.msra.mxu0 %v4287
    %5170 = vmatpush.msra.mxu0 %v4159
    %5171 = vmatpush.msra.mxu0 %v4031
    %5172 = vmatmul.f32.gmra.mxu0 %v4514
    %v5173 = vpop.f32.mrf.mxu0
    %v5174 = vadd.f32 0.0, %v5173
    %5175 = vdwg.mxu0
    %5176 = vmatpush.msra.mxu0 0.0
    %5177 = vmatpush.msra.mxu0 0.0
    %5178 = vmatpush.msra.mxu0 0.0
    %5179 = vmatpush.msra.mxu0 0.0
    %5180 = vmatpush.msra.mxu0 0.0
    %5181 = vmatpush.msra.mxu0 0.0
    %5182 = vmatpush.msra.mxu0 0.0
    %5183 = vmatpush.msra.mxu0 0.0
    %5184 = vmatpush.msra.mxu0 0.0
    %5185 = vmatpush.msra.mxu0 0.0
    %5186 = vmatpush.msra.mxu0 0.0
    %5187 = vmatpush.msra.mxu0 0.0
    %5188 = vmatpush.msra.mxu0 %v4416
    %5189 = vmatpush.msra.mxu0 %v4288
    %5190 = vmatpush.msra.mxu0 %v4160
    %5191 = vmatpush.msra.mxu0 %v4032
    %5192 = vmatmul.f32.gmra.mxu0 %v4514
    %v5193 = vpop.f32.mrf.mxu0
    %v5194 = vadd.f32 0.0, %v5193
    %5195 = vdwg.mxu0
    %5196 = vmatpush.msra.mxu0 0.0
    %5197 = vmatpush.msra.mxu0 0.0
    %5198 = vmatpush.msra.mxu0 0.0
    %5199 = vmatpush.msra.mxu0 0.0
    %5200 = vmatpush.msra.mxu0 0.0
    %5201 = vmatpush.msra.mxu0 0.0
    %5202 = vmatpush.msra.mxu0 0.0
    %5203 = vmatpush.msra.mxu0 0.0
    %5204 = vmatpush.msra.mxu0 0.0
    %5205 = vmatpush.msra.mxu0 0.0
    %5206 = vmatpush.msra.mxu0 0.0
    %5207 = vmatpush.msra.mxu0 0.0
    %5208 = vmatpush.msra.mxu0 %v4417
    %5209 = vmatpush.msra.mxu0 %v4289
    %5210 = vmatpush.msra.mxu0 %v4161
    %5211 = vmatpush.msra.mxu0 %v4033
    %5212 = vmatmul.f32.gmra.mxu0 %v4514
    %v5213 = vpop.f32.mrf.mxu0
    %v5214 = vadd.f32 0.0, %v5213
    %5215 = vdwg.mxu0
    %5216 = vmatpush.msra.mxu0 0.0
    %5217 = vmatpush.msra.mxu0 0.0
    %5218 = vmatpush.msra.mxu0 0.0
    %5219 = vmatpush.msra.mxu0 0.0
    %5220 = vmatpush.msra.mxu0 0.0
    %5221 = vmatpush.msra.mxu0 0.0
    %5222 = vmatpush.msra.mxu0 0.0
    %5223 = vmatpush.msra.mxu0 0.0
    %5224 = vmatpush.msra.mxu0 0.0
    %5225 = vmatpush.msra.mxu0 0.0
    %5226 = vmatpush.msra.mxu0 0.0
    %5227 = vmatpush.msra.mxu0 0.0
    %5228 = vmatpush.msra.mxu0 %v4418
    %5229 = vmatpush.msra.mxu0 %v4290
    %5230 = vmatpush.msra.mxu0 %v4162
    %5231 = vmatpush.msra.mxu0 %v4034
    %5232 = vmatmul.f32.gmra.mxu0 %v4514
    %v5233 = vpop.f32.mrf.mxu0
    %v5234 = vadd.f32 0.0, %v5233
    %5235 = vdwg.mxu0
    %5236 = vmatpush.msra.mxu0 0.0
    %5237 = vmatpush.msra.mxu0 0.0
    %5238 = vmatpush.msra.mxu0 0.0
    %5239 = vmatpush.msra.mxu0 0.0
    %5240 = vmatpush.msra.mxu0 0.0
    %5241 = vmatpush.msra.mxu0 0.0
    %5242 = vmatpush.msra.mxu0 0.0
    %5243 = vmatpush.msra.mxu0 0.0
    %5244 = vmatpush.msra.mxu0 0.0
    %5245 = vmatpush.msra.mxu0 0.0
    %5246 = vmatpush.msra.mxu0 0.0
    %5247 = vmatpush.msra.mxu0 0.0
    %5248 = vmatpush.msra.mxu0 %v4419
    %5249 = vmatpush.msra.mxu0 %v4291
    %5250 = vmatpush.msra.mxu0 %v4163
    %5251 = vmatpush.msra.mxu0 %v4035
    %5252 = vmatmul.f32.gmra.mxu0 %v4514
    %v5253 = vpop.f32.mrf.mxu0
    %v5254 = vadd.f32 0.0, %v5253
    %5255 = vdwg.mxu0
    %5256 = vmatpush.msra.mxu0 0.0
    %5257 = vmatpush.msra.mxu0 0.0
    %5258 = vmatpush.msra.mxu0 0.0
    %5259 = vmatpush.msra.mxu0 0.0
    %5260 = vmatpush.msra.mxu0 0.0
    %5261 = vmatpush.msra.mxu0 0.0
    %5262 = vmatpush.msra.mxu0 0.0
    %5263 = vmatpush.msra.mxu0 0.0
    %5264 = vmatpush.msra.mxu0 0.0
    %5265 = vmatpush.msra.mxu0 0.0
    %5266 = vmatpush.msra.mxu0 0.0
    %5267 = vmatpush.msra.mxu0 0.0
    %5268 = vmatpush.msra.mxu0 %v4420
    %5269 = vmatpush.msra.mxu0 %v4292
    %5270 = vmatpush.msra.mxu0 %v4164
    %5271 = vmatpush.msra.mxu0 %v4036
    %5272 = vmatmul.f32.gmra.mxu0 %v4514
    %v5273 = vpop.f32.mrf.mxu0
    %v5274 = vadd.f32 0.0, %v5273
    %5275 = vdwg.mxu0
    %5276 = vmatpush.msra.mxu0 0.0
    %5277 = vmatpush.msra.mxu0 0.0
    %5278 = vmatpush.msra.mxu0 0.0
    %5279 = vmatpush.msra.mxu0 0.0
    %5280 = vmatpush.msra.mxu0 0.0
    %5281 = vmatpush.msra.mxu0 0.0
    %5282 = vmatpush.msra.mxu0 0.0
    %5283 = vmatpush.msra.mxu0 0.0
    %5284 = vmatpush.msra.mxu0 0.0
    %5285 = vmatpush.msra.mxu0 0.0
    %5286 = vmatpush.msra.mxu0 0.0
    %5287 = vmatpush.msra.mxu0 0.0
    %5288 = vmatpush.msra.mxu0 %v4421
    %5289 = vmatpush.msra.mxu0 %v4293
    %5290 = vmatpush.msra.mxu0 %v4165
    %5291 = vmatpush.msra.mxu0 %v4037
    %5292 = vmatmul.f32.gmra.mxu0 %v4514
    %v5293 = vpop.f32.mrf.mxu0
    %v5294 = vadd.f32 0.0, %v5293
    %5295 = vdwg.mxu0
    %5296 = vmatpush.msra.mxu0 0.0
    %5297 = vmatpush.msra.mxu0 0.0
    %5298 = vmatpush.msra.mxu0 0.0
    %5299 = vmatpush.msra.mxu0 0.0
    %5300 = vmatpush.msra.mxu0 0.0
    %5301 = vmatpush.msra.mxu0 0.0
    %5302 = vmatpush.msra.mxu0 0.0
    %5303 = vmatpush.msra.mxu0 0.0
    %5304 = vmatpush.msra.mxu0 0.0
    %5305 = vmatpush.msra.mxu0 0.0
    %5306 = vmatpush.msra.mxu0 0.0
    %5307 = vmatpush.msra.mxu0 0.0
    %5308 = vmatpush.msra.mxu0 %v4422
    %5309 = vmatpush.msra.mxu0 %v4294
    %5310 = vmatpush.msra.mxu0 %v4166
    %5311 = vmatpush.msra.mxu0 %v4038
    %5312 = vmatmul.f32.gmra.mxu0 %v4514
    %v5313 = vpop.f32.mrf.mxu0
    %v5314 = vadd.f32 0.0, %v5313
    %5315 = vdwg.mxu0
    %5316 = vmatpush.msra.mxu0 0.0
    %5317 = vmatpush.msra.mxu0 0.0
    %5318 = vmatpush.msra.mxu0 0.0
    %5319 = vmatpush.msra.mxu0 0.0
    %5320 = vmatpush.msra.mxu0 0.0
    %5321 = vmatpush.msra.mxu0 0.0
    %5322 = vmatpush.msra.mxu0 0.0
    %5323 = vmatpush.msra.mxu0 0.0
    %5324 = vmatpush.msra.mxu0 0.0
    %5325 = vmatpush.msra.mxu0 0.0
    %5326 = vmatpush.msra.mxu0 0.0
    %5327 = vmatpush.msra.mxu0 0.0
    %5328 = vmatpush.msra.mxu0 %v4423
    %5329 = vmatpush.msra.mxu0 %v4295
    %5330 = vmatpush.msra.mxu0 %v4167
    %5331 = vmatpush.msra.mxu0 %v4039
    %5332 = vmatmul.f32.gmra.mxu0 %v4514
    %v5333 = vpop.f32.mrf.mxu0
    %v5334 = vadd.f32 0.0, %v5333
    %5335 = vdwg.mxu0
    %5336 = vmatpush.msra.mxu0 0.0
    %5337 = vmatpush.msra.mxu0 0.0
    %5338 = vmatpush.msra.mxu0 0.0
    %5339 = vmatpush.msra.mxu0 0.0
    %5340 = vmatpush.msra.mxu0 0.0
    %5341 = vmatpush.msra.mxu0 0.0
    %5342 = vmatpush.msra.mxu0 0.0
    %5343 = vmatpush.msra.mxu0 0.0
    %5344 = vmatpush.msra.mxu0 0.0
    %5345 = vmatpush.msra.mxu0 0.0
    %5346 = vmatpush.msra.mxu0 0.0
    %5347 = vmatpush.msra.mxu0 0.0
    %5348 = vmatpush.msra.mxu0 %v4424
    %5349 = vmatpush.msra.mxu0 %v4296
    %5350 = vmatpush.msra.mxu0 %v4168
    %5351 = vmatpush.msra.mxu0 %v4040
    %5352 = vmatmul.f32.gmra.mxu0 %v4514
    %v5353 = vpop.f32.mrf.mxu0
    %v5354 = vadd.f32 0.0, %v5353
    %5355 = vdwg.mxu0
    %5356 = vmatpush.msra.mxu0 0.0
    %5357 = vmatpush.msra.mxu0 0.0
    %5358 = vmatpush.msra.mxu0 0.0
    %5359 = vmatpush.msra.mxu0 0.0
    %5360 = vmatpush.msra.mxu0 0.0
    %5361 = vmatpush.msra.mxu0 0.0
    %5362 = vmatpush.msra.mxu0 0.0
    %5363 = vmatpush.msra.mxu0 0.0
    %5364 = vmatpush.msra.mxu0 0.0
    %5365 = vmatpush.msra.mxu0 0.0
    %5366 = vmatpush.msra.mxu0 0.0
    %5367 = vmatpush.msra.mxu0 0.0
    %5368 = vmatpush.msra.mxu0 %v4425
    %5369 = vmatpush.msra.mxu0 %v4297
    %5370 = vmatpush.msra.mxu0 %v4169
    %5371 = vmatpush.msra.mxu0 %v4041
    %5372 = vmatmul.f32.gmra.mxu0 %v4514
    %v5373 = vpop.f32.mrf.mxu0
    %v5374 = vadd.f32 0.0, %v5373
    %5375 = vdwg.mxu0
    %5376 = vmatpush.msra.mxu0 0.0
    %5377 = vmatpush.msra.mxu0 0.0
    %5378 = vmatpush.msra.mxu0 0.0
    %5379 = vmatpush.msra.mxu0 0.0
    %5380 = vmatpush.msra.mxu0 0.0
    %5381 = vmatpush.msra.mxu0 0.0
    %5382 = vmatpush.msra.mxu0 0.0
    %5383 = vmatpush.msra.mxu0 0.0
    %5384 = vmatpush.msra.mxu0 0.0
    %5385 = vmatpush.msra.mxu0 0.0
    %5386 = vmatpush.msra.mxu0 0.0
    %5387 = vmatpush.msra.mxu0 0.0
    %5388 = vmatpush.msra.mxu0 %v4426
    %5389 = vmatpush.msra.mxu0 %v4298
    %5390 = vmatpush.msra.mxu0 %v4170
    %5391 = vmatpush.msra.mxu0 %v4042
    %5392 = vmatmul.f32.gmra.mxu0 %v4514
    %v5393 = vpop.f32.mrf.mxu0
    %v5394 = vadd.f32 0.0, %v5393
    %5395 = vdwg.mxu0
    %5396 = vmatpush.msra.mxu0 0.0
    %5397 = vmatpush.msra.mxu0 0.0
    %5398 = vmatpush.msra.mxu0 0.0
    %5399 = vmatpush.msra.mxu0 0.0
    %5400 = vmatpush.msra.mxu0 0.0
    %5401 = vmatpush.msra.mxu0 0.0
    %5402 = vmatpush.msra.mxu0 0.0
    %5403 = vmatpush.msra.mxu0 0.0
    %5404 = vmatpush.msra.mxu0 0.0
    %5405 = vmatpush.msra.mxu0 0.0
    %5406 = vmatpush.msra.mxu0 0.0
    %5407 = vmatpush.msra.mxu0 0.0
    %5408 = vmatpush.msra.mxu0 %v4427
    %5409 = vmatpush.msra.mxu0 %v4299
    %5410 = vmatpush.msra.mxu0 %v4171
    %5411 = vmatpush.msra.mxu0 %v4043
    %5412 = vmatmul.f32.gmra.mxu0 %v4514
    %v5413 = vpop.f32.mrf.mxu0
    %v5414 = vadd.f32 0.0, %v5413
    %5415 = vdwg.mxu0
    %5416 = vmatpush.msra.mxu0 0.0
    %5417 = vmatpush.msra.mxu0 0.0
    %5418 = vmatpush.msra.mxu0 0.0
    %5419 = vmatpush.msra.mxu0 0.0
    %5420 = vmatpush.msra.mxu0 0.0
    %5421 = vmatpush.msra.mxu0 0.0
    %5422 = vmatpush.msra.mxu0 0.0
    %5423 = vmatpush.msra.mxu0 0.0
    %5424 = vmatpush.msra.mxu0 0.0
    %5425 = vmatpush.msra.mxu0 0.0
    %5426 = vmatpush.msra.mxu0 0.0
    %5427 = vmatpush.msra.mxu0 0.0
    %5428 = vmatpush.msra.mxu0 %v4428
    %5429 = vmatpush.msra.mxu0 %v4300
    %5430 = vmatpush.msra.mxu0 %v4172
    %5431 = vmatpush.msra.mxu0 %v4044
    %5432 = vmatmul.f32.gmra.mxu0 %v4514
    %v5433 = vpop.f32.mrf.mxu0
    %v5434 = vadd.f32 0.0, %v5433
    %5435 = vdwg.mxu0
    %5436 = vmatpush.msra.mxu0 0.0
    %5437 = vmatpush.msra.mxu0 0.0
    %5438 = vmatpush.msra.mxu0 0.0
    %5439 = vmatpush.msra.mxu0 0.0
    %5440 = vmatpush.msra.mxu0 0.0
    %5441 = vmatpush.msra.mxu0 0.0
    %5442 = vmatpush.msra.mxu0 0.0
    %5443 = vmatpush.msra.mxu0 0.0
    %5444 = vmatpush.msra.mxu0 0.0
    %5445 = vmatpush.msra.mxu0 0.0
    %5446 = vmatpush.msra.mxu0 0.0
    %5447 = vmatpush.msra.mxu0 0.0
    %5448 = vmatpush.msra.mxu0 %v4429
    %5449 = vmatpush.msra.mxu0 %v4301
    %5450 = vmatpush.msra.mxu0 %v4173
    %5451 = vmatpush.msra.mxu0 %v4045
    %5452 = vmatmul.f32.gmra.mxu0 %v4514
    %v5453 = vpop.f32.mrf.mxu0
    %v5454 = vadd.f32 0.0, %v5453
    %5455 = vdwg.mxu0
    %5456 = vmatpush.msra.mxu0 0.0
    %5457 = vmatpush.msra.mxu0 0.0
    %5458 = vmatpush.msra.mxu0 0.0
    %5459 = vmatpush.msra.mxu0 0.0
    %5460 = vmatpush.msra.mxu0 0.0
    %5461 = vmatpush.msra.mxu0 0.0
    %5462 = vmatpush.msra.mxu0 0.0
    %5463 = vmatpush.msra.mxu0 0.0
    %5464 = vmatpush.msra.mxu0 0.0
    %5465 = vmatpush.msra.mxu0 0.0
    %5466 = vmatpush.msra.mxu0 0.0
    %5467 = vmatpush.msra.mxu0 0.0
    %5468 = vmatpush.msra.mxu0 %v4430
    %5469 = vmatpush.msra.mxu0 %v4302
    %5470 = vmatpush.msra.mxu0 %v4174
    %5471 = vmatpush.msra.mxu0 %v4046
    %5472 = vmatmul.f32.gmra.mxu0 %v4514
    %v5473 = vpop.f32.mrf.mxu0
    %v5474 = vadd.f32 0.0, %v5473
    %5475 = vdwg.mxu0
    %5476 = vmatpush.msra.mxu0 0.0
    %5477 = vmatpush.msra.mxu0 0.0
    %5478 = vmatpush.msra.mxu0 0.0
    %5479 = vmatpush.msra.mxu0 0.0
    %5480 = vmatpush.msra.mxu0 0.0
    %5481 = vmatpush.msra.mxu0 0.0
    %5482 = vmatpush.msra.mxu0 0.0
    %5483 = vmatpush.msra.mxu0 0.0
    %5484 = vmatpush.msra.mxu0 0.0
    %5485 = vmatpush.msra.mxu0 0.0
    %5486 = vmatpush.msra.mxu0 0.0
    %5487 = vmatpush.msra.mxu0 0.0
    %5488 = vmatpush.msra.mxu0 %v4431
    %5489 = vmatpush.msra.mxu0 %v4303
    %5490 = vmatpush.msra.mxu0 %v4175
    %5491 = vmatpush.msra.mxu0 %v4047
    %5492 = vmatmul.f32.gmra.mxu0 %v4514
    %v5493 = vpop.f32.mrf.mxu0
    %v5494 = vadd.f32 0.0, %v5493
    %5495 = vdwg.mxu0
    %5496 = vmatpush.msra.mxu0 0.0
    %5497 = vmatpush.msra.mxu0 0.0
    %5498 = vmatpush.msra.mxu0 0.0
    %5499 = vmatpush.msra.mxu0 0.0
    %5500 = vmatpush.msra.mxu0 0.0
    %5501 = vmatpush.msra.mxu0 0.0
    %5502 = vmatpush.msra.mxu0 0.0
    %5503 = vmatpush.msra.mxu0 0.0
    %5504 = vmatpush.msra.mxu0 0.0
    %5505 = vmatpush.msra.mxu0 0.0
    %5506 = vmatpush.msra.mxu0 0.0
    %5507 = vmatpush.msra.mxu0 0.0
    %5508 = vmatpush.msra.mxu0 %v4432
    %5509 = vmatpush.msra.mxu0 %v4304
    %5510 = vmatpush.msra.mxu0 %v4176
    %5511 = vmatpush.msra.mxu0 %v4048
    %5512 = vmatmul.f32.gmra.mxu0 %v4514
    %v5513 = vpop.f32.mrf.mxu0
    %v5514 = vadd.f32 0.0, %v5513
    %5515 = vdwg.mxu0
    %5516 = vmatpush.msra.mxu0 0.0
    %5517 = vmatpush.msra.mxu0 0.0
    %5518 = vmatpush.msra.mxu0 0.0
    %5519 = vmatpush.msra.mxu0 0.0
    %5520 = vmatpush.msra.mxu0 0.0
    %5521 = vmatpush.msra.mxu0 0.0
    %5522 = vmatpush.msra.mxu0 0.0
    %5523 = vmatpush.msra.mxu0 0.0
    %5524 = vmatpush.msra.mxu0 0.0
    %5525 = vmatpush.msra.mxu0 0.0
    %5526 = vmatpush.msra.mxu0 0.0
    %5527 = vmatpush.msra.mxu0 0.0
    %5528 = vmatpush.msra.mxu0 %v4433
    %5529 = vmatpush.msra.mxu0 %v4305
    %5530 = vmatpush.msra.mxu0 %v4177
    %5531 = vmatpush.msra.mxu0 %v4049
    %5532 = vmatmul.f32.gmra.mxu0 %v4514
    %v5533 = vpop.f32.mrf.mxu0
    %v5534 = vadd.f32 0.0, %v5533
    %5535 = vdwg.mxu0
    %5536 = vmatpush.msra.mxu0 0.0
    %5537 = vmatpush.msra.mxu0 0.0
    %5538 = vmatpush.msra.mxu0 0.0
    %5539 = vmatpush.msra.mxu0 0.0
    %5540 = vmatpush.msra.mxu0 0.0
    %5541 = vmatpush.msra.mxu0 0.0
    %5542 = vmatpush.msra.mxu0 0.0
    %5543 = vmatpush.msra.mxu0 0.0
    %5544 = vmatpush.msra.mxu0 0.0
    %5545 = vmatpush.msra.mxu0 0.0
    %5546 = vmatpush.msra.mxu0 0.0
    %5547 = vmatpush.msra.mxu0 0.0
    %5548 = vmatpush.msra.mxu0 %v4434
    %5549 = vmatpush.msra.mxu0 %v4306
    %5550 = vmatpush.msra.mxu0 %v4178
    %5551 = vmatpush.msra.mxu0 %v4050
    %5552 = vmatmul.f32.gmra.mxu0 %v4514
    %v5553 = vpop.f32.mrf.mxu0
    %v5554 = vadd.f32 0.0, %v5553
    %5555 = vdwg.mxu0
    %5556 = vmatpush.msra.mxu0 0.0
    %5557 = vmatpush.msra.mxu0 0.0
    %5558 = vmatpush.msra.mxu0 0.0
    %5559 = vmatpush.msra.mxu0 0.0
    %5560 = vmatpush.msra.mxu0 0.0
    %5561 = vmatpush.msra.mxu0 0.0
    %5562 = vmatpush.msra.mxu0 0.0
    %5563 = vmatpush.msra.mxu0 0.0
    %5564 = vmatpush.msra.mxu0 0.0
    %5565 = vmatpush.msra.mxu0 0.0
    %5566 = vmatpush.msra.mxu0 0.0
    %5567 = vmatpush.msra.mxu0 0.0
    %5568 = vmatpush.msra.mxu0 %v4435
    %5569 = vmatpush.msra.mxu0 %v4307
    %5570 = vmatpush.msra.mxu0 %v4179
    %5571 = vmatpush.msra.mxu0 %v4051
    %5572 = vmatmul.f32.gmra.mxu0 %v4514
    %v5573 = vpop.f32.mrf.mxu0
    %v5574 = vadd.f32 0.0, %v5573
    %5575 = vdwg.mxu0
    %5576 = vmatpush.msra.mxu0 0.0
    %5577 = vmatpush.msra.mxu0 0.0
    %5578 = vmatpush.msra.mxu0 0.0
    %5579 = vmatpush.msra.mxu0 0.0
    %5580 = vmatpush.msra.mxu0 0.0
    %5581 = vmatpush.msra.mxu0 0.0
    %5582 = vmatpush.msra.mxu0 0.0
    %5583 = vmatpush.msra.mxu0 0.0
    %5584 = vmatpush.msra.mxu0 0.0
    %5585 = vmatpush.msra.mxu0 0.0
    %5586 = vmatpush.msra.mxu0 0.0
    %5587 = vmatpush.msra.mxu0 0.0
    %5588 = vmatpush.msra.mxu0 %v4436
    %5589 = vmatpush.msra.mxu0 %v4308
    %5590 = vmatpush.msra.mxu0 %v4180
    %5591 = vmatpush.msra.mxu0 %v4052
    %5592 = vmatmul.f32.gmra.mxu0 %v4514
    %v5593 = vpop.f32.mrf.mxu0
    %v5594 = vadd.f32 0.0, %v5593
    %5595 = vdwg.mxu0
    %5596 = vmatpush.msra.mxu0 0.0
    %5597 = vmatpush.msra.mxu0 0.0
    %5598 = vmatpush.msra.mxu0 0.0
    %5599 = vmatpush.msra.mxu0 0.0
    %5600 = vmatpush.msra.mxu0 0.0
    %5601 = vmatpush.msra.mxu0 0.0
    %5602 = vmatpush.msra.mxu0 0.0
    %5603 = vmatpush.msra.mxu0 0.0
    %5604 = vmatpush.msra.mxu0 0.0
    %5605 = vmatpush.msra.mxu0 0.0
    %5606 = vmatpush.msra.mxu0 0.0
    %5607 = vmatpush.msra.mxu0 0.0
    %5608 = vmatpush.msra.mxu0 %v4437
    %5609 = vmatpush.msra.mxu0 %v4309
    %5610 = vmatpush.msra.mxu0 %v4181
    %5611 = vmatpush.msra.mxu0 %v4053
    %5612 = vmatmul.f32.gmra.mxu0 %v4514
    %v5613 = vpop.f32.mrf.mxu0
    %v5614 = vadd.f32 0.0, %v5613
    %5615 = vdwg.mxu0
    %5616 = vmatpush.msra.mxu0 0.0
    %5617 = vmatpush.msra.mxu0 0.0
    %5618 = vmatpush.msra.mxu0 0.0
    %5619 = vmatpush.msra.mxu0 0.0
    %5620 = vmatpush.msra.mxu0 0.0
    %5621 = vmatpush.msra.mxu0 0.0
    %5622 = vmatpush.msra.mxu0 0.0
    %5623 = vmatpush.msra.mxu0 0.0
    %5624 = vmatpush.msra.mxu0 0.0
    %5625 = vmatpush.msra.mxu0 0.0
    %5626 = vmatpush.msra.mxu0 0.0
    %5627 = vmatpush.msra.mxu0 0.0
    %5628 = vmatpush.msra.mxu0 %v4438
    %5629 = vmatpush.msra.mxu0 %v4310
    %5630 = vmatpush.msra.mxu0 %v4182
    %5631 = vmatpush.msra.mxu0 %v4054
    %5632 = vmatmul.f32.gmra.mxu0 %v4514
    %v5633 = vpop.f32.mrf.mxu0
    %v5634 = vadd.f32 0.0, %v5633
    %5635 = vdwg.mxu0
    %5636 = vmatpush.msra.mxu0 0.0
    %5637 = vmatpush.msra.mxu0 0.0
    %5638 = vmatpush.msra.mxu0 0.0
    %5639 = vmatpush.msra.mxu0 0.0
    %5640 = vmatpush.msra.mxu0 0.0
    %5641 = vmatpush.msra.mxu0 0.0
    %5642 = vmatpush.msra.mxu0 0.0
    %5643 = vmatpush.msra.mxu0 0.0
    %5644 = vmatpush.msra.mxu0 0.0
    %5645 = vmatpush.msra.mxu0 0.0
    %5646 = vmatpush.msra.mxu0 0.0
    %5647 = vmatpush.msra.mxu0 0.0
    %5648 = vmatpush.msra.mxu0 %v4439
    %5649 = vmatpush.msra.mxu0 %v4311
    %5650 = vmatpush.msra.mxu0 %v4183
    %5651 = vmatpush.msra.mxu0 %v4055
    %5652 = vmatmul.f32.gmra.mxu0 %v4514
    %v5653 = vpop.f32.mrf.mxu0
    %v5654 = vadd.f32 0.0, %v5653
    %5655 = vdwg.mxu0
    %5656 = vmatpush.msra.mxu0 0.0
    %5657 = vmatpush.msra.mxu0 0.0
    %5658 = vmatpush.msra.mxu0 0.0
    %5659 = vmatpush.msra.mxu0 0.0
    %5660 = vmatpush.msra.mxu0 0.0
    %5661 = vmatpush.msra.mxu0 0.0
    %5662 = vmatpush.msra.mxu0 0.0
    %5663 = vmatpush.msra.mxu0 0.0
    %5664 = vmatpush.msra.mxu0 0.0
    %5665 = vmatpush.msra.mxu0 0.0
    %5666 = vmatpush.msra.mxu0 0.0
    %5667 = vmatpush.msra.mxu0 0.0
    %5668 = vmatpush.msra.mxu0 %v4440
    %5669 = vmatpush.msra.mxu0 %v4312
    %5670 = vmatpush.msra.mxu0 %v4184
    %5671 = vmatpush.msra.mxu0 %v4056
    %5672 = vmatmul.f32.gmra.mxu0 %v4514
    %v5673 = vpop.f32.mrf.mxu0
    %v5674 = vadd.f32 0.0, %v5673
    %5675 = vdwg.mxu0
    %5676 = vmatpush.msra.mxu0 0.0
    %5677 = vmatpush.msra.mxu0 0.0
    %5678 = vmatpush.msra.mxu0 0.0
    %5679 = vmatpush.msra.mxu0 0.0
    %5680 = vmatpush.msra.mxu0 0.0
    %5681 = vmatpush.msra.mxu0 0.0
    %5682 = vmatpush.msra.mxu0 0.0
    %5683 = vmatpush.msra.mxu0 0.0
    %5684 = vmatpush.msra.mxu0 0.0
    %5685 = vmatpush.msra.mxu0 0.0
    %5686 = vmatpush.msra.mxu0 0.0
    %5687 = vmatpush.msra.mxu0 0.0
    %5688 = vmatpush.msra.mxu0 %v4441
    %5689 = vmatpush.msra.mxu0 %v4313
    %5690 = vmatpush.msra.mxu0 %v4185
    %5691 = vmatpush.msra.mxu0 %v4057
    %5692 = vmatmul.f32.gmra.mxu0 %v4514
    %v5693 = vpop.f32.mrf.mxu0
    %v5694 = vadd.f32 0.0, %v5693
    %5695 = vdwg.mxu0
    %5696 = vmatpush.msra.mxu0 0.0
    %5697 = vmatpush.msra.mxu0 0.0
    %5698 = vmatpush.msra.mxu0 0.0
    %5699 = vmatpush.msra.mxu0 0.0
    %5700 = vmatpush.msra.mxu0 0.0
    %5701 = vmatpush.msra.mxu0 0.0
    %5702 = vmatpush.msra.mxu0 0.0
    %5703 = vmatpush.msra.mxu0 0.0
    %5704 = vmatpush.msra.mxu0 0.0
    %5705 = vmatpush.msra.mxu0 0.0
    %5706 = vmatpush.msra.mxu0 0.0
    %5707 = vmatpush.msra.mxu0 0.0
    %5708 = vmatpush.msra.mxu0 %v4442
    %5709 = vmatpush.msra.mxu0 %v4314
    %5710 = vmatpush.msra.mxu0 %v4186
    %5711 = vmatpush.msra.mxu0 %v4058
    %5712 = vmatmul.f32.gmra.mxu0 %v4514
    %v5713 = vpop.f32.mrf.mxu0
    %v5714 = vadd.f32 0.0, %v5713
    %5715 = vdwg.mxu0
    %5716 = vmatpush.msra.mxu0 0.0
    %5717 = vmatpush.msra.mxu0 0.0
    %5718 = vmatpush.msra.mxu0 0.0
    %5719 = vmatpush.msra.mxu0 0.0
    %5720 = vmatpush.msra.mxu0 0.0
    %5721 = vmatpush.msra.mxu0 0.0
    %5722 = vmatpush.msra.mxu0 0.0
    %5723 = vmatpush.msra.mxu0 0.0
    %5724 = vmatpush.msra.mxu0 0.0
    %5725 = vmatpush.msra.mxu0 0.0
    %5726 = vmatpush.msra.mxu0 0.0
    %5727 = vmatpush.msra.mxu0 0.0
    %5728 = vmatpush.msra.mxu0 %v4443
    %5729 = vmatpush.msra.mxu0 %v4315
    %5730 = vmatpush.msra.mxu0 %v4187
    %5731 = vmatpush.msra.mxu0 %v4059
    %5732 = vmatmul.f32.gmra.mxu0 %v4514
    %v5733 = vpop.f32.mrf.mxu0
    %v5734 = vadd.f32 0.0, %v5733
    %5735 = vdwg.mxu0
    %5736 = vmatpush.msra.mxu0 0.0
    %5737 = vmatpush.msra.mxu0 0.0
    %5738 = vmatpush.msra.mxu0 0.0
    %5739 = vmatpush.msra.mxu0 0.0
    %5740 = vmatpush.msra.mxu0 0.0
    %5741 = vmatpush.msra.mxu0 0.0
    %5742 = vmatpush.msra.mxu0 0.0
    %5743 = vmatpush.msra.mxu0 0.0
    %5744 = vmatpush.msra.mxu0 0.0
    %5745 = vmatpush.msra.mxu0 0.0
    %5746 = vmatpush.msra.mxu0 0.0
    %5747 = vmatpush.msra.mxu0 0.0
    %5748 = vmatpush.msra.mxu0 %v4444
    %5749 = vmatpush.msra.mxu0 %v4316
    %5750 = vmatpush.msra.mxu0 %v4188
    %5751 = vmatpush.msra.mxu0 %v4060
    %5752 = vmatmul.f32.gmra.mxu0 %v4514
    %v5753 = vpop.f32.mrf.mxu0
    %v5754 = vadd.f32 0.0, %v5753
    %5755 = vdwg.mxu0
    %5756 = vmatpush.msra.mxu0 0.0
    %5757 = vmatpush.msra.mxu0 0.0
    %5758 = vmatpush.msra.mxu0 0.0
    %5759 = vmatpush.msra.mxu0 0.0
    %5760 = vmatpush.msra.mxu0 0.0
    %5761 = vmatpush.msra.mxu0 0.0
    %5762 = vmatpush.msra.mxu0 0.0
    %5763 = vmatpush.msra.mxu0 0.0
    %5764 = vmatpush.msra.mxu0 0.0
    %5765 = vmatpush.msra.mxu0 0.0
    %5766 = vmatpush.msra.mxu0 0.0
    %5767 = vmatpush.msra.mxu0 0.0
    %5768 = vmatpush.msra.mxu0 %v4445
    %5769 = vmatpush.msra.mxu0 %v4317
    %5770 = vmatpush.msra.mxu0 %v4189
    %5771 = vmatpush.msra.mxu0 %v4061
    %5772 = vmatmul.f32.gmra.mxu0 %v4514
    %v5773 = vpop.f32.mrf.mxu0
    %v5774 = vadd.f32 0.0, %v5773
    %5775 = vdwg.mxu0
    %5776 = vmatpush.msra.mxu0 0.0
    %5777 = vmatpush.msra.mxu0 0.0
    %5778 = vmatpush.msra.mxu0 0.0
    %5779 = vmatpush.msra.mxu0 0.0
    %5780 = vmatpush.msra.mxu0 0.0
    %5781 = vmatpush.msra.mxu0 0.0
    %5782 = vmatpush.msra.mxu0 0.0
    %5783 = vmatpush.msra.mxu0 0.0
    %5784 = vmatpush.msra.mxu0 0.0
    %5785 = vmatpush.msra.mxu0 0.0
    %5786 = vmatpush.msra.mxu0 0.0
    %5787 = vmatpush.msra.mxu0 0.0
    %5788 = vmatpush.msra.mxu0 %v4446
    %5789 = vmatpush.msra.mxu0 %v4318
    %5790 = vmatpush.msra.mxu0 %v4190
    %5791 = vmatpush.msra.mxu0 %v4062
    %5792 = vmatmul.f32.gmra.mxu0 %v4514
    %v5793 = vpop.f32.mrf.mxu0
    %v5794 = vadd.f32 0.0, %v5793
    %5795 = vdwg.mxu0
    %5796 = vmatpush.msra.mxu0 0.0
    %5797 = vmatpush.msra.mxu0 0.0
    %5798 = vmatpush.msra.mxu0 0.0
    %5799 = vmatpush.msra.mxu0 0.0
    %5800 = vmatpush.msra.mxu0 0.0
    %5801 = vmatpush.msra.mxu0 0.0
    %5802 = vmatpush.msra.mxu0 0.0
    %5803 = vmatpush.msra.mxu0 0.0
    %5804 = vmatpush.msra.mxu0 0.0
    %5805 = vmatpush.msra.mxu0 0.0
    %5806 = vmatpush.msra.mxu0 0.0
    %5807 = vmatpush.msra.mxu0 0.0
    %5808 = vmatpush.msra.mxu0 %v4447
    %5809 = vmatpush.msra.mxu0 %v4319
    %5810 = vmatpush.msra.mxu0 %v4191
    %5811 = vmatpush.msra.mxu0 %v4063
    %5812 = vmatmul.f32.gmra.mxu0 %v4514
    %v5813 = vpop.f32.mrf.mxu0
    %v5814 = vadd.f32 0.0, %v5813
    %5815 = vdwg.mxu0
    %5816 = vmatpush.msra.mxu0 0.0
    %5817 = vmatpush.msra.mxu0 0.0
    %5818 = vmatpush.msra.mxu0 0.0
    %5819 = vmatpush.msra.mxu0 0.0
    %5820 = vmatpush.msra.mxu0 0.0
    %5821 = vmatpush.msra.mxu0 0.0
    %5822 = vmatpush.msra.mxu0 0.0
    %5823 = vmatpush.msra.mxu0 0.0
    %5824 = vmatpush.msra.mxu0 0.0
    %5825 = vmatpush.msra.mxu0 0.0
    %5826 = vmatpush.msra.mxu0 0.0
    %5827 = vmatpush.msra.mxu0 0.0
    %5828 = vmatpush.msra.mxu0 %v4448
    %5829 = vmatpush.msra.mxu0 %v4320
    %5830 = vmatpush.msra.mxu0 %v4192
    %5831 = vmatpush.msra.mxu0 %v4064
    %5832 = vmatmul.f32.gmra.mxu0 %v4514
    %v5833 = vpop.f32.mrf.mxu0
    %v5834 = vadd.f32 0.0, %v5833
    %5835 = vdwg.mxu0
    %5836 = vmatpush.msra.mxu0 0.0
    %5837 = vmatpush.msra.mxu0 0.0
    %5838 = vmatpush.msra.mxu0 0.0
    %5839 = vmatpush.msra.mxu0 0.0
    %5840 = vmatpush.msra.mxu0 0.0
    %5841 = vmatpush.msra.mxu0 0.0
    %5842 = vmatpush.msra.mxu0 0.0
    %5843 = vmatpush.msra.mxu0 0.0
    %5844 = vmatpush.msra.mxu0 0.0
    %5845 = vmatpush.msra.mxu0 0.0
    %5846 = vmatpush.msra.mxu0 0.0
    %5847 = vmatpush.msra.mxu0 0.0
    %5848 = vmatpush.msra.mxu0 %v4449
    %5849 = vmatpush.msra.mxu0 %v4321
    %5850 = vmatpush.msra.mxu0 %v4193
    %5851 = vmatpush.msra.mxu0 %v4065
    %5852 = vmatmul.f32.gmra.mxu0 %v4514
    %v5853 = vpop.f32.mrf.mxu0
    %v5854 = vadd.f32 0.0, %v5853
    %5855 = vdwg.mxu0
    %5856 = vmatpush.msra.mxu0 0.0
    %5857 = vmatpush.msra.mxu0 0.0
    %5858 = vmatpush.msra.mxu0 0.0
    %5859 = vmatpush.msra.mxu0 0.0
    %5860 = vmatpush.msra.mxu0 0.0
    %5861 = vmatpush.msra.mxu0 0.0
    %5862 = vmatpush.msra.mxu0 0.0
    %5863 = vmatpush.msra.mxu0 0.0
    %5864 = vmatpush.msra.mxu0 0.0
    %5865 = vmatpush.msra.mxu0 0.0
    %5866 = vmatpush.msra.mxu0 0.0
    %5867 = vmatpush.msra.mxu0 0.0
    %5868 = vmatpush.msra.mxu0 %v4450
    %5869 = vmatpush.msra.mxu0 %v4322
    %5870 = vmatpush.msra.mxu0 %v4194
    %5871 = vmatpush.msra.mxu0 %v4066
    %5872 = vmatmul.f32.gmra.mxu0 %v4514
    %v5873 = vpop.f32.mrf.mxu0
    %v5874 = vadd.f32 0.0, %v5873
    %5875 = vdwg.mxu0
    %5876 = vmatpush.msra.mxu0 0.0
    %5877 = vmatpush.msra.mxu0 0.0
    %5878 = vmatpush.msra.mxu0 0.0
    %5879 = vmatpush.msra.mxu0 0.0
    %5880 = vmatpush.msra.mxu0 0.0
    %5881 = vmatpush.msra.mxu0 0.0
    %5882 = vmatpush.msra.mxu0 0.0
    %5883 = vmatpush.msra.mxu0 0.0
    %5884 = vmatpush.msra.mxu0 0.0
    %5885 = vmatpush.msra.mxu0 0.0
    %5886 = vmatpush.msra.mxu0 0.0
    %5887 = vmatpush.msra.mxu0 0.0
    %5888 = vmatpush.msra.mxu0 %v4451
    %5889 = vmatpush.msra.mxu0 %v4323
    %5890 = vmatpush.msra.mxu0 %v4195
    %5891 = vmatpush.msra.mxu0 %v4067
    %5892 = vmatmul.f32.gmra.mxu0 %v4514
    %v5893 = vpop.f32.mrf.mxu0
    %v5894 = vadd.f32 0.0, %v5893
    %5895 = vdwg.mxu0
    %5896 = vmatpush.msra.mxu0 0.0
    %5897 = vmatpush.msra.mxu0 0.0
    %5898 = vmatpush.msra.mxu0 0.0
    %5899 = vmatpush.msra.mxu0 0.0
    %5900 = vmatpush.msra.mxu0 0.0
    %5901 = vmatpush.msra.mxu0 0.0
    %5902 = vmatpush.msra.mxu0 0.0
    %5903 = vmatpush.msra.mxu0 0.0
    %5904 = vmatpush.msra.mxu0 0.0
    %5905 = vmatpush.msra.mxu0 0.0
    %5906 = vmatpush.msra.mxu0 0.0
    %5907 = vmatpush.msra.mxu0 0.0
    %5908 = vmatpush.msra.mxu0 %v4452
    %5909 = vmatpush.msra.mxu0 %v4324
    %5910 = vmatpush.msra.mxu0 %v4196
    %5911 = vmatpush.msra.mxu0 %v4068
    %5912 = vmatmul.f32.gmra.mxu0 %v4514
    %v5913 = vpop.f32.mrf.mxu0
    %v5914 = vadd.f32 0.0, %v5913
    %5915 = vdwg.mxu0
    %5916 = vmatpush.msra.mxu0 0.0
    %5917 = vmatpush.msra.mxu0 0.0
    %5918 = vmatpush.msra.mxu0 0.0
    %5919 = vmatpush.msra.mxu0 0.0
    %5920 = vmatpush.msra.mxu0 0.0
    %5921 = vmatpush.msra.mxu0 0.0
    %5922 = vmatpush.msra.mxu0 0.0
    %5923 = vmatpush.msra.mxu0 0.0
    %5924 = vmatpush.msra.mxu0 0.0
    %5925 = vmatpush.msra.mxu0 0.0
    %5926 = vmatpush.msra.mxu0 0.0
    %5927 = vmatpush.msra.mxu0 0.0
    %5928 = vmatpush.msra.mxu0 %v4453
    %5929 = vmatpush.msra.mxu0 %v4325
    %5930 = vmatpush.msra.mxu0 %v4197
    %5931 = vmatpush.msra.mxu0 %v4069
    %5932 = vmatmul.f32.gmra.mxu0 %v4514
    %v5933 = vpop.f32.mrf.mxu0
    %v5934 = vadd.f32 0.0, %v5933
    %5935 = vdwg.mxu0
    %5936 = vmatpush.msra.mxu0 0.0
    %5937 = vmatpush.msra.mxu0 0.0
    %5938 = vmatpush.msra.mxu0 0.0
    %5939 = vmatpush.msra.mxu0 0.0
    %5940 = vmatpush.msra.mxu0 0.0
    %5941 = vmatpush.msra.mxu0 0.0
    %5942 = vmatpush.msra.mxu0 0.0
    %5943 = vmatpush.msra.mxu0 0.0
    %5944 = vmatpush.msra.mxu0 0.0
    %5945 = vmatpush.msra.mxu0 0.0
    %5946 = vmatpush.msra.mxu0 0.0
    %5947 = vmatpush.msra.mxu0 0.0
    %5948 = vmatpush.msra.mxu0 %v4454
    %5949 = vmatpush.msra.mxu0 %v4326
    %5950 = vmatpush.msra.mxu0 %v4198
    %5951 = vmatpush.msra.mxu0 %v4070
    %5952 = vmatmul.f32.gmra.mxu0 %v4514
    %v5953 = vpop.f32.mrf.mxu0
    %v5954 = vadd.f32 0.0, %v5953
    %5955 = vdwg.mxu0
    %5956 = vmatpush.msra.mxu0 0.0
    %5957 = vmatpush.msra.mxu0 0.0
    %5958 = vmatpush.msra.mxu0 0.0
    %5959 = vmatpush.msra.mxu0 0.0
    %5960 = vmatpush.msra.mxu0 0.0
    %5961 = vmatpush.msra.mxu0 0.0
    %5962 = vmatpush.msra.mxu0 0.0
    %5963 = vmatpush.msra.mxu0 0.0
    %5964 = vmatpush.msra.mxu0 0.0
    %5965 = vmatpush.msra.mxu0 0.0
    %5966 = vmatpush.msra.mxu0 0.0
    %5967 = vmatpush.msra.mxu0 0.0
    %5968 = vmatpush.msra.mxu0 %v4455
    %5969 = vmatpush.msra.mxu0 %v4327
    %5970 = vmatpush.msra.mxu0 %v4199
    %5971 = vmatpush.msra.mxu0 %v4071
    %5972 = vmatmul.f32.gmra.mxu0 %v4514
    %v5973 = vpop.f32.mrf.mxu0
    %v5974 = vadd.f32 0.0, %v5973
    %5975 = vdwg.mxu0
    %5976 = vmatpush.msra.mxu0 0.0
    %5977 = vmatpush.msra.mxu0 0.0
    %5978 = vmatpush.msra.mxu0 0.0
    %5979 = vmatpush.msra.mxu0 0.0
    %5980 = vmatpush.msra.mxu0 0.0
    %5981 = vmatpush.msra.mxu0 0.0
    %5982 = vmatpush.msra.mxu0 0.0
    %5983 = vmatpush.msra.mxu0 0.0
    %5984 = vmatpush.msra.mxu0 0.0
    %5985 = vmatpush.msra.mxu0 0.0
    %5986 = vmatpush.msra.mxu0 0.0
    %5987 = vmatpush.msra.mxu0 0.0
    %5988 = vmatpush.msra.mxu0 %v4456
    %5989 = vmatpush.msra.mxu0 %v4328
    %5990 = vmatpush.msra.mxu0 %v4200
    %5991 = vmatpush.msra.mxu0 %v4072
    %5992 = vmatmul.f32.gmra.mxu0 %v4514
    %v5993 = vpop.f32.mrf.mxu0
    %v5994 = vadd.f32 0.0, %v5993
    %5995 = vdwg.mxu0
    %5996 = vmatpush.msra.mxu0 0.0
    %5997 = vmatpush.msra.mxu0 0.0
    %5998 = vmatpush.msra.mxu0 0.0
    %5999 = vmatpush.msra.mxu0 0.0
    %6000 = vmatpush.msra.mxu0 0.0
    %6001 = vmatpush.msra.mxu0 0.0
    %6002 = vmatpush.msra.mxu0 0.0
    %6003 = vmatpush.msra.mxu0 0.0
    %6004 = vmatpush.msra.mxu0 0.0
    %6005 = vmatpush.msra.mxu0 0.0
    %6006 = vmatpush.msra.mxu0 0.0
    %6007 = vmatpush.msra.mxu0 0.0
    %6008 = vmatpush.msra.mxu0 %v4457
    %6009 = vmatpush.msra.mxu0 %v4329
    %6010 = vmatpush.msra.mxu0 %v4201
    %6011 = vmatpush.msra.mxu0 %v4073
    %6012 = vmatmul.f32.gmra.mxu0 %v4514
    %v6013 = vpop.f32.mrf.mxu0
    %v6014 = vadd.f32 0.0, %v6013
    %6015 = vdwg.mxu0
    %6016 = vmatpush.msra.mxu0 0.0
    %6017 = vmatpush.msra.mxu0 0.0
    %6018 = vmatpush.msra.mxu0 0.0
    %6019 = vmatpush.msra.mxu0 0.0
    %6020 = vmatpush.msra.mxu0 0.0
    %6021 = vmatpush.msra.mxu0 0.0
    %6022 = vmatpush.msra.mxu0 0.0
    %6023 = vmatpush.msra.mxu0 0.0
    %6024 = vmatpush.msra.mxu0 0.0
    %6025 = vmatpush.msra.mxu0 0.0
    %6026 = vmatpush.msra.mxu0 0.0
    %6027 = vmatpush.msra.mxu0 0.0
    %6028 = vmatpush.msra.mxu0 %v4458
    %6029 = vmatpush.msra.mxu0 %v4330
    %6030 = vmatpush.msra.mxu0 %v4202
    %6031 = vmatpush.msra.mxu0 %v4074
    %6032 = vmatmul.f32.gmra.mxu0 %v4514
    %v6033 = vpop.f32.mrf.mxu0
    %v6034 = vadd.f32 0.0, %v6033
    %6035 = vdwg.mxu0
    %6036 = vmatpush.msra.mxu0 0.0
    %6037 = vmatpush.msra.mxu0 0.0
    %6038 = vmatpush.msra.mxu0 0.0
    %6039 = vmatpush.msra.mxu0 0.0
    %6040 = vmatpush.msra.mxu0 0.0
    %6041 = vmatpush.msra.mxu0 0.0
    %6042 = vmatpush.msra.mxu0 0.0
    %6043 = vmatpush.msra.mxu0 0.0
    %6044 = vmatpush.msra.mxu0 0.0
    %6045 = vmatpush.msra.mxu0 0.0
    %6046 = vmatpush.msra.mxu0 0.0
    %6047 = vmatpush.msra.mxu0 0.0
    %6048 = vmatpush.msra.mxu0 %v4459
    %6049 = vmatpush.msra.mxu0 %v4331
    %6050 = vmatpush.msra.mxu0 %v4203
    %6051 = vmatpush.msra.mxu0 %v4075
    %6052 = vmatmul.f32.gmra.mxu0 %v4514
    %v6053 = vpop.f32.mrf.mxu0
    %v6054 = vadd.f32 0.0, %v6053
    %6055 = vdwg.mxu0
    %6056 = vmatpush.msra.mxu0 0.0
    %6057 = vmatpush.msra.mxu0 0.0
    %6058 = vmatpush.msra.mxu0 0.0
    %6059 = vmatpush.msra.mxu0 0.0
    %6060 = vmatpush.msra.mxu0 0.0
    %6061 = vmatpush.msra.mxu0 0.0
    %6062 = vmatpush.msra.mxu0 0.0
    %6063 = vmatpush.msra.mxu0 0.0
    %6064 = vmatpush.msra.mxu0 0.0
    %6065 = vmatpush.msra.mxu0 0.0
    %6066 = vmatpush.msra.mxu0 0.0
    %6067 = vmatpush.msra.mxu0 0.0
    %6068 = vmatpush.msra.mxu0 %v4460
    %6069 = vmatpush.msra.mxu0 %v4332
    %6070 = vmatpush.msra.mxu0 %v4204
    %6071 = vmatpush.msra.mxu0 %v4076
    %6072 = vmatmul.f32.gmra.mxu0 %v4514
    %v6073 = vpop.f32.mrf.mxu0
    %v6074 = vadd.f32 0.0, %v6073
    %6075 = vdwg.mxu0
    %6076 = vmatpush.msra.mxu0 0.0
    %6077 = vmatpush.msra.mxu0 0.0
    %6078 = vmatpush.msra.mxu0 0.0
    %6079 = vmatpush.msra.mxu0 0.0
    %6080 = vmatpush.msra.mxu0 0.0
    %6081 = vmatpush.msra.mxu0 0.0
    %6082 = vmatpush.msra.mxu0 0.0
    %6083 = vmatpush.msra.mxu0 0.0
    %6084 = vmatpush.msra.mxu0 0.0
    %6085 = vmatpush.msra.mxu0 0.0
    %6086 = vmatpush.msra.mxu0 0.0
    %6087 = vmatpush.msra.mxu0 0.0
    %6088 = vmatpush.msra.mxu0 %v4461
    %6089 = vmatpush.msra.mxu0 %v4333
    %6090 = vmatpush.msra.mxu0 %v4205
    %6091 = vmatpush.msra.mxu0 %v4077
    %6092 = vmatmul.f32.gmra.mxu0 %v4514
    %v6093 = vpop.f32.mrf.mxu0
    %v6094 = vadd.f32 0.0, %v6093
    %6095 = vdwg.mxu0
    %6096 = vmatpush.msra.mxu0 0.0
    %6097 = vmatpush.msra.mxu0 0.0
    %6098 = vmatpush.msra.mxu0 0.0
    %6099 = vmatpush.msra.mxu0 0.0
    %6100 = vmatpush.msra.mxu0 0.0
    %6101 = vmatpush.msra.mxu0 0.0
    %6102 = vmatpush.msra.mxu0 0.0
    %6103 = vmatpush.msra.mxu0 0.0
    %6104 = vmatpush.msra.mxu0 0.0
    %6105 = vmatpush.msra.mxu0 0.0
    %6106 = vmatpush.msra.mxu0 0.0
    %6107 = vmatpush.msra.mxu0 0.0
    %6108 = vmatpush.msra.mxu0 %v4462
    %6109 = vmatpush.msra.mxu0 %v4334
    %6110 = vmatpush.msra.mxu0 %v4206
    %6111 = vmatpush.msra.mxu0 %v4078
    %6112 = vmatmul.f32.gmra.mxu0 %v4514
    %v6113 = vpop.f32.mrf.mxu0
    %v6114 = vadd.f32 0.0, %v6113
    %6115 = vdwg.mxu0
    %6116 = vmatpush.msra.mxu0 0.0
    %6117 = vmatpush.msra.mxu0 0.0
    %6118 = vmatpush.msra.mxu0 0.0
    %6119 = vmatpush.msra.mxu0 0.0
    %6120 = vmatpush.msra.mxu0 0.0
    %6121 = vmatpush.msra.mxu0 0.0
    %6122 = vmatpush.msra.mxu0 0.0
    %6123 = vmatpush.msra.mxu0 0.0
    %6124 = vmatpush.msra.mxu0 0.0
    %6125 = vmatpush.msra.mxu0 0.0
    %6126 = vmatpush.msra.mxu0 0.0
    %6127 = vmatpush.msra.mxu0 0.0
    %6128 = vmatpush.msra.mxu0 %v4463
    %6129 = vmatpush.msra.mxu0 %v4335
    %6130 = vmatpush.msra.mxu0 %v4207
    %6131 = vmatpush.msra.mxu0 %v4079
    %6132 = vmatmul.f32.gmra.mxu0 %v4514
    %v6133 = vpop.f32.mrf.mxu0
    %v6134 = vadd.f32 0.0, %v6133
    %6135 = vdwg.mxu0
    %6136 = vmatpush.msra.mxu0 0.0
    %6137 = vmatpush.msra.mxu0 0.0
    %6138 = vmatpush.msra.mxu0 0.0
    %6139 = vmatpush.msra.mxu0 0.0
    %6140 = vmatpush.msra.mxu0 0.0
    %6141 = vmatpush.msra.mxu0 0.0
    %6142 = vmatpush.msra.mxu0 0.0
    %6143 = vmatpush.msra.mxu0 0.0
    %6144 = vmatpush.msra.mxu0 0.0
    %6145 = vmatpush.msra.mxu0 0.0
    %6146 = vmatpush.msra.mxu0 0.0
    %6147 = vmatpush.msra.mxu0 0.0
    %6148 = vmatpush.msra.mxu0 %v4464
    %6149 = vmatpush.msra.mxu0 %v4336
    %6150 = vmatpush.msra.mxu0 %v4208
    %6151 = vmatpush.msra.mxu0 %v4080
    %6152 = vmatmul.f32.gmra.mxu0 %v4514
    %v6153 = vpop.f32.mrf.mxu0
    %v6154 = vadd.f32 0.0, %v6153
    %6155 = vdwg.mxu0
    %6156 = vmatpush.msra.mxu0 0.0
    %6157 = vmatpush.msra.mxu0 0.0
    %6158 = vmatpush.msra.mxu0 0.0
    %6159 = vmatpush.msra.mxu0 0.0
    %6160 = vmatpush.msra.mxu0 0.0
    %6161 = vmatpush.msra.mxu0 0.0
    %6162 = vmatpush.msra.mxu0 0.0
    %6163 = vmatpush.msra.mxu0 0.0
    %6164 = vmatpush.msra.mxu0 0.0
    %6165 = vmatpush.msra.mxu0 0.0
    %6166 = vmatpush.msra.mxu0 0.0
    %6167 = vmatpush.msra.mxu0 0.0
    %6168 = vmatpush.msra.mxu0 %v4465
    %6169 = vmatpush.msra.mxu0 %v4337
    %6170 = vmatpush.msra.mxu0 %v4209
    %6171 = vmatpush.msra.mxu0 %v4081
    %6172 = vmatmul.f32.gmra.mxu0 %v4514
    %v6173 = vpop.f32.mrf.mxu0
    %v6174 = vadd.f32 0.0, %v6173
    %6175 = vdwg.mxu0
    %6176 = vmatpush.msra.mxu0 0.0
    %6177 = vmatpush.msra.mxu0 0.0
    %6178 = vmatpush.msra.mxu0 0.0
    %6179 = vmatpush.msra.mxu0 0.0
    %6180 = vmatpush.msra.mxu0 0.0
    %6181 = vmatpush.msra.mxu0 0.0
    %6182 = vmatpush.msra.mxu0 0.0
    %6183 = vmatpush.msra.mxu0 0.0
    %6184 = vmatpush.msra.mxu0 0.0
    %6185 = vmatpush.msra.mxu0 0.0
    %6186 = vmatpush.msra.mxu0 0.0
    %6187 = vmatpush.msra.mxu0 0.0
    %6188 = vmatpush.msra.mxu0 %v4466
    %6189 = vmatpush.msra.mxu0 %v4338
    %6190 = vmatpush.msra.mxu0 %v4210
    %6191 = vmatpush.msra.mxu0 %v4082
    %6192 = vmatmul.f32.gmra.mxu0 %v4514
    %v6193 = vpop.f32.mrf.mxu0
    %v6194 = vadd.f32 0.0, %v6193
    %6195 = vdwg.mxu0
    %6196 = vmatpush.msra.mxu0 0.0
    %6197 = vmatpush.msra.mxu0 0.0
    %6198 = vmatpush.msra.mxu0 0.0
    %6199 = vmatpush.msra.mxu0 0.0
    %6200 = vmatpush.msra.mxu0 0.0
    %6201 = vmatpush.msra.mxu0 0.0
    %6202 = vmatpush.msra.mxu0 0.0
    %6203 = vmatpush.msra.mxu0 0.0
    %6204 = vmatpush.msra.mxu0 0.0
    %6205 = vmatpush.msra.mxu0 0.0
    %6206 = vmatpush.msra.mxu0 0.0
    %6207 = vmatpush.msra.mxu0 0.0
    %6208 = vmatpush.msra.mxu0 %v4467
    %6209 = vmatpush.msra.mxu0 %v4339
    %6210 = vmatpush.msra.mxu0 %v4211
    %6211 = vmatpush.msra.mxu0 %v4083
    %6212 = vmatmul.f32.gmra.mxu0 %v4514
    %v6213 = vpop.f32.mrf.mxu0
    %v6214 = vadd.f32 0.0, %v6213
    %6215 = vdwg.mxu0
    %6216 = vmatpush.msra.mxu0 0.0
    %6217 = vmatpush.msra.mxu0 0.0
    %6218 = vmatpush.msra.mxu0 0.0
    %6219 = vmatpush.msra.mxu0 0.0
    %6220 = vmatpush.msra.mxu0 0.0
    %6221 = vmatpush.msra.mxu0 0.0
    %6222 = vmatpush.msra.mxu0 0.0
    %6223 = vmatpush.msra.mxu0 0.0
    %6224 = vmatpush.msra.mxu0 0.0
    %6225 = vmatpush.msra.mxu0 0.0
    %6226 = vmatpush.msra.mxu0 0.0
    %6227 = vmatpush.msra.mxu0 0.0
    %6228 = vmatpush.msra.mxu0 %v4468
    %6229 = vmatpush.msra.mxu0 %v4340
    %6230 = vmatpush.msra.mxu0 %v4212
    %6231 = vmatpush.msra.mxu0 %v4084
    %6232 = vmatmul.f32.gmra.mxu0 %v4514
    %v6233 = vpop.f32.mrf.mxu0
    %v6234 = vadd.f32 0.0, %v6233
    %6235 = vdwg.mxu0
    %6236 = vmatpush.msra.mxu0 0.0
    %6237 = vmatpush.msra.mxu0 0.0
    %6238 = vmatpush.msra.mxu0 0.0
    %6239 = vmatpush.msra.mxu0 0.0
    %6240 = vmatpush.msra.mxu0 0.0
    %6241 = vmatpush.msra.mxu0 0.0
    %6242 = vmatpush.msra.mxu0 0.0
    %6243 = vmatpush.msra.mxu0 0.0
    %6244 = vmatpush.msra.mxu0 0.0
    %6245 = vmatpush.msra.mxu0 0.0
    %6246 = vmatpush.msra.mxu0 0.0
    %6247 = vmatpush.msra.mxu0 0.0
    %6248 = vmatpush.msra.mxu0 %v4469
    %6249 = vmatpush.msra.mxu0 %v4341
    %6250 = vmatpush.msra.mxu0 %v4213
    %6251 = vmatpush.msra.mxu0 %v4085
    %6252 = vmatmul.f32.gmra.mxu0 %v4514
    %v6253 = vpop.f32.mrf.mxu0
    %v6254 = vadd.f32 0.0, %v6253
    %6255 = vdwg.mxu0
    %6256 = vmatpush.msra.mxu0 0.0
    %6257 = vmatpush.msra.mxu0 0.0
    %6258 = vmatpush.msra.mxu0 0.0
    %6259 = vmatpush.msra.mxu0 0.0
    %6260 = vmatpush.msra.mxu0 0.0
    %6261 = vmatpush.msra.mxu0 0.0
    %6262 = vmatpush.msra.mxu0 0.0
    %6263 = vmatpush.msra.mxu0 0.0
    %6264 = vmatpush.msra.mxu0 0.0
    %6265 = vmatpush.msra.mxu0 0.0
    %6266 = vmatpush.msra.mxu0 0.0
    %6267 = vmatpush.msra.mxu0 0.0
    %6268 = vmatpush.msra.mxu0 %v4470
    %6269 = vmatpush.msra.mxu0 %v4342
    %6270 = vmatpush.msra.mxu0 %v4214
    %6271 = vmatpush.msra.mxu0 %v4086
    %6272 = vmatmul.f32.gmra.mxu0 %v4514
    %v6273 = vpop.f32.mrf.mxu0
    %v6274 = vadd.f32 0.0, %v6273
    %6275 = vdwg.mxu0
    %6276 = vmatpush.msra.mxu0 0.0
    %6277 = vmatpush.msra.mxu0 0.0
    %6278 = vmatpush.msra.mxu0 0.0
    %6279 = vmatpush.msra.mxu0 0.0
    %6280 = vmatpush.msra.mxu0 0.0
    %6281 = vmatpush.msra.mxu0 0.0
    %6282 = vmatpush.msra.mxu0 0.0
    %6283 = vmatpush.msra.mxu0 0.0
    %6284 = vmatpush.msra.mxu0 0.0
    %6285 = vmatpush.msra.mxu0 0.0
    %6286 = vmatpush.msra.mxu0 0.0
    %6287 = vmatpush.msra.mxu0 0.0
    %6288 = vmatpush.msra.mxu0 %v4471
    %6289 = vmatpush.msra.mxu0 %v4343
    %6290 = vmatpush.msra.mxu0 %v4215
    %6291 = vmatpush.msra.mxu0 %v4087
    %6292 = vmatmul.f32.gmra.mxu0 %v4514
    %v6293 = vpop.f32.mrf.mxu0
    %v6294 = vadd.f32 0.0, %v6293
    %6295 = vdwg.mxu0
    %6296 = vmatpush.msra.mxu0 0.0
    %6297 = vmatpush.msra.mxu0 0.0
    %6298 = vmatpush.msra.mxu0 0.0
    %6299 = vmatpush.msra.mxu0 0.0
    %6300 = vmatpush.msra.mxu0 0.0
    %6301 = vmatpush.msra.mxu0 0.0
    %6302 = vmatpush.msra.mxu0 0.0
    %6303 = vmatpush.msra.mxu0 0.0
    %6304 = vmatpush.msra.mxu0 0.0
    %6305 = vmatpush.msra.mxu0 0.0
    %6306 = vmatpush.msra.mxu0 0.0
    %6307 = vmatpush.msra.mxu0 0.0
    %6308 = vmatpush.msra.mxu0 %v4472
    %6309 = vmatpush.msra.mxu0 %v4344
    %6310 = vmatpush.msra.mxu0 %v4216
    %6311 = vmatpush.msra.mxu0 %v4088
    %6312 = vmatmul.f32.gmra.mxu0 %v4514
    %v6313 = vpop.f32.mrf.mxu0
    %v6314 = vadd.f32 0.0, %v6313
    %6315 = vdwg.mxu0
    %6316 = vmatpush.msra.mxu0 0.0
    %6317 = vmatpush.msra.mxu0 0.0
    %6318 = vmatpush.msra.mxu0 0.0
    %6319 = vmatpush.msra.mxu0 0.0
    %6320 = vmatpush.msra.mxu0 0.0
    %6321 = vmatpush.msra.mxu0 0.0
    %6322 = vmatpush.msra.mxu0 0.0
    %6323 = vmatpush.msra.mxu0 0.0
    %6324 = vmatpush.msra.mxu0 0.0
    %6325 = vmatpush.msra.mxu0 0.0
    %6326 = vmatpush.msra.mxu0 0.0
    %6327 = vmatpush.msra.mxu0 0.0
    %6328 = vmatpush.msra.mxu0 %v4473
    %6329 = vmatpush.msra.mxu0 %v4345
    %6330 = vmatpush.msra.mxu0 %v4217
    %6331 = vmatpush.msra.mxu0 %v4089
    %6332 = vmatmul.f32.gmra.mxu0 %v4514
    %v6333 = vpop.f32.mrf.mxu0
    %v6334 = vadd.f32 0.0, %v6333
    %6335 = vdwg.mxu0
    %6336 = vmatpush.msra.mxu0 0.0
    %6337 = vmatpush.msra.mxu0 0.0
    %6338 = vmatpush.msra.mxu0 0.0
    %6339 = vmatpush.msra.mxu0 0.0
    %6340 = vmatpush.msra.mxu0 0.0
    %6341 = vmatpush.msra.mxu0 0.0
    %6342 = vmatpush.msra.mxu0 0.0
    %6343 = vmatpush.msra.mxu0 0.0
    %6344 = vmatpush.msra.mxu0 0.0
    %6345 = vmatpush.msra.mxu0 0.0
    %6346 = vmatpush.msra.mxu0 0.0
    %6347 = vmatpush.msra.mxu0 0.0
    %6348 = vmatpush.msra.mxu0 %v4474
    %6349 = vmatpush.msra.mxu0 %v4346
    %6350 = vmatpush.msra.mxu0 %v4218
    %6351 = vmatpush.msra.mxu0 %v4090
    %6352 = vmatmul.f32.gmra.mxu0 %v4514
    %v6353 = vpop.f32.mrf.mxu0
    %v6354 = vadd.f32 0.0, %v6353
    %6355 = vdwg.mxu0
    %6356 = vmatpush.msra.mxu0 0.0
    %6357 = vmatpush.msra.mxu0 0.0
    %6358 = vmatpush.msra.mxu0 0.0
    %6359 = vmatpush.msra.mxu0 0.0
    %6360 = vmatpush.msra.mxu0 0.0
    %6361 = vmatpush.msra.mxu0 0.0
    %6362 = vmatpush.msra.mxu0 0.0
    %6363 = vmatpush.msra.mxu0 0.0
    %6364 = vmatpush.msra.mxu0 0.0
    %6365 = vmatpush.msra.mxu0 0.0
    %6366 = vmatpush.msra.mxu0 0.0
    %6367 = vmatpush.msra.mxu0 0.0
    %6368 = vmatpush.msra.mxu0 %v4475
    %6369 = vmatpush.msra.mxu0 %v4347
    %6370 = vmatpush.msra.mxu0 %v4219
    %6371 = vmatpush.msra.mxu0 %v4091
    %6372 = vmatmul.f32.gmra.mxu0 %v4514
    %v6373 = vpop.f32.mrf.mxu0
    %v6374 = vadd.f32 0.0, %v6373
    %6375 = vdwg.mxu0
    %6376 = vmatpush.msra.mxu0 0.0
    %6377 = vmatpush.msra.mxu0 0.0
    %6378 = vmatpush.msra.mxu0 0.0
    %6379 = vmatpush.msra.mxu0 0.0
    %6380 = vmatpush.msra.mxu0 0.0
    %6381 = vmatpush.msra.mxu0 0.0
    %6382 = vmatpush.msra.mxu0 0.0
    %6383 = vmatpush.msra.mxu0 0.0
    %6384 = vmatpush.msra.mxu0 0.0
    %6385 = vmatpush.msra.mxu0 0.0
    %6386 = vmatpush.msra.mxu0 0.0
    %6387 = vmatpush.msra.mxu0 0.0
    %6388 = vmatpush.msra.mxu0 %v4476
    %6389 = vmatpush.msra.mxu0 %v4348
    %6390 = vmatpush.msra.mxu0 %v4220
    %6391 = vmatpush.msra.mxu0 %v4092
    %6392 = vmatmul.f32.gmra.mxu0 %v4514
    %v6393 = vpop.f32.mrf.mxu0
    %v6394 = vadd.f32 0.0, %v6393
    %6395 = vdwg.mxu0
    %6396 = vmatpush.msra.mxu0 0.0
    %6397 = vmatpush.msra.mxu0 0.0
    %6398 = vmatpush.msra.mxu0 0.0
    %6399 = vmatpush.msra.mxu0 0.0
    %6400 = vmatpush.msra.mxu0 0.0
    %6401 = vmatpush.msra.mxu0 0.0
    %6402 = vmatpush.msra.mxu0 0.0
    %6403 = vmatpush.msra.mxu0 0.0
    %6404 = vmatpush.msra.mxu0 0.0
    %6405 = vmatpush.msra.mxu0 0.0
    %6406 = vmatpush.msra.mxu0 0.0
    %6407 = vmatpush.msra.mxu0 0.0
    %6408 = vmatpush.msra.mxu0 %v4477
    %6409 = vmatpush.msra.mxu0 %v4349
    %6410 = vmatpush.msra.mxu0 %v4221
    %6411 = vmatpush.msra.mxu0 %v4093
    %6412 = vmatmul.f32.gmra.mxu0 %v4514
    %v6413 = vpop.f32.mrf.mxu0
    %v6414 = vadd.f32 0.0, %v6413
    %6415 = vdwg.mxu0
    %6416 = vmatpush.msra.mxu0 0.0
    %6417 = vmatpush.msra.mxu0 0.0
    %6418 = vmatpush.msra.mxu0 0.0
    %6419 = vmatpush.msra.mxu0 0.0
    %6420 = vmatpush.msra.mxu0 0.0
    %6421 = vmatpush.msra.mxu0 0.0
    %6422 = vmatpush.msra.mxu0 0.0
    %6423 = vmatpush.msra.mxu0 0.0
    %6424 = vmatpush.msra.mxu0 0.0
    %6425 = vmatpush.msra.mxu0 0.0
    %6426 = vmatpush.msra.mxu0 0.0
    %6427 = vmatpush.msra.mxu0 0.0
    %6428 = vmatpush.msra.mxu0 %v4478
    %6429 = vmatpush.msra.mxu0 %v4350
    %6430 = vmatpush.msra.mxu0 %v4222
    %6431 = vmatpush.msra.mxu0 %v4094
    %6432 = vmatmul.f32.gmra.mxu0 %v4514
    %v6433 = vpop.f32.mrf.mxu0
    %v6434 = vadd.f32 0.0, %v6433
    %6435 = vdwg.mxu0
    %6436 = vmatpush.msra.mxu0 0.0
    %6437 = vmatpush.msra.mxu0 0.0
    %6438 = vmatpush.msra.mxu0 0.0
    %6439 = vmatpush.msra.mxu0 0.0
    %6440 = vmatpush.msra.mxu0 0.0
    %6441 = vmatpush.msra.mxu0 0.0
    %6442 = vmatpush.msra.mxu0 0.0
    %6443 = vmatpush.msra.mxu0 0.0
    %6444 = vmatpush.msra.mxu0 0.0
    %6445 = vmatpush.msra.mxu0 0.0
    %6446 = vmatpush.msra.mxu0 0.0
    %6447 = vmatpush.msra.mxu0 0.0
    %6448 = vmatpush.msra.mxu0 %v4479
    %6449 = vmatpush.msra.mxu0 %v4351
    %6450 = vmatpush.msra.mxu0 %v4223
    %6451 = vmatpush.msra.mxu0 %v4095
    %6452 = vmatmul.f32.gmra.mxu0 %v4514
    %v6453 = vpop.f32.mrf.mxu0
    %v6454 = vadd.f32 0.0, %v6453
    %6455 = vdwg.mxu0
    %6456 = vmatpush.msra.mxu0 0.0
    %6457 = vmatpush.msra.mxu0 0.0
    %6458 = vmatpush.msra.mxu0 0.0
    %6459 = vmatpush.msra.mxu0 0.0
    %6460 = vmatpush.msra.mxu0 0.0
    %6461 = vmatpush.msra.mxu0 0.0
    %6462 = vmatpush.msra.mxu0 0.0
    %6463 = vmatpush.msra.mxu0 0.0
    %6464 = vmatpush.msra.mxu0 0.0
    %6465 = vmatpush.msra.mxu0 0.0
    %6466 = vmatpush.msra.mxu0 0.0
    %6467 = vmatpush.msra.mxu0 0.0
    %6468 = vmatpush.msra.mxu0 %v4480
    %6469 = vmatpush.msra.mxu0 %v4352
    %6470 = vmatpush.msra.mxu0 %v4224
    %6471 = vmatpush.msra.mxu0 %v4096
    %6472 = vmatmul.f32.gmra.mxu0 %v4514
    %v6473 = vpop.f32.mrf.mxu0
    %v6474 = vadd.f32 0.0, %v6473
    %6475 = vdwg.mxu0
    %6476 = vmatpush.msra.mxu0 0.0
    %6477 = vmatpush.msra.mxu0 0.0
    %6478 = vmatpush.msra.mxu0 0.0
    %6479 = vmatpush.msra.mxu0 0.0
    %6480 = vmatpush.msra.mxu0 0.0
    %6481 = vmatpush.msra.mxu0 0.0
    %6482 = vmatpush.msra.mxu0 0.0
    %6483 = vmatpush.msra.mxu0 0.0
    %6484 = vmatpush.msra.mxu0 0.0
    %6485 = vmatpush.msra.mxu0 0.0
    %6486 = vmatpush.msra.mxu0 0.0
    %6487 = vmatpush.msra.mxu0 0.0
    %6488 = vmatpush.msra.mxu0 %v4481
    %6489 = vmatpush.msra.mxu0 %v4353
    %6490 = vmatpush.msra.mxu0 %v4225
    %6491 = vmatpush.msra.mxu0 %v4097
    %6492 = vmatmul.f32.gmra.mxu0 %v4514
    %v6493 = vpop.f32.mrf.mxu0
    %v6494 = vadd.f32 0.0, %v6493
    %6495 = vdwg.mxu0
    %6496 = vmatpush.msra.mxu0 0.0
    %6497 = vmatpush.msra.mxu0 0.0
    %6498 = vmatpush.msra.mxu0 0.0
    %6499 = vmatpush.msra.mxu0 0.0
    %6500 = vmatpush.msra.mxu0 0.0
    %6501 = vmatpush.msra.mxu0 0.0
    %6502 = vmatpush.msra.mxu0 0.0
    %6503 = vmatpush.msra.mxu0 0.0
    %6504 = vmatpush.msra.mxu0 0.0
    %6505 = vmatpush.msra.mxu0 0.0
    %6506 = vmatpush.msra.mxu0 0.0
    %6507 = vmatpush.msra.mxu0 0.0
    %6508 = vmatpush.msra.mxu0 %v4482
    %6509 = vmatpush.msra.mxu0 %v4354
    %6510 = vmatpush.msra.mxu0 %v4226
    %6511 = vmatpush.msra.mxu0 %v4098
    %6512 = vmatmul.f32.gmra.mxu0 %v4514
    %v6513 = vpop.f32.mrf.mxu0
    %v6514 = vadd.f32 0.0, %v6513
    %6515 = vdwg.mxu0
    %6516 = vmatpush.msra.mxu0 0.0
    %6517 = vmatpush.msra.mxu0 0.0
    %6518 = vmatpush.msra.mxu0 0.0
    %6519 = vmatpush.msra.mxu0 0.0
    %6520 = vmatpush.msra.mxu0 0.0
    %6521 = vmatpush.msra.mxu0 0.0
    %6522 = vmatpush.msra.mxu0 0.0
    %6523 = vmatpush.msra.mxu0 0.0
    %6524 = vmatpush.msra.mxu0 0.0
    %6525 = vmatpush.msra.mxu0 0.0
    %6526 = vmatpush.msra.mxu0 0.0
    %6527 = vmatpush.msra.mxu0 0.0
    %6528 = vmatpush.msra.mxu0 %v4483
    %6529 = vmatpush.msra.mxu0 %v4355
    %6530 = vmatpush.msra.mxu0 %v4227
    %6531 = vmatpush.msra.mxu0 %v4099
    %6532 = vmatmul.f32.gmra.mxu0 %v4514
    %v6533 = vpop.f32.mrf.mxu0
    %v6534 = vadd.f32 0.0, %v6533
    %6535 = vdwg.mxu0
    %6536 = vmatpush.msra.mxu0 0.0
    %6537 = vmatpush.msra.mxu0 0.0
    %6538 = vmatpush.msra.mxu0 0.0
    %6539 = vmatpush.msra.mxu0 0.0
    %6540 = vmatpush.msra.mxu0 0.0
    %6541 = vmatpush.msra.mxu0 0.0
    %6542 = vmatpush.msra.mxu0 0.0
    %6543 = vmatpush.msra.mxu0 0.0
    %6544 = vmatpush.msra.mxu0 0.0
    %6545 = vmatpush.msra.mxu0 0.0
    %6546 = vmatpush.msra.mxu0 0.0
    %6547 = vmatpush.msra.mxu0 0.0
    %6548 = vmatpush.msra.mxu0 %v4484
    %6549 = vmatpush.msra.mxu0 %v4356
    %6550 = vmatpush.msra.mxu0 %v4228
    %6551 = vmatpush.msra.mxu0 %v4100
    %6552 = vmatmul.f32.gmra.mxu0 %v4514
    %v6553 = vpop.f32.mrf.mxu0
    %v6554 = vadd.f32 0.0, %v6553
    %6555 = vdwg.mxu0
    %6556 = vmatpush.msra.mxu0 0.0
    %6557 = vmatpush.msra.mxu0 0.0
    %6558 = vmatpush.msra.mxu0 0.0
    %6559 = vmatpush.msra.mxu0 0.0
    %6560 = vmatpush.msra.mxu0 0.0
    %6561 = vmatpush.msra.mxu0 0.0
    %6562 = vmatpush.msra.mxu0 0.0
    %6563 = vmatpush.msra.mxu0 0.0
    %6564 = vmatpush.msra.mxu0 0.0
    %6565 = vmatpush.msra.mxu0 0.0
    %6566 = vmatpush.msra.mxu0 0.0
    %6567 = vmatpush.msra.mxu0 0.0
    %6568 = vmatpush.msra.mxu0 %v4485
    %6569 = vmatpush.msra.mxu0 %v4357
    %6570 = vmatpush.msra.mxu0 %v4229
    %6571 = vmatpush.msra.mxu0 %v4101
    %6572 = vmatmul.f32.gmra.mxu0 %v4514
    %v6573 = vpop.f32.mrf.mxu0
    %v6574 = vadd.f32 0.0, %v6573
    %6575 = vdwg.mxu0
    %6576 = vmatpush.msra.mxu0 0.0
    %6577 = vmatpush.msra.mxu0 0.0
    %6578 = vmatpush.msra.mxu0 0.0
    %6579 = vmatpush.msra.mxu0 0.0
    %6580 = vmatpush.msra.mxu0 0.0
    %6581 = vmatpush.msra.mxu0 0.0
    %6582 = vmatpush.msra.mxu0 0.0
    %6583 = vmatpush.msra.mxu0 0.0
    %6584 = vmatpush.msra.mxu0 0.0
    %6585 = vmatpush.msra.mxu0 0.0
    %6586 = vmatpush.msra.mxu0 0.0
    %6587 = vmatpush.msra.mxu0 0.0
    %6588 = vmatpush.msra.mxu0 %v4486
    %6589 = vmatpush.msra.mxu0 %v4358
    %6590 = vmatpush.msra.mxu0 %v4230
    %6591 = vmatpush.msra.mxu0 %v4102
    %6592 = vmatmul.f32.gmra.mxu0 %v4514
    %v6593 = vpop.f32.mrf.mxu0
    %v6594 = vadd.f32 0.0, %v6593
    %6595 = vdwg.mxu0
    %6596 = vmatpush.msra.mxu0 0.0
    %6597 = vmatpush.msra.mxu0 0.0
    %6598 = vmatpush.msra.mxu0 0.0
    %6599 = vmatpush.msra.mxu0 0.0
    %6600 = vmatpush.msra.mxu0 0.0
    %6601 = vmatpush.msra.mxu0 0.0
    %6602 = vmatpush.msra.mxu0 0.0
    %6603 = vmatpush.msra.mxu0 0.0
    %6604 = vmatpush.msra.mxu0 0.0
    %6605 = vmatpush.msra.mxu0 0.0
    %6606 = vmatpush.msra.mxu0 0.0
    %6607 = vmatpush.msra.mxu0 0.0
    %6608 = vmatpush.msra.mxu0 %v4487
    %6609 = vmatpush.msra.mxu0 %v4359
    %6610 = vmatpush.msra.mxu0 %v4231
    %6611 = vmatpush.msra.mxu0 %v4103
    %6612 = vmatmul.f32.gmra.mxu0 %v4514
    %v6613 = vpop.f32.mrf.mxu0
    %v6614 = vadd.f32 0.0, %v6613
    %6615 = vdwg.mxu0
    %6616 = vmatpush.msra.mxu0 0.0
    %6617 = vmatpush.msra.mxu0 0.0
    %6618 = vmatpush.msra.mxu0 0.0
    %6619 = vmatpush.msra.mxu0 0.0
    %6620 = vmatpush.msra.mxu0 0.0
    %6621 = vmatpush.msra.mxu0 0.0
    %6622 = vmatpush.msra.mxu0 0.0
    %6623 = vmatpush.msra.mxu0 0.0
    %6624 = vmatpush.msra.mxu0 0.0
    %6625 = vmatpush.msra.mxu0 0.0
    %6626 = vmatpush.msra.mxu0 0.0
    %6627 = vmatpush.msra.mxu0 0.0
    %6628 = vmatpush.msra.mxu0 %v4488
    %6629 = vmatpush.msra.mxu0 %v4360
    %6630 = vmatpush.msra.mxu0 %v4232
    %6631 = vmatpush.msra.mxu0 %v4104
    %6632 = vmatmul.f32.gmra.mxu0 %v4514
    %v6633 = vpop.f32.mrf.mxu0
    %v6634 = vadd.f32 0.0, %v6633
    %6635 = vdwg.mxu0
    %6636 = vmatpush.msra.mxu0 0.0
    %6637 = vmatpush.msra.mxu0 0.0
    %6638 = vmatpush.msra.mxu0 0.0
    %6639 = vmatpush.msra.mxu0 0.0
    %6640 = vmatpush.msra.mxu0 0.0
    %6641 = vmatpush.msra.mxu0 0.0
    %6642 = vmatpush.msra.mxu0 0.0
    %6643 = vmatpush.msra.mxu0 0.0
    %6644 = vmatpush.msra.mxu0 0.0
    %6645 = vmatpush.msra.mxu0 0.0
    %6646 = vmatpush.msra.mxu0 0.0
    %6647 = vmatpush.msra.mxu0 0.0
    %6648 = vmatpush.msra.mxu0 %v4489
    %6649 = vmatpush.msra.mxu0 %v4361
    %6650 = vmatpush.msra.mxu0 %v4233
    %6651 = vmatpush.msra.mxu0 %v4105
    %6652 = vmatmul.f32.gmra.mxu0 %v4514
    %v6653 = vpop.f32.mrf.mxu0
    %v6654 = vadd.f32 0.0, %v6653
    %6655 = vdwg.mxu0
    %6656 = vmatpush.msra.mxu0 0.0
    %6657 = vmatpush.msra.mxu0 0.0
    %6658 = vmatpush.msra.mxu0 0.0
    %6659 = vmatpush.msra.mxu0 0.0
    %6660 = vmatpush.msra.mxu0 0.0
    %6661 = vmatpush.msra.mxu0 0.0
    %6662 = vmatpush.msra.mxu0 0.0
    %6663 = vmatpush.msra.mxu0 0.0
    %6664 = vmatpush.msra.mxu0 0.0
    %6665 = vmatpush.msra.mxu0 0.0
    %6666 = vmatpush.msra.mxu0 0.0
    %6667 = vmatpush.msra.mxu0 0.0
    %6668 = vmatpush.msra.mxu0 %v4490
    %6669 = vmatpush.msra.mxu0 %v4362
    %6670 = vmatpush.msra.mxu0 %v4234
    %6671 = vmatpush.msra.mxu0 %v4106
    %6672 = vmatmul.f32.gmra.mxu0 %v4514
    %v6673 = vpop.f32.mrf.mxu0
    %v6674 = vadd.f32 0.0, %v6673
    %6675 = vdwg.mxu0
    %6676 = vmatpush.msra.mxu0 0.0
    %6677 = vmatpush.msra.mxu0 0.0
    %6678 = vmatpush.msra.mxu0 0.0
    %6679 = vmatpush.msra.mxu0 0.0
    %6680 = vmatpush.msra.mxu0 0.0
    %6681 = vmatpush.msra.mxu0 0.0
    %6682 = vmatpush.msra.mxu0 0.0
    %6683 = vmatpush.msra.mxu0 0.0
    %6684 = vmatpush.msra.mxu0 0.0
    %6685 = vmatpush.msra.mxu0 0.0
    %6686 = vmatpush.msra.mxu0 0.0
    %6687 = vmatpush.msra.mxu0 0.0
    %6688 = vmatpush.msra.mxu0 %v4491
    %6689 = vmatpush.msra.mxu0 %v4363
    %6690 = vmatpush.msra.mxu0 %v4235
    %6691 = vmatpush.msra.mxu0 %v4107
    %6692 = vmatmul.f32.gmra.mxu0 %v4514
    %v6693 = vpop.f32.mrf.mxu0
    %v6694 = vadd.f32 0.0, %v6693
    %6695 = vdwg.mxu0
    %6696 = vmatpush.msra.mxu0 0.0
    %6697 = vmatpush.msra.mxu0 0.0
    %6698 = vmatpush.msra.mxu0 0.0
    %6699 = vmatpush.msra.mxu0 0.0
    %6700 = vmatpush.msra.mxu0 0.0
    %6701 = vmatpush.msra.mxu0 0.0
    %6702 = vmatpush.msra.mxu0 0.0
    %6703 = vmatpush.msra.mxu0 0.0
    %6704 = vmatpush.msra.mxu0 0.0
    %6705 = vmatpush.msra.mxu0 0.0
    %6706 = vmatpush.msra.mxu0 0.0
    %6707 = vmatpush.msra.mxu0 0.0
    %6708 = vmatpush.msra.mxu0 %v4492
    %6709 = vmatpush.msra.mxu0 %v4364
    %6710 = vmatpush.msra.mxu0 %v4236
    %6711 = vmatpush.msra.mxu0 %v4108
    %6712 = vmatmul.f32.gmra.mxu0 %v4514
    %v6713 = vpop.f32.mrf.mxu0
    %v6714 = vadd.f32 0.0, %v6713
    %6715 = vdwg.mxu0
    %6716 = vmatpush.msra.mxu0 0.0
    %6717 = vmatpush.msra.mxu0 0.0
    %6718 = vmatpush.msra.mxu0 0.0
    %6719 = vmatpush.msra.mxu0 0.0
    %6720 = vmatpush.msra.mxu0 0.0
    %6721 = vmatpush.msra.mxu0 0.0
    %6722 = vmatpush.msra.mxu0 0.0
    %6723 = vmatpush.msra.mxu0 0.0
    %6724 = vmatpush.msra.mxu0 0.0
    %6725 = vmatpush.msra.mxu0 0.0
    %6726 = vmatpush.msra.mxu0 0.0
    %6727 = vmatpush.msra.mxu0 0.0
    %6728 = vmatpush.msra.mxu0 %v4493
    %6729 = vmatpush.msra.mxu0 %v4365
    %6730 = vmatpush.msra.mxu0 %v4237
    %6731 = vmatpush.msra.mxu0 %v4109
    %6732 = vmatmul.f32.gmra.mxu0 %v4514
    %v6733 = vpop.f32.mrf.mxu0
    %v6734 = vadd.f32 0.0, %v6733
    %6735 = vdwg.mxu0
    %6736 = vmatpush.msra.mxu0 0.0
    %6737 = vmatpush.msra.mxu0 0.0
    %6738 = vmatpush.msra.mxu0 0.0
    %6739 = vmatpush.msra.mxu0 0.0
    %6740 = vmatpush.msra.mxu0 0.0
    %6741 = vmatpush.msra.mxu0 0.0
    %6742 = vmatpush.msra.mxu0 0.0
    %6743 = vmatpush.msra.mxu0 0.0
    %6744 = vmatpush.msra.mxu0 0.0
    %6745 = vmatpush.msra.mxu0 0.0
    %6746 = vmatpush.msra.mxu0 0.0
    %6747 = vmatpush.msra.mxu0 0.0
    %6748 = vmatpush.msra.mxu0 %v4494
    %6749 = vmatpush.msra.mxu0 %v4366
    %6750 = vmatpush.msra.mxu0 %v4238
    %6751 = vmatpush.msra.mxu0 %v4110
    %6752 = vmatmul.f32.gmra.mxu0 %v4514
    %v6753 = vpop.f32.mrf.mxu0
    %v6754 = vadd.f32 0.0, %v6753
    %6755 = vdwg.mxu0
    %6756 = vmatpush.msra.mxu0 0.0
    %6757 = vmatpush.msra.mxu0 0.0
    %6758 = vmatpush.msra.mxu0 0.0
    %6759 = vmatpush.msra.mxu0 0.0
    %6760 = vmatpush.msra.mxu0 0.0
    %6761 = vmatpush.msra.mxu0 0.0
    %6762 = vmatpush.msra.mxu0 0.0
    %6763 = vmatpush.msra.mxu0 0.0
    %6764 = vmatpush.msra.mxu0 0.0
    %6765 = vmatpush.msra.mxu0 0.0
    %6766 = vmatpush.msra.mxu0 0.0
    %6767 = vmatpush.msra.mxu0 0.0
    %6768 = vmatpush.msra.mxu0 %v4495
    %6769 = vmatpush.msra.mxu0 %v4367
    %6770 = vmatpush.msra.mxu0 %v4239
    %6771 = vmatpush.msra.mxu0 %v4111
    %6772 = vmatmul.f32.gmra.mxu0 %v4514
    %v6773 = vpop.f32.mrf.mxu0
    %v6774 = vadd.f32 0.0, %v6773
    %6775 = vdwg.mxu0
    %6776 = vmatpush.msra.mxu0 0.0
    %6777 = vmatpush.msra.mxu0 0.0
    %6778 = vmatpush.msra.mxu0 0.0
    %6779 = vmatpush.msra.mxu0 0.0
    %6780 = vmatpush.msra.mxu0 0.0
    %6781 = vmatpush.msra.mxu0 0.0
    %6782 = vmatpush.msra.mxu0 0.0
    %6783 = vmatpush.msra.mxu0 0.0
    %6784 = vmatpush.msra.mxu0 0.0
    %6785 = vmatpush.msra.mxu0 0.0
    %6786 = vmatpush.msra.mxu0 0.0
    %6787 = vmatpush.msra.mxu0 0.0
    %6788 = vmatpush.msra.mxu0 %v4496
    %6789 = vmatpush.msra.mxu0 %v4368
    %6790 = vmatpush.msra.mxu0 %v4240
    %6791 = vmatpush.msra.mxu0 %v4112
    %6792 = vmatmul.f32.gmra.mxu0 %v4514
    %v6793 = vpop.f32.mrf.mxu0
    %v6794 = vadd.f32 0.0, %v6793
    %6795 = vdwg.mxu0
    %6796 = vmatpush.msra.mxu0 0.0
    %6797 = vmatpush.msra.mxu0 0.0
    %6798 = vmatpush.msra.mxu0 0.0
    %6799 = vmatpush.msra.mxu0 0.0
    %6800 = vmatpush.msra.mxu0 0.0
    %6801 = vmatpush.msra.mxu0 0.0
    %6802 = vmatpush.msra.mxu0 0.0
    %6803 = vmatpush.msra.mxu0 0.0
    %6804 = vmatpush.msra.mxu0 0.0
    %6805 = vmatpush.msra.mxu0 0.0
    %6806 = vmatpush.msra.mxu0 0.0
    %6807 = vmatpush.msra.mxu0 0.0
    %6808 = vmatpush.msra.mxu0 %v4497
    %6809 = vmatpush.msra.mxu0 %v4369
    %6810 = vmatpush.msra.mxu0 %v4241
    %6811 = vmatpush.msra.mxu0 %v4113
    %6812 = vmatmul.f32.gmra.mxu0 %v4514
    %v6813 = vpop.f32.mrf.mxu0
    %v6814 = vadd.f32 0.0, %v6813
    %6815 = vdwg.mxu0
    %6816 = vmatpush.msra.mxu0 0.0
    %6817 = vmatpush.msra.mxu0 0.0
    %6818 = vmatpush.msra.mxu0 0.0
    %6819 = vmatpush.msra.mxu0 0.0
    %6820 = vmatpush.msra.mxu0 0.0
    %6821 = vmatpush.msra.mxu0 0.0
    %6822 = vmatpush.msra.mxu0 0.0
    %6823 = vmatpush.msra.mxu0 0.0
    %6824 = vmatpush.msra.mxu0 0.0
    %6825 = vmatpush.msra.mxu0 0.0
    %6826 = vmatpush.msra.mxu0 0.0
    %6827 = vmatpush.msra.mxu0 0.0
    %6828 = vmatpush.msra.mxu0 %v4498
    %6829 = vmatpush.msra.mxu0 %v4370
    %6830 = vmatpush.msra.mxu0 %v4242
    %6831 = vmatpush.msra.mxu0 %v4114
    %6832 = vmatmul.f32.gmra.mxu0 %v4514
    %v6833 = vpop.f32.mrf.mxu0
    %v6834 = vadd.f32 0.0, %v6833
    %6835 = vdwg.mxu0
    %6836 = vmatpush.msra.mxu0 0.0
    %6837 = vmatpush.msra.mxu0 0.0
    %6838 = vmatpush.msra.mxu0 0.0
    %6839 = vmatpush.msra.mxu0 0.0
    %6840 = vmatpush.msra.mxu0 0.0
    %6841 = vmatpush.msra.mxu0 0.0
    %6842 = vmatpush.msra.mxu0 0.0
    %6843 = vmatpush.msra.mxu0 0.0
    %6844 = vmatpush.msra.mxu0 0.0
    %6845 = vmatpush.msra.mxu0 0.0
    %6846 = vmatpush.msra.mxu0 0.0
    %6847 = vmatpush.msra.mxu0 0.0
    %6848 = vmatpush.msra.mxu0 %v4499
    %6849 = vmatpush.msra.mxu0 %v4371
    %6850 = vmatpush.msra.mxu0 %v4243
    %6851 = vmatpush.msra.mxu0 %v4115
    %6852 = vmatmul.f32.gmra.mxu0 %v4514
    %v6853 = vpop.f32.mrf.mxu0
    %v6854 = vadd.f32 0.0, %v6853
    %6855 = vdwg.mxu0
    %6856 = vmatpush.msra.mxu0 0.0
    %6857 = vmatpush.msra.mxu0 0.0
    %6858 = vmatpush.msra.mxu0 0.0
    %6859 = vmatpush.msra.mxu0 0.0
    %6860 = vmatpush.msra.mxu0 0.0
    %6861 = vmatpush.msra.mxu0 0.0
    %6862 = vmatpush.msra.mxu0 0.0
    %6863 = vmatpush.msra.mxu0 0.0
    %6864 = vmatpush.msra.mxu0 0.0
    %6865 = vmatpush.msra.mxu0 0.0
    %6866 = vmatpush.msra.mxu0 0.0
    %6867 = vmatpush.msra.mxu0 0.0
    %6868 = vmatpush.msra.mxu0 %v4500
    %6869 = vmatpush.msra.mxu0 %v4372
    %6870 = vmatpush.msra.mxu0 %v4244
    %6871 = vmatpush.msra.mxu0 %v4116
    %6872 = vmatmul.f32.gmra.mxu0 %v4514
    %v6873 = vpop.f32.mrf.mxu0
    %v6874 = vadd.f32 0.0, %v6873
    %6875 = vdwg.mxu0
    %6876 = vmatpush.msra.mxu0 0.0
    %6877 = vmatpush.msra.mxu0 0.0
    %6878 = vmatpush.msra.mxu0 0.0
    %6879 = vmatpush.msra.mxu0 0.0
    %6880 = vmatpush.msra.mxu0 0.0
    %6881 = vmatpush.msra.mxu0 0.0
    %6882 = vmatpush.msra.mxu0 0.0
    %6883 = vmatpush.msra.mxu0 0.0
    %6884 = vmatpush.msra.mxu0 0.0
    %6885 = vmatpush.msra.mxu0 0.0
    %6886 = vmatpush.msra.mxu0 0.0
    %6887 = vmatpush.msra.mxu0 0.0
    %6888 = vmatpush.msra.mxu0 %v4501
    %6889 = vmatpush.msra.mxu0 %v4373
    %6890 = vmatpush.msra.mxu0 %v4245
    %6891 = vmatpush.msra.mxu0 %v4117
    %6892 = vmatmul.f32.gmra.mxu0 %v4514
    %v6893 = vpop.f32.mrf.mxu0
    %v6894 = vadd.f32 0.0, %v6893
    %6895 = vdwg.mxu0
    %6896 = vmatpush.msra.mxu0 0.0
    %6897 = vmatpush.msra.mxu0 0.0
    %6898 = vmatpush.msra.mxu0 0.0
    %6899 = vmatpush.msra.mxu0 0.0
    %6900 = vmatpush.msra.mxu0 0.0
    %6901 = vmatpush.msra.mxu0 0.0
    %6902 = vmatpush.msra.mxu0 0.0
    %6903 = vmatpush.msra.mxu0 0.0
    %6904 = vmatpush.msra.mxu0 0.0
    %6905 = vmatpush.msra.mxu0 0.0
    %6906 = vmatpush.msra.mxu0 0.0
    %6907 = vmatpush.msra.mxu0 0.0
    %6908 = vmatpush.msra.mxu0 %v4502
    %6909 = vmatpush.msra.mxu0 %v4374
    %6910 = vmatpush.msra.mxu0 %v4246
    %6911 = vmatpush.msra.mxu0 %v4118
    %6912 = vmatmul.f32.gmra.mxu0 %v4514
    %v6913 = vpop.f32.mrf.mxu0
    %v6914 = vadd.f32 0.0, %v6913
    %6915 = vdwg.mxu0
    %6916 = vmatpush.msra.mxu0 0.0
    %6917 = vmatpush.msra.mxu0 0.0
    %6918 = vmatpush.msra.mxu0 0.0
    %6919 = vmatpush.msra.mxu0 0.0
    %6920 = vmatpush.msra.mxu0 0.0
    %6921 = vmatpush.msra.mxu0 0.0
    %6922 = vmatpush.msra.mxu0 0.0
    %6923 = vmatpush.msra.mxu0 0.0
    %6924 = vmatpush.msra.mxu0 0.0
    %6925 = vmatpush.msra.mxu0 0.0
    %6926 = vmatpush.msra.mxu0 0.0
    %6927 = vmatpush.msra.mxu0 0.0
    %6928 = vmatpush.msra.mxu0 %v4503
    %6929 = vmatpush.msra.mxu0 %v4375
    %6930 = vmatpush.msra.mxu0 %v4247
    %6931 = vmatpush.msra.mxu0 %v4119
    %6932 = vmatmul.f32.gmra.mxu0 %v4514
    %v6933 = vpop.f32.mrf.mxu0
    %v6934 = vadd.f32 0.0, %v6933
    %6935 = vdwg.mxu0
    %6936 = vmatpush.msra.mxu0 0.0
    %6937 = vmatpush.msra.mxu0 0.0
    %6938 = vmatpush.msra.mxu0 0.0
    %6939 = vmatpush.msra.mxu0 0.0
    %6940 = vmatpush.msra.mxu0 0.0
    %6941 = vmatpush.msra.mxu0 0.0
    %6942 = vmatpush.msra.mxu0 0.0
    %6943 = vmatpush.msra.mxu0 0.0
    %6944 = vmatpush.msra.mxu0 0.0
    %6945 = vmatpush.msra.mxu0 0.0
    %6946 = vmatpush.msra.mxu0 0.0
    %6947 = vmatpush.msra.mxu0 0.0
    %6948 = vmatpush.msra.mxu0 %v4504
    %6949 = vmatpush.msra.mxu0 %v4376
    %6950 = vmatpush.msra.mxu0 %v4248
    %6951 = vmatpush.msra.mxu0 %v4120
    %6952 = vmatmul.f32.gmra.mxu0 %v4514
    %v6953 = vpop.f32.mrf.mxu0
    %v6954 = vadd.f32 0.0, %v6953
    %6955 = vdwg.mxu0
    %6956 = vmatpush.msra.mxu0 0.0
    %6957 = vmatpush.msra.mxu0 0.0
    %6958 = vmatpush.msra.mxu0 0.0
    %6959 = vmatpush.msra.mxu0 0.0
    %6960 = vmatpush.msra.mxu0 0.0
    %6961 = vmatpush.msra.mxu0 0.0
    %6962 = vmatpush.msra.mxu0 0.0
    %6963 = vmatpush.msra.mxu0 0.0
    %6964 = vmatpush.msra.mxu0 0.0
    %6965 = vmatpush.msra.mxu0 0.0
    %6966 = vmatpush.msra.mxu0 0.0
    %6967 = vmatpush.msra.mxu0 0.0
    %6968 = vmatpush.msra.mxu0 %v4505
    %6969 = vmatpush.msra.mxu0 %v4377
    %6970 = vmatpush.msra.mxu0 %v4249
    %6971 = vmatpush.msra.mxu0 %v4121
    %6972 = vmatmul.f32.gmra.mxu0 %v4514
    %v6973 = vpop.f32.mrf.mxu0
    %v6974 = vadd.f32 0.0, %v6973
    %6975 = vdwg.mxu0
    %6976 = vmatpush.msra.mxu0 0.0
    %6977 = vmatpush.msra.mxu0 0.0
    %6978 = vmatpush.msra.mxu0 0.0
    %6979 = vmatpush.msra.mxu0 0.0
    %6980 = vmatpush.msra.mxu0 0.0
    %6981 = vmatpush.msra.mxu0 0.0
    %6982 = vmatpush.msra.mxu0 0.0
    %6983 = vmatpush.msra.mxu0 0.0
    %6984 = vmatpush.msra.mxu0 0.0
    %6985 = vmatpush.msra.mxu0 0.0
    %6986 = vmatpush.msra.mxu0 0.0
    %6987 = vmatpush.msra.mxu0 0.0
    %6988 = vmatpush.msra.mxu0 %v4506
    %6989 = vmatpush.msra.mxu0 %v4378
    %6990 = vmatpush.msra.mxu0 %v4250
    %6991 = vmatpush.msra.mxu0 %v4122
    %6992 = vmatmul.f32.gmra.mxu0 %v4514
    %v6993 = vpop.f32.mrf.mxu0
    %v6994 = vadd.f32 0.0, %v6993
    %6995 = vdwg.mxu0
    %6996 = vmatpush.msra.mxu0 0.0
    %6997 = vmatpush.msra.mxu0 0.0
    %6998 = vmatpush.msra.mxu0 0.0
    %6999 = vmatpush.msra.mxu0 0.0
    %7000 = vmatpush.msra.mxu0 0.0
    %7001 = vmatpush.msra.mxu0 0.0
    %7002 = vmatpush.msra.mxu0 0.0
    %7003 = vmatpush.msra.mxu0 0.0
    %7004 = vmatpush.msra.mxu0 0.0
    %7005 = vmatpush.msra.mxu0 0.0
    %7006 = vmatpush.msra.mxu0 0.0
    %7007 = vmatpush.msra.mxu0 0.0
    %7008 = vmatpush.msra.mxu0 %v4507
    %7009 = vmatpush.msra.mxu0 %v4379
    %7010 = vmatpush.msra.mxu0 %v4251
    %7011 = vmatpush.msra.mxu0 %v4123
    %7012 = vmatmul.f32.gmra.mxu0 %v4514
    %v7013 = vpop.f32.mrf.mxu0
    %v7014 = vadd.f32 0.0, %v7013
    %7015 = vdwg.mxu0
    %7016 = vmatpush.msra.mxu0 0.0
    %7017 = vmatpush.msra.mxu0 0.0
    %7018 = vmatpush.msra.mxu0 0.0
    %7019 = vmatpush.msra.mxu0 0.0
    %7020 = vmatpush.msra.mxu0 0.0
    %7021 = vmatpush.msra.mxu0 0.0
    %7022 = vmatpush.msra.mxu0 0.0
    %7023 = vmatpush.msra.mxu0 0.0
    %7024 = vmatpush.msra.mxu0 0.0
    %7025 = vmatpush.msra.mxu0 0.0
    %7026 = vmatpush.msra.mxu0 0.0
    %7027 = vmatpush.msra.mxu0 0.0
    %7028 = vmatpush.msra.mxu0 %v4508
    %7029 = vmatpush.msra.mxu0 %v4380
    %7030 = vmatpush.msra.mxu0 %v4252
    %7031 = vmatpush.msra.mxu0 %v4124
    %7032 = vmatmul.f32.gmra.mxu0 %v4514
    %v7033 = vpop.f32.mrf.mxu0
    %v7034 = vadd.f32 0.0, %v7033
    %7035 = vdwg.mxu0
    %7036 = vmatpush.msra.mxu0 0.0
    %7037 = vmatpush.msra.mxu0 0.0
    %7038 = vmatpush.msra.mxu0 0.0
    %7039 = vmatpush.msra.mxu0 0.0
    %7040 = vmatpush.msra.mxu0 0.0
    %7041 = vmatpush.msra.mxu0 0.0
    %7042 = vmatpush.msra.mxu0 0.0
    %7043 = vmatpush.msra.mxu0 0.0
    %7044 = vmatpush.msra.mxu0 0.0
    %7045 = vmatpush.msra.mxu0 0.0
    %7046 = vmatpush.msra.mxu0 0.0
    %7047 = vmatpush.msra.mxu0 0.0
    %7048 = vmatpush.msra.mxu0 %v4509
    %7049 = vmatpush.msra.mxu0 %v4381
    %7050 = vmatpush.msra.mxu0 %v4253
    %7051 = vmatpush.msra.mxu0 %v4125
    %7052 = vmatmul.f32.gmra.mxu0 %v4514
    %v7053 = vpop.f32.mrf.mxu0
    %v7054 = vadd.f32 0.0, %v7053
    %7055 = vdwg.mxu0
    %7056 = vmatpush.msra.mxu0 0.0
    %7057 = vmatpush.msra.mxu0 0.0
    %7058 = vmatpush.msra.mxu0 0.0
    %7059 = vmatpush.msra.mxu0 0.0
    %7060 = vmatpush.msra.mxu0 0.0
    %7061 = vmatpush.msra.mxu0 0.0
    %7062 = vmatpush.msra.mxu0 0.0
    %7063 = vmatpush.msra.mxu0 0.0
    %7064 = vmatpush.msra.mxu0 0.0
    %7065 = vmatpush.msra.mxu0 0.0
    %7066 = vmatpush.msra.mxu0 0.0
    %7067 = vmatpush.msra.mxu0 0.0
    %7068 = vmatpush.msra.mxu0 %v4510
    %7069 = vmatpush.msra.mxu0 %v4382
    %7070 = vmatpush.msra.mxu0 %v4254
    %7071 = vmatpush.msra.mxu0 %v4126
    %7072 = vmatmul.f32.gmra.mxu0 %v4514
    %v7073 = vpop.f32.mrf.mxu0
    %v7074 = vadd.f32 0.0, %v7073
    %7075 = vdwg.mxu0
    %7076 = vst [vmem:[#allocation5] sm:$0xff] %v4534
    %7077 = vst [vmem:[#allocation5 + $0x8] sm:$0xff] %v4554
    %7078 = vst [vmem:[#allocation5 + $0x10] sm:$0xff] %v4574
    %7079 = vst [vmem:[#allocation5 + $0x18] sm:$0xff] %v4594
    %7080 = vst [vmem:[#allocation5 + $0x20] sm:$0xff] %v4614
    %7081 = vst [vmem:[#allocation5 + $0x28] sm:$0xff] %v4634
    %7082 = vst [vmem:[#allocation5 + $0x30] sm:$0xff] %v4654
    %7083 = vst [vmem:[#allocation5 + $0x38] sm:$0xff] %v4674
    %7084 = vst [vmem:[#allocation5 + $0x40] sm:$0xff] %v4694
    %7085 = vst [vmem:[#allocation5 + $0x48] sm:$0xff] %v4714
    %7086 = vst [vmem:[#allocation5 + $0x50] sm:$0xff] %v4734
    %7087 = vst [vmem:[#allocation5 + $0x58] sm:$0xff] %v4754
    %7088 = vst [vmem:[#allocation5 + $0x60] sm:$0xff] %v4774
    %7089 = vst [vmem:[#allocation5 + $0x68] sm:$0xff] %v4794
    %7090 = vst [vmem:[#allocation5 + $0x70] sm:$0xff] %v4814
    %7091 = vst [vmem:[#allocation5 + $0x78] sm:$0xff] %v4834
    %7092 = vst [vmem:[#allocation5 + $0x80] sm:$0xff] %v4854
    %7093 = vst [vmem:[#allocation5 + $0x88] sm:$0xff] %v4874
    %7094 = vst [vmem:[#allocation5 + $0x90] sm:$0xff] %v4894
    %7095 = vst [vmem:[#allocation5 + $0x98] sm:$0xff] %v4914
    %7096 = vst [vmem:[#allocation5 + $0xa0] sm:$0xff] %v4934
    %7097 = vst [vmem:[#allocation5 + $0xa8] sm:$0xff] %v4954
    %7098 = vst [vmem:[#allocation5 + $0xb0] sm:$0xff] %v4974
    %7099 = vst [vmem:[#allocation5 + $0xb8] sm:$0xff] %v4994
    %7100 = vst [vmem:[#allocation5 + $0xc0] sm:$0xff] %v5014
    %7101 = vst [vmem:[#allocation5 + $0xc8] sm:$0xff] %v5034
    %7102 = vst [vmem:[#allocation5 + $0xd0] sm:$0xff] %v5054
    %7103 = vst [vmem:[#allocation5 + $0xd8] sm:$0xff] %v5074
    %7104 = vst [vmem:[#allocation5 + $0xe0] sm:$0xff] %v5094
    %7105 = vst [vmem:[#allocation5 + $0xe8] sm:$0xff] %v5114
    %7106 = vst [vmem:[#allocation5 + $0xf0] sm:$0xff] %v5134
    %7107 = vst [vmem:[#allocation5 + $0xf8] sm:$0xff] %v5154
    %7108 = vst [vmem:[#allocation5 + $0x100] sm:$0xff] %v5174
    %7109 = vst [vmem:[#allocation5 + $0x108] sm:$0xff] %v5194
    %7110 = vst [vmem:[#allocation5 + $0x110] sm:$0xff] %v5214
    %7111 = vst [vmem:[#allocation5 + $0x118] sm:$0xff] %v5234
    %7112 = vst [vmem:[#allocation5 + $0x120] sm:$0xff] %v5254
    %7113 = vst [vmem:[#allocation5 + $0x128] sm:$0xff] %v5274
    %7114 = vst [vmem:[#allocation5 + $0x130] sm:$0xff] %v5294
    %7115 = vst [vmem:[#allocation5 + $0x138] sm:$0xff] %v5314
    %7116 = vst [vmem:[#allocation5 + $0x140] sm:$0xff] %v5334
    %7117 = vst [vmem:[#allocation5 + $0x148] sm:$0xff] %v5354
    %7118 = vst [vmem:[#allocation5 + $0x150] sm:$0xff] %v5374
    %7119 = vst [vmem:[#allocation5 + $0x158] sm:$0xff] %v5394
    %7120 = vst [vmem:[#allocation5 + $0x160] sm:$0xff] %v5414
    %7121 = vst [vmem:[#allocation5 + $0x168] sm:$0xff] %v5434
    %7122 = vst [vmem:[#allocation5 + $0x170] sm:$0xff] %v5454
    %7123 = vst [vmem:[#allocation5 + $0x178] sm:$0xff] %v5474
    %7124 = vst [vmem:[#allocation5 + $0x180] sm:$0xff] %v5494
    %7125 = vst [vmem:[#allocation5 + $0x188] sm:$0xff] %v5514
    %7126 = vst [vmem:[#allocation5 + $0x190] sm:$0xff] %v5534
    %7127 = vst [vmem:[#allocation5 + $0x198] sm:$0xff] %v5554
    %7128 = vst [vmem:[#allocation5 + $0x1a0] sm:$0xff] %v5574
    %7129 = vst [vmem:[#allocation5 + $0x1a8] sm:$0xff] %v5594
    %7130 = vst [vmem:[#allocation5 + $0x1b0] sm:$0xff] %v5614
    %7131 = vst [vmem:[#allocation5 + $0x1b8] sm:$0xff] %v5634
    %7132 = vst [vmem:[#allocation5 + $0x1c0] sm:$0xff] %v5654
    %7133 = vst [vmem:[#allocation5 + $0x1c8] sm:$0xff] %v5674
    %7134 = vst [vmem:[#allocation5 + $0x1d0] sm:$0xff] %v5694
    %7135 = vst [vmem:[#allocation5 + $0x1d8] sm:$0xff] %v5714
    %7136 = vst [vmem:[#allocation5 + $0x1e0] sm:$0xff] %v5734
    %7137 = vst [vmem:[#allocation5 + $0x1e8] sm:$0xff] %v5754
    %7138 = vst [vmem:[#allocation5 + $0x1f0] sm:$0xff] %v5774
    %7139 = vst [vmem:[#allocation5 + $0x1f8] sm:$0xff] %v5794
    %7140 = vst [vmem:[#allocation5 + $0x200] sm:$0xff] %v5814
    %7141 = vst [vmem:[#allocation5 + $0x208] sm:$0xff] %v5834
    %7142 = vst [vmem:[#allocation5 + $0x210] sm:$0xff] %v5854
    %7143 = vst [vmem:[#allocation5 + $0x218] sm:$0xff] %v5874
    %7144 = vst [vmem:[#allocation5 + $0x220] sm:$0xff] %v5894
    %7145 = vst [vmem:[#allocation5 + $0x228] sm:$0xff] %v5914
    %7146 = vst [vmem:[#allocation5 + $0x230] sm:$0xff] %v5934
    %7147 = vst [vmem:[#allocation5 + $0x238] sm:$0xff] %v5954
    %7148 = vst [vmem:[#allocation5 + $0x240] sm:$0xff] %v5974
    %7149 = vst [vmem:[#allocation5 + $0x248] sm:$0xff] %v5994
    %7150 = vst [vmem:[#allocation5 + $0x250] sm:$0xff] %v6014
    %7151 = vst [vmem:[#allocation5 + $0x258] sm:$0xff] %v6034
    %7152 = vst [vmem:[#allocation5 + $0x260] sm:$0xff] %v6054
    %7153 = vst [vmem:[#allocation5 + $0x268] sm:$0xff] %v6074
    %7154 = vst [vmem:[#allocation5 + $0x270] sm:$0xff] %v6094
    %7155 = vst [vmem:[#allocation5 + $0x278] sm:$0xff] %v6114
    %7156 = vst [vmem:[#allocation5 + $0x280] sm:$0xff] %v6134
    %7157 = vst [vmem:[#allocation5 + $0x288] sm:$0xff] %v6154
    %7158 = vst [vmem:[#allocation5 + $0x290] sm:$0xff] %v6174
    %7159 = vst [vmem:[#allocation5 + $0x298] sm:$0xff] %v6194
    %7160 = vst [vmem:[#allocation5 + $0x2a0] sm:$0xff] %v6214
    %7161 = vst [vmem:[#allocation5 + $0x2a8] sm:$0xff] %v6234
    %7162 = vst [vmem:[#allocation5 + $0x2b0] sm:$0xff] %v6254
    %7163 = vst [vmem:[#allocation5 + $0x2b8] sm:$0xff] %v6274
    %7164 = vst [vmem:[#allocation5 + $0x2c0] sm:$0xff] %v6294
    %7165 = vst [vmem:[#allocation5 + $0x2c8] sm:$0xff] %v6314
    %7166 = vst [vmem:[#allocation5 + $0x2d0] sm:$0xff] %v6334
    %7167 = vst [vmem:[#allocation5 + $0x2d8] sm:$0xff] %v6354
    %7168 = vst [vmem:[#allocation5 + $0x2e0] sm:$0xff] %v6374
    %7169 = vst [vmem:[#allocation5 + $0x2e8] sm:$0xff] %v6394
    %7170 = vst [vmem:[#allocation5 + $0x2f0] sm:$0xff] %v6414
    %7171 = vst [vmem:[#allocation5 + $0x2f8] sm:$0xff] %v6434
    %7172 = vst [vmem:[#allocation5 + $0x300] sm:$0xff] %v6454
    %7173 = vst [vmem:[#allocation5 + $0x308] sm:$0xff] %v6474
    %7174 = vst [vmem:[#allocation5 + $0x310] sm:$0xff] %v6494
    %7175 = vst [vmem:[#allocation5 + $0x318] sm:$0xff] %v6514
    %7176 = vst [vmem:[#allocation5 + $0x320] sm:$0xff] %v6534
    %7177 = vst [vmem:[#allocation5 + $0x328] sm:$0xff] %v6554
    %7178 = vst [vmem:[#allocation5 + $0x330] sm:$0xff] %v6574
    %7179 = vst [vmem:[#allocation5 + $0x338] sm:$0xff] %v6594
    %7180 = vst [vmem:[#allocation5 + $0x340] sm:$0xff] %v6614
    %7181 = vst [vmem:[#allocation5 + $0x348] sm:$0xff] %v6634
    %7182 = vst [vmem:[#allocation5 + $0x350] sm:$0xff] %v6654
    %7183 = vst [vmem:[#allocation5 + $0x358] sm:$0xff] %v6674
    %7184 = vst [vmem:[#allocation5 + $0x360] sm:$0xff] %v6694
    %7185 = vst [vmem:[#allocation5 + $0x368] sm:$0xff] %v6714
    %7186 = vst [vmem:[#allocation5 + $0x370] sm:$0xff] %v6734
    %7187 = vst [vmem:[#allocation5 + $0x378] sm:$0xff] %v6754
    %7188 = vst [vmem:[#allocation5 + $0x380] sm:$0xff] %v6774
    %7189 = vst [vmem:[#allocation5 + $0x388] sm:$0xff] %v6794
    %7190 = vst [vmem:[#allocation5 + $0x390] sm:$0xff] %v6814
    %7191 = vst [vmem:[#allocation5 + $0x398] sm:$0xff] %v6834
    %7192 = vst [vmem:[#allocation5 + $0x3a0] sm:$0xff] %v6854
    %7193 = vst [vmem:[#allocation5 + $0x3a8] sm:$0xff] %v6874
    %7194 = vst [vmem:[#allocation5 + $0x3b0] sm:$0xff] %v6894
    %7195 = vst [vmem:[#allocation5 + $0x3b8] sm:$0xff] %v6914
    %7196 = vst [vmem:[#allocation5 + $0x3c0] sm:$0xff] %v6934
    %7197 = vst [vmem:[#allocation5 + $0x3c8] sm:$0xff] %v6954
    %7198 = vst [vmem:[#allocation5 + $0x3d0] sm:$0xff] %v6974
    %7199 = vst [vmem:[#allocation5 + $0x3d8] sm:$0xff] %v6994
    %7200 = vst [vmem:[#allocation5 + $0x3e0] sm:$0xff] %v7014
    %7201 = vst [vmem:[#allocation5 + $0x3e8] sm:$0xff] %v7034
    %7202 = vst [vmem:[#allocation5 + $0x3f0] sm:$0xff] %v7054
    %7203 = vst [vmem:[#allocation5 + $0x3f8] sm:$0xff] %v7074
    // Predicated region
    $region10: #{tpu_custom_call.1} parent=1 // pred_check
      _
    $region11: #{tpu_custom_call.1} parent=1 // pred_check_branch
      %7205 = sbr.rel (0) target = $region13
    $region12: #{tpu_custom_call.1} parent=1 // pred_region
      %7207 = vsyncadd [#allocation4], 0
      %s7209 = sshll.u32 [#allocation5], 4
      %s7210 = int_to_ptr.vmem [resolvable:$true] %s7209
      %s7211 = sshll.u32 %s1, 4
      %s7212 = int_to_ptr.hbm [resolvable:$true] %s7211
      %7214 = dma.vmem_to_hbm [thread:$0]  %s7210, 16384, %s7212, [#allocation4]
    $region13: #{tpu_custom_call.1} parent=1 // pred_fallthru
      _
    // Predicated region
    $region14: #{tpu_custom_call.1} parent=1 // pred_check
      _
    $region15: #{tpu_custom_call.1} parent=1 // pred_check_branch
      %7216 = sbr.rel (0) target = $region17
    $region16: #{tpu_custom_call.1} parent=1 // pred_region
      %7218 = dma.done [#allocation4], 16384
    $region17: #{tpu_custom_call.1} parent=1 // pred_fallthru
      _
    %7219 = vsyncpa [#allocation3], 1
    %7220 = vsyncpa [#allocation4], 1

</llo_original>
